<compile_context>
chip_gen: v7x
topology: tpu7x:2x2x1
jax: 0.10.0
libtpu: 0.0.40
codegen_flags: <defaults>
</compile_context>

<pallas_src>
import functools

import numpy as np
import jax
import jax.numpy as jnp
from jax import lax
from jax.experimental import pallas as pl
from jax.experimental.pallas import tpu as pltpu

EPS = 1e-5


def _round_up(x: int, m: int) -> int:
    return (x + m - 1) // m * m


# ----------------------------------------------------------------------------
# In-kernel 3x3 stride-1 convolution over a row-flattened, zero-haloed buffer.
# ----------------------------------------------------------------------------
def _conv3x3_from_rows(src_ref, w_ref, keep_l, keep_r, *, n, W, pad):
    """src_ref: (n + 2*pad, C) — rows [pad, pad+n) hold the image (m = r*W + c),
    rows outside are zero.  w_ref: (9, C, Co) per-tap (Cin, Cout) weights.
    keep_l/keep_r: (n, 1) bool masks (c > 0 / c < W-1).  Returns f32 (n, Co)."""
    acc = None
    t = 0
    for dh in (-1, 0, 1):
        for dw in (-1, 0, 1):
            off = pad + dh * W + dw                      # python int offset
            tap = src_ref[off:off + n, :]                # static VMEM slice
            if dw == -1:
                tap = jnp.where(keep_l, tap, jnp.zeros_like(tap))
            elif dw == 1:
                tap = jnp.where(keep_r, tap, jnp.zeros_like(tap))
            contrib = jnp.dot(tap, w_ref[t], preferred_element_type=jnp.float32)
            acc = contrib if acc is None else acc + contrib
            t += 1
    return acc


# ----------------------------------------------------------------------------
# Fused residual-block kernels (one grid step == one image).
# ----------------------------------------------------------------------------
def _resblock_id_kernel(x_ref, w1_ref, b1_ref, w2_ref, b2_ref, col_ref,
                        out_ref, h_ref, *, n, W, pad):
    """Stride-1 block, identity shortcut: relu(bn2(conv2(relu(bn1(conv1 x)))) + x)."""
    col = col_ref[...]                                   # (n, 1) int32
    keep_l = col > 0
    keep_r = col < (W - 1)

    # conv1 + bn1 + relu (taps formed in-kernel)
    acc1 = _conv3x3_from_rows(x_ref, w1_ref, keep_l, keep_r, n=n, W=W, pad=pad)
    h = jnp.maximum(acc1 + b1_ref[...], 0.0).astype(jnp.bfloat16)

    # stage h in a zero-haloed VMEM scratch (never touches HBM)
    h_ref[...] = jnp.zeros_like(h_ref)
    h_ref[pad:pad + n, :] = h

    # conv2 + bn2 + identity residual (VPU add) + relu
    acc2 = _conv3x3_from_rows(h_ref, w2_ref, keep_l, keep_r, n=n, W=W, pad=pad)
    res = x_ref[pad:pad + n, :].astype(jnp.float32)
    y = jnp.maximum(acc2 + b2_ref[...] + res, 0.0)

    out_ref[...] = jnp.zeros_like(out_ref)               # keep halo rows zero
    out_ref[pad:pad + n, :] = y.astype(out_ref.dtype)


def _resblock_proj_kernel(p1_ref, w1_ref, b1_ref, w2_ref, b2_ref, xs_ref, wr_ref,
                          col_ref, out_ref, h_ref, *, n, W, pad):
    """Strided first block: conv1 via pre-formed patches, conv2 taps in-kernel,
    1x1-conv+BN projection shortcut fused as an extra MXU matmul."""
    col = col_ref[...]
    keep_l = col > 0
    keep_r = col < (W - 1)

    # conv1 (strided) + bn1 + relu
    acc1 = jnp.dot(p1_ref[...], w1_ref[...], preferred_element_type=jnp.float32)
    h = jnp.maximum(acc1 + b1_ref[...], 0.0).astype(jnp.bfloat16)

    h_ref[...] = jnp.zeros_like(h_ref)
    h_ref[pad:pad + n, :] = h

    # conv2 + bn2 + projection shortcut + relu
    acc2 = _conv3x3_from_rows(h_ref, w2_ref, keep_l, keep_r, n=n, W=W, pad=pad)
    acc2 = acc2 + jnp.dot(xs_ref[...], wr_ref[...],
                          preferred_element_type=jnp.float32)
    y = jnp.maximum(acc2 + b2_ref[...], 0.0)

    out_ref[...] = jnp.zeros_like(out_ref)
    out_ref[pad:pad + n, :] = y.astype(out_ref.dtype)


# ----------------------------------------------------------------------------
# pallas_call wrappers
# ----------------------------------------------------------------------------
def _run_block(x_pad, q, col, *, W, pad):
    """One fully fused stride-1 residual block.  x_pad: (N, n + 2*pad, Cp) bf16."""
    N, rows, Cp = x_pad.shape
    n = rows - 2 * pad
    kernel = functools.partial(_resblock_id_kernel, n=n, W=W, pad=pad)
    return pl.pallas_call(
        kernel,
        out_shape=jax.ShapeDtypeStruct((N, rows, Cp), jnp.bfloat16),
        grid_spec=pltpu.PrefetchScalarGridSpec(
            num_scalar_prefetch=0,
            grid=(N,),
            in_specs=[
                pl.BlockSpec((None, rows, Cp), lambda b: (b, 0, 0)),   # x (per image)
                pl.BlockSpec((9, Cp, Cp), lambda b: (0, 0, 0)),        # w1 taps
                pl.BlockSpec((1, Cp), lambda b: (0, 0)),               # b1
                pl.BlockSpec((9, Cp, Cp), lambda b: (0, 0, 0)),        # w2 taps
                pl.BlockSpec((1, Cp), lambda b: (0, 0)),               # b2
                pl.BlockSpec((n, 1), lambda b: (0, 0)),                # col index
            ],
            out_specs=pl.BlockSpec((None, rows, Cp), lambda b: (b, 0, 0)),
            scratch_shapes=[pltpu.VMEM((rows, Cp), jnp.bfloat16)],     # h halo buf
        ),
        compiler_params=pltpu.CompilerParams(dimension_semantics=("parallel",)),
    )(x_pad, q["w1"], q["b1"], q["w2"], q["b2"], col)


def _run_first_block(p1, xs, q, col, *, W, pad):
    """Fused strided first block.  p1: (N, n, K1p) patches, xs: (N, n, Cinp)."""
    N, n, K1p = p1.shape
    Cinp = xs.shape[-1]
    Cp = q["w2"].shape[-1]
    rows = n + 2 * pad
    kernel = functools.partial(_resblock_proj_kernel, n=n, W=W, pad=pad)
    return pl.pallas_call(
        kernel,
        out_shape=jax.ShapeDtypeStruct((N, rows, Cp), jnp.bfloat16),
        grid_spec=pltpu.PrefetchScalarGridSpec(
            num_scalar_prefetch=0,
            grid=(N,),
            in_specs=[
                pl.BlockSpec((None, n, K1p), lambda b: (b, 0, 0)),     # conv1 patches
                pl.BlockSpec((K1p, Cp), lambda b: (0, 0)),             # w1 (flat)
                pl.BlockSpec((1, Cp), lambda b: (0, 0)),               # b1
                pl.BlockSpec((9, Cp, Cp), lambda b: (0, 0, 0)),        # w2 taps
                pl.BlockSpec((1, Cp), lambda b: (0, 0)),               # b2 (+shortcut)
                pl.BlockSpec((None, n, Cinp), lambda b: (b, 0, 0)),    # strided x
                pl.BlockSpec((Cinp, Cp), lambda b: (0, 0)),            # shortcut 1x1
                pl.BlockSpec((n, 1), lambda b: (0, 0)),                # col index
            ],
            out_specs=pl.BlockSpec((None, rows, Cp), lambda b: (b, 0, 0)),
            scratch_shapes=[pltpu.VMEM((rows, Cp), jnp.bfloat16)],
        ),
        compiler_params=pltpu.CompilerParams(dimension_semantics=("parallel",)),
    )(p1, q["w1"], q["b1"], q["w2"], q["b2"], xs, q["wr"], col)


# ----------------------------------------------------------------------------
# Host-side glue: im2col for the strided conv, parameter preparation, forward.
# ----------------------------------------------------------------------------
def _im2col_3x3_batched(x_nhwc, stride, k_pad):
    """(N,H,W,C) bf16, padding=1, 3x3, given stride -> (N, Ho*Wo, k_pad)."""
    N, H, W, C = x_nhwc.shape
    Ho = (H + 2 - 3) // stride + 1
    Wo = (W + 2 - 3) // stride + 1
    xp = jnp.pad(x_nhwc, ((0, 0), (1, 1), (1, 1), (0, 0)))
    taps = [xp[:, kh:kh + (Ho - 1) * stride + 1:stride,
                  kw:kw + (Wo - 1) * stride + 1:stride, :]
            for kh in range(3) for kw in range(3)]
    patches = jnp.concatenate(taps, axis=-1).reshape(N, Ho * Wo, 9 * C)
    patches = jnp.pad(patches, ((0, 0), (0, 0), (0, k_pad - 9 * C)))
    return patches, Ho, Wo


def _fold_bn(gamma, beta, mean, var, conv_bias):
    scale = gamma / jnp.sqrt(var + EPS)
    bias = (conv_bias - mean) * scale + beta
    return scale, bias


def _pad2(a, r, c):
    return jnp.pad(a, ((0, r - a.shape[0]), (0, c - a.shape[1])))


def _taps_matrix(w_oihw, scale, Cp):
    """(Cout, Cin, 3, 3) -> (9, Cp, Cp) bf16 per-tap (Cin, Cout) matrices, BN-scaled."""
    Cout, Cin = w_oihw.shape[0], w_oihw.shape[1]
    wt = jnp.transpose(w_oihw, (2, 3, 1, 0)).reshape(9, Cin, Cout) * scale[None, None, :]
    wt = jnp.pad(wt, ((0, 0), (0, Cp - Cin), (0, Cp - Cout)))
    return wt.astype(jnp.bfloat16)


def prepare_block_group_params(params, in_feats, out_feats, first_stride):
    """Hoisted, one-time weight prep: BN folding, transpose, channel padding, bf16."""
    Cout = out_feats
    Cp = _round_up(Cout, 128)
    prepared = []
    for i, p in enumerate(params):
        stride = first_stride if i == 0 else 1
        cin = in_feats if i == 0 else out_feats
        q = {}
        s1, b1 = _fold_bn(*p["bn1"], p["b1"])
        s2, b2 = _fold_bn(*p["bn2"], p["b2"])
        if stride > 1:
            K1 = 9 * cin
            K1p = _round_up(K1, 128)
            w1m = jnp.transpose(p["w1"], (2, 3, 1, 0)).reshape(K1, Cout) * s1[None, :]
            q["w1"] = _pad2(w1m, K1p, Cp).astype(jnp.bfloat16)
            sr, br = _fold_bn(*p["bnr"], p["br"])
            wrm = jnp.transpose(p["wr"][:, :, 0, 0]) * sr[None, :]      # (cin, Cout)
            Cinp = _round_up(cin, 128)
            q["wr"] = _pad2(wrm, Cinp, Cp).astype(jnp.bfloat16)
            b2 = b2 + br
        else:
            assert cin == Cout, "identity shortcut requires in_feats == out_feats"
            q["w1"] = _taps_matrix(p["w1"], s1, Cp)
        q["w2"] = _taps_matrix(p["w2"], s2, Cp)
        q["b1"] = jnp.pad(b1, (0, Cp - Cout)).astype(jnp.float32).reshape(1, Cp)
        q["b2"] = jnp.pad(b2, (0, Cp - Cout)).astype(jnp.float32).reshape(1, Cp)
        prepared.append(q)
    return prepared


def block_group_forward(x_nchw, prepared, *, first_stride, out_feats):
    N, Cin, H, W = x_nchw.shape
    Cp = _round_up(out_feats, 128)
    x = jnp.transpose(x_nchw, (0, 2, 3, 1)).astype(jnp.bfloat16)       # NCHW -> NHWC

    q0 = prepared[0]
    if first_stride > 1:
        K1p = q0["w1"].shape[0]
        p1, Ho, Wo = _im2col_3x3_batched(x, first_stride, K1p)
        Cinp = q0["wr"].shape[0]
        xs = x[:, 0:(Ho - 1) * first_stride + 1:first_stride,
                  0:(Wo - 1) * first_stride + 1:first_stride, :]
        xs = jnp.pad(xs.reshape(N, Ho * Wo, Cin), ((0, 0), (0, 0), (0, Cinp - Cin)))
        pad = _round_up(Wo + 1, 8)
        col = jnp.asarray(np.arange(Ho * Wo, dtype=np.int32).reshape(-1, 1) % Wo)
        y = _run_first_block(p1, xs, q0, col, W=Wo, pad=pad)
    else:
        assert Cin == out_feats, "identity shortcut requires in_feats == out_feats"
        Ho, Wo = H, W
        pad = _round_up(Wo + 1, 8)
        col = jnp.asarray(np.arange(Ho * Wo, dtype=np.int32).reshape(-1, 1) % Wo)
        xf = jnp.pad(x.reshape(N, H * W, Cin), ((0, 0), (pad, pad), (0, Cp - Cin)))
        y = _run_block(xf, q0, col, W=Wo, pad=pad)

    for q in prepared[1:]:
        y = _run_block(y, q, col, W=Wo, pad=pad)

    # Dropout(0.1): identity in eval mode.
    n = Ho * Wo
    out = y[:, pad:pad + n, :out_feats].reshape(N, Ho, Wo, out_feats)
    return jnp.transpose(out, (0, 3, 1, 2)).astype(jnp.float32)        # NHWC -> NCHW


# ----------------------------------------------------------------------------
# Deterministic parameter construction (matches nn.Conv2d / nn.BatchNorm2d shapes)
# ----------------------------------------------------------------------------
def _make_conv(key, cin, cout, ksize):
    k1, k2 = jax.random.split(key)
    fan_in = cin * ksize * ksize
    bound = 1.0 / np.sqrt(fan_in)
    w = jax.random.uniform(k1, (cout, cin, ksize, ksize),
                           minval=-bound, maxval=bound, dtype=jnp.float32)
    b = jax.random.uniform(k2, (cout,), minval=-bound, maxval=bound,
                           dtype=jnp.float32)
    return w, b


def _make_bn(key, c):
    k1, k2, k3, k4 = jax.random.split(key, 4)
    gamma = 1.0 + 0.1 * jax.random.normal(k1, (c,), dtype=jnp.float32)
    beta = 0.1 * jax.random.normal(k2, (c,), dtype=jnp.float32)
    mean = 0.1 * jax.random.normal(k3, (c,), dtype=jnp.float32)
    var = 1.0 + 0.1 * jax.random.uniform(k4, (c,), dtype=jnp.float32)
    return gamma, beta, mean, var


def make_block_group_params(key, n_blocks, in_feats, out_feats, first_stride):
    params = []
    for i in range(n_blocks):
        cin = in_feats if i == 0 else out_feats
        stride = first_stride if i == 0 else 1
        key, k1, k2, k3, k4, k5, k6 = jax.random.split(key, 7)
        p = {}
        p["w1"], p["b1"] = _make_conv(k1, cin, out_feats, 3)
        p["bn1"] = _make_bn(k2, out_feats)
        p["w2"], p["b2"] = _make_conv(k3, out_feats, out_feats, 3)
        p["bn2"] = _make_bn(k4, out_feats)
        if stride > 1:
            p["wr"], p["br"] = _make_conv(k5, cin, out_feats, 1)
            p["bnr"] = _make_bn(k6, out_feats)
        params.append(p)
    return params


# ----------------------------------------------------------------------------
# Pure-JAX f32 reference (eval-mode BatchNorm, identity dropout)
# ----------------------------------------------------------------------------
def _reference_forward(x, raw_params, first_stride):
    def conv(x, w, b, stride, pad):
        y = lax.conv_general_dilated(x, w, (stride, stride),
                                     [(pad, pad), (pad, pad)],
                                     dimension_numbers=("NCHW", "OIHW", "NCHW"))
        return y + b.reshape(1, -1, 1, 1)

    def bn(x, gamma, beta, mean, var):
        return ((x - mean.reshape(1, -1, 1, 1))
                / jnp.sqrt(var.reshape(1, -1, 1, 1) + EPS)
                * gamma.reshape(1, -1, 1, 1) + beta.reshape(1, -1, 1, 1))

    for i, p in enumerate(raw_params):
        stride = first_stride if i == 0 else 1
        left = jax.nn.relu(bn(conv(x, p["w1"], p["b1"], stride, 1), *p["bn1"]))
        left = bn(conv(left, p["w2"], p["b2"], 1, 1), *p["bn2"])
        if stride > 1:
            right = bn(conv(x, p["wr"], p["br"], stride, 0), *p["bnr"])
        else:
            right = x
        x = jax.nn.relu(left + right)
    return x


# ----------------------------------------------------------------------------
if __name__ == "__main__":
    key = jax.random.PRNGKey(0)
    kx, kp = jax.random.split(key)

    # BlockGroup(n_blocks=2, in_feats=4, out_feats=8, first_stride=2)
    n_blocks, in_feats, out_feats, first_stride = 2, 4, 8, 2
    x = jax.random.normal(kx, (2, in_feats, 16, 16), dtype=jnp.float32)  # NCHW

    raw_params = make_block_group_params(kp, n_blocks, in_feats, out_feats,
                                         first_stride)
    prepared = prepare_block_group_params(raw_params, in_feats, out_feats,
                                          first_stride)

    fwd = jax.jit(functools.partial(block_group_forward,
                                    first_stride=first_stride,
                                    out_feats=out_feats))
    out = jax.block_until_ready(fwd(x, prepared))

    assert out.shape == (2, out_feats, 16 // first_stride, 16 // first_stride)
    assert bool(jnp.all(jnp.isfinite(out)))

    # Loose correctness check vs. an f32 reference (kernel uses bf16 operands).
    ref = jax.block_until_ready(_reference_forward(x, raw_params, first_stride))
    err = float(jnp.max(jnp.abs(out - ref)))
    scale = float(jnp.max(jnp.abs(ref))) + 1e-6
    assert err <= 0.1 + 0.1 * scale, f"mismatch: max abs err {err}, ref scale {scale}"

    print("KERNEL_OK")
</pallas_src>

<mosaic_0001>
module attributes {stable_mosaic.version = 11 : i64} {
  func.func @_resblock_id_kernel(%arg0: i32, %arg1: memref<1x96x128xbf16, #tpu.memory_space<vmem>>, %arg2: memref<9x128x128xbf16, #tpu.memory_space<vmem>>, %arg3: memref<1x128xf32, #tpu.memory_space<vmem>>, %arg4: memref<9x128x128xbf16, #tpu.memory_space<vmem>>, %arg5: memref<1x128xf32, #tpu.memory_space<vmem>>, %arg6: memref<64x1xi32, #tpu.memory_space<vmem>>, %arg7: memref<1x96x128xbf16, #tpu.memory_space<vmem>>, %arg8: memref<96x128xbf16, #tpu.memory_space<vmem>>) attributes {dimension_semantics = [#tpu.dimension_semantics<parallel>], iteration_bounds = array<i64: 2>, scalar_prefetch = 0 : i64, scratch_operands = 1 : i64, tpu.core_type = #tpu.core_type<tc>, window_params = [{transform_indices = @transform_0, window_bounds = array<i64: 1, 96, 128>}, {pipeline_mode = #tpu.pipeline_mode<synchronous>, transform_indices = @transform_1, window_bounds = array<i64: 9, 128, 128>}, {pipeline_mode = #tpu.pipeline_mode<synchronous>, transform_indices = @transform_2, window_bounds = array<i64: 1, 128>}, {pipeline_mode = #tpu.pipeline_mode<synchronous>, transform_indices = @transform_3, window_bounds = array<i64: 9, 128, 128>}, {pipeline_mode = #tpu.pipeline_mode<synchronous>, transform_indices = @transform_4, window_bounds = array<i64: 1, 128>}, {pipeline_mode = #tpu.pipeline_mode<synchronous>, transform_indices = @transform_5, window_bounds = array<i64: 64, 1>}, {transform_indices = @transform_6, window_bounds = array<i64: 1, 96, 128>}]} {
    %c0 = arith.constant 0 : index
    %c0_0 = arith.constant 0 : index
    %0 = vector.load %arg6[%c0, %c0_0] : memref<64x1xi32, #tpu.memory_space<vmem>>, vector<64x1xi32>
    %c0_i32 = arith.constant 0 : i32
    %1 = vector.broadcast %c0_i32 : i32 to vector<64x1xi32>
    %2 = arith.cmpi sgt, %0, %1 : vector<64x1xi32>
    %c7_i32 = arith.constant 7 : i32
    %3 = vector.broadcast %c7_i32 : i32 to vector<64x1xi32>
    %4 = arith.cmpi slt, %0, %3 : vector<64x1xi32>
    %c0_1 = arith.constant 0 : index
    %c7 = arith.constant 7 : index
    %c0_2 = arith.constant 0 : index
    %5 = vector.load %arg1[%c0_1, %c7, %c0_2] : memref<1x96x128xbf16, #tpu.memory_space<vmem>>, vector<1x64x128xbf16>
    %6 = vector.shape_cast %5 : vector<1x64x128xbf16> to vector<64x128xbf16>
    %cst = arith.constant 0.000000e+00 : bf16
    %7 = vector.broadcast %cst : bf16 to vector<64x128xbf16>
    %8 = vector.shape_cast %2 : vector<64x1xi1> to vector<64x1xi1>
    %9 = vector.broadcast %8 : vector<64x1xi1> to vector<64x128xi1>
    %10 = arith.select %9, %6, %7 : vector<64x128xi1>, vector<64x128xbf16>
    %c0_3 = arith.constant 0 : index
    %c0_4 = arith.constant 0 : index
    %c0_5 = arith.constant 0 : index
    %11 = vector.load %arg2[%c0_3, %c0_4, %c0_5] : memref<9x128x128xbf16, #tpu.memory_space<vmem>>, vector<1x128x128xbf16>
    %12 = vector.shape_cast %11 : vector<1x128x128xbf16> to vector<128x128xbf16>
    %cst_6 = arith.constant dense<0.000000e+00> : vector<64x128xf32>
    %13 = tpu.matmul %10, %12, %cst_6 {dimension_numbers = #tpu.dot_dimension_numbers<[1], [0], [0], [1], [0, 0, 1, 1], [], []>} : vector<64x128xbf16>, vector<128x128xbf16>, vector<64x128xf32> -> vector<64x128xf32>
    %c0_7 = arith.constant 0 : index
    %c8 = arith.constant 8 : index
    %c0_8 = arith.constant 0 : index
    %14 = vector.load %arg1[%c0_7, %c8, %c0_8] : memref<1x96x128xbf16, #tpu.memory_space<vmem>>, vector<1x64x128xbf16>
    %15 = vector.shape_cast %14 : vector<1x64x128xbf16> to vector<64x128xbf16>
    %c1 = arith.constant 1 : index
    %c0_9 = arith.constant 0 : index
    %c0_10 = arith.constant 0 : index
    %16 = vector.load %arg2[%c1, %c0_9, %c0_10] : memref<9x128x128xbf16, #tpu.memory_space<vmem>>, vector<1x128x128xbf16>
    %17 = vector.shape_cast %16 : vector<1x128x128xbf16> to vector<128x128xbf16>
    %cst_11 = arith.constant dense<0.000000e+00> : vector<64x128xf32>
    %18 = tpu.matmul %15, %17, %cst_11 {dimension_numbers = #tpu.dot_dimension_numbers<[1], [0], [0], [1], [0, 0, 1, 1], [], []>} : vector<64x128xbf16>, vector<128x128xbf16>, vector<64x128xf32> -> vector<64x128xf32>
    %19 = arith.addf %13, %18 : vector<64x128xf32>
    %c0_12 = arith.constant 0 : index
    %c9 = arith.constant 9 : index
    %c0_13 = arith.constant 0 : index
    %20 = vector.load %arg1[%c0_12, %c9, %c0_13] : memref<1x96x128xbf16, #tpu.memory_space<vmem>>, vector<1x64x128xbf16>
    %21 = vector.shape_cast %20 : vector<1x64x128xbf16> to vector<64x128xbf16>
    %cst_14 = arith.constant 0.000000e+00 : bf16
    %22 = vector.broadcast %cst_14 : bf16 to vector<64x128xbf16>
    %23 = vector.shape_cast %4 : vector<64x1xi1> to vector<64x1xi1>
    %24 = vector.broadcast %23 : vector<64x1xi1> to vector<64x128xi1>
    %25 = arith.select %24, %21, %22 : vector<64x128xi1>, vector<64x128xbf16>
    %c2 = arith.constant 2 : index
    %c0_15 = arith.constant 0 : index
    %c0_16 = arith.constant 0 : index
    %26 = vector.load %arg2[%c2, %c0_15, %c0_16] : memref<9x128x128xbf16, #tpu.memory_space<vmem>>, vector<1x128x128xbf16>
    %27 = vector.shape_cast %26 : vector<1x128x128xbf16> to vector<128x128xbf16>
    %cst_17 = arith.constant dense<0.000000e+00> : vector<64x128xf32>
    %28 = tpu.matmul %25, %27, %cst_17 {dimension_numbers = #tpu.dot_dimension_numbers<[1], [0], [0], [1], [0, 0, 1, 1], [], []>} : vector<64x128xbf16>, vector<128x128xbf16>, vector<64x128xf32> -> vector<64x128xf32>
    %29 = arith.addf %19, %28 : vector<64x128xf32>
    %c0_18 = arith.constant 0 : index
    %c15 = arith.constant 15 : index
    %c0_19 = arith.constant 0 : index
    %30 = vector.load %arg1[%c0_18, %c15, %c0_19] : memref<1x96x128xbf16, #tpu.memory_space<vmem>>, vector<1x64x128xbf16>
    %31 = vector.shape_cast %30 : vector<1x64x128xbf16> to vector<64x128xbf16>
    %cst_20 = arith.constant 0.000000e+00 : bf16
    %32 = vector.broadcast %cst_20 : bf16 to vector<64x128xbf16>
    %33 = vector.shape_cast %2 : vector<64x1xi1> to vector<64x1xi1>
    %34 = vector.broadcast %33 : vector<64x1xi1> to vector<64x128xi1>
    %35 = arith.select %34, %31, %32 : vector<64x128xi1>, vector<64x128xbf16>
    %c3 = arith.constant 3 : index
    %c0_21 = arith.constant 0 : index
    %c0_22 = arith.constant 0 : index
    %36 = vector.load %arg2[%c3, %c0_21, %c0_22] : memref<9x128x128xbf16, #tpu.memory_space<vmem>>, vector<1x128x128xbf16>
    %37 = vector.shape_cast %36 : vector<1x128x128xbf16> to vector<128x128xbf16>
    %cst_23 = arith.constant dense<0.000000e+00> : vector<64x128xf32>
    %38 = tpu.matmul %35, %37, %cst_23 {dimension_numbers = #tpu.dot_dimension_numbers<[1], [0], [0], [1], [0, 0, 1, 1], [], []>} : vector<64x128xbf16>, vector<128x128xbf16>, vector<64x128xf32> -> vector<64x128xf32>
    %39 = arith.addf %29, %38 : vector<64x128xf32>
    %c0_24 = arith.constant 0 : index
    %c16 = arith.constant 16 : index
    %c0_25 = arith.constant 0 : index
    %40 = vector.load %arg1[%c0_24, %c16, %c0_25] : memref<1x96x128xbf16, #tpu.memory_space<vmem>>, vector<1x64x128xbf16>
    %41 = vector.shape_cast %40 : vector<1x64x128xbf16> to vector<64x128xbf16>
    %c4 = arith.constant 4 : index
    %c0_26 = arith.constant 0 : index
    %c0_27 = arith.constant 0 : index
    %42 = vector.load %arg2[%c4, %c0_26, %c0_27] : memref<9x128x128xbf16, #tpu.memory_space<vmem>>, vector<1x128x128xbf16>
    %43 = vector.shape_cast %42 : vector<1x128x128xbf16> to vector<128x128xbf16>
    %cst_28 = arith.constant dense<0.000000e+00> : vector<64x128xf32>
    %44 = tpu.matmul %41, %43, %cst_28 {dimension_numbers = #tpu.dot_dimension_numbers<[1], [0], [0], [1], [0, 0, 1, 1], [], []>} : vector<64x128xbf16>, vector<128x128xbf16>, vector<64x128xf32> -> vector<64x128xf32>
    %45 = arith.addf %39, %44 : vector<64x128xf32>
    %c0_29 = arith.constant 0 : index
    %c17 = arith.constant 17 : index
    %c0_30 = arith.constant 0 : index
    %46 = vector.load %arg1[%c0_29, %c17, %c0_30] : memref<1x96x128xbf16, #tpu.memory_space<vmem>>, vector<1x64x128xbf16>
    %47 = vector.shape_cast %46 : vector<1x64x128xbf16> to vector<64x128xbf16>
    %cst_31 = arith.constant 0.000000e+00 : bf16
    %48 = vector.broadcast %cst_31 : bf16 to vector<64x128xbf16>
    %49 = vector.shape_cast %4 : vector<64x1xi1> to vector<64x1xi1>
    %50 = vector.broadcast %49 : vector<64x1xi1> to vector<64x128xi1>
    %51 = arith.select %50, %47, %48 : vector<64x128xi1>, vector<64x128xbf16>
    %c5 = arith.constant 5 : index
    %c0_32 = arith.constant 0 : index
    %c0_33 = arith.constant 0 : index
    %52 = vector.load %arg2[%c5, %c0_32, %c0_33] : memref<9x128x128xbf16, #tpu.memory_space<vmem>>, vector<1x128x128xbf16>
    %53 = vector.shape_cast %52 : vector<1x128x128xbf16> to vector<128x128xbf16>
    %cst_34 = arith.constant dense<0.000000e+00> : vector<64x128xf32>
    %54 = tpu.matmul %51, %53, %cst_34 {dimension_numbers = #tpu.dot_dimension_numbers<[1], [0], [0], [1], [0, 0, 1, 1], [], []>} : vector<64x128xbf16>, vector<128x128xbf16>, vector<64x128xf32> -> vector<64x128xf32>
    %55 = arith.addf %45, %54 : vector<64x128xf32>
    %c0_35 = arith.constant 0 : index
    %c23 = arith.constant 23 : index
    %c0_36 = arith.constant 0 : index
    %56 = vector.load %arg1[%c0_35, %c23, %c0_36] : memref<1x96x128xbf16, #tpu.memory_space<vmem>>, vector<1x64x128xbf16>
    %57 = vector.shape_cast %56 : vector<1x64x128xbf16> to vector<64x128xbf16>
    %cst_37 = arith.constant 0.000000e+00 : bf16
    %58 = vector.broadcast %cst_37 : bf16 to vector<64x128xbf16>
    %59 = vector.shape_cast %2 : vector<64x1xi1> to vector<64x1xi1>
    %60 = vector.broadcast %59 : vector<64x1xi1> to vector<64x128xi1>
    %61 = arith.select %60, %57, %58 : vector<64x128xi1>, vector<64x128xbf16>
    %c6 = arith.constant 6 : index
    %c0_38 = arith.constant 0 : index
    %c0_39 = arith.constant 0 : index
    %62 = vector.load %arg2[%c6, %c0_38, %c0_39] : memref<9x128x128xbf16, #tpu.memory_space<vmem>>, vector<1x128x128xbf16>
    %63 = vector.shape_cast %62 : vector<1x128x128xbf16> to vector<128x128xbf16>
    %cst_40 = arith.constant dense<0.000000e+00> : vector<64x128xf32>
    %64 = tpu.matmul %61, %63, %cst_40 {dimension_numbers = #tpu.dot_dimension_numbers<[1], [0], [0], [1], [0, 0, 1, 1], [], []>} : vector<64x128xbf16>, vector<128x128xbf16>, vector<64x128xf32> -> vector<64x128xf32>
    %65 = arith.addf %55, %64 : vector<64x128xf32>
    %c0_41 = arith.constant 0 : index
    %c24 = arith.constant 24 : index
    %c0_42 = arith.constant 0 : index
    %66 = vector.load %arg1[%c0_41, %c24, %c0_42] : memref<1x96x128xbf16, #tpu.memory_space<vmem>>, vector<1x64x128xbf16>
    %67 = vector.shape_cast %66 : vector<1x64x128xbf16> to vector<64x128xbf16>
    %c7_43 = arith.constant 7 : index
    %c0_44 = arith.constant 0 : index
    %c0_45 = arith.constant 0 : index
    %68 = vector.load %arg2[%c7_43, %c0_44, %c0_45] : memref<9x128x128xbf16, #tpu.memory_space<vmem>>, vector<1x128x128xbf16>
    %69 = vector.shape_cast %68 : vector<1x128x128xbf16> to vector<128x128xbf16>
    %cst_46 = arith.constant dense<0.000000e+00> : vector<64x128xf32>
    %70 = tpu.matmul %67, %69, %cst_46 {dimension_numbers = #tpu.dot_dimension_numbers<[1], [0], [0], [1], [0, 0, 1, 1], [], []>} : vector<64x128xbf16>, vector<128x128xbf16>, vector<64x128xf32> -> vector<64x128xf32>
    %71 = arith.addf %65, %70 : vector<64x128xf32>
    %c0_47 = arith.constant 0 : index
    %c25 = arith.constant 25 : index
    %c0_48 = arith.constant 0 : index
    %72 = vector.load %arg1[%c0_47, %c25, %c0_48] : memref<1x96x128xbf16, #tpu.memory_space<vmem>>, vector<1x64x128xbf16>
    %73 = vector.shape_cast %72 : vector<1x64x128xbf16> to vector<64x128xbf16>
    %cst_49 = arith.constant 0.000000e+00 : bf16
    %74 = vector.broadcast %cst_49 : bf16 to vector<64x128xbf16>
    %75 = vector.shape_cast %4 : vector<64x1xi1> to vector<64x1xi1>
    %76 = vector.broadcast %75 : vector<64x1xi1> to vector<64x128xi1>
    %77 = arith.select %76, %73, %74 : vector<64x128xi1>, vector<64x128xbf16>
    %c8_50 = arith.constant 8 : index
    %c0_51 = arith.constant 0 : index
    %c0_52 = arith.constant 0 : index
    %78 = vector.load %arg2[%c8_50, %c0_51, %c0_52] : memref<9x128x128xbf16, #tpu.memory_space<vmem>>, vector<1x128x128xbf16>
    %79 = vector.shape_cast %78 : vector<1x128x128xbf16> to vector<128x128xbf16>
    %cst_53 = arith.constant dense<0.000000e+00> : vector<64x128xf32>
    %80 = tpu.matmul %77, %79, %cst_53 {dimension_numbers = #tpu.dot_dimension_numbers<[1], [0], [0], [1], [0, 0, 1, 1], [], []>} : vector<64x128xbf16>, vector<128x128xbf16>, vector<64x128xf32> -> vector<64x128xf32>
    %81 = arith.addf %71, %80 : vector<64x128xf32>
    %c0_54 = arith.constant 0 : index
    %c0_55 = arith.constant 0 : index
    %82 = vector.load %arg3[%c0_54, %c0_55] : memref<1x128xf32, #tpu.memory_space<vmem>>, vector<1x128xf32>
    %83 = vector.broadcast %82 : vector<1x128xf32> to vector<64x128xf32>
    %84 = arith.addf %81, %83 : vector<64x128xf32>
    %cst_56 = arith.constant 0.000000e+00 : f32
    %85 = vector.broadcast %cst_56 : f32 to vector<64x128xf32>
    %86 = arith.maximumf %84, %85 : vector<64x128xf32>
    %87 = arith.truncf %86 : vector<64x128xf32> to vector<64x128xbf16>
    %cst_57 = arith.constant 0.000000e+00 : bf16
    %88 = vector.broadcast %cst_57 : bf16 to vector<96x128xbf16>
    %c0_58 = arith.constant 0 : index
    %c0_59 = arith.constant 0 : index
    %89 = vector.load %arg8[%c0_58, %c0_59] : memref<96x128xbf16, #tpu.memory_space<vmem>>, vector<96x128xbf16>
    tpu.vector_store %arg8[%c0_58, %c0_59], %88 {strides = array<i32>} : memref<96x128xbf16, #tpu.memory_space<vmem>>, vector<96x128xbf16>,
    %c16_60 = arith.constant 16 : index
    %c0_61 = arith.constant 0 : index
    %90 = vector.load %arg8[%c16_60, %c0_61] : memref<96x128xbf16, #tpu.memory_space<vmem>>, vector<64x128xbf16>
    tpu.vector_store %arg8[%c16_60, %c0_61], %87 {strides = array<i32>} : memref<96x128xbf16, #tpu.memory_space<vmem>>, vector<64x128xbf16>,
    %c7_62 = arith.constant 7 : index
    %c0_63 = arith.constant 0 : index
    %91 = vector.load %arg8[%c7_62, %c0_63] : memref<96x128xbf16, #tpu.memory_space<vmem>>, vector<64x128xbf16>
    %cst_64 = arith.constant 0.000000e+00 : bf16
    %92 = vector.broadcast %cst_64 : bf16 to vector<64x128xbf16>
    %93 = vector.shape_cast %2 : vector<64x1xi1> to vector<64x1xi1>
    %94 = vector.broadcast %93 : vector<64x1xi1> to vector<64x128xi1>
    %95 = arith.select %94, %91, %92 : vector<64x128xi1>, vector<64x128xbf16>
    %c0_65 = arith.constant 0 : index
    %c0_66 = arith.constant 0 : index
    %c0_67 = arith.constant 0 : index
    %96 = vector.load %arg4[%c0_65, %c0_66, %c0_67] : memref<9x128x128xbf16, #tpu.memory_space<vmem>>, vector<1x128x128xbf16>
    %97 = vector.shape_cast %96 : vector<1x128x128xbf16> to vector<128x128xbf16>
    %cst_68 = arith.constant dense<0.000000e+00> : vector<64x128xf32>
    %98 = tpu.matmul %95, %97, %cst_68 {dimension_numbers = #tpu.dot_dimension_numbers<[1], [0], [0], [1], [0, 0, 1, 1], [], []>} : vector<64x128xbf16>, vector<128x128xbf16>, vector<64x128xf32> -> vector<64x128xf32>
    %c8_69 = arith.constant 8 : index
    %c0_70 = arith.constant 0 : index
    %99 = vector.load %arg8[%c8_69, %c0_70] : memref<96x128xbf16, #tpu.memory_space<vmem>>, vector<64x128xbf16>
    %c1_71 = arith.constant 1 : index
    %c0_72 = arith.constant 0 : index
    %c0_73 = arith.constant 0 : index
    %100 = vector.load %arg4[%c1_71, %c0_72, %c0_73] : memref<9x128x128xbf16, #tpu.memory_space<vmem>>, vector<1x128x128xbf16>
    %101 = vector.shape_cast %100 : vector<1x128x128xbf16> to vector<128x128xbf16>
    %cst_74 = arith.constant dense<0.000000e+00> : vector<64x128xf32>
    %102 = tpu.matmul %99, %101, %cst_74 {dimension_numbers = #tpu.dot_dimension_numbers<[1], [0], [0], [1], [0, 0, 1, 1], [], []>} : vector<64x128xbf16>, vector<128x128xbf16>, vector<64x128xf32> -> vector<64x128xf32>
    %103 = arith.addf %98, %102 : vector<64x128xf32>
    %c9_75 = arith.constant 9 : index
    %c0_76 = arith.constant 0 : index
    %104 = vector.load %arg8[%c9_75, %c0_76] : memref<96x128xbf16, #tpu.memory_space<vmem>>, vector<64x128xbf16>
    %cst_77 = arith.constant 0.000000e+00 : bf16
    %105 = vector.broadcast %cst_77 : bf16 to vector<64x128xbf16>
    %106 = vector.shape_cast %4 : vector<64x1xi1> to vector<64x1xi1>
    %107 = vector.broadcast %106 : vector<64x1xi1> to vector<64x128xi1>
    %108 = arith.select %107, %104, %105 : vector<64x128xi1>, vector<64x128xbf16>
    %c2_78 = arith.constant 2 : index
    %c0_79 = arith.constant 0 : index
    %c0_80 = arith.constant 0 : index
    %109 = vector.load %arg4[%c2_78, %c0_79, %c0_80] : memref<9x128x128xbf16, #tpu.memory_space<vmem>>, vector<1x128x128xbf16>
    %110 = vector.shape_cast %109 : vector<1x128x128xbf16> to vector<128x128xbf16>
    %cst_81 = arith.constant dense<0.000000e+00> : vector<64x128xf32>
    %111 = tpu.matmul %108, %110, %cst_81 {dimension_numbers = #tpu.dot_dimension_numbers<[1], [0], [0], [1], [0, 0, 1, 1], [], []>} : vector<64x128xbf16>, vector<128x128xbf16>, vector<64x128xf32> -> vector<64x128xf32>
    %112 = arith.addf %103, %111 : vector<64x128xf32>
    %c15_82 = arith.constant 15 : index
    %c0_83 = arith.constant 0 : index
    %113 = vector.load %arg8[%c15_82, %c0_83] : memref<96x128xbf16, #tpu.memory_space<vmem>>, vector<64x128xbf16>
    %cst_84 = arith.constant 0.000000e+00 : bf16
    %114 = vector.broadcast %cst_84 : bf16 to vector<64x128xbf16>
    %115 = vector.shape_cast %2 : vector<64x1xi1> to vector<64x1xi1>
    %116 = vector.broadcast %115 : vector<64x1xi1> to vector<64x128xi1>
    %117 = arith.select %116, %113, %114 : vector<64x128xi1>, vector<64x128xbf16>
    %c3_85 = arith.constant 3 : index
    %c0_86 = arith.constant 0 : index
    %c0_87 = arith.constant 0 : index
    %118 = vector.load %arg4[%c3_85, %c0_86, %c0_87] : memref<9x128x128xbf16, #tpu.memory_space<vmem>>, vector<1x128x128xbf16>
    %119 = vector.shape_cast %118 : vector<1x128x128xbf16> to vector<128x128xbf16>
    %cst_88 = arith.constant dense<0.000000e+00> : vector<64x128xf32>
    %120 = tpu.matmul %117, %119, %cst_88 {dimension_numbers = #tpu.dot_dimension_numbers<[1], [0], [0], [1], [0, 0, 1, 1], [], []>} : vector<64x128xbf16>, vector<128x128xbf16>, vector<64x128xf32> -> vector<64x128xf32>
    %121 = arith.addf %112, %120 : vector<64x128xf32>
    %c16_89 = arith.constant 16 : index
    %c0_90 = arith.constant 0 : index
    %122 = vector.load %arg8[%c16_89, %c0_90] : memref<96x128xbf16, #tpu.memory_space<vmem>>, vector<64x128xbf16>
    %c4_91 = arith.constant 4 : index
    %c0_92 = arith.constant 0 : index
    %c0_93 = arith.constant 0 : index
    %123 = vector.load %arg4[%c4_91, %c0_92, %c0_93] : memref<9x128x128xbf16, #tpu.memory_space<vmem>>, vector<1x128x128xbf16>
    %124 = vector.shape_cast %123 : vector<1x128x128xbf16> to vector<128x128xbf16>
    %cst_94 = arith.constant dense<0.000000e+00> : vector<64x128xf32>
    %125 = tpu.matmul %122, %124, %cst_94 {dimension_numbers = #tpu.dot_dimension_numbers<[1], [0], [0], [1], [0, 0, 1, 1], [], []>} : vector<64x128xbf16>, vector<128x128xbf16>, vector<64x128xf32> -> vector<64x128xf32>
    %126 = arith.addf %121, %125 : vector<64x128xf32>
    %c17_95 = arith.constant 17 : index
    %c0_96 = arith.constant 0 : index
    %127 = vector.load %arg8[%c17_95, %c0_96] : memref<96x128xbf16, #tpu.memory_space<vmem>>, vector<64x128xbf16>
    %cst_97 = arith.constant 0.000000e+00 : bf16
    %128 = vector.broadcast %cst_97 : bf16 to vector<64x128xbf16>
    %129 = vector.shape_cast %4 : vector<64x1xi1> to vector<64x1xi1>
    %130 = vector.broadcast %129 : vector<64x1xi1> to vector<64x128xi1>
    %131 = arith.select %130, %127, %128 : vector<64x128xi1>, vector<64x128xbf16>
    %c5_98 = arith.constant 5 : index
    %c0_99 = arith.constant 0 : index
    %c0_100 = arith.constant 0 : index
    %132 = vector.load %arg4[%c5_98, %c0_99, %c0_100] : memref<9x128x128xbf16, #tpu.memory_space<vmem>>, vector<1x128x128xbf16>
    %133 = vector.shape_cast %132 : vector<1x128x128xbf16> to vector<128x128xbf16>
    %cst_101 = arith.constant dense<0.000000e+00> : vector<64x128xf32>
    %134 = tpu.matmul %131, %133, %cst_101 {dimension_numbers = #tpu.dot_dimension_numbers<[1], [0], [0], [1], [0, 0, 1, 1], [], []>} : vector<64x128xbf16>, vector<128x128xbf16>, vector<64x128xf32> -> vector<64x128xf32>
    %135 = arith.addf %126, %134 : vector<64x128xf32>
    %c23_102 = arith.constant 23 : index
    %c0_103 = arith.constant 0 : index
    %136 = vector.load %arg8[%c23_102, %c0_103] : memref<96x128xbf16, #tpu.memory_space<vmem>>, vector<64x128xbf16>
    %cst_104 = arith.constant 0.000000e+00 : bf16
    %137 = vector.broadcast %cst_104 : bf16 to vector<64x128xbf16>
    %138 = vector.shape_cast %2 : vector<64x1xi1> to vector<64x1xi1>
    %139 = vector.broadcast %138 : vector<64x1xi1> to vector<64x128xi1>
    %140 = arith.select %139, %136, %137 : vector<64x128xi1>, vector<64x128xbf16>
    %c6_105 = arith.constant 6 : index
    %c0_106 = arith.constant 0 : index
    %c0_107 = arith.constant 0 : index
    %141 = vector.load %arg4[%c6_105, %c0_106, %c0_107] : memref<9x128x128xbf16, #tpu.memory_space<vmem>>, vector<1x128x128xbf16>
    %142 = vector.shape_cast %141 : vector<1x128x128xbf16> to vector<128x128xbf16>
    %cst_108 = arith.constant dense<0.000000e+00> : vector<64x128xf32>
    %143 = tpu.matmul %140, %142, %cst_108 {dimension_numbers = #tpu.dot_dimension_numbers<[1], [0], [0], [1], [0, 0, 1, 1], [], []>} : vector<64x128xbf16>, vector<128x128xbf16>, vector<64x128xf32> -> vector<64x128xf32>
    %144 = arith.addf %135, %143 : vector<64x128xf32>
    %c24_109 = arith.constant 24 : index
    %c0_110 = arith.constant 0 : index
    %145 = vector.load %arg8[%c24_109, %c0_110] : memref<96x128xbf16, #tpu.memory_space<vmem>>, vector<64x128xbf16>
    %c7_111 = arith.constant 7 : index
    %c0_112 = arith.constant 0 : index
    %c0_113 = arith.constant 0 : index
    %146 = vector.load %arg4[%c7_111, %c0_112, %c0_113] : memref<9x128x128xbf16, #tpu.memory_space<vmem>>, vector<1x128x128xbf16>
    %147 = vector.shape_cast %146 : vector<1x128x128xbf16> to vector<128x128xbf16>
    %cst_114 = arith.constant dense<0.000000e+00> : vector<64x128xf32>
    %148 = tpu.matmul %145, %147, %cst_114 {dimension_numbers = #tpu.dot_dimension_numbers<[1], [0], [0], [1], [0, 0, 1, 1], [], []>} : vector<64x128xbf16>, vector<128x128xbf16>, vector<64x128xf32> -> vector<64x128xf32>
    %149 = arith.addf %144, %148 : vector<64x128xf32>
    %c25_115 = arith.constant 25 : index
    %c0_116 = arith.constant 0 : index
    %150 = vector.load %arg8[%c25_115, %c0_116] : memref<96x128xbf16, #tpu.memory_space<vmem>>, vector<64x128xbf16>
    %cst_117 = arith.constant 0.000000e+00 : bf16
    %151 = vector.broadcast %cst_117 : bf16 to vector<64x128xbf16>
    %152 = vector.shape_cast %4 : vector<64x1xi1> to vector<64x1xi1>
    %153 = vector.broadcast %152 : vector<64x1xi1> to vector<64x128xi1>
    %154 = arith.select %153, %150, %151 : vector<64x128xi1>, vector<64x128xbf16>
    %c8_118 = arith.constant 8 : index
    %c0_119 = arith.constant 0 : index
    %c0_120 = arith.constant 0 : index
    %155 = vector.load %arg4[%c8_118, %c0_119, %c0_120] : memref<9x128x128xbf16, #tpu.memory_space<vmem>>, vector<1x128x128xbf16>
    %156 = vector.shape_cast %155 : vector<1x128x128xbf16> to vector<128x128xbf16>
    %cst_121 = arith.constant dense<0.000000e+00> : vector<64x128xf32>
    %157 = tpu.matmul %154, %156, %cst_121 {dimension_numbers = #tpu.dot_dimension_numbers<[1], [0], [0], [1], [0, 0, 1, 1], [], []>} : vector<64x128xbf16>, vector<128x128xbf16>, vector<64x128xf32> -> vector<64x128xf32>
    %158 = arith.addf %149, %157 : vector<64x128xf32>
    %c0_122 = arith.constant 0 : index
    %c16_123 = arith.constant 16 : index
    %c0_124 = arith.constant 0 : index
    %159 = vector.load %arg1[%c0_122, %c16_123, %c0_124] : memref<1x96x128xbf16, #tpu.memory_space<vmem>>, vector<1x64x128xbf16>
    %160 = vector.shape_cast %159 : vector<1x64x128xbf16> to vector<64x128xbf16>
    %161 = arith.extf %160 : vector<64x128xbf16> to vector<64x128xf32>
    %c0_125 = arith.constant 0 : index
    %c0_126 = arith.constant 0 : index
    %162 = vector.load %arg5[%c0_125, %c0_126] : memref<1x128xf32, #tpu.memory_space<vmem>>, vector<1x128xf32>
    %163 = vector.broadcast %162 : vector<1x128xf32> to vector<64x128xf32>
    %164 = arith.addf %158, %163 : vector<64x128xf32>
    %165 = arith.addf %164, %161 : vector<64x128xf32>
    %cst_127 = arith.constant 0.000000e+00 : f32
    %166 = vector.broadcast %cst_127 : f32 to vector<64x128xf32>
    %167 = arith.maximumf %165, %166 : vector<64x128xf32>
    %cst_128 = arith.constant 0.000000e+00 : bf16
    %168 = vector.broadcast %cst_128 : bf16 to vector<96x128xbf16>
    %c0_129 = arith.constant 0 : index
    %c0_130 = arith.constant 0 : index
    %c0_131 = arith.constant 0 : index
    %169 = vector.load %arg7[%c0_129, %c0_130, %c0_131] : memref<1x96x128xbf16, #tpu.memory_space<vmem>>, vector<1x96x128xbf16>
    %170 = vector.shape_cast %169 : vector<1x96x128xbf16> to vector<96x128xbf16>
    %171 = vector.shape_cast %168 : vector<96x128xbf16> to vector<1x96x128xbf16>
    tpu.vector_store %arg7[%c0_129, %c0_130, %c0_131], %171 {strides = array<i32>} : memref<1x96x128xbf16, #tpu.memory_space<vmem>>, vector<1x96x128xbf16>,
    %172 = arith.truncf %167 : vector<64x128xf32> to vector<64x128xbf16>
    %c0_132 = arith.constant 0 : index
    %c16_133 = arith.constant 16 : index
    %c0_134 = arith.constant 0 : index
    %173 = vector.load %arg7[%c0_132, %c16_133, %c0_134] : memref<1x96x128xbf16, #tpu.memory_space<vmem>>, vector<1x64x128xbf16>
    %174 = vector.shape_cast %173 : vector<1x64x128xbf16> to vector<64x128xbf16>
    %175 = vector.shape_cast %172 : vector<64x128xbf16> to vector<1x64x128xbf16>
    tpu.vector_store %arg7[%c0_132, %c16_133, %c0_134], %175 {strides = array<i32>} : memref<1x96x128xbf16, #tpu.memory_space<vmem>>, vector<1x64x128xbf16>,
    return
  }
  func.func @transform_0(%arg0: i32) -> (i32, i32, i32) {
    %c0_i32 = arith.constant 0 : i32
    %c0_i32_0 = arith.constant 0 : i32
    %c0_i32_1 = arith.constant 0 : i32
    return %arg0, %c0_i32, %c0_i32_0 : i32, i32, i32
  }
  func.func @transform_1(%arg0: i32) -> (i32, i32, i32) {
    %c0_i32 = arith.constant 0 : i32
    %c0_i32_0 = arith.constant 0 : i32
    %c0_i32_1 = arith.constant 0 : i32
    %c0_i32_2 = arith.constant 0 : i32
    return %c0_i32, %c0_i32_0, %c0_i32_1 : i32, i32, i32
  }
  func.func @transform_2(%arg0: i32) -> (i32, i32) {
    %c0_i32 = arith.constant 0 : i32
    %c0_i32_0 = arith.constant 0 : i32
    %c0_i32_1 = arith.constant 0 : i32
    return %c0_i32, %c0_i32_0 : i32, i32
  }
  func.func @transform_3(%arg0: i32) -> (i32, i32, i32) {
    %c0_i32 = arith.constant 0 : i32
    %c0_i32_0 = arith.constant 0 : i32
    %c0_i32_1 = arith.constant 0 : i32
    %c0_i32_2 = arith.constant 0 : i32
    return %c0_i32, %c0_i32_0, %c0_i32_1 : i32, i32, i32
  }
  func.func @transform_4(%arg0: i32) -> (i32, i32) {
    %c0_i32 = arith.constant 0 : i32
    %c0_i32_0 = arith.constant 0 : i32
    %c0_i32_1 = arith.constant 0 : i32
    return %c0_i32, %c0_i32_0 : i32, i32
  }
  func.func @transform_5(%arg0: i32) -> (i32, i32) {
    %c0_i32 = arith.constant 0 : i32
    %c0_i32_0 = arith.constant 0 : i32
    %c0_i32_1 = arith.constant 0 : i32
    return %c0_i32, %c0_i32_0 : i32, i32
  }
  func.func @transform_6(%arg0: i32) -> (i32, i32, i32) {
    %c0_i32 = arith.constant 0 : i32
    %c0_i32_0 = arith.constant 0 : i32
    %c0_i32_1 = arith.constant 0 : i32
    return %arg0, %c0_i32, %c0_i32_0 : i32, i32, i32
  }
}

module attributes {stable_mosaic.version = 11 : i64} {
  func.func @_resblock_proj_kernel(%arg0: i32, %arg1: memref<1x64x128xbf16, #tpu.memory_space<vmem>>, %arg2: memref<128x128xbf16, #tpu.memory_space<vmem>>, %arg3: memref<1x128xf32, #tpu.memory_space<vmem>>, %arg4: memref<9x128x128xbf16, #tpu.memory_space<vmem>>, %arg5: memref<1x128xf32, #tpu.memory_space<vmem>>, %arg6: memref<1x64x128xbf16, #tpu.memory_space<vmem>>, %arg7: memref<128x128xbf16, #tpu.memory_space<vmem>>, %arg8: memref<64x1xi32, #tpu.memory_space<vmem>>, %arg9: memref<1x96x128xbf16, #tpu.memory_space<vmem>>, %arg10: memref<96x128xbf16, #tpu.memory_space<vmem>>) attributes {dimension_semantics = [#tpu.dimension_semantics<parallel>], iteration_bounds = array<i64: 2>, scalar_prefetch = 0 : i64, scratch_operands = 1 : i64, tpu.core_type = #tpu.core_type<tc>, window_params = [{transform_indices = @transform_0, window_bounds = array<i64: 1, 64, 128>}, {pipeline_mode = #tpu.pipeline_mode<synchronous>, transform_indices = @transform_1, window_bounds = array<i64: 128, 128>}, {pipeline_mode = #tpu.pipeline_mode<synchronous>, transform_indices = @transform_2, window_bounds = array<i64: 1, 128>}, {pipeline_mode = #tpu.pipeline_mode<synchronous>, transform_indices = @transform_3, window_bounds = array<i64: 9, 128, 128>}, {pipeline_mode = #tpu.pipeline_mode<synchronous>, transform_indices = @transform_4, window_bounds = array<i64: 1, 128>}, {transform_indices = @transform_5, window_bounds = array<i64: 1, 64, 128>}, {pipeline_mode = #tpu.pipeline_mode<synchronous>, transform_indices = @transform_6, window_bounds = array<i64: 128, 128>}, {pipeline_mode = #tpu.pipeline_mode<synchronous>, transform_indices = @transform_7, window_bounds = array<i64: 64, 1>}, {transform_indices = @transform_8, window_bounds = array<i64: 1, 96, 128>}]} {
    %c0 = arith.constant 0 : index
    %c0_0 = arith.constant 0 : index
    %0 = vector.load %arg8[%c0, %c0_0] : memref<64x1xi32, #tpu.memory_space<vmem>>, vector<64x1xi32>
    %c0_i32 = arith.constant 0 : i32
    %1 = vector.broadcast %c0_i32 : i32 to vector<64x1xi32>
    %2 = arith.cmpi sgt, %0, %1 : vector<64x1xi32>
    %c7_i32 = arith.constant 7 : i32
    %3 = vector.broadcast %c7_i32 : i32 to vector<64x1xi32>
    %4 = arith.cmpi slt, %0, %3 : vector<64x1xi32>
    %c0_1 = arith.constant 0 : index
    %c0_2 = arith.constant 0 : index
    %c0_3 = arith.constant 0 : index
    %5 = vector.load %arg1[%c0_1, %c0_2, %c0_3] : memref<1x64x128xbf16, #tpu.memory_space<vmem>>, vector<1x64x128xbf16>
    %6 = vector.shape_cast %5 : vector<1x64x128xbf16> to vector<64x128xbf16>
    %c0_4 = arith.constant 0 : index
    %c0_5 = arith.constant 0 : index
    %7 = vector.load %arg2[%c0_4, %c0_5] : memref<128x128xbf16, #tpu.memory_space<vmem>>, vector<128x128xbf16>
    %cst = arith.constant dense<0.000000e+00> : vector<64x128xf32>
    %8 = tpu.matmul %6, %7, %cst {dimension_numbers = #tpu.dot_dimension_numbers<[1], [0], [0], [1], [0, 0, 1, 1], [], []>} : vector<64x128xbf16>, vector<128x128xbf16>, vector<64x128xf32> -> vector<64x128xf32>
    %c0_6 = arith.constant 0 : index
    %c0_7 = arith.constant 0 : index
    %9 = vector.load %arg3[%c0_6, %c0_7] : memref<1x128xf32, #tpu.memory_space<vmem>>, vector<1x128xf32>
    %10 = vector.broadcast %9 : vector<1x128xf32> to vector<64x128xf32>
    %11 = arith.addf %8, %10 : vector<64x128xf32>
    %cst_8 = arith.constant 0.000000e+00 : f32
    %12 = vector.broadcast %cst_8 : f32 to vector<64x128xf32>
    %13 = arith.maximumf %11, %12 : vector<64x128xf32>
    %14 = arith.truncf %13 : vector<64x128xf32> to vector<64x128xbf16>
    %cst_9 = arith.constant 0.000000e+00 : bf16
    %15 = vector.broadcast %cst_9 : bf16 to vector<96x128xbf16>
    %c0_10 = arith.constant 0 : index
    %c0_11 = arith.constant 0 : index
    %16 = vector.load %arg10[%c0_10, %c0_11] : memref<96x128xbf16, #tpu.memory_space<vmem>>, vector<96x128xbf16>
    tpu.vector_store %arg10[%c0_10, %c0_11], %15 {strides = array<i32>} : memref<96x128xbf16, #tpu.memory_space<vmem>>, vector<96x128xbf16>,
    %c16 = arith.constant 16 : index
    %c0_12 = arith.constant 0 : index
    %17 = vector.load %arg10[%c16, %c0_12] : memref<96x128xbf16, #tpu.memory_space<vmem>>, vector<64x128xbf16>
    tpu.vector_store %arg10[%c16, %c0_12], %14 {strides = array<i32>} : memref<96x128xbf16, #tpu.memory_space<vmem>>, vector<64x128xbf16>,
    %c7 = arith.constant 7 : index
    %c0_13 = arith.constant 0 : index
    %18 = vector.load %arg10[%c7, %c0_13] : memref<96x128xbf16, #tpu.memory_space<vmem>>, vector<64x128xbf16>
    %cst_14 = arith.constant 0.000000e+00 : bf16
    %19 = vector.broadcast %cst_14 : bf16 to vector<64x128xbf16>
    %20 = vector.shape_cast %2 : vector<64x1xi1> to vector<64x1xi1>
    %21 = vector.broadcast %20 : vector<64x1xi1> to vector<64x128xi1>
    %22 = arith.select %21, %18, %19 : vector<64x128xi1>, vector<64x128xbf16>
    %c0_15 = arith.constant 0 : index
    %c0_16 = arith.constant 0 : index
    %c0_17 = arith.constant 0 : index
    %23 = vector.load %arg4[%c0_15, %c0_16, %c0_17] : memref<9x128x128xbf16, #tpu.memory_space<vmem>>, vector<1x128x128xbf16>
    %24 = vector.shape_cast %23 : vector<1x128x128xbf16> to vector<128x128xbf16>
    %cst_18 = arith.constant dense<0.000000e+00> : vector<64x128xf32>
    %25 = tpu.matmul %22, %24, %cst_18 {dimension_numbers = #tpu.dot_dimension_numbers<[1], [0], [0], [1], [0, 0, 1, 1], [], []>} : vector<64x128xbf16>, vector<128x128xbf16>, vector<64x128xf32> -> vector<64x128xf32>
    %c8 = arith.constant 8 : index
    %c0_19 = arith.constant 0 : index
    %26 = vector.load %arg10[%c8, %c0_19] : memref<96x128xbf16, #tpu.memory_space<vmem>>, vector<64x128xbf16>
    %c1 = arith.constant 1 : index
    %c0_20 = arith.constant 0 : index
    %c0_21 = arith.constant 0 : index
    %27 = vector.load %arg4[%c1, %c0_20, %c0_21] : memref<9x128x128xbf16, #tpu.memory_space<vmem>>, vector<1x128x128xbf16>
    %28 = vector.shape_cast %27 : vector<1x128x128xbf16> to vector<128x128xbf16>
    %cst_22 = arith.constant dense<0.000000e+00> : vector<64x128xf32>
    %29 = tpu.matmul %26, %28, %cst_22 {dimension_numbers = #tpu.dot_dimension_numbers<[1], [0], [0], [1], [0, 0, 1, 1], [], []>} : vector<64x128xbf16>, vector<128x128xbf16>, vector<64x128xf32> -> vector<64x128xf32>
    %30 = arith.addf %25, %29 : vector<64x128xf32>
    %c9 = arith.constant 9 : index
    %c0_23 = arith.constant 0 : index
    %31 = vector.load %arg10[%c9, %c0_23] : memref<96x128xbf16, #tpu.memory_space<vmem>>, vector<64x128xbf16>
    %cst_24 = arith.constant 0.000000e+00 : bf16
    %32 = vector.broadcast %cst_24 : bf16 to vector<64x128xbf16>
    %33 = vector.shape_cast %4 : vector<64x1xi1> to vector<64x1xi1>
    %34 = vector.broadcast %33 : vector<64x1xi1> to vector<64x128xi1>
    %35 = arith.select %34, %31, %32 : vector<64x128xi1>, vector<64x128xbf16>
    %c2 = arith.constant 2 : index
    %c0_25 = arith.constant 0 : index
    %c0_26 = arith.constant 0 : index
    %36 = vector.load %arg4[%c2, %c0_25, %c0_26] : memref<9x128x128xbf16, #tpu.memory_space<vmem>>, vector<1x128x128xbf16>
    %37 = vector.shape_cast %36 : vector<1x128x128xbf16> to vector<128x128xbf16>
    %cst_27 = arith.constant dense<0.000000e+00> : vector<64x128xf32>
    %38 = tpu.matmul %35, %37, %cst_27 {dimension_numbers = #tpu.dot_dimension_numbers<[1], [0], [0], [1], [0, 0, 1, 1], [], []>} : vector<64x128xbf16>, vector<128x128xbf16>, vector<64x128xf32> -> vector<64x128xf32>
    %39 = arith.addf %30, %38 : vector<64x128xf32>
    %c15 = arith.constant 15 : index
    %c0_28 = arith.constant 0 : index
    %40 = vector.load %arg10[%c15, %c0_28] : memref<96x128xbf16, #tpu.memory_space<vmem>>, vector<64x128xbf16>
    %cst_29 = arith.constant 0.000000e+00 : bf16
    %41 = vector.broadcast %cst_29 : bf16 to vector<64x128xbf16>
    %42 = vector.shape_cast %2 : vector<64x1xi1> to vector<64x1xi1>
    %43 = vector.broadcast %42 : vector<64x1xi1> to vector<64x128xi1>
    %44 = arith.select %43, %40, %41 : vector<64x128xi1>, vector<64x128xbf16>
    %c3 = arith.constant 3 : index
    %c0_30 = arith.constant 0 : index
    %c0_31 = arith.constant 0 : index
    %45 = vector.load %arg4[%c3, %c0_30, %c0_31] : memref<9x128x128xbf16, #tpu.memory_space<vmem>>, vector<1x128x128xbf16>
    %46 = vector.shape_cast %45 : vector<1x128x128xbf16> to vector<128x128xbf16>
    %cst_32 = arith.constant dense<0.000000e+00> : vector<64x128xf32>
    %47 = tpu.matmul %44, %46, %cst_32 {dimension_numbers = #tpu.dot_dimension_numbers<[1], [0], [0], [1], [0, 0, 1, 1], [], []>} : vector<64x128xbf16>, vector<128x128xbf16>, vector<64x128xf32> -> vector<64x128xf32>
    %48 = arith.addf %39, %47 : vector<64x128xf32>
    %c16_33 = arith.constant 16 : index
    %c0_34 = arith.constant 0 : index
    %49 = vector.load %arg10[%c16_33, %c0_34] : memref<96x128xbf16, #tpu.memory_space<vmem>>, vector<64x128xbf16>
    %c4 = arith.constant 4 : index
    %c0_35 = arith.constant 0 : index
    %c0_36 = arith.constant 0 : index
    %50 = vector.load %arg4[%c4, %c0_35, %c0_36] : memref<9x128x128xbf16, #tpu.memory_space<vmem>>, vector<1x128x128xbf16>
    %51 = vector.shape_cast %50 : vector<1x128x128xbf16> to vector<128x128xbf16>
    %cst_37 = arith.constant dense<0.000000e+00> : vector<64x128xf32>
    %52 = tpu.matmul %49, %51, %cst_37 {dimension_numbers = #tpu.dot_dimension_numbers<[1], [0], [0], [1], [0, 0, 1, 1], [], []>} : vector<64x128xbf16>, vector<128x128xbf16>, vector<64x128xf32> -> vector<64x128xf32>
    %53 = arith.addf %48, %52 : vector<64x128xf32>
    %c17 = arith.constant 17 : index
    %c0_38 = arith.constant 0 : index
    %54 = vector.load %arg10[%c17, %c0_38] : memref<96x128xbf16, #tpu.memory_space<vmem>>, vector<64x128xbf16>
    %cst_39 = arith.constant 0.000000e+00 : bf16
    %55 = vector.broadcast %cst_39 : bf16 to vector<64x128xbf16>
    %56 = vector.shape_cast %4 : vector<64x1xi1> to vector<64x1xi1>
    %57 = vector.broadcast %56 : vector<64x1xi1> to vector<64x128xi1>
    %58 = arith.select %57, %54, %55 : vector<64x128xi1>, vector<64x128xbf16>
    %c5 = arith.constant 5 : index
    %c0_40 = arith.constant 0 : index
    %c0_41 = arith.constant 0 : index
    %59 = vector.load %arg4[%c5, %c0_40, %c0_41] : memref<9x128x128xbf16, #tpu.memory_space<vmem>>, vector<1x128x128xbf16>
    %60 = vector.shape_cast %59 : vector<1x128x128xbf16> to vector<128x128xbf16>
    %cst_42 = arith.constant dense<0.000000e+00> : vector<64x128xf32>
    %61 = tpu.matmul %58, %60, %cst_42 {dimension_numbers = #tpu.dot_dimension_numbers<[1], [0], [0], [1], [0, 0, 1, 1], [], []>} : vector<64x128xbf16>, vector<128x128xbf16>, vector<64x128xf32> -> vector<64x128xf32>
    %62 = arith.addf %53, %61 : vector<64x128xf32>
    %c23 = arith.constant 23 : index
    %c0_43 = arith.constant 0 : index
    %63 = vector.load %arg10[%c23, %c0_43] : memref<96x128xbf16, #tpu.memory_space<vmem>>, vector<64x128xbf16>
    %cst_44 = arith.constant 0.000000e+00 : bf16
    %64 = vector.broadcast %cst_44 : bf16 to vector<64x128xbf16>
    %65 = vector.shape_cast %2 : vector<64x1xi1> to vector<64x1xi1>
    %66 = vector.broadcast %65 : vector<64x1xi1> to vector<64x128xi1>
    %67 = arith.select %66, %63, %64 : vector<64x128xi1>, vector<64x128xbf16>
    %c6 = arith.constant 6 : index
    %c0_45 = arith.constant 0 : index
    %c0_46 = arith.constant 0 : index
    %68 = vector.load %arg4[%c6, %c0_45, %c0_46] : memref<9x128x128xbf16, #tpu.memory_space<vmem>>, vector<1x128x128xbf16>
    %69 = vector.shape_cast %68 : vector<1x128x128xbf16> to vector<128x128xbf16>
    %cst_47 = arith.constant dense<0.000000e+00> : vector<64x128xf32>
    %70 = tpu.matmul %67, %69, %cst_47 {dimension_numbers = #tpu.dot_dimension_numbers<[1], [0], [0], [1], [0, 0, 1, 1], [], []>} : vector<64x128xbf16>, vector<128x128xbf16>, vector<64x128xf32> -> vector<64x128xf32>
    %71 = arith.addf %62, %70 : vector<64x128xf32>
    %c24 = arith.constant 24 : index
    %c0_48 = arith.constant 0 : index
    %72 = vector.load %arg10[%c24, %c0_48] : memref<96x128xbf16, #tpu.memory_space<vmem>>, vector<64x128xbf16>
    %c7_49 = arith.constant 7 : index
    %c0_50 = arith.constant 0 : index
    %c0_51 = arith.constant 0 : index
    %73 = vector.load %arg4[%c7_49, %c0_50, %c0_51] : memref<9x128x128xbf16, #tpu.memory_space<vmem>>, vector<1x128x128xbf16>
    %74 = vector.shape_cast %73 : vector<1x128x128xbf16> to vector<128x128xbf16>
    %cst_52 = arith.constant dense<0.000000e+00> : vector<64x128xf32>
    %75 = tpu.matmul %72, %74, %cst_52 {dimension_numbers = #tpu.dot_dimension_numbers<[1], [0], [0], [1], [0, 0, 1, 1], [], []>} : vector<64x128xbf16>, vector<128x128xbf16>, vector<64x128xf32> -> vector<64x128xf32>
    %76 = arith.addf %71, %75 : vector<64x128xf32>
    %c25 = arith.constant 25 : index
    %c0_53 = arith.constant 0 : index
    %77 = vector.load %arg10[%c25, %c0_53] : memref<96x128xbf16, #tpu.memory_space<vmem>>, vector<64x128xbf16>
    %cst_54 = arith.constant 0.000000e+00 : bf16
    %78 = vector.broadcast %cst_54 : bf16 to vector<64x128xbf16>
    %79 = vector.shape_cast %4 : vector<64x1xi1> to vector<64x1xi1>
    %80 = vector.broadcast %79 : vector<64x1xi1> to vector<64x128xi1>
    %81 = arith.select %80, %77, %78 : vector<64x128xi1>, vector<64x128xbf16>
    %c8_55 = arith.constant 8 : index
    %c0_56 = arith.constant 0 : index
    %c0_57 = arith.constant 0 : index
    %82 = vector.load %arg4[%c8_55, %c0_56, %c0_57] : memref<9x128x128xbf16, #tpu.memory_space<vmem>>, vector<1x128x128xbf16>
    %83 = vector.shape_cast %82 : vector<1x128x128xbf16> to vector<128x128xbf16>
    %cst_58 = arith.constant dense<0.000000e+00> : vector<64x128xf32>
    %84 = tpu.matmul %81, %83, %cst_58 {dimension_numbers = #tpu.dot_dimension_numbers<[1], [0], [0], [1], [0, 0, 1, 1], [], []>} : vector<64x128xbf16>, vector<128x128xbf16>, vector<64x128xf32> -> vector<64x128xf32>
    %85 = arith.addf %76, %84 : vector<64x128xf32>
    %c0_59 = arith.constant 0 : index
    %c0_60 = arith.constant 0 : index
    %c0_61 = arith.constant 0 : index
    %86 = vector.load %arg6[%c0_59, %c0_60, %c0_61] : memref<1x64x128xbf16, #tpu.memory_space<vmem>>, vector<1x64x128xbf16>
    %87 = vector.shape_cast %86 : vector<1x64x128xbf16> to vector<64x128xbf16>
    %c0_62 = arith.constant 0 : index
    %c0_63 = arith.constant 0 : index
    %88 = vector.load %arg7[%c0_62, %c0_63] : memref<128x128xbf16, #tpu.memory_space<vmem>>, vector<128x128xbf16>
    %cst_64 = arith.constant dense<0.000000e+00> : vector<64x128xf32>
    %89 = tpu.matmul %87, %88, %cst_64 {dimension_numbers = #tpu.dot_dimension_numbers<[1], [0], [0], [1], [0, 0, 1, 1], [], []>} : vector<64x128xbf16>, vector<128x128xbf16>, vector<64x128xf32> -> vector<64x128xf32>
    %90 = arith.addf %85, %89 : vector<64x128xf32>
    %c0_65 = arith.constant 0 : index
    %c0_66 = arith.constant 0 : index
    %91 = vector.load %arg5[%c0_65, %c0_66] : memref<1x128xf32, #tpu.memory_space<vmem>>, vector<1x128xf32>
    %92 = vector.broadcast %91 : vector<1x128xf32> to vector<64x128xf32>
    %93 = arith.addf %90, %92 : vector<64x128xf32>
    %cst_67 = arith.constant 0.000000e+00 : f32
    %94 = vector.broadcast %cst_67 : f32 to vector<64x128xf32>
    %95 = arith.maximumf %93, %94 : vector<64x128xf32>
    %cst_68 = arith.constant 0.000000e+00 : bf16
    %96 = vector.broadcast %cst_68 : bf16 to vector<96x128xbf16>
    %c0_69 = arith.constant 0 : index
    %c0_70 = arith.constant 0 : index
    %c0_71 = arith.constant 0 : index
    %97 = vector.load %arg9[%c0_69, %c0_70, %c0_71] : memref<1x96x128xbf16, #tpu.memory_space<vmem>>, vector<1x96x128xbf16>
    %98 = vector.shape_cast %97 : vector<1x96x128xbf16> to vector<96x128xbf16>
    %99 = vector.shape_cast %96 : vector<96x128xbf16> to vector<1x96x128xbf16>
    tpu.vector_store %arg9[%c0_69, %c0_70, %c0_71], %99 {strides = array<i32>} : memref<1x96x128xbf16, #tpu.memory_space<vmem>>, vector<1x96x128xbf16>,
    %100 = arith.truncf %95 : vector<64x128xf32> to vector<64x128xbf16>
    %c0_72 = arith.constant 0 : index
    %c16_73 = arith.constant 16 : index
    %c0_74 = arith.constant 0 : index
    %101 = vector.load %arg9[%c0_72, %c16_73, %c0_74] : memref<1x96x128xbf16, #tpu.memory_space<vmem>>, vector<1x64x128xbf16>
    %102 = vector.shape_cast %101 : vector<1x64x128xbf16> to vector<64x128xbf16>
    %103 = vector.shape_cast %100 : vector<64x128xbf16> to vector<1x64x128xbf16>
    tpu.vector_store %arg9[%c0_72, %c16_73, %c0_74], %103 {strides = array<i32>} : memref<1x96x128xbf16, #tpu.memory_space<vmem>>, vector<1x64x128xbf16>,
    return
  }
  func.func @transform_0(%arg0: i32) -> (i32, i32, i32) {
    %c0_i32 = arith.constant 0 : i32
    %c0_i32_0 = arith.constant 0 : i32
    %c0_i32_1 = arith.constant 0 : i32
    return %arg0, %c0_i32, %c0_i32_0 : i32, i32, i32
  }
  func.func @transform_1(%arg0: i32) -> (i32, i32) {
    %c0_i32 = arith.constant 0 : i32
    %c0_i32_0 = arith.constant 0 : i32
    %c0_i32_1 = arith.constant 0 : i32
    return %c0_i32, %c0_i32_0 : i32, i32
  }
  func.func @transform_2(%arg0: i32) -> (i32, i32) {
    %c0_i32 = arith.constant 0 : i32
    %c0_i32_0 = arith.constant 0 : i32
    %c0_i32_1 = arith.constant 0 : i32
    return %c0_i32, %c0_i32_0 : i32, i32
  }
  func.func @transform_3(%arg0: i32) -> (i32, i32, i32) {
    %c0_i32 = arith.constant 0 : i32
    %c0_i32_0 = arith.constant 0 : i32
    %c0_i32_1 = arith.constant 0 : i32
    %c0_i32_2 = arith.constant 0 : i32
    return %c0_i32, %c0_i32_0, %c0_i32_1 : i32, i32, i32
  }
  func.func @transform_4(%arg0: i32) -> (i32, i32) {
    %c0_i32 = arith.constant 0 : i32
    %c0_i32_0 = arith.constant 0 : i32
    %c0_i32_1 = arith.constant 0 : i32
    return %c0_i32, %c0_i32_0 : i32, i32
  }
  func.func @transform_5(%arg0: i32) -> (i32, i32, i32) {
    %c0_i32 = arith.constant 0 : i32
    %c0_i32_0 = arith.constant 0 : i32
    %c0_i32_1 = arith.constant 0 : i32
    return %arg0, %c0_i32, %c0_i32_0 : i32, i32, i32
  }
  func.func @transform_6(%arg0: i32) -> (i32, i32) {
    %c0_i32 = arith.constant 0 : i32
    %c0_i32_0 = arith.constant 0 : i32
    %c0_i32_1 = arith.constant 0 : i32
    return %c0_i32, %c0_i32_0 : i32, i32
  }
  func.func @transform_7(%arg0: i32) -> (i32, i32) {
    %c0_i32 = arith.constant 0 : i32
    %c0_i32_0 = arith.constant 0 : i32
    %c0_i32_1 = arith.constant 0 : i32
    return %c0_i32, %c0_i32_0 : i32, i32
  }
  func.func @transform_8(%arg0: i32) -> (i32, i32, i32) {
    %c0_i32 = arith.constant 0 : i32
    %c0_i32_0 = arith.constant 0 : i32
    %c0_i32_1 = arith.constant 0 : i32
    return %arg0, %c0_i32, %c0_i32_0 : i32, i32, i32
  }
}

</mosaic_0001>

<llo_original>
// kernel: block_group_forward.2
$region0: #{block_group_forward.2}
  #allocation0 [shape = 'u32[]', space=smem, size = 0x4, offset = 0x4, fixed_abs, tag = 'smem constant byte address 0x4 - core index']
  #allocation1 [shape = 'u32[144,128]{1,0:T(1,128)}', space=vmem, size = 0x12000, scoped, tag = 'internal scratch']
  #allocation2 [shape = 'bf16[96,128]{1,0:T(16,128)(2,1)}', space=vmem, size = 0x6000, scoped, tag = 'scratch operand']
  %s0 = inlined_call_operand.vmem [shape: bf16[2,64,128], index: 0, kind: input, shape index: {}]
  %s1 = inlined_call_operand.vmem [shape: bf16[128,128], index: 1, kind: input, shape index: {}]
  %s2 = inlined_call_operand.vmem [shape: f32[1,128], index: 2, kind: input, shape index: {}]
  %s3 = inlined_call_operand.vmem [shape: bf16[9,128,128], index: 3, kind: input, shape index: {}]
  %s4 = inlined_call_operand.vmem [shape: f32[1,128], index: 4, kind: input, shape index: {}]
  %s5 = inlined_call_operand.vmem [shape: bf16[2,64,128], index: 5, kind: input, shape index: {}]
  %s6 = inlined_call_operand.vmem [shape: bf16[128,128], index: 6, kind: input, shape index: {}]
  %s7 = inlined_call_operand.vmem [shape: s32[64,1], index: 7, kind: input, shape index: {}]
  %s8 = inlined_call_operand.vmem [shape: bf16[2,96,128], index: 8, kind: output, shape index: {}]
  %s9 = sld [smem:[#allocation0]]
  $region65: #{block_group_forward.2} parent=0
    _
  %s11 = ssub.s32 1, %s9
  %s12 = scalar_select 0, %s11, %s9
  loop: start=0, step=1, limit=4
  $region2: #{block_group_forward.2} parent=0 // loop_pre_header
    _
  $region3: #{block_group_forward.2} parent=0 // loop_header
    %s14 = sphi 0, %s18
    %p15 = scmp.ge.s32.totalorder %s14, 4
    %s24 = sphi 0, %s26
    %s27 = sphi 0, %s24
    %s28 = sphi 0, %s27
    %s44 = sphi 0, %s28
    %s48 = sphi 0, %s48
    %s50 = sphi 0, %s48
    %s51 = sphi 0, %s50
    %s65 = sphi 0, %s51
    %s69 = sphi 0, %s69
    %s71 = sphi 0, %s69
    %s72 = sphi 0, %s71
    %s86 = sphi 0, %s72
    %s90 = sphi 0, %s90
    %s92 = sphi 0, %s90
    %s93 = sphi 0, %s92
    %s107 = sphi 0, %s93
    %s111 = sphi 0, %s111
    %s113 = sphi 0, %s111
    %s114 = sphi 0, %s113
    %s128 = sphi 0, %s114
    %s134 = sphi 0, %s136
    %s137 = sphi 0, %s134
    %s138 = sphi 0, %s137
    %s154 = sphi 0, %s138
    %s158 = sphi 0, %s158
    %s160 = sphi 0, %s158
    %s161 = sphi 0, %s160
    %s175 = sphi 0, %s161
    %s179 = sphi 0, %s179
    %s181 = sphi 0, %s179
    %s182 = sphi 0, %s181
    %s196 = sphi 0, %s182
    %s202 = sphi 0, %s204
    %s205 = sphi 0, %s202
    %s206 = sphi 0, %s205
    %s222 = sphi 0, %s206
  $region4: #{block_group_forward.2} parent=0 // loop_header_branch
    %17 = sbr.rel (%p15) target = $region8
  $region5: #{block_group_forward.2} parent=0 // loop_body
    %s19 = ssub.s32 %s14, 1
    %s20 = ssub.s32 %s14, 2
    %s21 = sadd.s32 %s14, 1
    %s22 = ssub.s32 %s14, %s21
    %p23 = scmp.eq.s32.totalorder %s22, 0
    %s25 = sadd.s32 %s24, 1
    %s26 = scalar_select %p23, %s24, %s25
    %p29 = pneg %p23
    %p30 = scmp.eq.s32.totalorder %s14, 1
    %p31 = por %p29, %p30
    %p32 = scmp.ne.s32.totalorder %s24, %s27
    %p33 = scmp.eq.s32.totalorder %s14, 0
    %p34 = por %p32, %p33
    %p35 = scmp.ne.s32.totalorder %s24, %s27
    %p36 = scmp.eq.s32.totalorder %s19, 1
    %p37 = por %p35, %p36
    %p38 = scmp.ne.s32.totalorder %s27, %s28
    %p39 = scmp.eq.s32.totalorder %s19, 0
    %p40 = por %p38, %p39
    %p41 = scmp.ne.s32.totalorder %s27, %s28
    %p42 = scmp.eq.s32.totalorder %s20, 1
    %p43 = por %p41, %p42
    %p45 = scmp.ne.s32.totalorder %s28, %s44
    %p46 = scmp.eq.s32.totalorder %s20, 0
    %p47 = por %p45, %p46
    %s49 = sadd.s32 %s48, 1
    %p52 = scmp.eq.s32.totalorder %s14, 1
    %p53 = scmp.ne.s32.totalorder %s48, %s50
    %p54 = scmp.eq.s32.totalorder %s14, 0
    %p55 = por %p53, %p54
    %p56 = scmp.ne.s32.totalorder %s48, %s50
    %p57 = scmp.eq.s32.totalorder %s19, 1
    %p58 = por %p56, %p57
    %p59 = scmp.ne.s32.totalorder %s50, %s51
    %p60 = scmp.eq.s32.totalorder %s19, 0
    %p61 = por %p59, %p60
    %p62 = scmp.ne.s32.totalorder %s50, %s51
    %p63 = scmp.eq.s32.totalorder %s20, 1
    %p64 = por %p62, %p63
    %p66 = scmp.ne.s32.totalorder %s51, %s65
    %p67 = scmp.eq.s32.totalorder %s20, 0
    %p68 = por %p66, %p67
    %s70 = sadd.s32 %s69, 1
    %p73 = scmp.eq.s32.totalorder %s14, 1
    %p74 = scmp.ne.s32.totalorder %s69, %s71
    %p75 = scmp.eq.s32.totalorder %s14, 0
    %p76 = por %p74, %p75
    %p77 = scmp.ne.s32.totalorder %s69, %s71
    %p78 = scmp.eq.s32.totalorder %s19, 1
    %p79 = por %p77, %p78
    %p80 = scmp.ne.s32.totalorder %s71, %s72
    %p81 = scmp.eq.s32.totalorder %s19, 0
    %p82 = por %p80, %p81
    %p83 = scmp.ne.s32.totalorder %s71, %s72
    %p84 = scmp.eq.s32.totalorder %s20, 1
    %p85 = por %p83, %p84
    %p87 = scmp.ne.s32.totalorder %s72, %s86
    %p88 = scmp.eq.s32.totalorder %s20, 0
    %p89 = por %p87, %p88
    %s91 = sadd.s32 %s90, 1
    %p94 = scmp.eq.s32.totalorder %s14, 1
    %p95 = scmp.ne.s32.totalorder %s90, %s92
    %p96 = scmp.eq.s32.totalorder %s14, 0
    %p97 = por %p95, %p96
    %p98 = scmp.ne.s32.totalorder %s90, %s92
    %p99 = scmp.eq.s32.totalorder %s19, 1
    %p100 = por %p98, %p99
    %p101 = scmp.ne.s32.totalorder %s92, %s93
    %p102 = scmp.eq.s32.totalorder %s19, 0
    %p103 = por %p101, %p102
    %p104 = scmp.ne.s32.totalorder %s92, %s93
    %p105 = scmp.eq.s32.totalorder %s20, 1
    %p106 = por %p104, %p105
    %p108 = scmp.ne.s32.totalorder %s93, %s107
    %p109 = scmp.eq.s32.totalorder %s20, 0
    %p110 = por %p108, %p109
    %s112 = sadd.s32 %s111, 1
    %p115 = scmp.eq.s32.totalorder %s14, 1
    %p116 = scmp.ne.s32.totalorder %s111, %s113
    %p117 = scmp.eq.s32.totalorder %s14, 0
    %p118 = por %p116, %p117
    %p119 = scmp.ne.s32.totalorder %s111, %s113
    %p120 = scmp.eq.s32.totalorder %s19, 1
    %p121 = por %p119, %p120
    %p122 = scmp.ne.s32.totalorder %s113, %s114
    %p123 = scmp.eq.s32.totalorder %s19, 0
    %p124 = por %p122, %p123
    %p125 = scmp.ne.s32.totalorder %s113, %s114
    %p126 = scmp.eq.s32.totalorder %s20, 1
    %p127 = por %p125, %p126
    %p129 = scmp.ne.s32.totalorder %s114, %s128
    %p130 = scmp.eq.s32.totalorder %s20, 0
    %p131 = por %p129, %p130
    %s132 = ssub.s32 %s14, %s21
    %p133 = scmp.eq.s32.totalorder %s132, 0
    %s135 = sadd.s32 %s134, 1
    %s136 = scalar_select %p133, %s134, %s135
    %p139 = pneg %p133
    %p140 = scmp.eq.s32.totalorder %s14, 1
    %p141 = por %p139, %p140
    %p142 = scmp.ne.s32.totalorder %s134, %s137
    %p143 = scmp.eq.s32.totalorder %s14, 0
    %p144 = por %p142, %p143
    %p145 = scmp.ne.s32.totalorder %s134, %s137
    %p146 = scmp.eq.s32.totalorder %s19, 1
    %p147 = por %p145, %p146
    %p148 = scmp.ne.s32.totalorder %s137, %s138
    %p149 = scmp.eq.s32.totalorder %s19, 0
    %p150 = por %p148, %p149
    %p151 = scmp.ne.s32.totalorder %s137, %s138
    %p152 = scmp.eq.s32.totalorder %s20, 1
    %p153 = por %p151, %p152
    %p155 = scmp.ne.s32.totalorder %s138, %s154
    %p156 = scmp.eq.s32.totalorder %s20, 0
    %p157 = por %p155, %p156
    %s159 = sadd.s32 %s158, 1
    %p162 = scmp.eq.s32.totalorder %s14, 1
    %p163 = scmp.ne.s32.totalorder %s158, %s160
    %p164 = scmp.eq.s32.totalorder %s14, 0
    %p165 = por %p163, %p164
    %p166 = scmp.ne.s32.totalorder %s158, %s160
    %p167 = scmp.eq.s32.totalorder %s19, 1
    %p168 = por %p166, %p167
    %p169 = scmp.ne.s32.totalorder %s160, %s161
    %p170 = scmp.eq.s32.totalorder %s19, 0
    %p171 = por %p169, %p170
    %p172 = scmp.ne.s32.totalorder %s160, %s161
    %p173 = scmp.eq.s32.totalorder %s20, 1
    %p174 = por %p172, %p173
    %p176 = scmp.ne.s32.totalorder %s161, %s175
    %p177 = scmp.eq.s32.totalorder %s20, 0
    %p178 = por %p176, %p177
    %s180 = sadd.s32 %s179, 1
    %p183 = scmp.eq.s32.totalorder %s14, 1
    %p184 = scmp.ne.s32.totalorder %s179, %s181
    %p185 = scmp.eq.s32.totalorder %s14, 0
    %p186 = por %p184, %p185
    %p187 = scmp.ne.s32.totalorder %s179, %s181
    %p188 = scmp.eq.s32.totalorder %s19, 1
    %p189 = por %p187, %p188
    %p190 = scmp.ne.s32.totalorder %s181, %s182
    %p191 = scmp.eq.s32.totalorder %s19, 0
    %p192 = por %p190, %p191
    %p193 = scmp.ne.s32.totalorder %s181, %s182
    %p194 = scmp.eq.s32.totalorder %s20, 1
    %p195 = por %p193, %p194
    %p197 = scmp.ne.s32.totalorder %s182, %s196
    %p198 = scmp.eq.s32.totalorder %s20, 0
    %p199 = por %p197, %p198
    %s200 = ssub.s32 %s14, %s21
    %p201 = scmp.eq.s32.totalorder %s200, 0
    %s203 = sadd.s32 %s202, 1
    %s204 = scalar_select %p201, %s202, %s203
    %p207 = pneg %p201
    %p208 = scmp.eq.s32.totalorder %s14, 1
    %p209 = por %p207, %p208
    %p210 = scmp.ne.s32.totalorder %s202, %s205
    %p211 = scmp.eq.s32.totalorder %s14, 0
    %p212 = por %p210, %p211
    %p213 = scmp.ne.s32.totalorder %s202, %s205
    %p214 = scmp.eq.s32.totalorder %s19, 1
    %p215 = por %p213, %p214
    %p216 = scmp.ne.s32.totalorder %s205, %s206
    %p217 = scmp.eq.s32.totalorder %s19, 0
    %p218 = por %p216, %p217
    %p219 = scmp.ne.s32.totalorder %s205, %s206
    %p220 = scmp.eq.s32.totalorder %s20, 1
    %p221 = por %p219, %p220
    %p223 = scmp.ne.s32.totalorder %s206, %s222
    %p224 = scmp.eq.s32.totalorder %s20, 0
    %p225 = por %p223, %p224
    %p226 = scmp.le.s32.totalorder 1, %s14
    %p227 = scmp.lt.s32.totalorder %s14, 3
    %p228 = pnand %p226, %p227
    %p229 = pneg %p228
    // Predicated region
    $region9: #{block_group_forward.2} parent=5 // pred_check
      _
    $region10: #{block_group_forward.2} parent=5 // pred_check_branch
      %231 = sbr.rel (%p228) target = $region12
    $region11: #{block_group_forward.2} parent=5 // pred_region
      %s232 = ssub.s32 %s14, 1
      // Predicated region
      $region13: #{block_group_forward.2} parent=11 // pred_check
        %p233 = pneg %p61
      $region14: #{block_group_forward.2} parent=11 // pred_check_branch
        %235 = sbr.rel (%p233) target = $region16
      $region15: #{block_group_forward.2} parent=11 // pred_region
        _
      $region16: #{block_group_forward.2} parent=11 // pred_fallthru
        _
      // Predicated region
      $region17: #{block_group_forward.2} parent=11 // pred_check
        %p236 = pneg %p82
      $region18: #{block_group_forward.2} parent=11 // pred_check_branch
        %238 = sbr.rel (%p236) target = $region20
      $region19: #{block_group_forward.2} parent=11 // pred_region
        _
      $region20: #{block_group_forward.2} parent=11 // pred_fallthru
        _
      // Predicated region
      $region21: #{block_group_forward.2} parent=11 // pred_check
        %p239 = pneg %p103
      $region22: #{block_group_forward.2} parent=11 // pred_check_branch
        %241 = sbr.rel (%p239) target = $region24
      $region23: #{block_group_forward.2} parent=11 // pred_region
        _
      $region24: #{block_group_forward.2} parent=11 // pred_fallthru
        _
      // Predicated region
      $region25: #{block_group_forward.2} parent=11 // pred_check
        %p242 = pneg %p124
      $region26: #{block_group_forward.2} parent=11 // pred_check_branch
        %244 = sbr.rel (%p242) target = $region28
      $region27: #{block_group_forward.2} parent=11 // pred_region
        _
      $region28: #{block_group_forward.2} parent=11 // pred_fallthru
        _
      // Predicated region
      $region29: #{block_group_forward.2} parent=11 // pred_check
        %p245 = pneg %p171
      $region30: #{block_group_forward.2} parent=11 // pred_check_branch
        %247 = sbr.rel (%p245) target = $region32
      $region31: #{block_group_forward.2} parent=11 // pred_region
        _
      $region32: #{block_group_forward.2} parent=11 // pred_fallthru
        _
      // Predicated region
      $region33: #{block_group_forward.2} parent=11 // pred_check
        %p248 = pneg %p192
      $region34: #{block_group_forward.2} parent=11 // pred_check_branch
        %250 = sbr.rel (%p248) target = $region36
      $region35: #{block_group_forward.2} parent=11 // pred_region
        _
      $region36: #{block_group_forward.2} parent=11 // pred_fallthru
        _
    $region12: #{block_group_forward.2} parent=5 // pred_fallthru
      _
    %p251 = scmp.lt.s32.totalorder %s14, 2
    // Predicated region
    $region37: #{block_group_forward.2} parent=5 // pred_check
      %p252 = pneg %p251
    $region38: #{block_group_forward.2} parent=5 // pred_check_branch
      %254 = sbr.rel (%p252) target = $region40
    $region39: #{block_group_forward.2} parent=5 // pred_region
      // Predicated region
      $region41: #{block_group_forward.2} parent=39 // pred_check
        %p255 = pneg %p34
      $region42: #{block_group_forward.2} parent=39 // pred_check_branch
        %257 = sbr.rel (%p255) target = $region44
      $region43: #{block_group_forward.2} parent=39 // pred_region
        %p258 = scmp.lt.s32.totalorder %s14, 1
        %s259 = scalar_select %p258, %s14, 1
        %s260 = smul.addr %s259, 8
        %s261 = smul.addr %s260, 4
        %s262 = scalar_lea.vmem %s0, %s261
      $region44: #{block_group_forward.2} parent=39 // pred_fallthru
        _
      // Predicated region
      $region45: #{block_group_forward.2} parent=39 // pred_check
        %p263 = pneg %p144
      $region46: #{block_group_forward.2} parent=39 // pred_check_branch
        %265 = sbr.rel (%p263) target = $region48
      $region47: #{block_group_forward.2} parent=39 // pred_region
        %p266 = scmp.lt.s32.totalorder %s14, 1
        %s267 = scalar_select %p266, %s14, 1
        %s268 = smul.addr %s267, 8
        %s269 = smul.addr %s268, 4
        %s270 = scalar_lea.vmem %s5, %s269
      $region48: #{block_group_forward.2} parent=39 // pred_fallthru
        _
    $region40: #{block_group_forward.2} parent=5 // pred_fallthru
      _
    %p271 = scmp.le.s32.totalorder 1, %s14
    %p272 = scmp.lt.s32.totalorder %s14, 3
    %p273 = pnand %p271, %p272
    %p274 = pneg %p273
    // Predicated region
    $region49: #{block_group_forward.2} parent=5 // pred_check
      _
    $region50: #{block_group_forward.2} parent=5 // pred_check_branch
      %276 = sbr.rel (%p273) target = $region52
    $region51: #{block_group_forward.2} parent=5 // pred_region
      %s277 = ssub.s32 %s14, 1
      %p278 = scmp.lt.s32.totalorder %s19, 1
      %s279 = scalar_select %p278, %s19, 1
      %s280 = smul.addr %s279, 8
      %s281 = smul.addr %s280, 4
      %s282 = scalar_lea.vmem %s0, %s281
      %p283 = pneg %p40
      %p284 = pneg %p37
      %p285 = pneg %p61
      %p286 = pneg %p58
      %p287 = pneg %p82
      %p288 = pneg %p79
      %p289 = pneg %p103
      %p290 = pneg %p100
      %p291 = pneg %p124
      %p292 = pneg %p121
      %p293 = scmp.lt.s32.totalorder %s19, 1
      %s294 = scalar_select %p293, %s19, 1
      %s295 = smul.addr %s294, 8
      %s296 = smul.addr %s295, 4
      %s297 = scalar_lea.vmem %s5, %s296
      %p298 = pneg %p150
      %p299 = pneg %p147
      %p300 = pneg %p171
      %p301 = pneg %p168
      %p302 = pneg %p192
      %p303 = pneg %p189
      %p304 = pneg %p218
      %p305 = pneg %p215
      %p306 = scmp.lt.s32.totalorder %s19, 1
      %s307 = scalar_select %p306, %s19, 1
      %s308 = smul.addr %s307, 12
      %s309 = smul.addr %s308, 4
      %s310 = scalar_lea.vmem %s8, %s309
      %p311 = scmp.lt.s32.totalorder %s19, 1
      %s312 = scalar_select %p311, %s19, 1
      %s313 = smul.addr %s312, 8
      %s314 = smul.addr %s313, 4
      %s315 = scalar_lea.vmem %s0, %s314
      %p316 = scmp.lt.s32.totalorder %s19, 1
      %s317 = scalar_select %p316, %s19, 1
      %s318 = smul.addr %s317, 8
      %s319 = smul.addr %s318, 4
      %s320 = scalar_lea.vmem %s5, %s319
      %p321 = scmp.lt.s32.totalorder %s19, 1
      %s322 = scalar_select %p321, %s19, 1
      %s323 = smul.addr %s322, 12
      %s324 = smul.addr %s323, 4
      %s325 = scalar_lea.vmem %s8, %s324
      %v329 = vld [vmem:[%s7] sm:$0xff]
      %v330 = vld [vmem:[%s7 + $0x8] sm:$0xff]
      %v331 = vld [vmem:[%s7 + $0x10] sm:$0xff]
      %v332 = vld [vmem:[%s7 + $0x18] sm:$0xff]
      %v333 = vld [vmem:[%s7 + $0x20] sm:$0xff]
      %v334 = vld [vmem:[%s7 + $0x28] sm:$0xff]
      %v335 = vld [vmem:[%s7 + $0x30] sm:$0xff]
      %v336 = vld [vmem:[%s7 + $0x38] sm:$0xff]
      %vm337 = vcmp.gt.s32.totalorder %v329, 0
      %vm338 = vcmp.gt.s32.totalorder %v330, 0
      %vm339 = vcmp.gt.s32.totalorder %v331, 0
      %vm340 = vcmp.gt.s32.totalorder %v332, 0
      %vm341 = vcmp.gt.s32.totalorder %v333, 0
      %vm342 = vcmp.gt.s32.totalorder %v334, 0
      %vm343 = vcmp.gt.s32.totalorder %v335, 0
      %vm344 = vcmp.gt.s32.totalorder %v336, 0
      %vm345 = vcmp.lt.s32.totalorder %v329, 7
      %vm346 = vcmp.lt.s32.totalorder %v330, 7
      %vm347 = vcmp.lt.s32.totalorder %v331, 7
      %vm348 = vcmp.lt.s32.totalorder %v332, 7
      %vm349 = vcmp.lt.s32.totalorder %v333, 7
      %vm350 = vcmp.lt.s32.totalorder %v334, 7
      %vm351 = vcmp.lt.s32.totalorder %v335, 7
      %vm352 = vcmp.lt.s32.totalorder %v336, 7
      %v353 = vld [vmem:[%s315] sm:$0xf]
      %v354 = vld [vmem:[%s315 + $0x4] sm:$0xf]
      %v355 = vld [vmem:[%s315 + $0x8] sm:$0xf]
      %v356 = vld [vmem:[%s315 + $0xc] sm:$0xf]
      %v357 = vld [vmem:[%s315 + $0x10] sm:$0xf]
      %v358 = vld [vmem:[%s315 + $0x14] sm:$0xf]
      %v359 = vld [vmem:[%s315 + $0x18] sm:$0xf]
      %v360 = vld [vmem:[%s315 + $0x1c] sm:$0xf]
      %v361 = vld [vmem:[%s1] sm:$0xf]
      %v362 = vld [vmem:[%s1 + $0x4] sm:$0xf]
      %v363 = vld [vmem:[%s1 + $0x8] sm:$0xf]
      %v364 = vld [vmem:[%s1 + $0xc] sm:$0xf]
      %v365 = vld [vmem:[%s1 + $0x10] sm:$0xf]
      %v366 = vld [vmem:[%s1 + $0x14] sm:$0xf]
      %v367 = vld [vmem:[%s1 + $0x18] sm:$0xf]
      %v368 = vld [vmem:[%s1 + $0x1c] sm:$0xf]
      %v369 = vld [vmem:[%s1 + $0x20] sm:$0xf]
      %v370 = vld [vmem:[%s1 + $0x24] sm:$0xf]
      %v371 = vld [vmem:[%s1 + $0x28] sm:$0xf]
      %v372 = vld [vmem:[%s1 + $0x2c] sm:$0xf]
      %v373 = vld [vmem:[%s1 + $0x30] sm:$0xf]
      %v374 = vld [vmem:[%s1 + $0x34] sm:$0xf]
      %v375 = vld [vmem:[%s1 + $0x38] sm:$0xf]
      %v376 = vld [vmem:[%s1 + $0x3c] sm:$0xf]
      %v377 = vld [vmem:[%s2] sm:$0x1]
      %v379 = vlaneseq
      %v380 = vshrl.u32 %v379, 7
      %v381 = vsub.s32 0, %v380
      %v382 = vrot.slane %v377, %v381
      %v392 = vunpack.c.l.b16 %v353
      %v393 = vunpack.c.l.b16 %v354
      %v394 = vunpack.c.l.b16 %v355
      %v395 = vunpack.c.l.b16 %v356
      %v396 = vunpack.c.l.b16 %v357
      %v397 = vunpack.c.l.b16 %v358
      %v398 = vunpack.c.l.b16 %v359
      %v399 = vunpack.c.l.b16 %v360
      %v400 = vpack.c.b16 %v393, %v392
      %v401 = vpack.c.b16 %v395, %v394
      %v402 = vpack.c.b16 %v397, %v396
      %v403 = vpack.c.b16 %v399, %v398
      %v424 = vunpack.c.l.b16 %v361
      %v425 = vunpack.c.l.b16 %v362
      %v426 = vunpack.c.l.b16 %v363
      %v427 = vunpack.c.l.b16 %v364
      %v428 = vunpack.c.l.b16 %v365
      %v429 = vunpack.c.l.b16 %v366
      %v430 = vunpack.c.l.b16 %v367
      %v431 = vunpack.c.l.b16 %v368
      %v432 = vunpack.c.l.b16 %v369
      %v433 = vunpack.c.l.b16 %v370
      %v434 = vunpack.c.l.b16 %v371
      %v435 = vunpack.c.l.b16 %v372
      %v436 = vunpack.c.l.b16 %v373
      %v437 = vunpack.c.l.b16 %v374
      %v438 = vunpack.c.l.b16 %v375
      %v439 = vunpack.c.l.b16 %v376
      %v440 = vpack.c.b16 %v425, %v424
      %v441 = vpack.c.b16 %v427, %v426
      %v442 = vpack.c.b16 %v429, %v428
      %v443 = vpack.c.b16 %v431, %v430
      %v444 = vpack.c.b16 %v433, %v432
      %v445 = vpack.c.b16 %v435, %v434
      %v446 = vpack.c.b16 %v437, %v436
      %v447 = vpack.c.b16 %v439, %v438
      %456 = vmatprep.subr.bf16.mxu0 0
      %457 = vmatpush1.bf16.msra.mxu0 %v440
      %458 = vmatprep.subr.bf16.mxu0 0
      %459 = vmatpush1.bf16.msra.mxu0 %v441
      %460 = vmatprep.subr.bf16.mxu0 0
      %461 = vmatpush1.bf16.msra.mxu0 %v442
      %462 = vmatprep.subr.bf16.mxu0 0
      %463 = vmatpush1.bf16.msra.mxu0 %v443
      %464 = vmatprep.subr.bf16.mxu0 0
      %465 = vmatpush1.bf16.msra.mxu0 %v444
      %466 = vmatprep.subr.bf16.mxu0 0
      %467 = vmatpush1.bf16.msra.mxu0 %v445
      %468 = vmatprep.subr.bf16.mxu0 0
      %469 = vmatpush1.bf16.msra.mxu0 %v446
      %470 = vmatprep.subr.bf16.mxu0 0
      %471 = vmatpush1.bf16.msra.mxu0 %v447
      %472 = vmatprep.subr.bf16.mxu0 0
      %473 = vmatpush1.bf16.msra.mxu0 0
      %474 = vmatprep.subr.bf16.mxu0 0
      %475 = vmatpush1.bf16.msra.mxu0 0
      %476 = vmatprep.subr.bf16.mxu0 0
      %477 = vmatpush1.bf16.msra.mxu0 0
      %478 = vmatprep.subr.bf16.mxu0 0
      %479 = vmatpush1.bf16.msra.mxu0 0
      %480 = vmatprep.subr.bf16.mxu0 0
      %481 = vmatpush1.bf16.msra.mxu0 0
      %482 = vmatprep.subr.bf16.mxu0 0
      %483 = vmatpush1.bf16.msra.mxu0 0
      %484 = vmatprep.subr.bf16.mxu0 0
      %485 = vmatpush1.bf16.msra.mxu0 0
      %486 = vmatprep.subr.bf16.mxu0 0
      %487 = vmatpush1.bf16.msra.mxu0 0
      %488 = vmatprep.mubr.bf16.mxu0 0
      %489 = vmatmul.mubr.bf16.gmra.mrb[0].mxu0 %v400
      %v490 = vpop.f32.mrb[0].mxu0
      %v491 = vadd.f32 %v382, %v490
      %v492 = vpop.f32.mrb[0].mxu0
      %v493 = vpop.f32.mrb[0].mxu0
      %v494 = vadd.f32 %v382, %v493
      %v495 = vpop.f32.mrb[0].mxu0
      %496 = vmatprep.mubr.bf16.mxu0 0
      %497 = vmatmul.mubr.bf16.gmra.mrb[0].mxu0 %v401
      %v498 = vpop.f32.mrb[0].mxu0
      %v499 = vadd.f32 %v382, %v498
      %v500 = vpop.f32.mrb[0].mxu0
      %v501 = vpop.f32.mrb[0].mxu0
      %v502 = vadd.f32 %v382, %v501
      %v503 = vpop.f32.mrb[0].mxu0
      %504 = vmatprep.mubr.bf16.mxu0 0
      %505 = vmatmul.mubr.bf16.gmra.mrb[0].mxu0 %v402
      %v506 = vpop.f32.mrb[0].mxu0
      %v507 = vadd.f32 %v382, %v506
      %v508 = vpop.f32.mrb[0].mxu0
      %v509 = vpop.f32.mrb[0].mxu0
      %v510 = vadd.f32 %v382, %v509
      %v511 = vpop.f32.mrb[0].mxu0
      %512 = vmatprep.mubr.bf16.mxu0 0
      %513 = vmatmul.mubr.bf16.gmra.mrb[0].mxu0 %v403
      %v514 = vpop.f32.mrb[0].mxu0
      %v515 = vadd.f32 %v382, %v514
      %v516 = vpop.f32.mrb[0].mxu0
      %v517 = vpop.f32.mrb[0].mxu0
      %v518 = vadd.f32 %v382, %v517
      %v519 = vpop.f32.mrb[0].mxu0
      %520 = vdwg.mxu0
      %v521 = vmax.f32 %v491, 0.0
      %v522 = vmax.f32 %v494, 0.0
      %v523 = vmax.f32 %v499, 0.0
      %v524 = vmax.f32 %v502, 0.0
      %v525 = vmax.f32 %v507, 0.0
      %v526 = vmax.f32 %v510, 0.0
      %v527 = vmax.f32 %v515, 0.0
      %v528 = vmax.f32 %v518, 0.0
      %v529 = vpack.c.bf16 %v522, %v521
      %v530 = vpack.c.bf16 %v524, %v523
      %v531 = vpack.c.bf16 %v526, %v525
      %v532 = vpack.c.bf16 %v528, %v527
      %533 = vst [vmem:[#allocation2] sm:$0xff] 0
      %534 = vst [vmem:[#allocation2 + $0x8] sm:$0xff] 0
      %535 = vst [vmem:[#allocation2 + $0x10] sm:$0xff] 0
      %536 = vst [vmem:[#allocation2 + $0x18] sm:$0xff] 0
      %537 = vst [vmem:[#allocation2 + $0x20] sm:$0xff] 0
      %538 = vst [vmem:[#allocation2 + $0x28] sm:$0xff] 0
      %539 = vst [vmem:[#allocation2 + $0x8] sm:$0xff] %v529
      %540 = vst [vmem:[#allocation2 + $0x10] sm:$0xff] %v530
      %541 = vst [vmem:[#allocation2 + $0x18] sm:$0xff] %v531
      %542 = vst [vmem:[#allocation2 + $0x20] sm:$0xff] %v532
      %v543 = vld [vmem:[#allocation2] sm:$0xf8]
      %v544 = vld [vmem:[#allocation2 + $0x8] sm:$0xff]
      %v545 = vld [vmem:[#allocation2 + $0x10] sm:$0xff]
      %v546 = vld [vmem:[#allocation2 + $0x18] sm:$0xff]
      %v547 = vld [vmem:[#allocation2 + $0x20] sm:$0xf]
      %v548 = vsel %vm337, 1, 0
      %v549 = vsel %vm338, 1, 0
      %v550 = vsel %vm339, 1, 0
      %v551 = vsel %vm340, 1, 0
      %v552 = vsel %vm341, 1, 0
      %v553 = vsel %vm342, 1, 0
      %v554 = vsel %vm343, 1, 0
      %v555 = vsel %vm344, 1, 0
      %556 = vset.pattern.permute.xlu0 0
      %557 = vperm.xlu0 %556, %v548
      %v558 = vpop.permute.xlu0 %557
      %559 = vset.pattern.permute.xlu0 0
      %560 = vperm.xlu0 %559, %v549
      %v561 = vpop.permute.xlu0 %560
      %562 = vset.pattern.permute.xlu0 0
      %563 = vperm.xlu0 %562, %v550
      %v564 = vpop.permute.xlu0 %563
      %565 = vset.pattern.permute.xlu0 0
      %566 = vperm.xlu0 %565, %v551
      %v567 = vpop.permute.xlu0 %566
      %568 = vset.pattern.permute.xlu0 0
      %569 = vperm.xlu0 %568, %v552
      %v570 = vpop.permute.xlu0 %569
      %571 = vset.pattern.permute.xlu0 0
      %572 = vperm.xlu0 %571, %v553
      %v573 = vpop.permute.xlu0 %572
      %574 = vset.pattern.permute.xlu0 0
      %575 = vperm.xlu0 %574, %v554
      %v576 = vpop.permute.xlu0 %575
      %577 = vset.pattern.permute.xlu0 0
      %578 = vperm.xlu0 %577, %v555
      %v579 = vpop.permute.xlu0 %578
      %vm580 = vcmp.eq.s32.totalorder %v558, 1
      %vm581 = vcmp.eq.s32.totalorder %v561, 1
      %vm582 = vcmp.eq.s32.totalorder %v564, 1
      %vm583 = vcmp.eq.s32.totalorder %v567, 1
      %vm584 = vcmp.eq.s32.totalorder %v570, 1
      %vm585 = vcmp.eq.s32.totalorder %v573, 1
      %vm586 = vcmp.eq.s32.totalorder %v576, 1
      %vm587 = vcmp.eq.s32.totalorder %v579, 1
      %vm588 = vmpackc.low %vm580, %vm580
      %vm589 = vmpackc.low %vm581, %vm581
      %vm590 = vmpackc.low %vm582, %vm582
      %vm591 = vmpackc.low %vm583, %vm583
      %vm592 = vmpackc.low %vm584, %vm584
      %vm593 = vmpackc.low %vm585, %vm585
      %vm594 = vmpackc.low %vm586, %vm586
      %vm595 = vmpackc.low %vm587, %vm587
      %v596 = vsel %vm588, 65537, 0
      %v597 = vsel %vm589, 65537, 0
      %v598 = vsel %vm590, 65537, 0
      %v599 = vsel %vm591, 65537, 0
      %v600 = vsel %vm592, 65537, 0
      %v601 = vsel %vm593, 65537, 0
      %v602 = vsel %vm594, 65537, 0
      %v603 = vsel %vm595, 65537, 0
      %v604 = vunpack.c.l.b16 %v596
      %v605 = vunpack.c.l.b16 %v597
      %v606 = vunpack.c.l.b16 %v598
      %v607 = vunpack.c.l.b16 %v599
      %v608 = vunpack.c.l.b16 %v600
      %v609 = vunpack.c.l.b16 %v601
      %v610 = vunpack.c.l.b16 %v602
      %v611 = vunpack.c.l.b16 %v603
      %v612 = vpack.c.b16 %v605, %v604
      %v613 = vpack.c.b16 %v607, %v606
      %v614 = vpack.c.b16 %v609, %v608
      %v615 = vpack.c.b16 %v611, %v610
      %vm616 = vsmask.f32 3328
      %v618 = vshrl.u32 %v612, 16
      %v620 = vrot.slane %v618, 4
      %v621 = vshll.u32 %v612, 16
      %v623 = vrot.slane %v621, 5
      %v624 = vor.u32 %v620, %v623
      %v626 = vshrl.u32 %v613, 16
      %v628 = vrot.slane %v626, 4
      %v629 = vshll.u32 %v613, 16
      %v631 = vrot.slane %v629, 5
      %v632 = vor.u32 %v628, %v631
      %v633 = vsel %vm616, %v624, %v632
      %v635 = vshrl.u32 %v614, 16
      %v637 = vrot.slane %v635, 4
      %v638 = vshll.u32 %v614, 16
      %v640 = vrot.slane %v638, 5
      %v641 = vor.u32 %v637, %v640
      %v642 = vsel %vm616, %v632, %v641
      %v644 = vshrl.u32 %v615, 16
      %v646 = vrot.slane %v644, 4
      %v647 = vshll.u32 %v615, 16
      %v649 = vrot.slane %v647, 5
      %v650 = vor.u32 %v646, %v649
      %v651 = vsel %vm616, %v641, %v650
      %vm652 = vcmp.ne.s16.totalorder %v624, 0
      %vm653 = vcmp.ne.s16.totalorder %v633, 0
      %vm654 = vcmp.ne.s16.totalorder %v642, 0
      %vm655 = vcmp.ne.s16.totalorder %v651, 0
      %vm656 = vcmp.ne.s16.totalorder %v650, 0
      %v657 = vsel %vm652, %v543, 0
      %v658 = vsel %vm653, %v544, 0
      %v659 = vsel %vm654, %v545, 0
      %v660 = vsel %vm655, %v546, 0
      %v661 = vsel %vm656, %v547, 0
      %v662 = vld [vmem:[%s3] sm:$0xf]
      %v663 = vld [vmem:[%s3 + $0x4] sm:$0xf]
      %v664 = vld [vmem:[%s3 + $0x8] sm:$0xf]
      %v665 = vld [vmem:[%s3 + $0xc] sm:$0xf]
      %v666 = vld [vmem:[%s3 + $0x10] sm:$0xf]
      %v667 = vld [vmem:[%s3 + $0x14] sm:$0xf]
      %v668 = vld [vmem:[%s3 + $0x18] sm:$0xf]
      %v669 = vld [vmem:[%s3 + $0x1c] sm:$0xf]
      %v670 = vld [vmem:[%s3 + $0x20] sm:$0xf]
      %v671 = vld [vmem:[%s3 + $0x24] sm:$0xf]
      %v672 = vld [vmem:[%s3 + $0x28] sm:$0xf]
      %v673 = vld [vmem:[%s3 + $0x2c] sm:$0xf]
      %v674 = vld [vmem:[%s3 + $0x30] sm:$0xf]
      %v675 = vld [vmem:[%s3 + $0x34] sm:$0xf]
      %v676 = vld [vmem:[%s3 + $0x38] sm:$0xf]
      %v677 = vld [vmem:[%s3 + $0x3c] sm:$0xf]
      %v678 = vld [vmem:[#allocation2] sm:$0xf0]
      %s679 = scalar_lea.vmem %s3, 64
      %v680 = vld [vmem:[%s679] sm:$0xf]
      %v681 = vld [vmem:[%s679 + $0x4] sm:$0xf]
      %v682 = vld [vmem:[%s679 + $0x8] sm:$0xf]
      %v683 = vld [vmem:[%s679 + $0xc] sm:$0xf]
      %v684 = vld [vmem:[%s679 + $0x10] sm:$0xf]
      %v685 = vld [vmem:[%s679 + $0x14] sm:$0xf]
      %v686 = vld [vmem:[%s679 + $0x18] sm:$0xf]
      %v687 = vld [vmem:[%s679 + $0x1c] sm:$0xf]
      %v688 = vld [vmem:[%s679 + $0x20] sm:$0xf]
      %v689 = vld [vmem:[%s679 + $0x24] sm:$0xf]
      %v690 = vld [vmem:[%s679 + $0x28] sm:$0xf]
      %v691 = vld [vmem:[%s679 + $0x2c] sm:$0xf]
      %v692 = vld [vmem:[%s679 + $0x30] sm:$0xf]
      %v693 = vld [vmem:[%s679 + $0x34] sm:$0xf]
      %v694 = vld [vmem:[%s679 + $0x38] sm:$0xf]
      %v695 = vld [vmem:[%s679 + $0x3c] sm:$0xf]
      %vm701 = vcmask 1043456
      %v702 = vrot.slane %v678, 4
      %v703 = vrot.slane %v544, 4
      %v704 = vsel %vm701, %v702, %v703
      %v705 = vrot.slane %v545, 4
      %v706 = vsel %vm701, %v703, %v705
      %v707 = vrot.slane %v546, 4
      %v708 = vsel %vm701, %v705, %v707
      %v709 = vrot.slane %v547, 4
      %v710 = vsel %vm701, %v707, %v709
      %v731 = vunpack.c.l.b16 %v680
      %v732 = vunpack.c.l.b16 %v681
      %v733 = vunpack.c.l.b16 %v682
      %v734 = vunpack.c.l.b16 %v683
      %v735 = vunpack.c.l.b16 %v684
      %v736 = vunpack.c.l.b16 %v685
      %v737 = vunpack.c.l.b16 %v686
      %v738 = vunpack.c.l.b16 %v687
      %v739 = vunpack.c.l.b16 %v688
      %v740 = vunpack.c.l.b16 %v689
      %v741 = vunpack.c.l.b16 %v690
      %v742 = vunpack.c.l.b16 %v691
      %v743 = vunpack.c.l.b16 %v692
      %v744 = vunpack.c.l.b16 %v693
      %v745 = vunpack.c.l.b16 %v694
      %v746 = vunpack.c.l.b16 %v695
      %v747 = vpack.c.b16 %v732, %v731
      %v748 = vpack.c.b16 %v734, %v733
      %v749 = vpack.c.b16 %v736, %v735
      %v750 = vpack.c.b16 %v738, %v737
      %v751 = vpack.c.b16 %v740, %v739
      %v752 = vpack.c.b16 %v742, %v741
      %v753 = vpack.c.b16 %v744, %v743
      %v754 = vpack.c.b16 %v746, %v745
      %763 = vmatprep.subr.bf16.mxu0 0
      %764 = vmatpush1.bf16.msra.mxu0 %v747
      %765 = vmatprep.subr.bf16.mxu0 0
      %766 = vmatpush1.bf16.msra.mxu0 %v748
      %767 = vmatprep.subr.bf16.mxu0 0
      %768 = vmatpush1.bf16.msra.mxu0 %v749
      %769 = vmatprep.subr.bf16.mxu0 0
      %770 = vmatpush1.bf16.msra.mxu0 %v750
      %771 = vmatprep.subr.bf16.mxu0 0
      %772 = vmatpush1.bf16.msra.mxu0 %v751
      %773 = vmatprep.subr.bf16.mxu0 0
      %774 = vmatpush1.bf16.msra.mxu0 %v752
      %775 = vmatprep.subr.bf16.mxu0 0
      %776 = vmatpush1.bf16.msra.mxu0 %v753
      %777 = vmatprep.subr.bf16.mxu0 0
      %778 = vmatpush1.bf16.msra.mxu0 %v754
      %779 = vmatprep.subr.bf16.mxu0 0
      %780 = vmatpush1.bf16.msra.mxu0 0
      %781 = vmatprep.subr.bf16.mxu0 0
      %782 = vmatpush1.bf16.msra.mxu0 0
      %783 = vmatprep.subr.bf16.mxu0 0
      %784 = vmatpush1.bf16.msra.mxu0 0
      %785 = vmatprep.subr.bf16.mxu0 0
      %786 = vmatpush1.bf16.msra.mxu0 0
      %787 = vmatprep.subr.bf16.mxu0 0
      %788 = vmatpush1.bf16.msra.mxu0 0
      %789 = vmatprep.subr.bf16.mxu0 0
      %790 = vmatpush1.bf16.msra.mxu0 0
      %791 = vmatprep.subr.bf16.mxu0 0
      %792 = vmatpush1.bf16.msra.mxu0 0
      %793 = vmatprep.subr.bf16.mxu0 0
      %794 = vmatpush1.bf16.msra.mxu0 0
      %795 = vmatprep.mubr.bf16.mxu0 0
      %796 = vmatmul.mubr.bf16.gmra.mrb[0].mxu0 %v704
      %v797 = vpop.f32.mrb[0].mxu0
      %v798 = vadd.f32 0.0, %v797
      %v799 = vpop.f32.mrb[0].mxu0
      %v800 = vpop.f32.mrb[0].mxu0
      %v801 = vadd.f32 0.0, %v800
      %v802 = vpop.f32.mrb[0].mxu0
      %803 = vmatprep.mubr.bf16.mxu0 0
      %804 = vmatmul.mubr.bf16.gmra.mrb[0].mxu0 %v706
      %v805 = vpop.f32.mrb[0].mxu0
      %v806 = vadd.f32 0.0, %v805
      %v807 = vpop.f32.mrb[0].mxu0
      %v808 = vpop.f32.mrb[0].mxu0
      %v809 = vadd.f32 0.0, %v808
      %v810 = vpop.f32.mrb[0].mxu0
      %811 = vmatprep.mubr.bf16.mxu0 0
      %812 = vmatmul.mubr.bf16.gmra.mrb[0].mxu0 %v708
      %v813 = vpop.f32.mrb[0].mxu0
      %v814 = vadd.f32 0.0, %v813
      %v815 = vpop.f32.mrb[0].mxu0
      %v816 = vpop.f32.mrb[0].mxu0
      %v817 = vadd.f32 0.0, %v816
      %v818 = vpop.f32.mrb[0].mxu0
      %819 = vmatprep.mubr.bf16.mxu0 0
      %820 = vmatmul.mubr.bf16.gmra.mrb[0].mxu0 %v710
      %v821 = vpop.f32.mrb[0].mxu0
      %v822 = vadd.f32 0.0, %v821
      %v823 = vpop.f32.mrb[0].mxu0
      %v824 = vpop.f32.mrb[0].mxu0
      %v825 = vadd.f32 0.0, %v824
      %v826 = vpop.f32.mrb[0].mxu0
      %827 = vdwg.mxu0
      %vm828 = vsmask.f32 4352
      %v830 = vshrl.u32 %v657, 16
      %v832 = vrot.slane %v830, 3
      %v833 = vshll.u32 %v657, 16
      %v835 = vrot.slane %v833, 4
      %v836 = vor.u32 %v832, %v835
      %v838 = vshrl.u32 %v658, 16
      %v840 = vrot.slane %v838, 3
      %v841 = vshll.u32 %v658, 16
      %v843 = vrot.slane %v841, 4
      %v844 = vor.u32 %v840, %v843
      %v845 = vsel %vm828, %v836, %v844
      %v847 = vshrl.u32 %v659, 16
      %v849 = vrot.slane %v847, 3
      %v850 = vshll.u32 %v659, 16
      %v852 = vrot.slane %v850, 4
      %v853 = vor.u32 %v849, %v852
      %v854 = vsel %vm828, %v844, %v853
      %v856 = vshrl.u32 %v660, 16
      %v858 = vrot.slane %v856, 3
      %v859 = vshll.u32 %v660, 16
      %v861 = vrot.slane %v859, 4
      %v862 = vor.u32 %v858, %v861
      %v863 = vsel %vm828, %v853, %v862
      %v865 = vshrl.u32 %v661, 16
      %v867 = vrot.slane %v865, 3
      %v868 = vshll.u32 %v661, 16
      %v870 = vrot.slane %v868, 4
      %v871 = vor.u32 %v867, %v870
      %v872 = vsel %vm828, %v862, %v871
      %v893 = vunpack.c.l.b16 %v662
      %v894 = vunpack.c.l.b16 %v663
      %v895 = vunpack.c.l.b16 %v664
      %v896 = vunpack.c.l.b16 %v665
      %v897 = vunpack.c.l.b16 %v666
      %v898 = vunpack.c.l.b16 %v667
      %v899 = vunpack.c.l.b16 %v668
      %v900 = vunpack.c.l.b16 %v669
      %v901 = vunpack.c.l.b16 %v670
      %v902 = vunpack.c.l.b16 %v671
      %v903 = vunpack.c.l.b16 %v672
      %v904 = vunpack.c.l.b16 %v673
      %v905 = vunpack.c.l.b16 %v674
      %v906 = vunpack.c.l.b16 %v675
      %v907 = vunpack.c.l.b16 %v676
      %v908 = vunpack.c.l.b16 %v677
      %v909 = vpack.c.b16 %v894, %v893
      %v910 = vpack.c.b16 %v896, %v895
      %v911 = vpack.c.b16 %v898, %v897
      %v912 = vpack.c.b16 %v900, %v899
      %v913 = vpack.c.b16 %v902, %v901
      %v914 = vpack.c.b16 %v904, %v903
      %v915 = vpack.c.b16 %v906, %v905
      %v916 = vpack.c.b16 %v908, %v907
      %925 = vmatprep.subr.bf16.mxu0 0
      %926 = vmatpush1.bf16.msra.mxu0 %v909
      %927 = vmatprep.subr.bf16.mxu0 0
      %928 = vmatpush1.bf16.msra.mxu0 %v910
      %929 = vmatprep.subr.bf16.mxu0 0
      %930 = vmatpush1.bf16.msra.mxu0 %v911
      %931 = vmatprep.subr.bf16.mxu0 0
      %932 = vmatpush1.bf16.msra.mxu0 %v912
      %933 = vmatprep.subr.bf16.mxu0 0
      %934 = vmatpush1.bf16.msra.mxu0 %v913
      %935 = vmatprep.subr.bf16.mxu0 0
      %936 = vmatpush1.bf16.msra.mxu0 %v914
      %937 = vmatprep.subr.bf16.mxu0 0
      %938 = vmatpush1.bf16.msra.mxu0 %v915
      %939 = vmatprep.subr.bf16.mxu0 0
      %940 = vmatpush1.bf16.msra.mxu0 %v916
      %941 = vmatprep.subr.bf16.mxu0 0
      %942 = vmatpush1.bf16.msra.mxu0 0
      %943 = vmatprep.subr.bf16.mxu0 0
      %944 = vmatpush1.bf16.msra.mxu0 0
      %945 = vmatprep.subr.bf16.mxu0 0
      %946 = vmatpush1.bf16.msra.mxu0 0
      %947 = vmatprep.subr.bf16.mxu0 0
      %948 = vmatpush1.bf16.msra.mxu0 0
      %949 = vmatprep.subr.bf16.mxu0 0
      %950 = vmatpush1.bf16.msra.mxu0 0
      %951 = vmatprep.subr.bf16.mxu0 0
      %952 = vmatpush1.bf16.msra.mxu0 0
      %953 = vmatprep.subr.bf16.mxu0 0
      %954 = vmatpush1.bf16.msra.mxu0 0
      %955 = vmatprep.subr.bf16.mxu0 0
      %956 = vmatpush1.bf16.msra.mxu0 0
      %957 = vmatprep.mubr.bf16.mxu0 0
      %958 = vmatmul.mubr.bf16.gmra.mrb[0].mxu0 %v845
      %v959 = vpop.f32.mrb[0].mxu0
      %v960 = vadd.f32 %v798, %v959
      %v961 = vpop.f32.mrb[0].mxu0
      %v962 = vpop.f32.mrb[0].mxu0
      %v963 = vadd.f32 %v801, %v962
      %v964 = vpop.f32.mrb[0].mxu0
      %965 = vmatprep.mubr.bf16.mxu0 0
      %966 = vmatmul.mubr.bf16.gmra.mrb[0].mxu0 %v854
      %v967 = vpop.f32.mrb[0].mxu0
      %v968 = vadd.f32 %v806, %v967
      %v969 = vpop.f32.mrb[0].mxu0
      %v970 = vpop.f32.mrb[0].mxu0
      %v971 = vadd.f32 %v809, %v970
      %v972 = vpop.f32.mrb[0].mxu0
      %973 = vmatprep.mubr.bf16.mxu0 0
      %974 = vmatmul.mubr.bf16.gmra.mrb[0].mxu0 %v863
      %v975 = vpop.f32.mrb[0].mxu0
      %v976 = vadd.f32 %v814, %v975
      %v977 = vpop.f32.mrb[0].mxu0
      %v978 = vpop.f32.mrb[0].mxu0
      %v979 = vadd.f32 %v817, %v978
      %v980 = vpop.f32.mrb[0].mxu0
      %981 = vmatprep.mubr.bf16.mxu0 0
      %982 = vmatmul.mubr.bf16.gmra.mrb[0].mxu0 %v872
      %v983 = vpop.f32.mrb[0].mxu0
      %v984 = vadd.f32 %v822, %v983
      %v985 = vpop.f32.mrb[0].mxu0
      %v986 = vpop.f32.mrb[0].mxu0
      %v987 = vadd.f32 %v825, %v986
      %v988 = vpop.f32.mrb[0].mxu0
      %989 = vdwg.mxu0
      %v990 = vld [vmem:[#allocation2 + $0x20] sm:$0x1f]
      %v991 = vsel %vm345, 1, 0
      %v992 = vsel %vm346, 1, 0
      %v993 = vsel %vm347, 1, 0
      %v994 = vsel %vm348, 1, 0
      %v995 = vsel %vm349, 1, 0
      %v996 = vsel %vm350, 1, 0
      %v997 = vsel %vm351, 1, 0
      %v998 = vsel %vm352, 1, 0
      %999 = vset.pattern.permute.xlu0 0
      %1000 = vperm.xlu0 %999, %v991
      %v1001 = vpop.permute.xlu0 %1000
      %1002 = vset.pattern.permute.xlu0 0
      %1003 = vperm.xlu0 %1002, %v992
      %v1004 = vpop.permute.xlu0 %1003
      %1005 = vset.pattern.permute.xlu0 0
      %1006 = vperm.xlu0 %1005, %v993
      %v1007 = vpop.permute.xlu0 %1006
      %1008 = vset.pattern.permute.xlu0 0
      %1009 = vperm.xlu0 %1008, %v994
      %v1010 = vpop.permute.xlu0 %1009
      %1011 = vset.pattern.permute.xlu0 0
      %1012 = vperm.xlu0 %1011, %v995
      %v1013 = vpop.permute.xlu0 %1012
      %1014 = vset.pattern.permute.xlu0 0
      %1015 = vperm.xlu0 %1014, %v996
      %v1016 = vpop.permute.xlu0 %1015
      %1017 = vset.pattern.permute.xlu0 0
      %1018 = vperm.xlu0 %1017, %v997
      %v1019 = vpop.permute.xlu0 %1018
      %1020 = vset.pattern.permute.xlu0 0
      %1021 = vperm.xlu0 %1020, %v998
      %v1022 = vpop.permute.xlu0 %1021
      %vm1023 = vcmp.eq.s32.totalorder %v1001, 1
      %vm1024 = vcmp.eq.s32.totalorder %v1004, 1
      %vm1025 = vcmp.eq.s32.totalorder %v1007, 1
      %vm1026 = vcmp.eq.s32.totalorder %v1010, 1
      %vm1027 = vcmp.eq.s32.totalorder %v1013, 1
      %vm1028 = vcmp.eq.s32.totalorder %v1016, 1
      %vm1029 = vcmp.eq.s32.totalorder %v1019, 1
      %vm1030 = vcmp.eq.s32.totalorder %v1022, 1
      %vm1031 = vmpackc.low %vm1023, %vm1023
      %vm1032 = vmpackc.low %vm1024, %vm1024
      %vm1033 = vmpackc.low %vm1025, %vm1025
      %vm1034 = vmpackc.low %vm1026, %vm1026
      %vm1035 = vmpackc.low %vm1027, %vm1027
      %vm1036 = vmpackc.low %vm1028, %vm1028
      %vm1037 = vmpackc.low %vm1029, %vm1029
      %vm1038 = vmpackc.low %vm1030, %vm1030
      %v1039 = vsel %vm1031, 65537, 0
      %v1040 = vsel %vm1032, 65537, 0
      %v1041 = vsel %vm1033, 65537, 0
      %v1042 = vsel %vm1034, 65537, 0
      %v1043 = vsel %vm1035, 65537, 0
      %v1044 = vsel %vm1036, 65537, 0
      %v1045 = vsel %vm1037, 65537, 0
      %v1046 = vsel %vm1038, 65537, 0
      %v1047 = vunpack.c.l.b16 %v1039
      %v1048 = vunpack.c.l.b16 %v1040
      %v1049 = vunpack.c.l.b16 %v1041
      %v1050 = vunpack.c.l.b16 %v1042
      %v1051 = vunpack.c.l.b16 %v1043
      %v1052 = vunpack.c.l.b16 %v1044
      %v1053 = vunpack.c.l.b16 %v1045
      %v1054 = vunpack.c.l.b16 %v1046
      %v1055 = vpack.c.b16 %v1048, %v1047
      %v1056 = vpack.c.b16 %v1050, %v1049
      %v1057 = vpack.c.b16 %v1052, %v1051
      %v1058 = vpack.c.b16 %v1054, %v1053
      %v1060 = vshrl.u32 %v1055, 16
      %v1062 = vrot.slane %v1060, 3
      %v1063 = vshll.u32 %v1055, 16
      %v1065 = vrot.slane %v1063, 4
      %v1066 = vor.u32 %v1062, %v1065
      %v1068 = vshrl.u32 %v1056, 16
      %v1070 = vrot.slane %v1068, 3
      %v1071 = vshll.u32 %v1056, 16
      %v1073 = vrot.slane %v1071, 4
      %v1074 = vor.u32 %v1070, %v1073
      %v1075 = vsel %vm828, %v1066, %v1074
      %v1077 = vshrl.u32 %v1057, 16
      %v1079 = vrot.slane %v1077, 3
      %v1080 = vshll.u32 %v1057, 16
      %v1082 = vrot.slane %v1080, 4
      %v1083 = vor.u32 %v1079, %v1082
      %v1084 = vsel %vm828, %v1074, %v1083
      %v1086 = vshrl.u32 %v1058, 16
      %v1088 = vrot.slane %v1086, 3
      %v1089 = vshll.u32 %v1058, 16
      %v1091 = vrot.slane %v1089, 4
      %v1092 = vor.u32 %v1088, %v1091
      %v1093 = vsel %vm828, %v1083, %v1092
      %vm1094 = vcmp.ne.s16.totalorder %v1066, 0
      %vm1095 = vcmp.ne.s16.totalorder %v1075, 0
      %vm1096 = vcmp.ne.s16.totalorder %v1084, 0
      %vm1097 = vcmp.ne.s16.totalorder %v1093, 0
      %vm1098 = vcmp.ne.s16.totalorder %v1092, 0
      %v1099 = vsel %vm1094, %v678, 0
      %v1100 = vsel %vm1095, %v544, 0
      %v1101 = vsel %vm1096, %v545, 0
      %v1102 = vsel %vm1097, %v546, 0
      %v1103 = vsel %vm1098, %v990, 0
      %s1104 = scalar_lea.vmem %s3, 128
      %v1105 = vld [vmem:[%s1104] sm:$0xf]
      %v1106 = vld [vmem:[%s1104 + $0x4] sm:$0xf]
      %v1107 = vld [vmem:[%s1104 + $0x8] sm:$0xf]
      %v1108 = vld [vmem:[%s1104 + $0xc] sm:$0xf]
      %v1109 = vld [vmem:[%s1104 + $0x10] sm:$0xf]
      %v1110 = vld [vmem:[%s1104 + $0x14] sm:$0xf]
      %v1111 = vld [vmem:[%s1104 + $0x18] sm:$0xf]
      %v1112 = vld [vmem:[%s1104 + $0x1c] sm:$0xf]
      %v1113 = vld [vmem:[%s1104 + $0x20] sm:$0xf]
      %v1114 = vld [vmem:[%s1104 + $0x24] sm:$0xf]
      %v1115 = vld [vmem:[%s1104 + $0x28] sm:$0xf]
      %v1116 = vld [vmem:[%s1104 + $0x2c] sm:$0xf]
      %v1117 = vld [vmem:[%s1104 + $0x30] sm:$0xf]
      %v1118 = vld [vmem:[%s1104 + $0x34] sm:$0xf]
      %v1119 = vld [vmem:[%s1104 + $0x38] sm:$0xf]
      %v1120 = vld [vmem:[%s1104 + $0x3c] sm:$0xf]
      %v1122 = vshrl.u32 %v1099, 16
      %v1124 = vrot.slane %v1122, 4
      %v1125 = vshll.u32 %v1099, 16
      %v1127 = vrot.slane %v1125, 5
      %v1128 = vor.u32 %v1124, %v1127
      %v1130 = vshrl.u32 %v1100, 16
      %v1132 = vrot.slane %v1130, 4
      %v1133 = vshll.u32 %v1100, 16
      %v1135 = vrot.slane %v1133, 5
      %v1136 = vor.u32 %v1132, %v1135
      %v1137 = vsel %vm616, %v1128, %v1136
      %v1139 = vshrl.u32 %v1101, 16
      %v1141 = vrot.slane %v1139, 4
      %v1142 = vshll.u32 %v1101, 16
      %v1144 = vrot.slane %v1142, 5
      %v1145 = vor.u32 %v1141, %v1144
      %v1146 = vsel %vm616, %v1136, %v1145
      %v1148 = vshrl.u32 %v1102, 16
      %v1150 = vrot.slane %v1148, 4
      %v1151 = vshll.u32 %v1102, 16
      %v1153 = vrot.slane %v1151, 5
      %v1154 = vor.u32 %v1150, %v1153
      %v1155 = vsel %vm616, %v1145, %v1154
      %v1157 = vshrl.u32 %v1103, 16
      %v1159 = vrot.slane %v1157, 4
      %v1160 = vshll.u32 %v1103, 16
      %v1162 = vrot.slane %v1160, 5
      %v1163 = vor.u32 %v1159, %v1162
      %v1164 = vsel %vm616, %v1154, %v1163
      %v1185 = vunpack.c.l.b16 %v1105
      %v1186 = vunpack.c.l.b16 %v1106
      %v1187 = vunpack.c.l.b16 %v1107
      %v1188 = vunpack.c.l.b16 %v1108
      %v1189 = vunpack.c.l.b16 %v1109
      %v1190 = vunpack.c.l.b16 %v1110
      %v1191 = vunpack.c.l.b16 %v1111
      %v1192 = vunpack.c.l.b16 %v1112
      %v1193 = vunpack.c.l.b16 %v1113
      %v1194 = vunpack.c.l.b16 %v1114
      %v1195 = vunpack.c.l.b16 %v1115
      %v1196 = vunpack.c.l.b16 %v1116
      %v1197 = vunpack.c.l.b16 %v1117
      %v1198 = vunpack.c.l.b16 %v1118
      %v1199 = vunpack.c.l.b16 %v1119
      %v1200 = vunpack.c.l.b16 %v1120
      %v1201 = vpack.c.b16 %v1186, %v1185
      %v1202 = vpack.c.b16 %v1188, %v1187
      %v1203 = vpack.c.b16 %v1190, %v1189
      %v1204 = vpack.c.b16 %v1192, %v1191
      %v1205 = vpack.c.b16 %v1194, %v1193
      %v1206 = vpack.c.b16 %v1196, %v1195
      %v1207 = vpack.c.b16 %v1198, %v1197
      %v1208 = vpack.c.b16 %v1200, %v1199
      %1217 = vmatprep.subr.bf16.mxu0 0
      %1218 = vmatpush1.bf16.msra.mxu0 %v1201
      %1219 = vmatprep.subr.bf16.mxu0 0
      %1220 = vmatpush1.bf16.msra.mxu0 %v1202
      %1221 = vmatprep.subr.bf16.mxu0 0
      %1222 = vmatpush1.bf16.msra.mxu0 %v1203
      %1223 = vmatprep.subr.bf16.mxu0 0
      %1224 = vmatpush1.bf16.msra.mxu0 %v1204
      %1225 = vmatprep.subr.bf16.mxu0 0
      %1226 = vmatpush1.bf16.msra.mxu0 %v1205
      %1227 = vmatprep.subr.bf16.mxu0 0
      %1228 = vmatpush1.bf16.msra.mxu0 %v1206
      %1229 = vmatprep.subr.bf16.mxu0 0
      %1230 = vmatpush1.bf16.msra.mxu0 %v1207
      %1231 = vmatprep.subr.bf16.mxu0 0
      %1232 = vmatpush1.bf16.msra.mxu0 %v1208
      %1233 = vmatprep.subr.bf16.mxu0 0
      %1234 = vmatpush1.bf16.msra.mxu0 0
      %1235 = vmatprep.subr.bf16.mxu0 0
      %1236 = vmatpush1.bf16.msra.mxu0 0
      %1237 = vmatprep.subr.bf16.mxu0 0
      %1238 = vmatpush1.bf16.msra.mxu0 0
      %1239 = vmatprep.subr.bf16.mxu0 0
      %1240 = vmatpush1.bf16.msra.mxu0 0
      %1241 = vmatprep.subr.bf16.mxu0 0
      %1242 = vmatpush1.bf16.msra.mxu0 0
      %1243 = vmatprep.subr.bf16.mxu0 0
      %1244 = vmatpush1.bf16.msra.mxu0 0
      %1245 = vmatprep.subr.bf16.mxu0 0
      %1246 = vmatpush1.bf16.msra.mxu0 0
      %1247 = vmatprep.subr.bf16.mxu0 0
      %1248 = vmatpush1.bf16.msra.mxu0 0
      %1249 = vmatprep.mubr.bf16.mxu0 0
      %1250 = vmatmul.mubr.bf16.gmra.mrb[0].mxu0 %v1137
      %v1251 = vpop.f32.mrb[0].mxu0
      %v1252 = vadd.f32 0.0, %v1251
      %v1253 = vpop.f32.mrb[0].mxu0
      %v1254 = vpop.f32.mrb[0].mxu0
      %v1255 = vadd.f32 0.0, %v1254
      %v1256 = vpop.f32.mrb[0].mxu0
      %1257 = vmatprep.mubr.bf16.mxu0 0
      %1258 = vmatmul.mubr.bf16.gmra.mrb[0].mxu0 %v1146
      %v1259 = vpop.f32.mrb[0].mxu0
      %v1260 = vadd.f32 0.0, %v1259
      %v1261 = vpop.f32.mrb[0].mxu0
      %v1262 = vpop.f32.mrb[0].mxu0
      %v1263 = vadd.f32 0.0, %v1262
      %v1264 = vpop.f32.mrb[0].mxu0
      %1265 = vmatprep.mubr.bf16.mxu0 0
      %1266 = vmatmul.mubr.bf16.gmra.mrb[0].mxu0 %v1155
      %v1267 = vpop.f32.mrb[0].mxu0
      %v1268 = vadd.f32 0.0, %v1267
      %v1269 = vpop.f32.mrb[0].mxu0
      %v1270 = vpop.f32.mrb[0].mxu0
      %v1271 = vadd.f32 0.0, %v1270
      %v1272 = vpop.f32.mrb[0].mxu0
      %1273 = vmatprep.mubr.bf16.mxu0 0
      %1274 = vmatmul.mubr.bf16.gmra.mrb[0].mxu0 %v1164
      %v1275 = vpop.f32.mrb[0].mxu0
      %v1276 = vadd.f32 0.0, %v1275
      %v1277 = vpop.f32.mrb[0].mxu0
      %v1278 = vpop.f32.mrb[0].mxu0
      %v1279 = vadd.f32 0.0, %v1278
      %v1280 = vpop.f32.mrb[0].mxu0
      %1281 = vdwg.mxu0
      %v1282 = vadd.f32 %v960, %v1252
      %v1283 = vadd.f32 %v963, %v1255
      %v1284 = vadd.f32 %v968, %v1260
      %v1285 = vadd.f32 %v971, %v1263
      %v1286 = vadd.f32 %v976, %v1268
      %v1287 = vadd.f32 %v979, %v1271
      %v1288 = vadd.f32 %v984, %v1276
      %v1289 = vadd.f32 %v987, %v1279
      %v1290 = vld [vmem:[#allocation2] sm:$0x80]
      %v1291 = vld [vmem:[#allocation2 + $0x20] sm:$0xff]
      %vm1292 = vsmask.f32 7424
      %v1293 = vrot.slane %v621, 1
      %v1294 = vor.u32 %v618, %v1293
      %v1295 = vrot.slane %v629, 1
      %v1296 = vsel %vm1292, %v1294, %v1295
      %v1297 = vor.u32 %v626, %v1295
      %v1298 = vrot.slane %v638, 1
      %v1299 = vsel %vm1292, %v1297, %v1298
      %v1300 = vor.u32 %v635, %v1298
      %v1301 = vrot.slane %v647, 1
      %v1302 = vsel %vm1292, %v1300, %v1301
      %v1303 = vor.u32 %v644, %v1301
      %vm1304 = vcmp.ne.s16.totalorder %v1293, 0
      %vm1305 = vcmp.ne.s16.totalorder %v1296, 0
      %vm1306 = vcmp.ne.s16.totalorder %v1299, 0
      %vm1307 = vcmp.ne.s16.totalorder %v1302, 0
      %vm1308 = vcmp.ne.s16.totalorder %v1303, 0
      %v1309 = vsel %vm1304, %v1290, 0
      %v1310 = vsel %vm1305, %v544, 0
      %v1311 = vsel %vm1306, %v545, 0
      %v1312 = vsel %vm1307, %v546, 0
      %v1313 = vsel %vm1308, %v1291, 0
      %s1314 = scalar_lea.vmem %s3, 192
      %v1315 = vld [vmem:[%s1314] sm:$0xf]
      %v1316 = vld [vmem:[%s1314 + $0x4] sm:$0xf]
      %v1317 = vld [vmem:[%s1314 + $0x8] sm:$0xf]
      %v1318 = vld [vmem:[%s1314 + $0xc] sm:$0xf]
      %v1319 = vld [vmem:[%s1314 + $0x10] sm:$0xf]
      %v1320 = vld [vmem:[%s1314 + $0x14] sm:$0xf]
      %v1321 = vld [vmem:[%s1314 + $0x18] sm:$0xf]
      %v1322 = vld [vmem:[%s1314 + $0x1c] sm:$0xf]
      %v1323 = vld [vmem:[%s1314 + $0x20] sm:$0xf]
      %v1324 = vld [vmem:[%s1314 + $0x24] sm:$0xf]
      %v1325 = vld [vmem:[%s1314 + $0x28] sm:$0xf]
      %v1326 = vld [vmem:[%s1314 + $0x2c] sm:$0xf]
      %v1327 = vld [vmem:[%s1314 + $0x30] sm:$0xf]
      %v1328 = vld [vmem:[%s1314 + $0x34] sm:$0xf]
      %v1329 = vld [vmem:[%s1314 + $0x38] sm:$0xf]
      %v1330 = vld [vmem:[%s1314 + $0x3c] sm:$0xf]
      %vm1331 = vsmask.f32 256
      %v1333 = vshrl.u32 %v1309, 16
      %v1335 = vrot.slane %v1333, 7
      %v1337 = vshrl.u32 %v1310, 16
      %v1339 = vrot.slane %v1337, 7
      %v1340 = vshll.u32 %v1310, 16
      %v1342 = vor.u32 %v1339, %v1340
      %v1343 = vsel %vm1331, %v1335, %v1342
      %v1345 = vshrl.u32 %v1311, 16
      %v1347 = vrot.slane %v1345, 7
      %v1348 = vshll.u32 %v1311, 16
      %v1350 = vor.u32 %v1347, %v1348
      %v1351 = vsel %vm1331, %v1339, %v1350
      %v1353 = vshrl.u32 %v1312, 16
      %v1355 = vrot.slane %v1353, 7
      %v1356 = vshll.u32 %v1312, 16
      %v1358 = vor.u32 %v1355, %v1356
      %v1359 = vsel %vm1331, %v1347, %v1358
      %v1361 = vshrl.u32 %v1313, 16
      %v1363 = vrot.slane %v1361, 7
      %v1364 = vshll.u32 %v1313, 16
      %v1366 = vor.u32 %v1363, %v1364
      %v1367 = vsel %vm1331, %v1355, %v1366
      %v1388 = vunpack.c.l.b16 %v1315
      %v1389 = vunpack.c.l.b16 %v1316
      %v1390 = vunpack.c.l.b16 %v1317
      %v1391 = vunpack.c.l.b16 %v1318
      %v1392 = vunpack.c.l.b16 %v1319
      %v1393 = vunpack.c.l.b16 %v1320
      %v1394 = vunpack.c.l.b16 %v1321
      %v1395 = vunpack.c.l.b16 %v1322
      %v1396 = vunpack.c.l.b16 %v1323
      %v1397 = vunpack.c.l.b16 %v1324
      %v1398 = vunpack.c.l.b16 %v1325
      %v1399 = vunpack.c.l.b16 %v1326
      %v1400 = vunpack.c.l.b16 %v1327
      %v1401 = vunpack.c.l.b16 %v1328
      %v1402 = vunpack.c.l.b16 %v1329
      %v1403 = vunpack.c.l.b16 %v1330
      %v1404 = vpack.c.b16 %v1389, %v1388
      %v1405 = vpack.c.b16 %v1391, %v1390
      %v1406 = vpack.c.b16 %v1393, %v1392
      %v1407 = vpack.c.b16 %v1395, %v1394
      %v1408 = vpack.c.b16 %v1397, %v1396
      %v1409 = vpack.c.b16 %v1399, %v1398
      %v1410 = vpack.c.b16 %v1401, %v1400
      %v1411 = vpack.c.b16 %v1403, %v1402
      %1420 = vmatprep.subr.bf16.mxu0 0
      %1421 = vmatpush1.bf16.msra.mxu0 %v1404
      %1422 = vmatprep.subr.bf16.mxu0 0
      %1423 = vmatpush1.bf16.msra.mxu0 %v1405
      %1424 = vmatprep.subr.bf16.mxu0 0
      %1425 = vmatpush1.bf16.msra.mxu0 %v1406
      %1426 = vmatprep.subr.bf16.mxu0 0
      %1427 = vmatpush1.bf16.msra.mxu0 %v1407
      %1428 = vmatprep.subr.bf16.mxu0 0
      %1429 = vmatpush1.bf16.msra.mxu0 %v1408
      %1430 = vmatprep.subr.bf16.mxu0 0
      %1431 = vmatpush1.bf16.msra.mxu0 %v1409
      %1432 = vmatprep.subr.bf16.mxu0 0
      %1433 = vmatpush1.bf16.msra.mxu0 %v1410
      %1434 = vmatprep.subr.bf16.mxu0 0
      %1435 = vmatpush1.bf16.msra.mxu0 %v1411
      %1436 = vmatprep.subr.bf16.mxu0 0
      %1437 = vmatpush1.bf16.msra.mxu0 0
      %1438 = vmatprep.subr.bf16.mxu0 0
      %1439 = vmatpush1.bf16.msra.mxu0 0
      %1440 = vmatprep.subr.bf16.mxu0 0
      %1441 = vmatpush1.bf16.msra.mxu0 0
      %1442 = vmatprep.subr.bf16.mxu0 0
      %1443 = vmatpush1.bf16.msra.mxu0 0
      %1444 = vmatprep.subr.bf16.mxu0 0
      %1445 = vmatpush1.bf16.msra.mxu0 0
      %1446 = vmatprep.subr.bf16.mxu0 0
      %1447 = vmatpush1.bf16.msra.mxu0 0
      %1448 = vmatprep.subr.bf16.mxu0 0
      %1449 = vmatpush1.bf16.msra.mxu0 0
      %1450 = vmatprep.subr.bf16.mxu0 0
      %1451 = vmatpush1.bf16.msra.mxu0 0
      %1452 = vmatprep.mubr.bf16.mxu0 0
      %1453 = vmatmul.mubr.bf16.gmra.mrb[0].mxu0 %v1343
      %v1454 = vpop.f32.mrb[0].mxu0
      %v1455 = vadd.f32 0.0, %v1454
      %v1456 = vpop.f32.mrb[0].mxu0
      %v1457 = vpop.f32.mrb[0].mxu0
      %v1458 = vadd.f32 0.0, %v1457
      %v1459 = vpop.f32.mrb[0].mxu0
      %1460 = vmatprep.mubr.bf16.mxu0 0
      %1461 = vmatmul.mubr.bf16.gmra.mrb[0].mxu0 %v1351
      %v1462 = vpop.f32.mrb[0].mxu0
      %v1463 = vadd.f32 0.0, %v1462
      %v1464 = vpop.f32.mrb[0].mxu0
      %v1465 = vpop.f32.mrb[0].mxu0
      %v1466 = vadd.f32 0.0, %v1465
      %v1467 = vpop.f32.mrb[0].mxu0
      %1468 = vmatprep.mubr.bf16.mxu0 0
      %1469 = vmatmul.mubr.bf16.gmra.mrb[0].mxu0 %v1359
      %v1470 = vpop.f32.mrb[0].mxu0
      %v1471 = vadd.f32 0.0, %v1470
      %v1472 = vpop.f32.mrb[0].mxu0
      %v1473 = vpop.f32.mrb[0].mxu0
      %v1474 = vadd.f32 0.0, %v1473
      %v1475 = vpop.f32.mrb[0].mxu0
      %1476 = vmatprep.mubr.bf16.mxu0 0
      %1477 = vmatmul.mubr.bf16.gmra.mrb[0].mxu0 %v1367
      %v1478 = vpop.f32.mrb[0].mxu0
      %v1479 = vadd.f32 0.0, %v1478
      %v1480 = vpop.f32.mrb[0].mxu0
      %v1481 = vpop.f32.mrb[0].mxu0
      %v1482 = vadd.f32 0.0, %v1481
      %v1483 = vpop.f32.mrb[0].mxu0
      %1484 = vdwg.mxu0
      %v1485 = vadd.f32 %v1282, %v1455
      %v1486 = vadd.f32 %v1283, %v1458
      %v1487 = vadd.f32 %v1284, %v1463
      %v1488 = vadd.f32 %v1285, %v1466
      %v1489 = vadd.f32 %v1286, %v1471
      %v1490 = vadd.f32 %v1287, %v1474
      %v1491 = vadd.f32 %v1288, %v1479
      %v1492 = vadd.f32 %v1289, %v1482
      %s1493 = scalar_lea.vmem %s3, 256
      %v1494 = vld [vmem:[%s1493] sm:$0xf]
      %v1495 = vld [vmem:[%s1493 + $0x4] sm:$0xf]
      %v1496 = vld [vmem:[%s1493 + $0x8] sm:$0xf]
      %v1497 = vld [vmem:[%s1493 + $0xc] sm:$0xf]
      %v1498 = vld [vmem:[%s1493 + $0x10] sm:$0xf]
      %v1499 = vld [vmem:[%s1493 + $0x14] sm:$0xf]
      %v1500 = vld [vmem:[%s1493 + $0x18] sm:$0xf]
      %v1501 = vld [vmem:[%s1493 + $0x1c] sm:$0xf]
      %v1502 = vld [vmem:[%s1493 + $0x20] sm:$0xf]
      %v1503 = vld [vmem:[%s1493 + $0x24] sm:$0xf]
      %v1504 = vld [vmem:[%s1493 + $0x28] sm:$0xf]
      %v1505 = vld [vmem:[%s1493 + $0x2c] sm:$0xf]
      %v1506 = vld [vmem:[%s1493 + $0x30] sm:$0xf]
      %v1507 = vld [vmem:[%s1493 + $0x34] sm:$0xf]
      %v1508 = vld [vmem:[%s1493 + $0x38] sm:$0xf]
      %v1509 = vld [vmem:[%s1493 + $0x3c] sm:$0xf]
      %v1526 = vunpack.c.l.b16 %v1494
      %v1527 = vunpack.c.l.b16 %v1495
      %v1528 = vunpack.c.l.b16 %v1496
      %v1529 = vunpack.c.l.b16 %v1497
      %v1530 = vunpack.c.l.b16 %v1498
      %v1531 = vunpack.c.l.b16 %v1499
      %v1532 = vunpack.c.l.b16 %v1500
      %v1533 = vunpack.c.l.b16 %v1501
      %v1534 = vunpack.c.l.b16 %v1502
      %v1535 = vunpack.c.l.b16 %v1503
      %v1536 = vunpack.c.l.b16 %v1504
      %v1537 = vunpack.c.l.b16 %v1505
      %v1538 = vunpack.c.l.b16 %v1506
      %v1539 = vunpack.c.l.b16 %v1507
      %v1540 = vunpack.c.l.b16 %v1508
      %v1541 = vunpack.c.l.b16 %v1509
      %v1542 = vpack.c.b16 %v1527, %v1526
      %v1543 = vpack.c.b16 %v1529, %v1528
      %v1544 = vpack.c.b16 %v1531, %v1530
      %v1545 = vpack.c.b16 %v1533, %v1532
      %v1546 = vpack.c.b16 %v1535, %v1534
      %v1547 = vpack.c.b16 %v1537, %v1536
      %v1548 = vpack.c.b16 %v1539, %v1538
      %v1549 = vpack.c.b16 %v1541, %v1540
      %1558 = vmatprep.subr.bf16.mxu0 0
      %1559 = vmatpush1.bf16.msra.mxu0 %v1542
      %1560 = vmatprep.subr.bf16.mxu0 0
      %1561 = vmatpush1.bf16.msra.mxu0 %v1543
      %1562 = vmatprep.subr.bf16.mxu0 0
      %1563 = vmatpush1.bf16.msra.mxu0 %v1544
      %1564 = vmatprep.subr.bf16.mxu0 0
      %1565 = vmatpush1.bf16.msra.mxu0 %v1545
      %1566 = vmatprep.subr.bf16.mxu0 0
      %1567 = vmatpush1.bf16.msra.mxu0 %v1546
      %1568 = vmatprep.subr.bf16.mxu0 0
      %1569 = vmatpush1.bf16.msra.mxu0 %v1547
      %1570 = vmatprep.subr.bf16.mxu0 0
      %1571 = vmatpush1.bf16.msra.mxu0 %v1548
      %1572 = vmatprep.subr.bf16.mxu0 0
      %1573 = vmatpush1.bf16.msra.mxu0 %v1549
      %1574 = vmatprep.subr.bf16.mxu0 0
      %1575 = vmatpush1.bf16.msra.mxu0 0
      %1576 = vmatprep.subr.bf16.mxu0 0
      %1577 = vmatpush1.bf16.msra.mxu0 0
      %1578 = vmatprep.subr.bf16.mxu0 0
      %1579 = vmatpush1.bf16.msra.mxu0 0
      %1580 = vmatprep.subr.bf16.mxu0 0
      %1581 = vmatpush1.bf16.msra.mxu0 0
      %1582 = vmatprep.subr.bf16.mxu0 0
      %1583 = vmatpush1.bf16.msra.mxu0 0
      %1584 = vmatprep.subr.bf16.mxu0 0
      %1585 = vmatpush1.bf16.msra.mxu0 0
      %1586 = vmatprep.subr.bf16.mxu0 0
      %1587 = vmatpush1.bf16.msra.mxu0 0
      %1588 = vmatprep.subr.bf16.mxu0 0
      %1589 = vmatpush1.bf16.msra.mxu0 0
      %1590 = vmatprep.mubr.bf16.mxu0 0
      %1591 = vmatmul.mubr.bf16.gmra.mrb[0].mxu0 %v544
      %v1592 = vpop.f32.mrb[0].mxu0
      %v1593 = vadd.f32 0.0, %v1592
      %v1594 = vpop.f32.mrb[0].mxu0
      %v1595 = vpop.f32.mrb[0].mxu0
      %v1596 = vadd.f32 0.0, %v1595
      %v1597 = vpop.f32.mrb[0].mxu0
      %1598 = vmatprep.mubr.bf16.mxu0 0
      %1599 = vmatmul.mubr.bf16.gmra.mrb[0].mxu0 %v545
      %v1600 = vpop.f32.mrb[0].mxu0
      %v1601 = vadd.f32 0.0, %v1600
      %v1602 = vpop.f32.mrb[0].mxu0
      %v1603 = vpop.f32.mrb[0].mxu0
      %v1604 = vadd.f32 0.0, %v1603
      %v1605 = vpop.f32.mrb[0].mxu0
      %1606 = vmatprep.mubr.bf16.mxu0 0
      %1607 = vmatmul.mubr.bf16.gmra.mrb[0].mxu0 %v546
      %v1608 = vpop.f32.mrb[0].mxu0
      %v1609 = vadd.f32 0.0, %v1608
      %v1610 = vpop.f32.mrb[0].mxu0
      %v1611 = vpop.f32.mrb[0].mxu0
      %v1612 = vadd.f32 0.0, %v1611
      %v1613 = vpop.f32.mrb[0].mxu0
      %1614 = vmatprep.mubr.bf16.mxu0 0
      %1615 = vmatmul.mubr.bf16.gmra.mrb[0].mxu0 %v1291
      %v1616 = vpop.f32.mrb[0].mxu0
      %v1617 = vadd.f32 0.0, %v1616
      %v1618 = vpop.f32.mrb[0].mxu0
      %v1619 = vpop.f32.mrb[0].mxu0
      %v1620 = vadd.f32 0.0, %v1619
      %v1621 = vpop.f32.mrb[0].mxu0
      %1622 = vdwg.mxu0
      %v1623 = vadd.f32 %v1485, %v1593
      %v1624 = vadd.f32 %v1486, %v1596
      %v1625 = vadd.f32 %v1487, %v1601
      %v1626 = vadd.f32 %v1488, %v1604
      %v1627 = vadd.f32 %v1489, %v1609
      %v1628 = vadd.f32 %v1490, %v1612
      %v1629 = vadd.f32 %v1491, %v1617
      %v1630 = vadd.f32 %v1492, %v1620
      %v1631 = vld [vmem:[#allocation2 + $0x8] sm:$0xff]
      %v1632 = vld [vmem:[#allocation2 + $0x10] sm:$0xff]
      %v1633 = vld [vmem:[#allocation2 + $0x18] sm:$0xff]
      %v1634 = vld [vmem:[#allocation2 + $0x20] sm:$0xff]
      %v1635 = vld [vmem:[#allocation2 + $0x28] sm:$0x1]
      %v1636 = vrot.slane %v1060, 7
      %v1637 = vor.u32 %v1636, %v1063
      %v1638 = vrot.slane %v1068, 7
      %v1639 = vor.u32 %v1638, %v1071
      %v1640 = vsel %vm1331, %v1636, %v1639
      %v1641 = vrot.slane %v1077, 7
      %v1642 = vor.u32 %v1641, %v1080
      %v1643 = vsel %vm1331, %v1638, %v1642
      %v1644 = vrot.slane %v1086, 7
      %v1645 = vor.u32 %v1644, %v1089
      %v1646 = vsel %vm1331, %v1641, %v1645
      %vm1647 = vcmp.ne.s16.totalorder %v1637, 0
      %vm1648 = vcmp.ne.s16.totalorder %v1640, 0
      %vm1649 = vcmp.ne.s16.totalorder %v1643, 0
      %vm1650 = vcmp.ne.s16.totalorder %v1646, 0
      %vm1651 = vcmp.ne.s16.totalorder %v1644, 0
      %v1652 = vsel %vm1647, %v1631, 0
      %v1653 = vsel %vm1648, %v1632, 0
      %v1654 = vsel %vm1649, %v1633, 0
      %v1655 = vsel %vm1650, %v1634, 0
      %v1656 = vsel %vm1651, %v1635, 0
      %s1657 = scalar_lea.vmem %s3, 320
      %v1658 = vld [vmem:[%s1657] sm:$0xf]
      %v1659 = vld [vmem:[%s1657 + $0x4] sm:$0xf]
      %v1660 = vld [vmem:[%s1657 + $0x8] sm:$0xf]
      %v1661 = vld [vmem:[%s1657 + $0xc] sm:$0xf]
      %v1662 = vld [vmem:[%s1657 + $0x10] sm:$0xf]
      %v1663 = vld [vmem:[%s1657 + $0x14] sm:$0xf]
      %v1664 = vld [vmem:[%s1657 + $0x18] sm:$0xf]
      %v1665 = vld [vmem:[%s1657 + $0x1c] sm:$0xf]
      %v1666 = vld [vmem:[%s1657 + $0x20] sm:$0xf]
      %v1667 = vld [vmem:[%s1657 + $0x24] sm:$0xf]
      %v1668 = vld [vmem:[%s1657 + $0x28] sm:$0xf]
      %v1669 = vld [vmem:[%s1657 + $0x2c] sm:$0xf]
      %v1670 = vld [vmem:[%s1657 + $0x30] sm:$0xf]
      %v1671 = vld [vmem:[%s1657 + $0x34] sm:$0xf]
      %v1672 = vld [vmem:[%s1657 + $0x38] sm:$0xf]
      %v1673 = vld [vmem:[%s1657 + $0x3c] sm:$0xf]
      %v1675 = vshrl.u32 %v1652, 16
      %v1677 = vshll.u32 %v1652, 16
      %v1679 = vrot.slane %v1677, 1
      %v1680 = vor.u32 %v1675, %v1679
      %v1682 = vshll.u32 %v1653, 16
      %v1684 = vrot.slane %v1682, 1
      %v1685 = vsel %vm1292, %v1680, %v1684
      %v1686 = vshrl.u32 %v1653, 16
      %v1688 = vor.u32 %v1686, %v1684
      %v1690 = vshll.u32 %v1654, 16
      %v1692 = vrot.slane %v1690, 1
      %v1693 = vsel %vm1292, %v1688, %v1692
      %v1694 = vshrl.u32 %v1654, 16
      %v1696 = vor.u32 %v1694, %v1692
      %v1698 = vshll.u32 %v1655, 16
      %v1700 = vrot.slane %v1698, 1
      %v1701 = vsel %vm1292, %v1696, %v1700
      %v1702 = vshrl.u32 %v1655, 16
      %v1704 = vor.u32 %v1702, %v1700
      %v1706 = vshll.u32 %v1656, 16
      %v1708 = vrot.slane %v1706, 1
      %v1709 = vsel %vm1292, %v1704, %v1708
      %v1730 = vunpack.c.l.b16 %v1658
      %v1731 = vunpack.c.l.b16 %v1659
      %v1732 = vunpack.c.l.b16 %v1660
      %v1733 = vunpack.c.l.b16 %v1661
      %v1734 = vunpack.c.l.b16 %v1662
      %v1735 = vunpack.c.l.b16 %v1663
      %v1736 = vunpack.c.l.b16 %v1664
      %v1737 = vunpack.c.l.b16 %v1665
      %v1738 = vunpack.c.l.b16 %v1666
      %v1739 = vunpack.c.l.b16 %v1667
      %v1740 = vunpack.c.l.b16 %v1668
      %v1741 = vunpack.c.l.b16 %v1669
      %v1742 = vunpack.c.l.b16 %v1670
      %v1743 = vunpack.c.l.b16 %v1671
      %v1744 = vunpack.c.l.b16 %v1672
      %v1745 = vunpack.c.l.b16 %v1673
      %v1746 = vpack.c.b16 %v1731, %v1730
      %v1747 = vpack.c.b16 %v1733, %v1732
      %v1748 = vpack.c.b16 %v1735, %v1734
      %v1749 = vpack.c.b16 %v1737, %v1736
      %v1750 = vpack.c.b16 %v1739, %v1738
      %v1751 = vpack.c.b16 %v1741, %v1740
      %v1752 = vpack.c.b16 %v1743, %v1742
      %v1753 = vpack.c.b16 %v1745, %v1744
      %1762 = vmatprep.subr.bf16.mxu0 0
      %1763 = vmatpush1.bf16.msra.mxu0 %v1746
      %1764 = vmatprep.subr.bf16.mxu0 0
      %1765 = vmatpush1.bf16.msra.mxu0 %v1747
      %1766 = vmatprep.subr.bf16.mxu0 0
      %1767 = vmatpush1.bf16.msra.mxu0 %v1748
      %1768 = vmatprep.subr.bf16.mxu0 0
      %1769 = vmatpush1.bf16.msra.mxu0 %v1749
      %1770 = vmatprep.subr.bf16.mxu0 0
      %1771 = vmatpush1.bf16.msra.mxu0 %v1750
      %1772 = vmatprep.subr.bf16.mxu0 0
      %1773 = vmatpush1.bf16.msra.mxu0 %v1751
      %1774 = vmatprep.subr.bf16.mxu0 0
      %1775 = vmatpush1.bf16.msra.mxu0 %v1752
      %1776 = vmatprep.subr.bf16.mxu0 0
      %1777 = vmatpush1.bf16.msra.mxu0 %v1753
      %1778 = vmatprep.subr.bf16.mxu0 0
      %1779 = vmatpush1.bf16.msra.mxu0 0
      %1780 = vmatprep.subr.bf16.mxu0 0
      %1781 = vmatpush1.bf16.msra.mxu0 0
      %1782 = vmatprep.subr.bf16.mxu0 0
      %1783 = vmatpush1.bf16.msra.mxu0 0
      %1784 = vmatprep.subr.bf16.mxu0 0
      %1785 = vmatpush1.bf16.msra.mxu0 0
      %1786 = vmatprep.subr.bf16.mxu0 0
      %1787 = vmatpush1.bf16.msra.mxu0 0
      %1788 = vmatprep.subr.bf16.mxu0 0
      %1789 = vmatpush1.bf16.msra.mxu0 0
      %1790 = vmatprep.subr.bf16.mxu0 0
      %1791 = vmatpush1.bf16.msra.mxu0 0
      %1792 = vmatprep.subr.bf16.mxu0 0
      %1793 = vmatpush1.bf16.msra.mxu0 0
      %1794 = vmatprep.mubr.bf16.mxu0 0
      %1795 = vmatmul.mubr.bf16.gmra.mrb[0].mxu0 %v1685
      %v1796 = vpop.f32.mrb[0].mxu0
      %v1797 = vadd.f32 0.0, %v1796
      %v1798 = vpop.f32.mrb[0].mxu0
      %v1799 = vpop.f32.mrb[0].mxu0
      %v1800 = vadd.f32 0.0, %v1799
      %v1801 = vpop.f32.mrb[0].mxu0
      %1802 = vmatprep.mubr.bf16.mxu0 0
      %1803 = vmatmul.mubr.bf16.gmra.mrb[0].mxu0 %v1693
      %v1804 = vpop.f32.mrb[0].mxu0
      %v1805 = vadd.f32 0.0, %v1804
      %v1806 = vpop.f32.mrb[0].mxu0
      %v1807 = vpop.f32.mrb[0].mxu0
      %v1808 = vadd.f32 0.0, %v1807
      %v1809 = vpop.f32.mrb[0].mxu0
      %1810 = vmatprep.mubr.bf16.mxu0 0
      %1811 = vmatmul.mubr.bf16.gmra.mrb[0].mxu0 %v1701
      %v1812 = vpop.f32.mrb[0].mxu0
      %v1813 = vadd.f32 0.0, %v1812
      %v1814 = vpop.f32.mrb[0].mxu0
      %v1815 = vpop.f32.mrb[0].mxu0
      %v1816 = vadd.f32 0.0, %v1815
      %v1817 = vpop.f32.mrb[0].mxu0
      %1818 = vmatprep.mubr.bf16.mxu0 0
      %1819 = vmatmul.mubr.bf16.gmra.mrb[0].mxu0 %v1709
      %v1820 = vpop.f32.mrb[0].mxu0
      %v1821 = vadd.f32 0.0, %v1820
      %v1822 = vpop.f32.mrb[0].mxu0
      %v1823 = vpop.f32.mrb[0].mxu0
      %v1824 = vadd.f32 0.0, %v1823
      %v1825 = vpop.f32.mrb[0].mxu0
      %1826 = vdwg.mxu0
      %v1827 = vadd.f32 %v1623, %v1797
      %v1828 = vadd.f32 %v1624, %v1800
      %v1829 = vadd.f32 %v1625, %v1805
      %v1830 = vadd.f32 %v1626, %v1808
      %v1831 = vadd.f32 %v1627, %v1813
      %v1832 = vadd.f32 %v1628, %v1816
      %v1833 = vadd.f32 %v1629, %v1821
      %v1834 = vadd.f32 %v1630, %v1824
      %v1835 = vld [vmem:[#allocation2 + $0x8] sm:$0xf8]
      %v1836 = vld [vmem:[#allocation2 + $0x28] sm:$0xf]
      %v1837 = vsel %vm652, %v1835, 0
      %v1838 = vsel %vm653, %v1632, 0
      %v1839 = vsel %vm654, %v1633, 0
      %v1840 = vsel %vm655, %v1634, 0
      %v1841 = vsel %vm656, %v1836, 0
      %s1842 = scalar_lea.vmem %s3, 384
      %v1843 = vld [vmem:[%s1842] sm:$0xf]
      %v1844 = vld [vmem:[%s1842 + $0x4] sm:$0xf]
      %v1845 = vld [vmem:[%s1842 + $0x8] sm:$0xf]
      %v1846 = vld [vmem:[%s1842 + $0xc] sm:$0xf]
      %v1847 = vld [vmem:[%s1842 + $0x10] sm:$0xf]
      %v1848 = vld [vmem:[%s1842 + $0x14] sm:$0xf]
      %v1849 = vld [vmem:[%s1842 + $0x18] sm:$0xf]
      %v1850 = vld [vmem:[%s1842 + $0x1c] sm:$0xf]
      %v1851 = vld [vmem:[%s1842 + $0x20] sm:$0xf]
      %v1852 = vld [vmem:[%s1842 + $0x24] sm:$0xf]
      %v1853 = vld [vmem:[%s1842 + $0x28] sm:$0xf]
      %v1854 = vld [vmem:[%s1842 + $0x2c] sm:$0xf]
      %v1855 = vld [vmem:[%s1842 + $0x30] sm:$0xf]
      %v1856 = vld [vmem:[%s1842 + $0x34] sm:$0xf]
      %v1857 = vld [vmem:[%s1842 + $0x38] sm:$0xf]
      %v1858 = vld [vmem:[%s1842 + $0x3c] sm:$0xf]
      %v1860 = vshrl.u32 %v1837, 16
      %v1862 = vrot.slane %v1860, 3
      %v1863 = vshll.u32 %v1837, 16
      %v1865 = vrot.slane %v1863, 4
      %v1866 = vor.u32 %v1862, %v1865
      %v1868 = vshrl.u32 %v1838, 16
      %v1870 = vrot.slane %v1868, 3
      %v1871 = vshll.u32 %v1838, 16
      %v1873 = vrot.slane %v1871, 4
      %v1874 = vor.u32 %v1870, %v1873
      %v1875 = vsel %vm828, %v1866, %v1874
      %v1877 = vshrl.u32 %v1839, 16
      %v1879 = vrot.slane %v1877, 3
      %v1880 = vshll.u32 %v1839, 16
      %v1882 = vrot.slane %v1880, 4
      %v1883 = vor.u32 %v1879, %v1882
      %v1884 = vsel %vm828, %v1874, %v1883
      %v1886 = vshrl.u32 %v1840, 16
      %v1888 = vrot.slane %v1886, 3
      %v1889 = vshll.u32 %v1840, 16
      %v1891 = vrot.slane %v1889, 4
      %v1892 = vor.u32 %v1888, %v1891
      %v1893 = vsel %vm828, %v1883, %v1892
      %v1895 = vshrl.u32 %v1841, 16
      %v1897 = vrot.slane %v1895, 3
      %v1898 = vshll.u32 %v1841, 16
      %v1900 = vrot.slane %v1898, 4
      %v1901 = vor.u32 %v1897, %v1900
      %v1902 = vsel %vm828, %v1892, %v1901
      %v1923 = vunpack.c.l.b16 %v1843
      %v1924 = vunpack.c.l.b16 %v1844
      %v1925 = vunpack.c.l.b16 %v1845
      %v1926 = vunpack.c.l.b16 %v1846
      %v1927 = vunpack.c.l.b16 %v1847
      %v1928 = vunpack.c.l.b16 %v1848
      %v1929 = vunpack.c.l.b16 %v1849
      %v1930 = vunpack.c.l.b16 %v1850
      %v1931 = vunpack.c.l.b16 %v1851
      %v1932 = vunpack.c.l.b16 %v1852
      %v1933 = vunpack.c.l.b16 %v1853
      %v1934 = vunpack.c.l.b16 %v1854
      %v1935 = vunpack.c.l.b16 %v1855
      %v1936 = vunpack.c.l.b16 %v1856
      %v1937 = vunpack.c.l.b16 %v1857
      %v1938 = vunpack.c.l.b16 %v1858
      %v1939 = vpack.c.b16 %v1924, %v1923
      %v1940 = vpack.c.b16 %v1926, %v1925
      %v1941 = vpack.c.b16 %v1928, %v1927
      %v1942 = vpack.c.b16 %v1930, %v1929
      %v1943 = vpack.c.b16 %v1932, %v1931
      %v1944 = vpack.c.b16 %v1934, %v1933
      %v1945 = vpack.c.b16 %v1936, %v1935
      %v1946 = vpack.c.b16 %v1938, %v1937
      %1955 = vmatprep.subr.bf16.mxu0 0
      %1956 = vmatpush1.bf16.msra.mxu0 %v1939
      %1957 = vmatprep.subr.bf16.mxu0 0
      %1958 = vmatpush1.bf16.msra.mxu0 %v1940
      %1959 = vmatprep.subr.bf16.mxu0 0
      %1960 = vmatpush1.bf16.msra.mxu0 %v1941
      %1961 = vmatprep.subr.bf16.mxu0 0
      %1962 = vmatpush1.bf16.msra.mxu0 %v1942
      %1963 = vmatprep.subr.bf16.mxu0 0
      %1964 = vmatpush1.bf16.msra.mxu0 %v1943
      %1965 = vmatprep.subr.bf16.mxu0 0
      %1966 = vmatpush1.bf16.msra.mxu0 %v1944
      %1967 = vmatprep.subr.bf16.mxu0 0
      %1968 = vmatpush1.bf16.msra.mxu0 %v1945
      %1969 = vmatprep.subr.bf16.mxu0 0
      %1970 = vmatpush1.bf16.msra.mxu0 %v1946
      %1971 = vmatprep.subr.bf16.mxu0 0
      %1972 = vmatpush1.bf16.msra.mxu0 0
      %1973 = vmatprep.subr.bf16.mxu0 0
      %1974 = vmatpush1.bf16.msra.mxu0 0
      %1975 = vmatprep.subr.bf16.mxu0 0
      %1976 = vmatpush1.bf16.msra.mxu0 0
      %1977 = vmatprep.subr.bf16.mxu0 0
      %1978 = vmatpush1.bf16.msra.mxu0 0
      %1979 = vmatprep.subr.bf16.mxu0 0
      %1980 = vmatpush1.bf16.msra.mxu0 0
      %1981 = vmatprep.subr.bf16.mxu0 0
      %1982 = vmatpush1.bf16.msra.mxu0 0
      %1983 = vmatprep.subr.bf16.mxu0 0
      %1984 = vmatpush1.bf16.msra.mxu0 0
      %1985 = vmatprep.subr.bf16.mxu0 0
      %1986 = vmatpush1.bf16.msra.mxu0 0
      %1987 = vmatprep.mubr.bf16.mxu0 0
      %1988 = vmatmul.mubr.bf16.gmra.mrb[0].mxu0 %v1875
      %v1989 = vpop.f32.mrb[0].mxu0
      %v1990 = vadd.f32 0.0, %v1989
      %v1991 = vpop.f32.mrb[0].mxu0
      %v1992 = vpop.f32.mrb[0].mxu0
      %v1993 = vadd.f32 0.0, %v1992
      %v1994 = vpop.f32.mrb[0].mxu0
      %1995 = vmatprep.mubr.bf16.mxu0 0
      %1996 = vmatmul.mubr.bf16.gmra.mrb[0].mxu0 %v1884
      %v1997 = vpop.f32.mrb[0].mxu0
      %v1998 = vadd.f32 0.0, %v1997
      %v1999 = vpop.f32.mrb[0].mxu0
      %v2000 = vpop.f32.mrb[0].mxu0
      %v2001 = vadd.f32 0.0, %v2000
      %v2002 = vpop.f32.mrb[0].mxu0
      %2003 = vmatprep.mubr.bf16.mxu0 0
      %2004 = vmatmul.mubr.bf16.gmra.mrb[0].mxu0 %v1893
      %v2005 = vpop.f32.mrb[0].mxu0
      %v2006 = vadd.f32 0.0, %v2005
      %v2007 = vpop.f32.mrb[0].mxu0
      %v2008 = vpop.f32.mrb[0].mxu0
      %v2009 = vadd.f32 0.0, %v2008
      %v2010 = vpop.f32.mrb[0].mxu0
      %2011 = vmatprep.mubr.bf16.mxu0 0
      %2012 = vmatmul.mubr.bf16.gmra.mrb[0].mxu0 %v1902
      %v2013 = vpop.f32.mrb[0].mxu0
      %v2014 = vadd.f32 0.0, %v2013
      %v2015 = vpop.f32.mrb[0].mxu0
      %v2016 = vpop.f32.mrb[0].mxu0
      %v2017 = vadd.f32 0.0, %v2016
      %v2018 = vpop.f32.mrb[0].mxu0
      %2019 = vdwg.mxu0
      %v2020 = vadd.f32 %v1827, %v1990
      %v2021 = vadd.f32 %v1828, %v1993
      %v2022 = vadd.f32 %v1829, %v1998
      %v2023 = vadd.f32 %v1830, %v2001
      %v2024 = vadd.f32 %v1831, %v2006
      %v2025 = vadd.f32 %v1832, %v2009
      %v2026 = vadd.f32 %v1833, %v2014
      %v2027 = vadd.f32 %v1834, %v2017
      %v2028 = vld [vmem:[#allocation2 + $0x8] sm:$0xf0]
      %s2029 = scalar_lea.vmem %s3, 448
      %v2030 = vld [vmem:[%s2029] sm:$0xf]
      %v2031 = vld [vmem:[%s2029 + $0x4] sm:$0xf]
      %v2032 = vld [vmem:[%s2029 + $0x8] sm:$0xf]
      %v2033 = vld [vmem:[%s2029 + $0xc] sm:$0xf]
      %v2034 = vld [vmem:[%s2029 + $0x10] sm:$0xf]
      %v2035 = vld [vmem:[%s2029 + $0x14] sm:$0xf]
      %v2036 = vld [vmem:[%s2029 + $0x18] sm:$0xf]
      %v2037 = vld [vmem:[%s2029 + $0x1c] sm:$0xf]
      %v2038 = vld [vmem:[%s2029 + $0x20] sm:$0xf]
      %v2039 = vld [vmem:[%s2029 + $0x24] sm:$0xf]
      %v2040 = vld [vmem:[%s2029 + $0x28] sm:$0xf]
      %v2041 = vld [vmem:[%s2029 + $0x2c] sm:$0xf]
      %v2042 = vld [vmem:[%s2029 + $0x30] sm:$0xf]
      %v2043 = vld [vmem:[%s2029 + $0x34] sm:$0xf]
      %v2044 = vld [vmem:[%s2029 + $0x38] sm:$0xf]
      %v2045 = vld [vmem:[%s2029 + $0x3c] sm:$0xf]
      %v2051 = vrot.slane %v2028, 4
      %v2052 = vrot.slane %v1632, 4
      %v2053 = vsel %vm701, %v2051, %v2052
      %v2054 = vrot.slane %v1633, 4
      %v2055 = vsel %vm701, %v2052, %v2054
      %v2056 = vrot.slane %v1634, 4
      %v2057 = vsel %vm701, %v2054, %v2056
      %v2058 = vrot.slane %v1836, 4
      %v2059 = vsel %vm701, %v2056, %v2058
      %v2080 = vunpack.c.l.b16 %v2030
      %v2081 = vunpack.c.l.b16 %v2031
      %v2082 = vunpack.c.l.b16 %v2032
      %v2083 = vunpack.c.l.b16 %v2033
      %v2084 = vunpack.c.l.b16 %v2034
      %v2085 = vunpack.c.l.b16 %v2035
      %v2086 = vunpack.c.l.b16 %v2036
      %v2087 = vunpack.c.l.b16 %v2037
      %v2088 = vunpack.c.l.b16 %v2038
      %v2089 = vunpack.c.l.b16 %v2039
      %v2090 = vunpack.c.l.b16 %v2040
      %v2091 = vunpack.c.l.b16 %v2041
      %v2092 = vunpack.c.l.b16 %v2042
      %v2093 = vunpack.c.l.b16 %v2043
      %v2094 = vunpack.c.l.b16 %v2044
      %v2095 = vunpack.c.l.b16 %v2045
      %v2096 = vpack.c.b16 %v2081, %v2080
      %v2097 = vpack.c.b16 %v2083, %v2082
      %v2098 = vpack.c.b16 %v2085, %v2084
      %v2099 = vpack.c.b16 %v2087, %v2086
      %v2100 = vpack.c.b16 %v2089, %v2088
      %v2101 = vpack.c.b16 %v2091, %v2090
      %v2102 = vpack.c.b16 %v2093, %v2092
      %v2103 = vpack.c.b16 %v2095, %v2094
      %2112 = vmatprep.subr.bf16.mxu0 0
      %2113 = vmatpush1.bf16.msra.mxu0 %v2096
      %2114 = vmatprep.subr.bf16.mxu0 0
      %2115 = vmatpush1.bf16.msra.mxu0 %v2097
      %2116 = vmatprep.subr.bf16.mxu0 0
      %2117 = vmatpush1.bf16.msra.mxu0 %v2098
      %2118 = vmatprep.subr.bf16.mxu0 0
      %2119 = vmatpush1.bf16.msra.mxu0 %v2099
      %2120 = vmatprep.subr.bf16.mxu0 0
      %2121 = vmatpush1.bf16.msra.mxu0 %v2100
      %2122 = vmatprep.subr.bf16.mxu0 0
      %2123 = vmatpush1.bf16.msra.mxu0 %v2101
      %2124 = vmatprep.subr.bf16.mxu0 0
      %2125 = vmatpush1.bf16.msra.mxu0 %v2102
      %2126 = vmatprep.subr.bf16.mxu0 0
      %2127 = vmatpush1.bf16.msra.mxu0 %v2103
      %2128 = vmatprep.subr.bf16.mxu0 0
      %2129 = vmatpush1.bf16.msra.mxu0 0
      %2130 = vmatprep.subr.bf16.mxu0 0
      %2131 = vmatpush1.bf16.msra.mxu0 0
      %2132 = vmatprep.subr.bf16.mxu0 0
      %2133 = vmatpush1.bf16.msra.mxu0 0
      %2134 = vmatprep.subr.bf16.mxu0 0
      %2135 = vmatpush1.bf16.msra.mxu0 0
      %2136 = vmatprep.subr.bf16.mxu0 0
      %2137 = vmatpush1.bf16.msra.mxu0 0
      %2138 = vmatprep.subr.bf16.mxu0 0
      %2139 = vmatpush1.bf16.msra.mxu0 0
      %2140 = vmatprep.subr.bf16.mxu0 0
      %2141 = vmatpush1.bf16.msra.mxu0 0
      %2142 = vmatprep.subr.bf16.mxu0 0
      %2143 = vmatpush1.bf16.msra.mxu0 0
      %2144 = vmatprep.mubr.bf16.mxu0 0
      %2145 = vmatmul.mubr.bf16.gmra.mrb[0].mxu0 %v2053
      %v2146 = vpop.f32.mrb[0].mxu0
      %v2147 = vadd.f32 0.0, %v2146
      %v2148 = vpop.f32.mrb[0].mxu0
      %v2149 = vpop.f32.mrb[0].mxu0
      %v2150 = vadd.f32 0.0, %v2149
      %v2151 = vpop.f32.mrb[0].mxu0
      %2152 = vmatprep.mubr.bf16.mxu0 0
      %2153 = vmatmul.mubr.bf16.gmra.mrb[0].mxu0 %v2055
      %v2154 = vpop.f32.mrb[0].mxu0
      %v2155 = vadd.f32 0.0, %v2154
      %v2156 = vpop.f32.mrb[0].mxu0
      %v2157 = vpop.f32.mrb[0].mxu0
      %v2158 = vadd.f32 0.0, %v2157
      %v2159 = vpop.f32.mrb[0].mxu0
      %2160 = vmatprep.mubr.bf16.mxu0 0
      %2161 = vmatmul.mubr.bf16.gmra.mrb[0].mxu0 %v2057
      %v2162 = vpop.f32.mrb[0].mxu0
      %v2163 = vadd.f32 0.0, %v2162
      %v2164 = vpop.f32.mrb[0].mxu0
      %v2165 = vpop.f32.mrb[0].mxu0
      %v2166 = vadd.f32 0.0, %v2165
      %v2167 = vpop.f32.mrb[0].mxu0
      %2168 = vmatprep.mubr.bf16.mxu0 0
      %2169 = vmatmul.mubr.bf16.gmra.mrb[0].mxu0 %v2059
      %v2170 = vpop.f32.mrb[0].mxu0
      %v2171 = vadd.f32 0.0, %v2170
      %v2172 = vpop.f32.mrb[0].mxu0
      %v2173 = vpop.f32.mrb[0].mxu0
      %v2174 = vadd.f32 0.0, %v2173
      %v2175 = vpop.f32.mrb[0].mxu0
      %2176 = vdwg.mxu0
      %v2177 = vadd.f32 %v2020, %v2147
      %v2178 = vadd.f32 %v2021, %v2150
      %v2179 = vadd.f32 %v2022, %v2155
      %v2180 = vadd.f32 %v2023, %v2158
      %v2181 = vadd.f32 %v2024, %v2163
      %v2182 = vadd.f32 %v2025, %v2166
      %v2183 = vadd.f32 %v2026, %v2171
      %v2184 = vadd.f32 %v2027, %v2174
      %v2185 = vld [vmem:[#allocation2 + $0x28] sm:$0x1f]
      %v2186 = vsel %vm1094, %v2028, 0
      %v2187 = vsel %vm1095, %v1632, 0
      %v2188 = vsel %vm1096, %v1633, 0
      %v2189 = vsel %vm1097, %v1634, 0
      %v2190 = vsel %vm1098, %v2185, 0
      %s2191 = scalar_lea.vmem %s3, 512
      %v2192 = vld [vmem:[%s2191] sm:$0xf]
      %v2193 = vld [vmem:[%s2191 + $0x4] sm:$0xf]
      %v2194 = vld [vmem:[%s2191 + $0x8] sm:$0xf]
      %v2195 = vld [vmem:[%s2191 + $0xc] sm:$0xf]
      %v2196 = vld [vmem:[%s2191 + $0x10] sm:$0xf]
      %v2197 = vld [vmem:[%s2191 + $0x14] sm:$0xf]
      %v2198 = vld [vmem:[%s2191 + $0x18] sm:$0xf]
      %v2199 = vld [vmem:[%s2191 + $0x1c] sm:$0xf]
      %v2200 = vld [vmem:[%s2191 + $0x20] sm:$0xf]
      %v2201 = vld [vmem:[%s2191 + $0x24] sm:$0xf]
      %v2202 = vld [vmem:[%s2191 + $0x28] sm:$0xf]
      %v2203 = vld [vmem:[%s2191 + $0x2c] sm:$0xf]
      %v2204 = vld [vmem:[%s2191 + $0x30] sm:$0xf]
      %v2205 = vld [vmem:[%s2191 + $0x34] sm:$0xf]
      %v2206 = vld [vmem:[%s2191 + $0x38] sm:$0xf]
      %v2207 = vld [vmem:[%s2191 + $0x3c] sm:$0xf]
      %v2209 = vshrl.u32 %v2186, 16
      %v2211 = vrot.slane %v2209, 4
      %v2212 = vshll.u32 %v2186, 16
      %v2214 = vrot.slane %v2212, 5
      %v2215 = vor.u32 %v2211, %v2214
      %v2217 = vshrl.u32 %v2187, 16
      %v2219 = vrot.slane %v2217, 4
      %v2220 = vshll.u32 %v2187, 16
      %v2222 = vrot.slane %v2220, 5
      %v2223 = vor.u32 %v2219, %v2222
      %v2224 = vsel %vm616, %v2215, %v2223
      %v2226 = vshrl.u32 %v2188, 16
      %v2228 = vrot.slane %v2226, 4
      %v2229 = vshll.u32 %v2188, 16
      %v2231 = vrot.slane %v2229, 5
      %v2232 = vor.u32 %v2228, %v2231
      %v2233 = vsel %vm616, %v2223, %v2232
      %v2235 = vshrl.u32 %v2189, 16
      %v2237 = vrot.slane %v2235, 4
      %v2238 = vshll.u32 %v2189, 16
      %v2240 = vrot.slane %v2238, 5
      %v2241 = vor.u32 %v2237, %v2240
      %v2242 = vsel %vm616, %v2232, %v2241
      %v2244 = vshrl.u32 %v2190, 16
      %v2246 = vrot.slane %v2244, 4
      %v2247 = vshll.u32 %v2190, 16
      %v2249 = vrot.slane %v2247, 5
      %v2250 = vor.u32 %v2246, %v2249
      %v2251 = vsel %vm616, %v2241, %v2250
      %v2272 = vunpack.c.l.b16 %v2192
      %v2273 = vunpack.c.l.b16 %v2193
      %v2274 = vunpack.c.l.b16 %v2194
      %v2275 = vunpack.c.l.b16 %v2195
      %v2276 = vunpack.c.l.b16 %v2196
      %v2277 = vunpack.c.l.b16 %v2197
      %v2278 = vunpack.c.l.b16 %v2198
      %v2279 = vunpack.c.l.b16 %v2199
      %v2280 = vunpack.c.l.b16 %v2200
      %v2281 = vunpack.c.l.b16 %v2201
      %v2282 = vunpack.c.l.b16 %v2202
      %v2283 = vunpack.c.l.b16 %v2203
      %v2284 = vunpack.c.l.b16 %v2204
      %v2285 = vunpack.c.l.b16 %v2205
      %v2286 = vunpack.c.l.b16 %v2206
      %v2287 = vunpack.c.l.b16 %v2207
      %v2288 = vpack.c.b16 %v2273, %v2272
      %v2289 = vpack.c.b16 %v2275, %v2274
      %v2290 = vpack.c.b16 %v2277, %v2276
      %v2291 = vpack.c.b16 %v2279, %v2278
      %v2292 = vpack.c.b16 %v2281, %v2280
      %v2293 = vpack.c.b16 %v2283, %v2282
      %v2294 = vpack.c.b16 %v2285, %v2284
      %v2295 = vpack.c.b16 %v2287, %v2286
      %2304 = vmatprep.subr.bf16.mxu0 0
      %2305 = vmatpush1.bf16.msra.mxu0 %v2288
      %2306 = vmatprep.subr.bf16.mxu0 0
      %2307 = vmatpush1.bf16.msra.mxu0 %v2289
      %2308 = vmatprep.subr.bf16.mxu0 0
      %2309 = vmatpush1.bf16.msra.mxu0 %v2290
      %2310 = vmatprep.subr.bf16.mxu0 0
      %2311 = vmatpush1.bf16.msra.mxu0 %v2291
      %2312 = vmatprep.subr.bf16.mxu0 0
      %2313 = vmatpush1.bf16.msra.mxu0 %v2292
      %2314 = vmatprep.subr.bf16.mxu0 0
      %2315 = vmatpush1.bf16.msra.mxu0 %v2293
      %2316 = vmatprep.subr.bf16.mxu0 0
      %2317 = vmatpush1.bf16.msra.mxu0 %v2294
      %2318 = vmatprep.subr.bf16.mxu0 0
      %2319 = vmatpush1.bf16.msra.mxu0 %v2295
      %2320 = vmatprep.subr.bf16.mxu0 0
      %2321 = vmatpush1.bf16.msra.mxu0 0
      %2322 = vmatprep.subr.bf16.mxu0 0
      %2323 = vmatpush1.bf16.msra.mxu0 0
      %2324 = vmatprep.subr.bf16.mxu0 0
      %2325 = vmatpush1.bf16.msra.mxu0 0
      %2326 = vmatprep.subr.bf16.mxu0 0
      %2327 = vmatpush1.bf16.msra.mxu0 0
      %2328 = vmatprep.subr.bf16.mxu0 0
      %2329 = vmatpush1.bf16.msra.mxu0 0
      %2330 = vmatprep.subr.bf16.mxu0 0
      %2331 = vmatpush1.bf16.msra.mxu0 0
      %2332 = vmatprep.subr.bf16.mxu0 0
      %2333 = vmatpush1.bf16.msra.mxu0 0
      %2334 = vmatprep.subr.bf16.mxu0 0
      %2335 = vmatpush1.bf16.msra.mxu0 0
      %2336 = vmatprep.mubr.bf16.mxu0 0
      %2337 = vmatmul.mubr.bf16.gmra.mrb[0].mxu0 %v2224
      %v2338 = vpop.f32.mrb[0].mxu0
      %v2339 = vadd.f32 0.0, %v2338
      %v2340 = vpop.f32.mrb[0].mxu0
      %v2341 = vpop.f32.mrb[0].mxu0
      %v2342 = vadd.f32 0.0, %v2341
      %v2343 = vpop.f32.mrb[0].mxu0
      %2344 = vmatprep.mubr.bf16.mxu0 0
      %2345 = vmatmul.mubr.bf16.gmra.mrb[0].mxu0 %v2233
      %v2346 = vpop.f32.mrb[0].mxu0
      %v2347 = vadd.f32 0.0, %v2346
      %v2348 = vpop.f32.mrb[0].mxu0
      %v2349 = vpop.f32.mrb[0].mxu0
      %v2350 = vadd.f32 0.0, %v2349
      %v2351 = vpop.f32.mrb[0].mxu0
      %2352 = vmatprep.mubr.bf16.mxu0 0
      %2353 = vmatmul.mubr.bf16.gmra.mrb[0].mxu0 %v2242
      %v2354 = vpop.f32.mrb[0].mxu0
      %v2355 = vadd.f32 0.0, %v2354
      %v2356 = vpop.f32.mrb[0].mxu0
      %v2357 = vpop.f32.mrb[0].mxu0
      %v2358 = vadd.f32 0.0, %v2357
      %v2359 = vpop.f32.mrb[0].mxu0
      %2360 = vmatprep.mubr.bf16.mxu0 0
      %2361 = vmatmul.mubr.bf16.gmra.mrb[0].mxu0 %v2251
      %v2362 = vpop.f32.mrb[0].mxu0
      %v2363 = vadd.f32 0.0, %v2362
      %v2364 = vpop.f32.mrb[0].mxu0
      %v2365 = vpop.f32.mrb[0].mxu0
      %v2366 = vadd.f32 0.0, %v2365
      %v2367 = vpop.f32.mrb[0].mxu0
      %2368 = vdwg.mxu0
      %v2369 = vadd.f32 %v2177, %v2339
      %v2370 = vadd.f32 %v2178, %v2342
      %v2371 = vadd.f32 %v2179, %v2347
      %v2372 = vadd.f32 %v2180, %v2350
      %v2373 = vadd.f32 %v2181, %v2355
      %v2374 = vadd.f32 %v2182, %v2358
      %v2375 = vadd.f32 %v2183, %v2363
      %v2376 = vadd.f32 %v2184, %v2366
      %v2377 = vld [vmem:[%s320] sm:$0xf]
      %v2378 = vld [vmem:[%s320 + $0x4] sm:$0xf]
      %v2379 = vld [vmem:[%s320 + $0x8] sm:$0xf]
      %v2380 = vld [vmem:[%s320 + $0xc] sm:$0xf]
      %v2381 = vld [vmem:[%s320 + $0x10] sm:$0xf]
      %v2382 = vld [vmem:[%s320 + $0x14] sm:$0xf]
      %v2383 = vld [vmem:[%s320 + $0x18] sm:$0xf]
      %v2384 = vld [vmem:[%s320 + $0x1c] sm:$0xf]
      %v2385 = vld [vmem:[%s6] sm:$0xf]
      %v2386 = vld [vmem:[%s6 + $0x4] sm:$0xf]
      %v2387 = vld [vmem:[%s6 + $0x8] sm:$0xf]
      %v2388 = vld [vmem:[%s6 + $0xc] sm:$0xf]
      %v2389 = vld [vmem:[%s6 + $0x10] sm:$0xf]
      %v2390 = vld [vmem:[%s6 + $0x14] sm:$0xf]
      %v2391 = vld [vmem:[%s6 + $0x18] sm:$0xf]
      %v2392 = vld [vmem:[%s6 + $0x1c] sm:$0xf]
      %v2393 = vld [vmem:[%s6 + $0x20] sm:$0xf]
      %v2394 = vld [vmem:[%s6 + $0x24] sm:$0xf]
      %v2395 = vld [vmem:[%s6 + $0x28] sm:$0xf]
      %v2396 = vld [vmem:[%s6 + $0x2c] sm:$0xf]
      %v2397 = vld [vmem:[%s6 + $0x30] sm:$0xf]
      %v2398 = vld [vmem:[%s6 + $0x34] sm:$0xf]
      %v2399 = vld [vmem:[%s6 + $0x38] sm:$0xf]
      %v2400 = vld [vmem:[%s6 + $0x3c] sm:$0xf]
      %v2409 = vunpack.c.l.b16 %v2377
      %v2410 = vunpack.c.l.b16 %v2378
      %v2411 = vunpack.c.l.b16 %v2379
      %v2412 = vunpack.c.l.b16 %v2380
      %v2413 = vunpack.c.l.b16 %v2381
      %v2414 = vunpack.c.l.b16 %v2382
      %v2415 = vunpack.c.l.b16 %v2383
      %v2416 = vunpack.c.l.b16 %v2384
      %v2417 = vpack.c.b16 %v2410, %v2409
      %v2418 = vpack.c.b16 %v2412, %v2411
      %v2419 = vpack.c.b16 %v2414, %v2413
      %v2420 = vpack.c.b16 %v2416, %v2415
      %v2441 = vunpack.c.l.b16 %v2385
      %v2442 = vunpack.c.l.b16 %v2386
      %v2443 = vunpack.c.l.b16 %v2387
      %v2444 = vunpack.c.l.b16 %v2388
      %v2445 = vunpack.c.l.b16 %v2389
      %v2446 = vunpack.c.l.b16 %v2390
      %v2447 = vunpack.c.l.b16 %v2391
      %v2448 = vunpack.c.l.b16 %v2392
      %v2449 = vunpack.c.l.b16 %v2393
      %v2450 = vunpack.c.l.b16 %v2394
      %v2451 = vunpack.c.l.b16 %v2395
      %v2452 = vunpack.c.l.b16 %v2396
      %v2453 = vunpack.c.l.b16 %v2397
      %v2454 = vunpack.c.l.b16 %v2398
      %v2455 = vunpack.c.l.b16 %v2399
      %v2456 = vunpack.c.l.b16 %v2400
      %v2457 = vpack.c.b16 %v2442, %v2441
      %v2458 = vpack.c.b16 %v2444, %v2443
      %v2459 = vpack.c.b16 %v2446, %v2445
      %v2460 = vpack.c.b16 %v2448, %v2447
      %v2461 = vpack.c.b16 %v2450, %v2449
      %v2462 = vpack.c.b16 %v2452, %v2451
      %v2463 = vpack.c.b16 %v2454, %v2453
      %v2464 = vpack.c.b16 %v2456, %v2455
      %2473 = vmatprep.subr.bf16.mxu0 0
      %2474 = vmatpush1.bf16.msra.mxu0 %v2457
      %2475 = vmatprep.subr.bf16.mxu0 0
      %2476 = vmatpush1.bf16.msra.mxu0 %v2458
      %2477 = vmatprep.subr.bf16.mxu0 0
      %2478 = vmatpush1.bf16.msra.mxu0 %v2459
      %2479 = vmatprep.subr.bf16.mxu0 0
      %2480 = vmatpush1.bf16.msra.mxu0 %v2460
      %2481 = vmatprep.subr.bf16.mxu0 0
      %2482 = vmatpush1.bf16.msra.mxu0 %v2461
      %2483 = vmatprep.subr.bf16.mxu0 0
      %2484 = vmatpush1.bf16.msra.mxu0 %v2462
      %2485 = vmatprep.subr.bf16.mxu0 0
      %2486 = vmatpush1.bf16.msra.mxu0 %v2463
      %2487 = vmatprep.subr.bf16.mxu0 0
      %2488 = vmatpush1.bf16.msra.mxu0 %v2464
      %2489 = vmatprep.subr.bf16.mxu0 0
      %2490 = vmatpush1.bf16.msra.mxu0 0
      %2491 = vmatprep.subr.bf16.mxu0 0
      %2492 = vmatpush1.bf16.msra.mxu0 0
      %2493 = vmatprep.subr.bf16.mxu0 0
      %2494 = vmatpush1.bf16.msra.mxu0 0
      %2495 = vmatprep.subr.bf16.mxu0 0
      %2496 = vmatpush1.bf16.msra.mxu0 0
      %2497 = vmatprep.subr.bf16.mxu0 0
      %2498 = vmatpush1.bf16.msra.mxu0 0
      %2499 = vmatprep.subr.bf16.mxu0 0
      %2500 = vmatpush1.bf16.msra.mxu0 0
      %2501 = vmatprep.subr.bf16.mxu0 0
      %2502 = vmatpush1.bf16.msra.mxu0 0
      %2503 = vmatprep.subr.bf16.mxu0 0
      %2504 = vmatpush1.bf16.msra.mxu0 0
      %2505 = vmatprep.mubr.bf16.mxu0 0
      %2506 = vmatmul.mubr.bf16.gmra.mrb[0].mxu0 %v2417
      %v2507 = vpop.f32.mrb[0].mxu0
      %v2508 = vadd.f32 0.0, %v2507
      %v2509 = vpop.f32.mrb[0].mxu0
      %v2510 = vpop.f32.mrb[0].mxu0
      %v2511 = vadd.f32 0.0, %v2510
      %v2512 = vpop.f32.mrb[0].mxu0
      %2513 = vmatprep.mubr.bf16.mxu0 0
      %2514 = vmatmul.mubr.bf16.gmra.mrb[0].mxu0 %v2418
      %v2515 = vpop.f32.mrb[0].mxu0
      %v2516 = vadd.f32 0.0, %v2515
      %v2517 = vpop.f32.mrb[0].mxu0
      %v2518 = vpop.f32.mrb[0].mxu0
      %v2519 = vadd.f32 0.0, %v2518
      %v2520 = vpop.f32.mrb[0].mxu0
      %2521 = vmatprep.mubr.bf16.mxu0 0
      %2522 = vmatmul.mubr.bf16.gmra.mrb[0].mxu0 %v2419
      %v2523 = vpop.f32.mrb[0].mxu0
      %v2524 = vadd.f32 0.0, %v2523
      %v2525 = vpop.f32.mrb[0].mxu0
      %v2526 = vpop.f32.mrb[0].mxu0
      %v2527 = vadd.f32 0.0, %v2526
      %v2528 = vpop.f32.mrb[0].mxu0
      %2529 = vmatprep.mubr.bf16.mxu0 0
      %2530 = vmatmul.mubr.bf16.gmra.mrb[0].mxu0 %v2420
      %v2531 = vpop.f32.mrb[0].mxu0
      %v2532 = vadd.f32 0.0, %v2531
      %v2533 = vpop.f32.mrb[0].mxu0
      %v2534 = vpop.f32.mrb[0].mxu0
      %v2535 = vadd.f32 0.0, %v2534
      %v2536 = vpop.f32.mrb[0].mxu0
      %2537 = vdwg.mxu0
      %v2538 = vadd.f32 %v2369, %v2508
      %v2539 = vadd.f32 %v2370, %v2511
      %v2540 = vadd.f32 %v2371, %v2516
      %v2541 = vadd.f32 %v2372, %v2519
      %v2542 = vadd.f32 %v2373, %v2524
      %v2543 = vadd.f32 %v2374, %v2527
      %v2544 = vadd.f32 %v2375, %v2532
      %v2545 = vadd.f32 %v2376, %v2535
      %v2546 = vld [vmem:[%s4] sm:$0x1]
      %v2548 = vlaneseq
      %v2549 = vshrl.u32 %v2548, 7
      %v2550 = vsub.s32 0, %v2549
      %v2551 = vrot.slane %v2546, %v2550
      %v2553 = vadd.f32 %v2538, %v2551
      %v2554 = vadd.f32 %v2539, %v2551
      %v2555 = vadd.f32 %v2540, %v2551
      %v2556 = vadd.f32 %v2541, %v2551
      %v2557 = vadd.f32 %v2542, %v2551
      %v2558 = vadd.f32 %v2543, %v2551
      %v2559 = vadd.f32 %v2544, %v2551
      %v2560 = vadd.f32 %v2545, %v2551
      %v2561 = vmax.f32 %v2553, 0.0
      %v2562 = vmax.f32 %v2554, 0.0
      %v2563 = vmax.f32 %v2555, 0.0
      %v2564 = vmax.f32 %v2556, 0.0
      %v2565 = vmax.f32 %v2557, 0.0
      %v2566 = vmax.f32 %v2558, 0.0
      %v2567 = vmax.f32 %v2559, 0.0
      %v2568 = vmax.f32 %v2560, 0.0
      %2569 = vst [vmem:[%s325] sm:$0xf] 0
      %2570 = vst [vmem:[%s325 + $0x4] sm:$0xf] 0
      %2571 = vst [vmem:[%s325 + $0x8] sm:$0xf] 0
      %2572 = vst [vmem:[%s325 + $0xc] sm:$0xf] 0
      %2573 = vst [vmem:[%s325 + $0x10] sm:$0xf] 0
      %2574 = vst [vmem:[%s325 + $0x14] sm:$0xf] 0
      %2575 = vst [vmem:[%s325 + $0x18] sm:$0xf] 0
      %2576 = vst [vmem:[%s325 + $0x1c] sm:$0xf] 0
      %2577 = vst [vmem:[%s325 + $0x20] sm:$0xf] 0
      %2578 = vst [vmem:[%s325 + $0x24] sm:$0xf] 0
      %2579 = vst [vmem:[%s325 + $0x28] sm:$0xf] 0
      %2580 = vst [vmem:[%s325 + $0x2c] sm:$0xf] 0
      %v2581 = vpack.c.bf16 %v2562, %v2561
      %v2582 = vpack.c.bf16 %v2564, %v2563
      %v2583 = vpack.c.bf16 %v2566, %v2565
      %v2584 = vpack.c.bf16 %v2568, %v2567
      %v2589 = vunpack.c.l.b16 %v2581
      %v2590 = vunpack.c.h.b16 %v2581
      %v2591 = vunpack.c.l.b16 %v2582
      %v2592 = vunpack.c.h.b16 %v2582
      %v2593 = vunpack.c.l.b16 %v2583
      %v2594 = vunpack.c.h.b16 %v2583
      %v2595 = vunpack.c.l.b16 %v2584
      %v2596 = vunpack.c.h.b16 %v2584
      %v2597 = vpack.c.b16 %v2589, %v2589
      %v2598 = vpack.c.b16 %v2590, %v2590
      %v2599 = vpack.c.b16 %v2591, %v2591
      %v2600 = vpack.c.b16 %v2592, %v2592
      %v2601 = vpack.c.b16 %v2593, %v2593
      %v2602 = vpack.c.b16 %v2594, %v2594
      %v2603 = vpack.c.b16 %v2595, %v2595
      %v2604 = vpack.c.b16 %v2596, %v2596
      %2613 = vst [vmem:[%s325 + $0x8] sm:$0xf] %v2597
      %2614 = vst [vmem:[%s325 + $0xc] sm:$0xf] %v2598
      %2615 = vst [vmem:[%s325 + $0x10] sm:$0xf] %v2599
      %2616 = vst [vmem:[%s325 + $0x14] sm:$0xf] %v2600
      %2617 = vst [vmem:[%s325 + $0x18] sm:$0xf] %v2601
      %2618 = vst [vmem:[%s325 + $0x1c] sm:$0xf] %v2602
      %2619 = vst [vmem:[%s325 + $0x20] sm:$0xf] %v2603
      %2620 = vst [vmem:[%s325 + $0x24] sm:$0xf] %v2604
      %p2621 = scmp.lt.s32.totalorder %s19, 1
      %s2622 = scalar_select %p2621, %s19, 1
      %s2623 = smul.addr %s2622, 12
      %s2624 = smul.addr %s2623, 4
      %s2625 = scalar_lea.vmem %s8, %s2624
      // Predicated region
      $region53: #{block_group_forward.2} parent=51 // pred_check
        %p2626 = pneg %p215
      $region54: #{block_group_forward.2} parent=51 // pred_check_branch
        %2628 = sbr.rel (%p2626) target = $region56
      $region55: #{block_group_forward.2} parent=51 // pred_region
        _
      $region56: #{block_group_forward.2} parent=51 // pred_fallthru
        _
    $region52: #{block_group_forward.2} parent=5 // pred_fallthru
      _
    %p2629 = scmp.le.s32.totalorder 2, %s14
    // Predicated region
    $region57: #{block_group_forward.2} parent=5 // pred_check
      %p2630 = pneg %p2629
    $region58: #{block_group_forward.2} parent=5 // pred_check_branch
      %2632 = sbr.rel (%p2630) target = $region60
    $region59: #{block_group_forward.2} parent=5 // pred_region
      %s2633 = ssub.s32 %s14, 2
      // Predicated region
      $region61: #{block_group_forward.2} parent=59 // pred_check
        %p2634 = pneg %p221
      $region62: #{block_group_forward.2} parent=59 // pred_check_branch
        %2636 = sbr.rel (%p2634) target = $region64
      $region63: #{block_group_forward.2} parent=59 // pred_region
        %p2637 = scmp.lt.s32.totalorder %s20, 1
        %s2638 = scalar_select %p2637, %s20, 1
        %s2639 = smul.addr %s2638, 12
        %s2640 = smul.addr %s2639, 4
        %s2641 = scalar_lea.vmem %s8, %s2640
      $region64: #{block_group_forward.2} parent=59 // pred_fallthru
        _
    $region60: #{block_group_forward.2} parent=5 // pred_fallthru
      _
  $region6: #{block_group_forward.2} parent=0 // loop_footer
    %s18 = sadd.s32 1, %s14
  $region7: #{block_group_forward.2} parent=0 // loop_footer_branch
    %13 = sbr.rel target = $region3
  $region8: #{block_group_forward.2} parent=0 // loop_exit
    _

// kernel: block_group_forward.3
$region0: #{block_group_forward.3}
  #allocation0 [shape = 'u32[]', space=smem, size = 0x4, offset = 0x4, fixed_abs, tag = 'smem constant byte address 0x4 - core index']
  #allocation1 [shape = 'u32[144,128]{1,0:T(1,128)}', space=vmem, size = 0x12000, scoped, tag = 'internal scratch']
  #allocation2 [shape = 'bf16[96,128]{1,0:T(16,128)(2,1)}', space=vmem, size = 0x6000, scoped, tag = 'scratch operand']
  %s0 = inlined_call_operand.vmem [shape: bf16[2,96,128], index: 0, kind: input, shape index: {}]
  %s1 = inlined_call_operand.vmem [shape: bf16[9,128,128], index: 1, kind: input, shape index: {}]
  %s2 = inlined_call_operand.vmem [shape: f32[1,128], index: 2, kind: input, shape index: {}]
  %s3 = inlined_call_operand.vmem [shape: bf16[9,128,128], index: 3, kind: input, shape index: {}]
  %s4 = inlined_call_operand.vmem [shape: f32[1,128], index: 4, kind: input, shape index: {}]
  %s5 = inlined_call_operand.vmem [shape: s32[64,1], index: 5, kind: input, shape index: {}]
  %s6 = inlined_call_operand.vmem [shape: bf16[2,96,128], index: 6, kind: output, shape index: {}]
  %s7 = sld [smem:[#allocation0]]
  $region57: #{block_group_forward.3} parent=0
    _
  %s9 = ssub.s32 1, %s7
  %s10 = scalar_select 0, %s9, %s7
  loop: start=0, step=1, limit=4
  $region2: #{block_group_forward.3} parent=0 // loop_pre_header
    _
  $region3: #{block_group_forward.3} parent=0 // loop_header
    %s12 = sphi 0, %s16
    %p13 = scmp.ge.s32.totalorder %s12, 4
    %s22 = sphi 0, %s24
    %s25 = sphi 0, %s22
    %s26 = sphi 0, %s25
    %s42 = sphi 0, %s26
    %s46 = sphi 0, %s46
    %s48 = sphi 0, %s46
    %s49 = sphi 0, %s48
    %s63 = sphi 0, %s49
    %s67 = sphi 0, %s67
    %s69 = sphi 0, %s67
    %s70 = sphi 0, %s69
    %s84 = sphi 0, %s70
    %s88 = sphi 0, %s88
    %s90 = sphi 0, %s88
    %s91 = sphi 0, %s90
    %s105 = sphi 0, %s91
    %s109 = sphi 0, %s109
    %s111 = sphi 0, %s109
    %s112 = sphi 0, %s111
    %s126 = sphi 0, %s112
    %s130 = sphi 0, %s130
    %s132 = sphi 0, %s130
    %s133 = sphi 0, %s132
    %s147 = sphi 0, %s133
    %s153 = sphi 0, %s155
    %s156 = sphi 0, %s153
    %s157 = sphi 0, %s156
    %s173 = sphi 0, %s157
  $region4: #{block_group_forward.3} parent=0 // loop_header_branch
    %15 = sbr.rel (%p13) target = $region8
  $region5: #{block_group_forward.3} parent=0 // loop_body
    %s17 = ssub.s32 %s12, 1
    %s18 = ssub.s32 %s12, 2
    %s19 = sadd.s32 %s12, 1
    %s20 = ssub.s32 %s12, %s19
    %p21 = scmp.eq.s32.totalorder %s20, 0
    %s23 = sadd.s32 %s22, 1
    %s24 = scalar_select %p21, %s22, %s23
    %p27 = pneg %p21
    %p28 = scmp.eq.s32.totalorder %s12, 1
    %p29 = por %p27, %p28
    %p30 = scmp.ne.s32.totalorder %s22, %s25
    %p31 = scmp.eq.s32.totalorder %s12, 0
    %p32 = por %p30, %p31
    %p33 = scmp.ne.s32.totalorder %s22, %s25
    %p34 = scmp.eq.s32.totalorder %s17, 1
    %p35 = por %p33, %p34
    %p36 = scmp.ne.s32.totalorder %s25, %s26
    %p37 = scmp.eq.s32.totalorder %s17, 0
    %p38 = por %p36, %p37
    %p39 = scmp.ne.s32.totalorder %s25, %s26
    %p40 = scmp.eq.s32.totalorder %s18, 1
    %p41 = por %p39, %p40
    %p43 = scmp.ne.s32.totalorder %s26, %s42
    %p44 = scmp.eq.s32.totalorder %s18, 0
    %p45 = por %p43, %p44
    %s47 = sadd.s32 %s46, 1
    %p50 = scmp.eq.s32.totalorder %s12, 1
    %p51 = scmp.ne.s32.totalorder %s46, %s48
    %p52 = scmp.eq.s32.totalorder %s12, 0
    %p53 = por %p51, %p52
    %p54 = scmp.ne.s32.totalorder %s46, %s48
    %p55 = scmp.eq.s32.totalorder %s17, 1
    %p56 = por %p54, %p55
    %p57 = scmp.ne.s32.totalorder %s48, %s49
    %p58 = scmp.eq.s32.totalorder %s17, 0
    %p59 = por %p57, %p58
    %p60 = scmp.ne.s32.totalorder %s48, %s49
    %p61 = scmp.eq.s32.totalorder %s18, 1
    %p62 = por %p60, %p61
    %p64 = scmp.ne.s32.totalorder %s49, %s63
    %p65 = scmp.eq.s32.totalorder %s18, 0
    %p66 = por %p64, %p65
    %s68 = sadd.s32 %s67, 1
    %p71 = scmp.eq.s32.totalorder %s12, 1
    %p72 = scmp.ne.s32.totalorder %s67, %s69
    %p73 = scmp.eq.s32.totalorder %s12, 0
    %p74 = por %p72, %p73
    %p75 = scmp.ne.s32.totalorder %s67, %s69
    %p76 = scmp.eq.s32.totalorder %s17, 1
    %p77 = por %p75, %p76
    %p78 = scmp.ne.s32.totalorder %s69, %s70
    %p79 = scmp.eq.s32.totalorder %s17, 0
    %p80 = por %p78, %p79
    %p81 = scmp.ne.s32.totalorder %s69, %s70
    %p82 = scmp.eq.s32.totalorder %s18, 1
    %p83 = por %p81, %p82
    %p85 = scmp.ne.s32.totalorder %s70, %s84
    %p86 = scmp.eq.s32.totalorder %s18, 0
    %p87 = por %p85, %p86
    %s89 = sadd.s32 %s88, 1
    %p92 = scmp.eq.s32.totalorder %s12, 1
    %p93 = scmp.ne.s32.totalorder %s88, %s90
    %p94 = scmp.eq.s32.totalorder %s12, 0
    %p95 = por %p93, %p94
    %p96 = scmp.ne.s32.totalorder %s88, %s90
    %p97 = scmp.eq.s32.totalorder %s17, 1
    %p98 = por %p96, %p97
    %p99 = scmp.ne.s32.totalorder %s90, %s91
    %p100 = scmp.eq.s32.totalorder %s17, 0
    %p101 = por %p99, %p100
    %p102 = scmp.ne.s32.totalorder %s90, %s91
    %p103 = scmp.eq.s32.totalorder %s18, 1
    %p104 = por %p102, %p103
    %p106 = scmp.ne.s32.totalorder %s91, %s105
    %p107 = scmp.eq.s32.totalorder %s18, 0
    %p108 = por %p106, %p107
    %s110 = sadd.s32 %s109, 1
    %p113 = scmp.eq.s32.totalorder %s12, 1
    %p114 = scmp.ne.s32.totalorder %s109, %s111
    %p115 = scmp.eq.s32.totalorder %s12, 0
    %p116 = por %p114, %p115
    %p117 = scmp.ne.s32.totalorder %s109, %s111
    %p118 = scmp.eq.s32.totalorder %s17, 1
    %p119 = por %p117, %p118
    %p120 = scmp.ne.s32.totalorder %s111, %s112
    %p121 = scmp.eq.s32.totalorder %s17, 0
    %p122 = por %p120, %p121
    %p123 = scmp.ne.s32.totalorder %s111, %s112
    %p124 = scmp.eq.s32.totalorder %s18, 1
    %p125 = por %p123, %p124
    %p127 = scmp.ne.s32.totalorder %s112, %s126
    %p128 = scmp.eq.s32.totalorder %s18, 0
    %p129 = por %p127, %p128
    %s131 = sadd.s32 %s130, 1
    %p134 = scmp.eq.s32.totalorder %s12, 1
    %p135 = scmp.ne.s32.totalorder %s130, %s132
    %p136 = scmp.eq.s32.totalorder %s12, 0
    %p137 = por %p135, %p136
    %p138 = scmp.ne.s32.totalorder %s130, %s132
    %p139 = scmp.eq.s32.totalorder %s17, 1
    %p140 = por %p138, %p139
    %p141 = scmp.ne.s32.totalorder %s132, %s133
    %p142 = scmp.eq.s32.totalorder %s17, 0
    %p143 = por %p141, %p142
    %p144 = scmp.ne.s32.totalorder %s132, %s133
    %p145 = scmp.eq.s32.totalorder %s18, 1
    %p146 = por %p144, %p145
    %p148 = scmp.ne.s32.totalorder %s133, %s147
    %p149 = scmp.eq.s32.totalorder %s18, 0
    %p150 = por %p148, %p149
    %s151 = ssub.s32 %s12, %s19
    %p152 = scmp.eq.s32.totalorder %s151, 0
    %s154 = sadd.s32 %s153, 1
    %s155 = scalar_select %p152, %s153, %s154
    %p158 = pneg %p152
    %p159 = scmp.eq.s32.totalorder %s12, 1
    %p160 = por %p158, %p159
    %p161 = scmp.ne.s32.totalorder %s153, %s156
    %p162 = scmp.eq.s32.totalorder %s12, 0
    %p163 = por %p161, %p162
    %p164 = scmp.ne.s32.totalorder %s153, %s156
    %p165 = scmp.eq.s32.totalorder %s17, 1
    %p166 = por %p164, %p165
    %p167 = scmp.ne.s32.totalorder %s156, %s157
    %p168 = scmp.eq.s32.totalorder %s17, 0
    %p169 = por %p167, %p168
    %p170 = scmp.ne.s32.totalorder %s156, %s157
    %p171 = scmp.eq.s32.totalorder %s18, 1
    %p172 = por %p170, %p171
    %p174 = scmp.ne.s32.totalorder %s157, %s173
    %p175 = scmp.eq.s32.totalorder %s18, 0
    %p176 = por %p174, %p175
    %p177 = scmp.le.s32.totalorder 1, %s12
    %p178 = scmp.lt.s32.totalorder %s12, 3
    %p179 = pnand %p177, %p178
    %p180 = pneg %p179
    // Predicated region
    $region9: #{block_group_forward.3} parent=5 // pred_check
      _
    $region10: #{block_group_forward.3} parent=5 // pred_check_branch
      %182 = sbr.rel (%p179) target = $region12
    $region11: #{block_group_forward.3} parent=5 // pred_region
      %s183 = ssub.s32 %s12, 1
      // Predicated region
      $region13: #{block_group_forward.3} parent=11 // pred_check
        %p184 = pneg %p59
      $region14: #{block_group_forward.3} parent=11 // pred_check_branch
        %186 = sbr.rel (%p184) target = $region16
      $region15: #{block_group_forward.3} parent=11 // pred_region
        _
      $region16: #{block_group_forward.3} parent=11 // pred_fallthru
        _
      // Predicated region
      $region17: #{block_group_forward.3} parent=11 // pred_check
        %p187 = pneg %p80
      $region18: #{block_group_forward.3} parent=11 // pred_check_branch
        %189 = sbr.rel (%p187) target = $region20
      $region19: #{block_group_forward.3} parent=11 // pred_region
        _
      $region20: #{block_group_forward.3} parent=11 // pred_fallthru
        _
      // Predicated region
      $region21: #{block_group_forward.3} parent=11 // pred_check
        %p190 = pneg %p101
      $region22: #{block_group_forward.3} parent=11 // pred_check_branch
        %192 = sbr.rel (%p190) target = $region24
      $region23: #{block_group_forward.3} parent=11 // pred_region
        _
      $region24: #{block_group_forward.3} parent=11 // pred_fallthru
        _
      // Predicated region
      $region25: #{block_group_forward.3} parent=11 // pred_check
        %p193 = pneg %p122
      $region26: #{block_group_forward.3} parent=11 // pred_check_branch
        %195 = sbr.rel (%p193) target = $region28
      $region27: #{block_group_forward.3} parent=11 // pred_region
        _
      $region28: #{block_group_forward.3} parent=11 // pred_fallthru
        _
      // Predicated region
      $region29: #{block_group_forward.3} parent=11 // pred_check
        %p196 = pneg %p143
      $region30: #{block_group_forward.3} parent=11 // pred_check_branch
        %198 = sbr.rel (%p196) target = $region32
      $region31: #{block_group_forward.3} parent=11 // pred_region
        _
      $region32: #{block_group_forward.3} parent=11 // pred_fallthru
        _
    $region12: #{block_group_forward.3} parent=5 // pred_fallthru
      _
    %p199 = scmp.lt.s32.totalorder %s12, 2
    // Predicated region
    $region33: #{block_group_forward.3} parent=5 // pred_check
      %p200 = pneg %p199
    $region34: #{block_group_forward.3} parent=5 // pred_check_branch
      %202 = sbr.rel (%p200) target = $region36
    $region35: #{block_group_forward.3} parent=5 // pred_region
      // Predicated region
      $region37: #{block_group_forward.3} parent=35 // pred_check
        %p203 = pneg %p32
      $region38: #{block_group_forward.3} parent=35 // pred_check_branch
        %205 = sbr.rel (%p203) target = $region40
      $region39: #{block_group_forward.3} parent=35 // pred_region
        %p206 = scmp.lt.s32.totalorder %s12, 1
        %s207 = scalar_select %p206, %s12, 1
        %s208 = smul.addr %s207, 12
        %s209 = smul.addr %s208, 4
        %s210 = scalar_lea.vmem %s0, %s209
      $region40: #{block_group_forward.3} parent=35 // pred_fallthru
        _
    $region36: #{block_group_forward.3} parent=5 // pred_fallthru
      _
    %p211 = scmp.le.s32.totalorder 1, %s12
    %p212 = scmp.lt.s32.totalorder %s12, 3
    %p213 = pnand %p211, %p212
    %p214 = pneg %p213
    // Predicated region
    $region41: #{block_group_forward.3} parent=5 // pred_check
      _
    $region42: #{block_group_forward.3} parent=5 // pred_check_branch
      %216 = sbr.rel (%p213) target = $region44
    $region43: #{block_group_forward.3} parent=5 // pred_region
      %s217 = ssub.s32 %s12, 1
      %p218 = scmp.lt.s32.totalorder %s17, 1
      %s219 = scalar_select %p218, %s17, 1
      %s220 = smul.addr %s219, 12
      %s221 = smul.addr %s220, 4
      %s222 = scalar_lea.vmem %s0, %s221
      %p223 = pneg %p38
      %p224 = pneg %p35
      %p225 = pneg %p59
      %p226 = pneg %p56
      %p227 = pneg %p80
      %p228 = pneg %p77
      %p229 = pneg %p101
      %p230 = pneg %p98
      %p231 = pneg %p122
      %p232 = pneg %p119
      %p233 = pneg %p143
      %p234 = pneg %p140
      %p235 = pneg %p169
      %p236 = pneg %p166
      %p237 = scmp.lt.s32.totalorder %s17, 1
      %s238 = scalar_select %p237, %s17, 1
      %s239 = smul.addr %s238, 12
      %s240 = smul.addr %s239, 4
      %s241 = scalar_lea.vmem %s6, %s240
      %p242 = scmp.lt.s32.totalorder %s17, 1
      %s243 = scalar_select %p242, %s17, 1
      %s244 = smul.addr %s243, 12
      %s245 = smul.addr %s244, 4
      %s246 = scalar_lea.vmem %s0, %s245
      %p247 = scmp.lt.s32.totalorder %s17, 1
      %s248 = scalar_select %p247, %s17, 1
      %s249 = smul.addr %s248, 12
      %s250 = smul.addr %s249, 4
      %s251 = scalar_lea.vmem %s6, %s250
      %v255 = vld [vmem:[%s5] sm:$0xff]
      %v256 = vld [vmem:[%s5 + $0x8] sm:$0xff]
      %v257 = vld [vmem:[%s5 + $0x10] sm:$0xff]
      %v258 = vld [vmem:[%s5 + $0x18] sm:$0xff]
      %v259 = vld [vmem:[%s5 + $0x20] sm:$0xff]
      %v260 = vld [vmem:[%s5 + $0x28] sm:$0xff]
      %v261 = vld [vmem:[%s5 + $0x30] sm:$0xff]
      %v262 = vld [vmem:[%s5 + $0x38] sm:$0xff]
      %vm263 = vcmp.gt.s32.totalorder %v255, 0
      %vm264 = vcmp.gt.s32.totalorder %v256, 0
      %vm265 = vcmp.gt.s32.totalorder %v257, 0
      %vm266 = vcmp.gt.s32.totalorder %v258, 0
      %vm267 = vcmp.gt.s32.totalorder %v259, 0
      %vm268 = vcmp.gt.s32.totalorder %v260, 0
      %vm269 = vcmp.gt.s32.totalorder %v261, 0
      %vm270 = vcmp.gt.s32.totalorder %v262, 0
      %vm271 = vcmp.lt.s32.totalorder %v255, 7
      %vm272 = vcmp.lt.s32.totalorder %v256, 7
      %vm273 = vcmp.lt.s32.totalorder %v257, 7
      %vm274 = vcmp.lt.s32.totalorder %v258, 7
      %vm275 = vcmp.lt.s32.totalorder %v259, 7
      %vm276 = vcmp.lt.s32.totalorder %v260, 7
      %vm277 = vcmp.lt.s32.totalorder %v261, 7
      %vm278 = vcmp.lt.s32.totalorder %v262, 7
      %v279 = vld [vmem:[%s246] sm:$0x8]
      %v280 = vld [vmem:[%s246 + $0x4] sm:$0xf]
      %v281 = vld [vmem:[%s246 + $0x8] sm:$0xf]
      %v282 = vld [vmem:[%s246 + $0xc] sm:$0xf]
      %v283 = vld [vmem:[%s246 + $0x10] sm:$0xf]
      %v284 = vld [vmem:[%s246 + $0x14] sm:$0xf]
      %v285 = vld [vmem:[%s246 + $0x18] sm:$0xf]
      %v286 = vld [vmem:[%s246 + $0x1c] sm:$0xf]
      %v287 = vld [vmem:[%s246 + $0x20] sm:$0xf]
      %v288 = vsel %vm263, 1, 0
      %v289 = vsel %vm264, 1, 0
      %v290 = vsel %vm265, 1, 0
      %v291 = vsel %vm266, 1, 0
      %v292 = vsel %vm267, 1, 0
      %v293 = vsel %vm268, 1, 0
      %v294 = vsel %vm269, 1, 0
      %v295 = vsel %vm270, 1, 0
      %296 = vset.pattern.permute.xlu0 0
      %297 = vperm.xlu0 %296, %v288
      %v298 = vpop.permute.xlu0 %297
      %299 = vset.pattern.permute.xlu0 0
      %300 = vperm.xlu0 %299, %v289
      %v301 = vpop.permute.xlu0 %300
      %302 = vset.pattern.permute.xlu0 0
      %303 = vperm.xlu0 %302, %v290
      %v304 = vpop.permute.xlu0 %303
      %305 = vset.pattern.permute.xlu0 0
      %306 = vperm.xlu0 %305, %v291
      %v307 = vpop.permute.xlu0 %306
      %308 = vset.pattern.permute.xlu0 0
      %309 = vperm.xlu0 %308, %v292
      %v310 = vpop.permute.xlu0 %309
      %311 = vset.pattern.permute.xlu0 0
      %312 = vperm.xlu0 %311, %v293
      %v313 = vpop.permute.xlu0 %312
      %314 = vset.pattern.permute.xlu0 0
      %315 = vperm.xlu0 %314, %v294
      %v316 = vpop.permute.xlu0 %315
      %317 = vset.pattern.permute.xlu0 0
      %318 = vperm.xlu0 %317, %v295
      %v319 = vpop.permute.xlu0 %318
      %vm320 = vcmp.eq.s32.totalorder %v298, 1
      %vm321 = vcmp.eq.s32.totalorder %v301, 1
      %vm322 = vcmp.eq.s32.totalorder %v304, 1
      %vm323 = vcmp.eq.s32.totalorder %v307, 1
      %vm324 = vcmp.eq.s32.totalorder %v310, 1
      %vm325 = vcmp.eq.s32.totalorder %v313, 1
      %vm326 = vcmp.eq.s32.totalorder %v316, 1
      %vm327 = vcmp.eq.s32.totalorder %v319, 1
      %vm328 = vmpackc.low %vm320, %vm320
      %vm329 = vmpackc.low %vm321, %vm321
      %vm330 = vmpackc.low %vm322, %vm322
      %vm331 = vmpackc.low %vm323, %vm323
      %vm332 = vmpackc.low %vm324, %vm324
      %vm333 = vmpackc.low %vm325, %vm325
      %vm334 = vmpackc.low %vm326, %vm326
      %vm335 = vmpackc.low %vm327, %vm327
      %v336 = vsel %vm328, 65537, 0
      %v337 = vsel %vm329, 65537, 0
      %v338 = vsel %vm330, 65537, 0
      %v339 = vsel %vm331, 65537, 0
      %v340 = vsel %vm332, 65537, 0
      %v341 = vsel %vm333, 65537, 0
      %v342 = vsel %vm334, 65537, 0
      %v343 = vsel %vm335, 65537, 0
      %vm344 = vsmask.f32 3328
      %vm345 = vsmask.f32 7440
      %vm346 = vmor %vm344, %vm345
      %v348 = vshll.u32 %v336, 16
      %v350 = vrot.slane %v348, 5
      %v351 = vshrl.u32 %v336, 16
      %v353 = vrot.slane %v351, 4
      %v354 = vor.u32 %v353, %v350
      %v355 = vrot.slane %v354, 4
      %v357 = vshll.u32 %v337, 16
      %v359 = vrot.slane %v357, 5
      %v360 = vsel %vm346, %v355, %v359
      %v361 = vshrl.u32 %v337, 16
      %v363 = vrot.slane %v361, 4
      %v364 = vor.u32 %v363, %v359
      %v365 = vrot.slane %v364, 4
      %v367 = vshll.u32 %v338, 16
      %v369 = vrot.slane %v367, 5
      %v370 = vsel %vm346, %v365, %v369
      %v371 = vshrl.u32 %v338, 16
      %v373 = vrot.slane %v371, 4
      %v374 = vor.u32 %v373, %v369
      %v375 = vrot.slane %v374, 4
      %v377 = vshll.u32 %v339, 16
      %v379 = vrot.slane %v377, 5
      %v380 = vsel %vm346, %v375, %v379
      %v381 = vshrl.u32 %v339, 16
      %v383 = vrot.slane %v381, 4
      %v384 = vor.u32 %v383, %v379
      %v385 = vrot.slane %v384, 4
      %v387 = vshll.u32 %v340, 16
      %v389 = vrot.slane %v387, 5
      %v390 = vsel %vm346, %v385, %v389
      %v391 = vshrl.u32 %v340, 16
      %v393 = vrot.slane %v391, 4
      %v394 = vor.u32 %v393, %v389
      %v395 = vrot.slane %v394, 4
      %v397 = vshll.u32 %v341, 16
      %v399 = vrot.slane %v397, 5
      %v400 = vsel %vm346, %v395, %v399
      %v401 = vshrl.u32 %v341, 16
      %v403 = vrot.slane %v401, 4
      %v404 = vor.u32 %v403, %v399
      %v405 = vrot.slane %v404, 4
      %v407 = vshll.u32 %v342, 16
      %v409 = vrot.slane %v407, 5
      %v410 = vsel %vm346, %v405, %v409
      %v411 = vshrl.u32 %v342, 16
      %v413 = vrot.slane %v411, 4
      %v414 = vor.u32 %v413, %v409
      %v415 = vrot.slane %v414, 4
      %v417 = vshll.u32 %v343, 16
      %v419 = vrot.slane %v417, 5
      %v420 = vsel %vm346, %v415, %v419
      %v421 = vshrl.u32 %v343, 16
      %v423 = vrot.slane %v421, 4
      %v424 = vor.u32 %v423, %v419
      %v425 = vrot.slane %v424, 4
      %vm426 = vcmp.ne.s16.totalorder %v350, 0
      %vm427 = vcmp.ne.s16.totalorder %v360, 0
      %vm428 = vcmp.ne.s16.totalorder %v370, 0
      %vm429 = vcmp.ne.s16.totalorder %v380, 0
      %vm430 = vcmp.ne.s16.totalorder %v390, 0
      %vm431 = vcmp.ne.s16.totalorder %v400, 0
      %vm432 = vcmp.ne.s16.totalorder %v410, 0
      %vm433 = vcmp.ne.s16.totalorder %v420, 0
      %vm434 = vcmp.ne.s16.totalorder %v425, 0
      %v435 = vsel %vm426, %v279, 0
      %v436 = vsel %vm427, %v280, 0
      %v437 = vsel %vm428, %v281, 0
      %v438 = vsel %vm429, %v282, 0
      %v439 = vsel %vm430, %v283, 0
      %v440 = vsel %vm431, %v284, 0
      %v441 = vsel %vm432, %v285, 0
      %v442 = vsel %vm433, %v286, 0
      %v443 = vsel %vm434, %v287, 0
      %v444 = vld [vmem:[%s1] sm:$0xf]
      %v445 = vld [vmem:[%s1 + $0x4] sm:$0xf]
      %v446 = vld [vmem:[%s1 + $0x8] sm:$0xf]
      %v447 = vld [vmem:[%s1 + $0xc] sm:$0xf]
      %v448 = vld [vmem:[%s1 + $0x10] sm:$0xf]
      %v449 = vld [vmem:[%s1 + $0x14] sm:$0xf]
      %v450 = vld [vmem:[%s1 + $0x18] sm:$0xf]
      %v451 = vld [vmem:[%s1 + $0x1c] sm:$0xf]
      %v452 = vld [vmem:[%s1 + $0x20] sm:$0xf]
      %v453 = vld [vmem:[%s1 + $0x24] sm:$0xf]
      %v454 = vld [vmem:[%s1 + $0x28] sm:$0xf]
      %v455 = vld [vmem:[%s1 + $0x2c] sm:$0xf]
      %v456 = vld [vmem:[%s1 + $0x30] sm:$0xf]
      %v457 = vld [vmem:[%s1 + $0x34] sm:$0xf]
      %v458 = vld [vmem:[%s1 + $0x38] sm:$0xf]
      %v459 = vld [vmem:[%s1 + $0x3c] sm:$0xf]
      %s460 = scalar_lea.vmem %s1, 64
      %v461 = vld [vmem:[%s460] sm:$0xf]
      %v462 = vld [vmem:[%s460 + $0x4] sm:$0xf]
      %v463 = vld [vmem:[%s460 + $0x8] sm:$0xf]
      %v464 = vld [vmem:[%s460 + $0xc] sm:$0xf]
      %v465 = vld [vmem:[%s460 + $0x10] sm:$0xf]
      %v466 = vld [vmem:[%s460 + $0x14] sm:$0xf]
      %v467 = vld [vmem:[%s460 + $0x18] sm:$0xf]
      %v468 = vld [vmem:[%s460 + $0x1c] sm:$0xf]
      %v469 = vld [vmem:[%s460 + $0x20] sm:$0xf]
      %v470 = vld [vmem:[%s460 + $0x24] sm:$0xf]
      %v471 = vld [vmem:[%s460 + $0x28] sm:$0xf]
      %v472 = vld [vmem:[%s460 + $0x2c] sm:$0xf]
      %v473 = vld [vmem:[%s460 + $0x30] sm:$0xf]
      %v474 = vld [vmem:[%s460 + $0x34] sm:$0xf]
      %v475 = vld [vmem:[%s460 + $0x38] sm:$0xf]
      %v476 = vld [vmem:[%s460 + $0x3c] sm:$0xf]
      %v485 = vunpack.c.l.b16 %v280
      %v486 = vunpack.c.l.b16 %v281
      %v487 = vunpack.c.l.b16 %v282
      %v488 = vunpack.c.l.b16 %v283
      %v489 = vunpack.c.l.b16 %v284
      %v490 = vunpack.c.l.b16 %v285
      %v491 = vunpack.c.l.b16 %v286
      %v492 = vunpack.c.l.b16 %v287
      %v493 = vpack.c.b16 %v486, %v485
      %v494 = vpack.c.b16 %v488, %v487
      %v495 = vpack.c.b16 %v490, %v489
      %v496 = vpack.c.b16 %v492, %v491
      %v517 = vunpack.c.l.b16 %v461
      %v518 = vunpack.c.l.b16 %v462
      %v519 = vunpack.c.l.b16 %v463
      %v520 = vunpack.c.l.b16 %v464
      %v521 = vunpack.c.l.b16 %v465
      %v522 = vunpack.c.l.b16 %v466
      %v523 = vunpack.c.l.b16 %v467
      %v524 = vunpack.c.l.b16 %v468
      %v525 = vunpack.c.l.b16 %v469
      %v526 = vunpack.c.l.b16 %v470
      %v527 = vunpack.c.l.b16 %v471
      %v528 = vunpack.c.l.b16 %v472
      %v529 = vunpack.c.l.b16 %v473
      %v530 = vunpack.c.l.b16 %v474
      %v531 = vunpack.c.l.b16 %v475
      %v532 = vunpack.c.l.b16 %v476
      %v533 = vpack.c.b16 %v518, %v517
      %v534 = vpack.c.b16 %v520, %v519
      %v535 = vpack.c.b16 %v522, %v521
      %v536 = vpack.c.b16 %v524, %v523
      %v537 = vpack.c.b16 %v526, %v525
      %v538 = vpack.c.b16 %v528, %v527
      %v539 = vpack.c.b16 %v530, %v529
      %v540 = vpack.c.b16 %v532, %v531
      %549 = vmatprep.subr.bf16.mxu0 0
      %550 = vmatpush1.bf16.msra.mxu0 %v533
      %551 = vmatprep.subr.bf16.mxu0 0
      %552 = vmatpush1.bf16.msra.mxu0 %v534
      %553 = vmatprep.subr.bf16.mxu0 0
      %554 = vmatpush1.bf16.msra.mxu0 %v535
      %555 = vmatprep.subr.bf16.mxu0 0
      %556 = vmatpush1.bf16.msra.mxu0 %v536
      %557 = vmatprep.subr.bf16.mxu0 0
      %558 = vmatpush1.bf16.msra.mxu0 %v537
      %559 = vmatprep.subr.bf16.mxu0 0
      %560 = vmatpush1.bf16.msra.mxu0 %v538
      %561 = vmatprep.subr.bf16.mxu0 0
      %562 = vmatpush1.bf16.msra.mxu0 %v539
      %563 = vmatprep.subr.bf16.mxu0 0
      %564 = vmatpush1.bf16.msra.mxu0 %v540
      %565 = vmatprep.subr.bf16.mxu0 0
      %566 = vmatpush1.bf16.msra.mxu0 0
      %567 = vmatprep.subr.bf16.mxu0 0
      %568 = vmatpush1.bf16.msra.mxu0 0
      %569 = vmatprep.subr.bf16.mxu0 0
      %570 = vmatpush1.bf16.msra.mxu0 0
      %571 = vmatprep.subr.bf16.mxu0 0
      %572 = vmatpush1.bf16.msra.mxu0 0
      %573 = vmatprep.subr.bf16.mxu0 0
      %574 = vmatpush1.bf16.msra.mxu0 0
      %575 = vmatprep.subr.bf16.mxu0 0
      %576 = vmatpush1.bf16.msra.mxu0 0
      %577 = vmatprep.subr.bf16.mxu0 0
      %578 = vmatpush1.bf16.msra.mxu0 0
      %579 = vmatprep.subr.bf16.mxu0 0
      %580 = vmatpush1.bf16.msra.mxu0 0
      %581 = vmatprep.mubr.bf16.mxu0 0
      %582 = vmatmul.mubr.bf16.gmra.mrb[0].mxu0 %v493
      %v583 = vpop.f32.mrb[0].mxu0
      %v584 = vadd.f32 0.0, %v583
      %v585 = vpop.f32.mrb[0].mxu0
      %v586 = vpop.f32.mrb[0].mxu0
      %v587 = vadd.f32 0.0, %v586
      %v588 = vpop.f32.mrb[0].mxu0
      %589 = vmatprep.mubr.bf16.mxu0 0
      %590 = vmatmul.mubr.bf16.gmra.mrb[0].mxu0 %v494
      %v591 = vpop.f32.mrb[0].mxu0
      %v592 = vadd.f32 0.0, %v591
      %v593 = vpop.f32.mrb[0].mxu0
      %v594 = vpop.f32.mrb[0].mxu0
      %v595 = vadd.f32 0.0, %v594
      %v596 = vpop.f32.mrb[0].mxu0
      %597 = vmatprep.mubr.bf16.mxu0 0
      %598 = vmatmul.mubr.bf16.gmra.mrb[0].mxu0 %v495
      %v599 = vpop.f32.mrb[0].mxu0
      %v600 = vadd.f32 0.0, %v599
      %v601 = vpop.f32.mrb[0].mxu0
      %v602 = vpop.f32.mrb[0].mxu0
      %v603 = vadd.f32 0.0, %v602
      %v604 = vpop.f32.mrb[0].mxu0
      %605 = vmatprep.mubr.bf16.mxu0 0
      %606 = vmatmul.mubr.bf16.gmra.mrb[0].mxu0 %v496
      %v607 = vpop.f32.mrb[0].mxu0
      %v608 = vadd.f32 0.0, %v607
      %v609 = vpop.f32.mrb[0].mxu0
      %v610 = vpop.f32.mrb[0].mxu0
      %v611 = vadd.f32 0.0, %v610
      %v612 = vpop.f32.mrb[0].mxu0
      %613 = vdwg.mxu0
      %v623 = vunpack.c.l.b16 %v435
      %v624 = vunpack.c.l.b16 %v436
      %v625 = vunpack.c.l.b16 %v437
      %v626 = vunpack.c.l.b16 %v438
      %v627 = vunpack.c.l.b16 %v439
      %v628 = vunpack.c.l.b16 %v440
      %v629 = vunpack.c.l.b16 %v441
      %v630 = vunpack.c.l.b16 %v442
      %v631 = vunpack.c.l.b16 %v443
      %v632 = vpack.c.b16 %v624, %v623
      %v633 = vpack.c.b16 %v626, %v625
      %v634 = vpack.c.b16 %v628, %v627
      %v635 = vpack.c.b16 %v630, %v629
      %v636 = vpack.c.b16 %v631, %v631
      %vm637 = vsmask.f32 4352
      %v639 = vshrl.u32 %v632, 16
      %v641 = vrot.slane %v639, 3
      %v642 = vshll.u32 %v632, 16
      %v644 = vrot.slane %v642, 4
      %v645 = vor.u32 %v641, %v644
      %v647 = vshrl.u32 %v633, 16
      %v649 = vrot.slane %v647, 3
      %v650 = vshll.u32 %v633, 16
      %v652 = vrot.slane %v650, 4
      %v653 = vor.u32 %v649, %v652
      %v654 = vsel %vm637, %v645, %v653
      %v656 = vshrl.u32 %v634, 16
      %v658 = vrot.slane %v656, 3
      %v659 = vshll.u32 %v634, 16
      %v661 = vrot.slane %v659, 4
      %v662 = vor.u32 %v658, %v661
      %v663 = vsel %vm637, %v653, %v662
      %v665 = vshrl.u32 %v635, 16
      %v667 = vrot.slane %v665, 3
      %v668 = vshll.u32 %v635, 16
      %v670 = vrot.slane %v668, 4
      %v671 = vor.u32 %v667, %v670
      %v672 = vsel %vm637, %v662, %v671
      %v674 = vshrl.u32 %v636, 16
      %v676 = vrot.slane %v674, 3
      %v677 = vshll.u32 %v636, 16
      %v679 = vrot.slane %v677, 4
      %v680 = vor.u32 %v676, %v679
      %v681 = vsel %vm637, %v671, %v680
      %v702 = vunpack.c.l.b16 %v444
      %v703 = vunpack.c.l.b16 %v445
      %v704 = vunpack.c.l.b16 %v446
      %v705 = vunpack.c.l.b16 %v447
      %v706 = vunpack.c.l.b16 %v448
      %v707 = vunpack.c.l.b16 %v449
      %v708 = vunpack.c.l.b16 %v450
      %v709 = vunpack.c.l.b16 %v451
      %v710 = vunpack.c.l.b16 %v452
      %v711 = vunpack.c.l.b16 %v453
      %v712 = vunpack.c.l.b16 %v454
      %v713 = vunpack.c.l.b16 %v455
      %v714 = vunpack.c.l.b16 %v456
      %v715 = vunpack.c.l.b16 %v457
      %v716 = vunpack.c.l.b16 %v458
      %v717 = vunpack.c.l.b16 %v459
      %v718 = vpack.c.b16 %v703, %v702
      %v719 = vpack.c.b16 %v705, %v704
      %v720 = vpack.c.b16 %v707, %v706
      %v721 = vpack.c.b16 %v709, %v708
      %v722 = vpack.c.b16 %v711, %v710
      %v723 = vpack.c.b16 %v713, %v712
      %v724 = vpack.c.b16 %v715, %v714
      %v725 = vpack.c.b16 %v717, %v716
      %734 = vmatprep.subr.bf16.mxu0 0
      %735 = vmatpush1.bf16.msra.mxu0 %v718
      %736 = vmatprep.subr.bf16.mxu0 0
      %737 = vmatpush1.bf16.msra.mxu0 %v719
      %738 = vmatprep.subr.bf16.mxu0 0
      %739 = vmatpush1.bf16.msra.mxu0 %v720
      %740 = vmatprep.subr.bf16.mxu0 0
      %741 = vmatpush1.bf16.msra.mxu0 %v721
      %742 = vmatprep.subr.bf16.mxu0 0
      %743 = vmatpush1.bf16.msra.mxu0 %v722
      %744 = vmatprep.subr.bf16.mxu0 0
      %745 = vmatpush1.bf16.msra.mxu0 %v723
      %746 = vmatprep.subr.bf16.mxu0 0
      %747 = vmatpush1.bf16.msra.mxu0 %v724
      %748 = vmatprep.subr.bf16.mxu0 0
      %749 = vmatpush1.bf16.msra.mxu0 %v725
      %750 = vmatprep.subr.bf16.mxu0 0
      %751 = vmatpush1.bf16.msra.mxu0 0
      %752 = vmatprep.subr.bf16.mxu0 0
      %753 = vmatpush1.bf16.msra.mxu0 0
      %754 = vmatprep.subr.bf16.mxu0 0
      %755 = vmatpush1.bf16.msra.mxu0 0
      %756 = vmatprep.subr.bf16.mxu0 0
      %757 = vmatpush1.bf16.msra.mxu0 0
      %758 = vmatprep.subr.bf16.mxu0 0
      %759 = vmatpush1.bf16.msra.mxu0 0
      %760 = vmatprep.subr.bf16.mxu0 0
      %761 = vmatpush1.bf16.msra.mxu0 0
      %762 = vmatprep.subr.bf16.mxu0 0
      %763 = vmatpush1.bf16.msra.mxu0 0
      %764 = vmatprep.subr.bf16.mxu0 0
      %765 = vmatpush1.bf16.msra.mxu0 0
      %766 = vmatprep.mubr.bf16.mxu0 0
      %767 = vmatmul.mubr.bf16.gmra.mrb[0].mxu0 %v654
      %v768 = vpop.f32.mrb[0].mxu0
      %v769 = vadd.f32 %v584, %v768
      %v770 = vpop.f32.mrb[0].mxu0
      %v771 = vpop.f32.mrb[0].mxu0
      %v772 = vadd.f32 %v587, %v771
      %v773 = vpop.f32.mrb[0].mxu0
      %774 = vmatprep.mubr.bf16.mxu0 0
      %775 = vmatmul.mubr.bf16.gmra.mrb[0].mxu0 %v663
      %v776 = vpop.f32.mrb[0].mxu0
      %v777 = vadd.f32 %v592, %v776
      %v778 = vpop.f32.mrb[0].mxu0
      %v779 = vpop.f32.mrb[0].mxu0
      %v780 = vadd.f32 %v595, %v779
      %v781 = vpop.f32.mrb[0].mxu0
      %782 = vmatprep.mubr.bf16.mxu0 0
      %783 = vmatmul.mubr.bf16.gmra.mrb[0].mxu0 %v672
      %v784 = vpop.f32.mrb[0].mxu0
      %v785 = vadd.f32 %v600, %v784
      %v786 = vpop.f32.mrb[0].mxu0
      %v787 = vpop.f32.mrb[0].mxu0
      %v788 = vadd.f32 %v603, %v787
      %v789 = vpop.f32.mrb[0].mxu0
      %790 = vmatprep.mubr.bf16.mxu0 0
      %791 = vmatmul.mubr.bf16.gmra.mrb[0].mxu0 %v681
      %v792 = vpop.f32.mrb[0].mxu0
      %v793 = vadd.f32 %v608, %v792
      %v794 = vpop.f32.mrb[0].mxu0
      %v795 = vpop.f32.mrb[0].mxu0
      %v796 = vadd.f32 %v611, %v795
      %v797 = vpop.f32.mrb[0].mxu0
      %798 = vdwg.mxu0
      %v799 = vld [vmem:[%s246 + $0x4] sm:$0xf]
      %v800 = vld [vmem:[%s246 + $0x8] sm:$0xf]
      %v801 = vld [vmem:[%s246 + $0xc] sm:$0xf]
      %v802 = vld [vmem:[%s246 + $0x10] sm:$0xf]
      %v803 = vld [vmem:[%s246 + $0x14] sm:$0xf]
      %v804 = vld [vmem:[%s246 + $0x18] sm:$0xf]
      %v805 = vld [vmem:[%s246 + $0x1c] sm:$0xf]
      %v806 = vld [vmem:[%s246 + $0x20] sm:$0xf]
      %v807 = vld [vmem:[%s246 + $0x24] sm:$0x1]
      %v808 = vsel %vm271, 1, 0
      %v809 = vsel %vm272, 1, 0
      %v810 = vsel %vm273, 1, 0
      %v811 = vsel %vm274, 1, 0
      %v812 = vsel %vm275, 1, 0
      %v813 = vsel %vm276, 1, 0
      %v814 = vsel %vm277, 1, 0
      %v815 = vsel %vm278, 1, 0
      %816 = vset.pattern.permute.xlu0 0
      %817 = vperm.xlu0 %816, %v808
      %v818 = vpop.permute.xlu0 %817
      %819 = vset.pattern.permute.xlu0 0
      %820 = vperm.xlu0 %819, %v809
      %v821 = vpop.permute.xlu0 %820
      %822 = vset.pattern.permute.xlu0 0
      %823 = vperm.xlu0 %822, %v810
      %v824 = vpop.permute.xlu0 %823
      %825 = vset.pattern.permute.xlu0 0
      %826 = vperm.xlu0 %825, %v811
      %v827 = vpop.permute.xlu0 %826
      %828 = vset.pattern.permute.xlu0 0
      %829 = vperm.xlu0 %828, %v812
      %v830 = vpop.permute.xlu0 %829
      %831 = vset.pattern.permute.xlu0 0
      %832 = vperm.xlu0 %831, %v813
      %v833 = vpop.permute.xlu0 %832
      %834 = vset.pattern.permute.xlu0 0
      %835 = vperm.xlu0 %834, %v814
      %v836 = vpop.permute.xlu0 %835
      %837 = vset.pattern.permute.xlu0 0
      %838 = vperm.xlu0 %837, %v815
      %v839 = vpop.permute.xlu0 %838
      %vm840 = vcmp.eq.s32.totalorder %v818, 1
      %vm841 = vcmp.eq.s32.totalorder %v821, 1
      %vm842 = vcmp.eq.s32.totalorder %v824, 1
      %vm843 = vcmp.eq.s32.totalorder %v827, 1
      %vm844 = vcmp.eq.s32.totalorder %v830, 1
      %vm845 = vcmp.eq.s32.totalorder %v833, 1
      %vm846 = vcmp.eq.s32.totalorder %v836, 1
      %vm847 = vcmp.eq.s32.totalorder %v839, 1
      %vm848 = vmpackc.low %vm840, %vm840
      %vm849 = vmpackc.low %vm841, %vm841
      %vm850 = vmpackc.low %vm842, %vm842
      %vm851 = vmpackc.low %vm843, %vm843
      %vm852 = vmpackc.low %vm844, %vm844
      %vm853 = vmpackc.low %vm845, %vm845
      %vm854 = vmpackc.low %vm846, %vm846
      %vm855 = vmpackc.low %vm847, %vm847
      %v856 = vsel %vm848, 65537, 0
      %v857 = vsel %vm849, 65537, 0
      %v858 = vsel %vm850, 65537, 0
      %v859 = vsel %vm851, 65537, 0
      %v860 = vsel %vm852, 65537, 0
      %v861 = vsel %vm853, 65537, 0
      %v862 = vsel %vm854, 65537, 0
      %v863 = vsel %vm855, 65537, 0
      %vm864 = vsmask.f32 256
      %vm865 = vsmask.f32 4368
      %vm866 = vmor %vm864, %vm865
      %v868 = vshrl.u32 %v856, 16
      %v870 = vrot.slane %v868, 7
      %v871 = vshll.u32 %v856, 16
      %v873 = vor.u32 %v870, %v871
      %v874 = vrot.slane %v870, 4
      %v876 = vshrl.u32 %v857, 16
      %v878 = vrot.slane %v876, 7
      %v879 = vshll.u32 %v857, 16
      %v881 = vor.u32 %v878, %v879
      %v882 = vsel %vm866, %v874, %v881
      %v883 = vrot.slane %v878, 4
      %v885 = vshrl.u32 %v858, 16
      %v887 = vrot.slane %v885, 7
      %v888 = vshll.u32 %v858, 16
      %v890 = vor.u32 %v887, %v888
      %v891 = vsel %vm866, %v883, %v890
      %v892 = vrot.slane %v887, 4
      %v894 = vshrl.u32 %v859, 16
      %v896 = vrot.slane %v894, 7
      %v897 = vshll.u32 %v859, 16
      %v899 = vor.u32 %v896, %v897
      %v900 = vsel %vm866, %v892, %v899
      %v901 = vrot.slane %v896, 4
      %v903 = vshrl.u32 %v860, 16
      %v905 = vrot.slane %v903, 7
      %v906 = vshll.u32 %v860, 16
      %v908 = vor.u32 %v905, %v906
      %v909 = vsel %vm866, %v901, %v908
      %v910 = vrot.slane %v905, 4
      %v912 = vshrl.u32 %v861, 16
      %v914 = vrot.slane %v912, 7
      %v915 = vshll.u32 %v861, 16
      %v917 = vor.u32 %v914, %v915
      %v918 = vsel %vm866, %v910, %v917
      %v919 = vrot.slane %v914, 4
      %v921 = vshrl.u32 %v862, 16
      %v923 = vrot.slane %v921, 7
      %v924 = vshll.u32 %v862, 16
      %v926 = vor.u32 %v923, %v924
      %v927 = vsel %vm866, %v919, %v926
      %v928 = vrot.slane %v923, 4
      %v930 = vshrl.u32 %v863, 16
      %v932 = vrot.slane %v930, 7
      %v933 = vshll.u32 %v863, 16
      %v935 = vor.u32 %v932, %v933
      %v936 = vsel %vm866, %v928, %v935
      %v937 = vrot.slane %v932, 4
      %vm938 = vcmp.ne.s16.totalorder %v873, 0
      %vm939 = vcmp.ne.s16.totalorder %v882, 0
      %vm940 = vcmp.ne.s16.totalorder %v891, 0
      %vm941 = vcmp.ne.s16.totalorder %v900, 0
      %vm942 = vcmp.ne.s16.totalorder %v909, 0
      %vm943 = vcmp.ne.s16.totalorder %v918, 0
      %vm944 = vcmp.ne.s16.totalorder %v927, 0
      %vm945 = vcmp.ne.s16.totalorder %v936, 0
      %vm946 = vcmp.ne.s16.totalorder %v937, 0
      %v947 = vsel %vm938, %v799, 0
      %v948 = vsel %vm939, %v800, 0
      %v949 = vsel %vm940, %v801, 0
      %v950 = vsel %vm941, %v802, 0
      %v951 = vsel %vm942, %v803, 0
      %v952 = vsel %vm943, %v804, 0
      %v953 = vsel %vm944, %v805, 0
      %v954 = vsel %vm945, %v806, 0
      %v955 = vsel %vm946, %v807, 0
      %s956 = scalar_lea.vmem %s1, 128
      %v957 = vld [vmem:[%s956] sm:$0xf]
      %v958 = vld [vmem:[%s956 + $0x4] sm:$0xf]
      %v959 = vld [vmem:[%s956 + $0x8] sm:$0xf]
      %v960 = vld [vmem:[%s956 + $0xc] sm:$0xf]
      %v961 = vld [vmem:[%s956 + $0x10] sm:$0xf]
      %v962 = vld [vmem:[%s956 + $0x14] sm:$0xf]
      %v963 = vld [vmem:[%s956 + $0x18] sm:$0xf]
      %v964 = vld [vmem:[%s956 + $0x1c] sm:$0xf]
      %v965 = vld [vmem:[%s956 + $0x20] sm:$0xf]
      %v966 = vld [vmem:[%s956 + $0x24] sm:$0xf]
      %v967 = vld [vmem:[%s956 + $0x28] sm:$0xf]
      %v968 = vld [vmem:[%s956 + $0x2c] sm:$0xf]
      %v969 = vld [vmem:[%s956 + $0x30] sm:$0xf]
      %v970 = vld [vmem:[%s956 + $0x34] sm:$0xf]
      %v971 = vld [vmem:[%s956 + $0x38] sm:$0xf]
      %v972 = vld [vmem:[%s956 + $0x3c] sm:$0xf]
      %v982 = vunpack.c.l.b16 %v947
      %v983 = vunpack.c.l.b16 %v948
      %v984 = vunpack.c.l.b16 %v949
      %v985 = vunpack.c.l.b16 %v950
      %v986 = vunpack.c.l.b16 %v951
      %v987 = vunpack.c.l.b16 %v952
      %v988 = vunpack.c.l.b16 %v953
      %v989 = vunpack.c.l.b16 %v954
      %v990 = vunpack.c.l.b16 %v955
      %v991 = vpack.c.b16 %v983, %v982
      %v992 = vpack.c.b16 %v985, %v984
      %v993 = vpack.c.b16 %v987, %v986
      %v994 = vpack.c.b16 %v989, %v988
      %v995 = vpack.c.b16 %v990, %v990
      %vm996 = vsmask.f32 7424
      %v998 = vshrl.u32 %v991, 16
      %v1000 = vshll.u32 %v991, 16
      %v1002 = vrot.slane %v1000, 1
      %v1003 = vor.u32 %v998, %v1002
      %v1005 = vshll.u32 %v992, 16
      %v1007 = vrot.slane %v1005, 1
      %v1008 = vsel %vm996, %v1003, %v1007
      %v1009 = vshrl.u32 %v992, 16
      %v1011 = vor.u32 %v1009, %v1007
      %v1013 = vshll.u32 %v993, 16
      %v1015 = vrot.slane %v1013, 1
      %v1016 = vsel %vm996, %v1011, %v1015
      %v1017 = vshrl.u32 %v993, 16
      %v1019 = vor.u32 %v1017, %v1015
      %v1021 = vshll.u32 %v994, 16
      %v1023 = vrot.slane %v1021, 1
      %v1024 = vsel %vm996, %v1019, %v1023
      %v1025 = vshrl.u32 %v994, 16
      %v1027 = vor.u32 %v1025, %v1023
      %v1029 = vshll.u32 %v995, 16
      %v1031 = vrot.slane %v1029, 1
      %v1032 = vsel %vm996, %v1027, %v1031
      %v1053 = vunpack.c.l.b16 %v957
      %v1054 = vunpack.c.l.b16 %v958
      %v1055 = vunpack.c.l.b16 %v959
      %v1056 = vunpack.c.l.b16 %v960
      %v1057 = vunpack.c.l.b16 %v961
      %v1058 = vunpack.c.l.b16 %v962
      %v1059 = vunpack.c.l.b16 %v963
      %v1060 = vunpack.c.l.b16 %v964
      %v1061 = vunpack.c.l.b16 %v965
      %v1062 = vunpack.c.l.b16 %v966
      %v1063 = vunpack.c.l.b16 %v967
      %v1064 = vunpack.c.l.b16 %v968
      %v1065 = vunpack.c.l.b16 %v969
      %v1066 = vunpack.c.l.b16 %v970
      %v1067 = vunpack.c.l.b16 %v971
      %v1068 = vunpack.c.l.b16 %v972
      %v1069 = vpack.c.b16 %v1054, %v1053
      %v1070 = vpack.c.b16 %v1056, %v1055
      %v1071 = vpack.c.b16 %v1058, %v1057
      %v1072 = vpack.c.b16 %v1060, %v1059
      %v1073 = vpack.c.b16 %v1062, %v1061
      %v1074 = vpack.c.b16 %v1064, %v1063
      %v1075 = vpack.c.b16 %v1066, %v1065
      %v1076 = vpack.c.b16 %v1068, %v1067
      %1085 = vmatprep.subr.bf16.mxu0 0
      %1086 = vmatpush1.bf16.msra.mxu0 %v1069
      %1087 = vmatprep.subr.bf16.mxu0 0
      %1088 = vmatpush1.bf16.msra.mxu0 %v1070
      %1089 = vmatprep.subr.bf16.mxu0 0
      %1090 = vmatpush1.bf16.msra.mxu0 %v1071
      %1091 = vmatprep.subr.bf16.mxu0 0
      %1092 = vmatpush1.bf16.msra.mxu0 %v1072
      %1093 = vmatprep.subr.bf16.mxu0 0
      %1094 = vmatpush1.bf16.msra.mxu0 %v1073
      %1095 = vmatprep.subr.bf16.mxu0 0
      %1096 = vmatpush1.bf16.msra.mxu0 %v1074
      %1097 = vmatprep.subr.bf16.mxu0 0
      %1098 = vmatpush1.bf16.msra.mxu0 %v1075
      %1099 = vmatprep.subr.bf16.mxu0 0
      %1100 = vmatpush1.bf16.msra.mxu0 %v1076
      %1101 = vmatprep.subr.bf16.mxu0 0
      %1102 = vmatpush1.bf16.msra.mxu0 0
      %1103 = vmatprep.subr.bf16.mxu0 0
      %1104 = vmatpush1.bf16.msra.mxu0 0
      %1105 = vmatprep.subr.bf16.mxu0 0
      %1106 = vmatpush1.bf16.msra.mxu0 0
      %1107 = vmatprep.subr.bf16.mxu0 0
      %1108 = vmatpush1.bf16.msra.mxu0 0
      %1109 = vmatprep.subr.bf16.mxu0 0
      %1110 = vmatpush1.bf16.msra.mxu0 0
      %1111 = vmatprep.subr.bf16.mxu0 0
      %1112 = vmatpush1.bf16.msra.mxu0 0
      %1113 = vmatprep.subr.bf16.mxu0 0
      %1114 = vmatpush1.bf16.msra.mxu0 0
      %1115 = vmatprep.subr.bf16.mxu0 0
      %1116 = vmatpush1.bf16.msra.mxu0 0
      %1117 = vmatprep.mubr.bf16.mxu0 0
      %1118 = vmatmul.mubr.bf16.gmra.mrb[0].mxu0 %v1008
      %v1119 = vpop.f32.mrb[0].mxu0
      %v1120 = vadd.f32 0.0, %v1119
      %v1121 = vpop.f32.mrb[0].mxu0
      %v1122 = vpop.f32.mrb[0].mxu0
      %v1123 = vadd.f32 0.0, %v1122
      %v1124 = vpop.f32.mrb[0].mxu0
      %1125 = vmatprep.mubr.bf16.mxu0 0
      %1126 = vmatmul.mubr.bf16.gmra.mrb[0].mxu0 %v1016
      %v1127 = vpop.f32.mrb[0].mxu0
      %v1128 = vadd.f32 0.0, %v1127
      %v1129 = vpop.f32.mrb[0].mxu0
      %v1130 = vpop.f32.mrb[0].mxu0
      %v1131 = vadd.f32 0.0, %v1130
      %v1132 = vpop.f32.mrb[0].mxu0
      %1133 = vmatprep.mubr.bf16.mxu0 0
      %1134 = vmatmul.mubr.bf16.gmra.mrb[0].mxu0 %v1024
      %v1135 = vpop.f32.mrb[0].mxu0
      %v1136 = vadd.f32 0.0, %v1135
      %v1137 = vpop.f32.mrb[0].mxu0
      %v1138 = vpop.f32.mrb[0].mxu0
      %v1139 = vadd.f32 0.0, %v1138
      %v1140 = vpop.f32.mrb[0].mxu0
      %1141 = vmatprep.mubr.bf16.mxu0 0
      %1142 = vmatmul.mubr.bf16.gmra.mrb[0].mxu0 %v1032
      %v1143 = vpop.f32.mrb[0].mxu0
      %v1144 = vadd.f32 0.0, %v1143
      %v1145 = vpop.f32.mrb[0].mxu0
      %v1146 = vpop.f32.mrb[0].mxu0
      %v1147 = vadd.f32 0.0, %v1146
      %v1148 = vpop.f32.mrb[0].mxu0
      %1149 = vdwg.mxu0
      %v1150 = vadd.f32 %v769, %v1120
      %v1151 = vadd.f32 %v772, %v1123
      %v1152 = vadd.f32 %v777, %v1128
      %v1153 = vadd.f32 %v780, %v1131
      %v1154 = vadd.f32 %v785, %v1136
      %v1155 = vadd.f32 %v788, %v1139
      %v1156 = vadd.f32 %v793, %v1144
      %v1157 = vadd.f32 %v796, %v1147
      %v1158 = vld [vmem:[%s246 + $0x4] sm:$0x8]
      %v1159 = vld [vmem:[%s246 + $0x24] sm:$0xf]
      %v1160 = vsel %vm426, %v1158, 0
      %v1161 = vsel %vm427, %v800, 0
      %v1162 = vsel %vm428, %v801, 0
      %v1163 = vsel %vm429, %v802, 0
      %v1164 = vsel %vm430, %v803, 0
      %v1165 = vsel %vm431, %v804, 0
      %v1166 = vsel %vm432, %v805, 0
      %v1167 = vsel %vm433, %v806, 0
      %v1168 = vsel %vm434, %v1159, 0
      %s1169 = scalar_lea.vmem %s1, 192
      %v1170 = vld [vmem:[%s1169] sm:$0xf]
      %v1171 = vld [vmem:[%s1169 + $0x4] sm:$0xf]
      %v1172 = vld [vmem:[%s1169 + $0x8] sm:$0xf]
      %v1173 = vld [vmem:[%s1169 + $0xc] sm:$0xf]
      %v1174 = vld [vmem:[%s1169 + $0x10] sm:$0xf]
      %v1175 = vld [vmem:[%s1169 + $0x14] sm:$0xf]
      %v1176 = vld [vmem:[%s1169 + $0x18] sm:$0xf]
      %v1177 = vld [vmem:[%s1169 + $0x1c] sm:$0xf]
      %v1178 = vld [vmem:[%s1169 + $0x20] sm:$0xf]
      %v1179 = vld [vmem:[%s1169 + $0x24] sm:$0xf]
      %v1180 = vld [vmem:[%s1169 + $0x28] sm:$0xf]
      %v1181 = vld [vmem:[%s1169 + $0x2c] sm:$0xf]
      %v1182 = vld [vmem:[%s1169 + $0x30] sm:$0xf]
      %v1183 = vld [vmem:[%s1169 + $0x34] sm:$0xf]
      %v1184 = vld [vmem:[%s1169 + $0x38] sm:$0xf]
      %v1185 = vld [vmem:[%s1169 + $0x3c] sm:$0xf]
      %v1195 = vunpack.c.l.b16 %v1160
      %v1196 = vunpack.c.l.b16 %v1161
      %v1197 = vunpack.c.l.b16 %v1162
      %v1198 = vunpack.c.l.b16 %v1163
      %v1199 = vunpack.c.l.b16 %v1164
      %v1200 = vunpack.c.l.b16 %v1165
      %v1201 = vunpack.c.l.b16 %v1166
      %v1202 = vunpack.c.l.b16 %v1167
      %v1203 = vunpack.c.l.b16 %v1168
      %v1204 = vpack.c.b16 %v1196, %v1195
      %v1205 = vpack.c.b16 %v1198, %v1197
      %v1206 = vpack.c.b16 %v1200, %v1199
      %v1207 = vpack.c.b16 %v1202, %v1201
      %v1208 = vpack.c.b16 %v1203, %v1203
      %v1210 = vshrl.u32 %v1204, 16
      %v1212 = vrot.slane %v1210, 3
      %v1213 = vshll.u32 %v1204, 16
      %v1215 = vrot.slane %v1213, 4
      %v1216 = vor.u32 %v1212, %v1215
      %v1218 = vshrl.u32 %v1205, 16
      %v1220 = vrot.slane %v1218, 3
      %v1221 = vshll.u32 %v1205, 16
      %v1223 = vrot.slane %v1221, 4
      %v1224 = vor.u32 %v1220, %v1223
      %v1225 = vsel %vm637, %v1216, %v1224
      %v1227 = vshrl.u32 %v1206, 16
      %v1229 = vrot.slane %v1227, 3
      %v1230 = vshll.u32 %v1206, 16
      %v1232 = vrot.slane %v1230, 4
      %v1233 = vor.u32 %v1229, %v1232
      %v1234 = vsel %vm637, %v1224, %v1233
      %v1236 = vshrl.u32 %v1207, 16
      %v1238 = vrot.slane %v1236, 3
      %v1239 = vshll.u32 %v1207, 16
      %v1241 = vrot.slane %v1239, 4
      %v1242 = vor.u32 %v1238, %v1241
      %v1243 = vsel %vm637, %v1233, %v1242
      %v1245 = vshrl.u32 %v1208, 16
      %v1247 = vrot.slane %v1245, 3
      %v1248 = vshll.u32 %v1208, 16
      %v1250 = vrot.slane %v1248, 4
      %v1251 = vor.u32 %v1247, %v1250
      %v1252 = vsel %vm637, %v1242, %v1251
      %v1273 = vunpack.c.l.b16 %v1170
      %v1274 = vunpack.c.l.b16 %v1171
      %v1275 = vunpack.c.l.b16 %v1172
      %v1276 = vunpack.c.l.b16 %v1173
      %v1277 = vunpack.c.l.b16 %v1174
      %v1278 = vunpack.c.l.b16 %v1175
      %v1279 = vunpack.c.l.b16 %v1176
      %v1280 = vunpack.c.l.b16 %v1177
      %v1281 = vunpack.c.l.b16 %v1178
      %v1282 = vunpack.c.l.b16 %v1179
      %v1283 = vunpack.c.l.b16 %v1180
      %v1284 = vunpack.c.l.b16 %v1181
      %v1285 = vunpack.c.l.b16 %v1182
      %v1286 = vunpack.c.l.b16 %v1183
      %v1287 = vunpack.c.l.b16 %v1184
      %v1288 = vunpack.c.l.b16 %v1185
      %v1289 = vpack.c.b16 %v1274, %v1273
      %v1290 = vpack.c.b16 %v1276, %v1275
      %v1291 = vpack.c.b16 %v1278, %v1277
      %v1292 = vpack.c.b16 %v1280, %v1279
      %v1293 = vpack.c.b16 %v1282, %v1281
      %v1294 = vpack.c.b16 %v1284, %v1283
      %v1295 = vpack.c.b16 %v1286, %v1285
      %v1296 = vpack.c.b16 %v1288, %v1287
      %1305 = vmatprep.subr.bf16.mxu0 0
      %1306 = vmatpush1.bf16.msra.mxu0 %v1289
      %1307 = vmatprep.subr.bf16.mxu0 0
      %1308 = vmatpush1.bf16.msra.mxu0 %v1290
      %1309 = vmatprep.subr.bf16.mxu0 0
      %1310 = vmatpush1.bf16.msra.mxu0 %v1291
      %1311 = vmatprep.subr.bf16.mxu0 0
      %1312 = vmatpush1.bf16.msra.mxu0 %v1292
      %1313 = vmatprep.subr.bf16.mxu0 0
      %1314 = vmatpush1.bf16.msra.mxu0 %v1293
      %1315 = vmatprep.subr.bf16.mxu0 0
      %1316 = vmatpush1.bf16.msra.mxu0 %v1294
      %1317 = vmatprep.subr.bf16.mxu0 0
      %1318 = vmatpush1.bf16.msra.mxu0 %v1295
      %1319 = vmatprep.subr.bf16.mxu0 0
      %1320 = vmatpush1.bf16.msra.mxu0 %v1296
      %1321 = vmatprep.subr.bf16.mxu0 0
      %1322 = vmatpush1.bf16.msra.mxu0 0
      %1323 = vmatprep.subr.bf16.mxu0 0
      %1324 = vmatpush1.bf16.msra.mxu0 0
      %1325 = vmatprep.subr.bf16.mxu0 0
      %1326 = vmatpush1.bf16.msra.mxu0 0
      %1327 = vmatprep.subr.bf16.mxu0 0
      %1328 = vmatpush1.bf16.msra.mxu0 0
      %1329 = vmatprep.subr.bf16.mxu0 0
      %1330 = vmatpush1.bf16.msra.mxu0 0
      %1331 = vmatprep.subr.bf16.mxu0 0
      %1332 = vmatpush1.bf16.msra.mxu0 0
      %1333 = vmatprep.subr.bf16.mxu0 0
      %1334 = vmatpush1.bf16.msra.mxu0 0
      %1335 = vmatprep.subr.bf16.mxu0 0
      %1336 = vmatpush1.bf16.msra.mxu0 0
      %1337 = vmatprep.mubr.bf16.mxu0 0
      %1338 = vmatmul.mubr.bf16.gmra.mrb[0].mxu0 %v1225
      %v1339 = vpop.f32.mrb[0].mxu0
      %v1340 = vadd.f32 0.0, %v1339
      %v1341 = vpop.f32.mrb[0].mxu0
      %v1342 = vpop.f32.mrb[0].mxu0
      %v1343 = vadd.f32 0.0, %v1342
      %v1344 = vpop.f32.mrb[0].mxu0
      %1345 = vmatprep.mubr.bf16.mxu0 0
      %1346 = vmatmul.mubr.bf16.gmra.mrb[0].mxu0 %v1234
      %v1347 = vpop.f32.mrb[0].mxu0
      %v1348 = vadd.f32 0.0, %v1347
      %v1349 = vpop.f32.mrb[0].mxu0
      %v1350 = vpop.f32.mrb[0].mxu0
      %v1351 = vadd.f32 0.0, %v1350
      %v1352 = vpop.f32.mrb[0].mxu0
      %1353 = vmatprep.mubr.bf16.mxu0 0
      %1354 = vmatmul.mubr.bf16.gmra.mrb[0].mxu0 %v1243
      %v1355 = vpop.f32.mrb[0].mxu0
      %v1356 = vadd.f32 0.0, %v1355
      %v1357 = vpop.f32.mrb[0].mxu0
      %v1358 = vpop.f32.mrb[0].mxu0
      %v1359 = vadd.f32 0.0, %v1358
      %v1360 = vpop.f32.mrb[0].mxu0
      %1361 = vmatprep.mubr.bf16.mxu0 0
      %1362 = vmatmul.mubr.bf16.gmra.mrb[0].mxu0 %v1252
      %v1363 = vpop.f32.mrb[0].mxu0
      %v1364 = vadd.f32 0.0, %v1363
      %v1365 = vpop.f32.mrb[0].mxu0
      %v1366 = vpop.f32.mrb[0].mxu0
      %v1367 = vadd.f32 0.0, %v1366
      %v1368 = vpop.f32.mrb[0].mxu0
      %1369 = vdwg.mxu0
      %v1370 = vadd.f32 %v1150, %v1340
      %v1371 = vadd.f32 %v1151, %v1343
      %v1372 = vadd.f32 %v1152, %v1348
      %v1373 = vadd.f32 %v1153, %v1351
      %v1374 = vadd.f32 %v1154, %v1356
      %v1375 = vadd.f32 %v1155, %v1359
      %v1376 = vadd.f32 %v1156, %v1364
      %v1377 = vadd.f32 %v1157, %v1367
      %s1378 = scalar_lea.vmem %s1, 256
      %v1379 = vld [vmem:[%s1378] sm:$0xf]
      %v1380 = vld [vmem:[%s1378 + $0x4] sm:$0xf]
      %v1381 = vld [vmem:[%s1378 + $0x8] sm:$0xf]
      %v1382 = vld [vmem:[%s1378 + $0xc] sm:$0xf]
      %v1383 = vld [vmem:[%s1378 + $0x10] sm:$0xf]
      %v1384 = vld [vmem:[%s1378 + $0x14] sm:$0xf]
      %v1385 = vld [vmem:[%s1378 + $0x18] sm:$0xf]
      %v1386 = vld [vmem:[%s1378 + $0x1c] sm:$0xf]
      %v1387 = vld [vmem:[%s1378 + $0x20] sm:$0xf]
      %v1388 = vld [vmem:[%s1378 + $0x24] sm:$0xf]
      %v1389 = vld [vmem:[%s1378 + $0x28] sm:$0xf]
      %v1390 = vld [vmem:[%s1378 + $0x2c] sm:$0xf]
      %v1391 = vld [vmem:[%s1378 + $0x30] sm:$0xf]
      %v1392 = vld [vmem:[%s1378 + $0x34] sm:$0xf]
      %v1393 = vld [vmem:[%s1378 + $0x38] sm:$0xf]
      %v1394 = vld [vmem:[%s1378 + $0x3c] sm:$0xf]
      %v1403 = vunpack.c.l.b16 %v800
      %v1404 = vunpack.c.l.b16 %v801
      %v1405 = vunpack.c.l.b16 %v802
      %v1406 = vunpack.c.l.b16 %v803
      %v1407 = vunpack.c.l.b16 %v804
      %v1408 = vunpack.c.l.b16 %v805
      %v1409 = vunpack.c.l.b16 %v806
      %v1410 = vunpack.c.l.b16 %v1159
      %v1411 = vpack.c.b16 %v1404, %v1403
      %v1412 = vpack.c.b16 %v1406, %v1405
      %v1413 = vpack.c.b16 %v1408, %v1407
      %v1414 = vpack.c.b16 %v1410, %v1409
      %v1435 = vunpack.c.l.b16 %v1379
      %v1436 = vunpack.c.l.b16 %v1380
      %v1437 = vunpack.c.l.b16 %v1381
      %v1438 = vunpack.c.l.b16 %v1382
      %v1439 = vunpack.c.l.b16 %v1383
      %v1440 = vunpack.c.l.b16 %v1384
      %v1441 = vunpack.c.l.b16 %v1385
      %v1442 = vunpack.c.l.b16 %v1386
      %v1443 = vunpack.c.l.b16 %v1387
      %v1444 = vunpack.c.l.b16 %v1388
      %v1445 = vunpack.c.l.b16 %v1389
      %v1446 = vunpack.c.l.b16 %v1390
      %v1447 = vunpack.c.l.b16 %v1391
      %v1448 = vunpack.c.l.b16 %v1392
      %v1449 = vunpack.c.l.b16 %v1393
      %v1450 = vunpack.c.l.b16 %v1394
      %v1451 = vpack.c.b16 %v1436, %v1435
      %v1452 = vpack.c.b16 %v1438, %v1437
      %v1453 = vpack.c.b16 %v1440, %v1439
      %v1454 = vpack.c.b16 %v1442, %v1441
      %v1455 = vpack.c.b16 %v1444, %v1443
      %v1456 = vpack.c.b16 %v1446, %v1445
      %v1457 = vpack.c.b16 %v1448, %v1447
      %v1458 = vpack.c.b16 %v1450, %v1449
      %1467 = vmatprep.subr.bf16.mxu0 0
      %1468 = vmatpush1.bf16.msra.mxu0 %v1451
      %1469 = vmatprep.subr.bf16.mxu0 0
      %1470 = vmatpush1.bf16.msra.mxu0 %v1452
      %1471 = vmatprep.subr.bf16.mxu0 0
      %1472 = vmatpush1.bf16.msra.mxu0 %v1453
      %1473 = vmatprep.subr.bf16.mxu0 0
      %1474 = vmatpush1.bf16.msra.mxu0 %v1454
      %1475 = vmatprep.subr.bf16.mxu0 0
      %1476 = vmatpush1.bf16.msra.mxu0 %v1455
      %1477 = vmatprep.subr.bf16.mxu0 0
      %1478 = vmatpush1.bf16.msra.mxu0 %v1456
      %1479 = vmatprep.subr.bf16.mxu0 0
      %1480 = vmatpush1.bf16.msra.mxu0 %v1457
      %1481 = vmatprep.subr.bf16.mxu0 0
      %1482 = vmatpush1.bf16.msra.mxu0 %v1458
      %1483 = vmatprep.subr.bf16.mxu0 0
      %1484 = vmatpush1.bf16.msra.mxu0 0
      %1485 = vmatprep.subr.bf16.mxu0 0
      %1486 = vmatpush1.bf16.msra.mxu0 0
      %1487 = vmatprep.subr.bf16.mxu0 0
      %1488 = vmatpush1.bf16.msra.mxu0 0
      %1489 = vmatprep.subr.bf16.mxu0 0
      %1490 = vmatpush1.bf16.msra.mxu0 0
      %1491 = vmatprep.subr.bf16.mxu0 0
      %1492 = vmatpush1.bf16.msra.mxu0 0
      %1493 = vmatprep.subr.bf16.mxu0 0
      %1494 = vmatpush1.bf16.msra.mxu0 0
      %1495 = vmatprep.subr.bf16.mxu0 0
      %1496 = vmatpush1.bf16.msra.mxu0 0
      %1497 = vmatprep.subr.bf16.mxu0 0
      %1498 = vmatpush1.bf16.msra.mxu0 0
      %1499 = vmatprep.mubr.bf16.mxu0 0
      %1500 = vmatmul.mubr.bf16.gmra.mrb[0].mxu0 %v1411
      %v1501 = vpop.f32.mrb[0].mxu0
      %v1502 = vadd.f32 0.0, %v1501
      %v1503 = vpop.f32.mrb[0].mxu0
      %v1504 = vpop.f32.mrb[0].mxu0
      %v1505 = vadd.f32 0.0, %v1504
      %v1506 = vpop.f32.mrb[0].mxu0
      %1507 = vmatprep.mubr.bf16.mxu0 0
      %1508 = vmatmul.mubr.bf16.gmra.mrb[0].mxu0 %v1412
      %v1509 = vpop.f32.mrb[0].mxu0
      %v1510 = vadd.f32 0.0, %v1509
      %v1511 = vpop.f32.mrb[0].mxu0
      %v1512 = vpop.f32.mrb[0].mxu0
      %v1513 = vadd.f32 0.0, %v1512
      %v1514 = vpop.f32.mrb[0].mxu0
      %1515 = vmatprep.mubr.bf16.mxu0 0
      %1516 = vmatmul.mubr.bf16.gmra.mrb[0].mxu0 %v1413
      %v1517 = vpop.f32.mrb[0].mxu0
      %v1518 = vadd.f32 0.0, %v1517
      %v1519 = vpop.f32.mrb[0].mxu0
      %v1520 = vpop.f32.mrb[0].mxu0
      %v1521 = vadd.f32 0.0, %v1520
      %v1522 = vpop.f32.mrb[0].mxu0
      %1523 = vmatprep.mubr.bf16.mxu0 0
      %1524 = vmatmul.mubr.bf16.gmra.mrb[0].mxu0 %v1414
      %v1525 = vpop.f32.mrb[0].mxu0
      %v1526 = vadd.f32 0.0, %v1525
      %v1527 = vpop.f32.mrb[0].mxu0
      %v1528 = vpop.f32.mrb[0].mxu0
      %v1529 = vadd.f32 0.0, %v1528
      %v1530 = vpop.f32.mrb[0].mxu0
      %1531 = vdwg.mxu0
      %v1532 = vadd.f32 %v1370, %v1502
      %v1533 = vadd.f32 %v1371, %v1505
      %v1534 = vadd.f32 %v1372, %v1510
      %v1535 = vadd.f32 %v1373, %v1513
      %v1536 = vadd.f32 %v1374, %v1518
      %v1537 = vadd.f32 %v1375, %v1521
      %v1538 = vadd.f32 %v1376, %v1526
      %v1539 = vadd.f32 %v1377, %v1529
      %v1540 = vld [vmem:[%s246 + $0x8] sm:$0xf]
      %v1541 = vld [vmem:[%s246 + $0xc] sm:$0xf]
      %v1542 = vld [vmem:[%s246 + $0x10] sm:$0xf]
      %v1543 = vld [vmem:[%s246 + $0x14] sm:$0xf]
      %v1544 = vld [vmem:[%s246 + $0x18] sm:$0xf]
      %v1545 = vld [vmem:[%s246 + $0x1c] sm:$0xf]
      %v1546 = vld [vmem:[%s246 + $0x20] sm:$0xf]
      %v1547 = vld [vmem:[%s246 + $0x24] sm:$0xf]
      %v1548 = vld [vmem:[%s246 + $0x28] sm:$0x1]
      %v1549 = vsel %vm938, %v1540, 0
      %v1550 = vsel %vm939, %v1541, 0
      %v1551 = vsel %vm940, %v1542, 0
      %v1552 = vsel %vm941, %v1543, 0
      %v1553 = vsel %vm942, %v1544, 0
      %v1554 = vsel %vm943, %v1545, 0
      %v1555 = vsel %vm944, %v1546, 0
      %v1556 = vsel %vm945, %v1547, 0
      %v1557 = vsel %vm946, %v1548, 0
      %s1558 = scalar_lea.vmem %s1, 320
      %v1559 = vld [vmem:[%s1558] sm:$0xf]
      %v1560 = vld [vmem:[%s1558 + $0x4] sm:$0xf]
      %v1561 = vld [vmem:[%s1558 + $0x8] sm:$0xf]
      %v1562 = vld [vmem:[%s1558 + $0xc] sm:$0xf]
      %v1563 = vld [vmem:[%s1558 + $0x10] sm:$0xf]
      %v1564 = vld [vmem:[%s1558 + $0x14] sm:$0xf]
      %v1565 = vld [vmem:[%s1558 + $0x18] sm:$0xf]
      %v1566 = vld [vmem:[%s1558 + $0x1c] sm:$0xf]
      %v1567 = vld [vmem:[%s1558 + $0x20] sm:$0xf]
      %v1568 = vld [vmem:[%s1558 + $0x24] sm:$0xf]
      %v1569 = vld [vmem:[%s1558 + $0x28] sm:$0xf]
      %v1570 = vld [vmem:[%s1558 + $0x2c] sm:$0xf]
      %v1571 = vld [vmem:[%s1558 + $0x30] sm:$0xf]
      %v1572 = vld [vmem:[%s1558 + $0x34] sm:$0xf]
      %v1573 = vld [vmem:[%s1558 + $0x38] sm:$0xf]
      %v1574 = vld [vmem:[%s1558 + $0x3c] sm:$0xf]
      %v1584 = vunpack.c.l.b16 %v1549
      %v1585 = vunpack.c.l.b16 %v1550
      %v1586 = vunpack.c.l.b16 %v1551
      %v1587 = vunpack.c.l.b16 %v1552
      %v1588 = vunpack.c.l.b16 %v1553
      %v1589 = vunpack.c.l.b16 %v1554
      %v1590 = vunpack.c.l.b16 %v1555
      %v1591 = vunpack.c.l.b16 %v1556
      %v1592 = vunpack.c.l.b16 %v1557
      %v1593 = vpack.c.b16 %v1585, %v1584
      %v1594 = vpack.c.b16 %v1587, %v1586
      %v1595 = vpack.c.b16 %v1589, %v1588
      %v1596 = vpack.c.b16 %v1591, %v1590
      %v1597 = vpack.c.b16 %v1592, %v1592
      %v1599 = vshrl.u32 %v1593, 16
      %v1601 = vshll.u32 %v1593, 16
      %v1603 = vrot.slane %v1601, 1
      %v1604 = vor.u32 %v1599, %v1603
      %v1606 = vshll.u32 %v1594, 16
      %v1608 = vrot.slane %v1606, 1
      %v1609 = vsel %vm996, %v1604, %v1608
      %v1610 = vshrl.u32 %v1594, 16
      %v1612 = vor.u32 %v1610, %v1608
      %v1614 = vshll.u32 %v1595, 16
      %v1616 = vrot.slane %v1614, 1
      %v1617 = vsel %vm996, %v1612, %v1616
      %v1618 = vshrl.u32 %v1595, 16
      %v1620 = vor.u32 %v1618, %v1616
      %v1622 = vshll.u32 %v1596, 16
      %v1624 = vrot.slane %v1622, 1
      %v1625 = vsel %vm996, %v1620, %v1624
      %v1626 = vshrl.u32 %v1596, 16
      %v1628 = vor.u32 %v1626, %v1624
      %v1630 = vshll.u32 %v1597, 16
      %v1632 = vrot.slane %v1630, 1
      %v1633 = vsel %vm996, %v1628, %v1632
      %v1654 = vunpack.c.l.b16 %v1559
      %v1655 = vunpack.c.l.b16 %v1560
      %v1656 = vunpack.c.l.b16 %v1561
      %v1657 = vunpack.c.l.b16 %v1562
      %v1658 = vunpack.c.l.b16 %v1563
      %v1659 = vunpack.c.l.b16 %v1564
      %v1660 = vunpack.c.l.b16 %v1565
      %v1661 = vunpack.c.l.b16 %v1566
      %v1662 = vunpack.c.l.b16 %v1567
      %v1663 = vunpack.c.l.b16 %v1568
      %v1664 = vunpack.c.l.b16 %v1569
      %v1665 = vunpack.c.l.b16 %v1570
      %v1666 = vunpack.c.l.b16 %v1571
      %v1667 = vunpack.c.l.b16 %v1572
      %v1668 = vunpack.c.l.b16 %v1573
      %v1669 = vunpack.c.l.b16 %v1574
      %v1670 = vpack.c.b16 %v1655, %v1654
      %v1671 = vpack.c.b16 %v1657, %v1656
      %v1672 = vpack.c.b16 %v1659, %v1658
      %v1673 = vpack.c.b16 %v1661, %v1660
      %v1674 = vpack.c.b16 %v1663, %v1662
      %v1675 = vpack.c.b16 %v1665, %v1664
      %v1676 = vpack.c.b16 %v1667, %v1666
      %v1677 = vpack.c.b16 %v1669, %v1668
      %1686 = vmatprep.subr.bf16.mxu0 0
      %1687 = vmatpush1.bf16.msra.mxu0 %v1670
      %1688 = vmatprep.subr.bf16.mxu0 0
      %1689 = vmatpush1.bf16.msra.mxu0 %v1671
      %1690 = vmatprep.subr.bf16.mxu0 0
      %1691 = vmatpush1.bf16.msra.mxu0 %v1672
      %1692 = vmatprep.subr.bf16.mxu0 0
      %1693 = vmatpush1.bf16.msra.mxu0 %v1673
      %1694 = vmatprep.subr.bf16.mxu0 0
      %1695 = vmatpush1.bf16.msra.mxu0 %v1674
      %1696 = vmatprep.subr.bf16.mxu0 0
      %1697 = vmatpush1.bf16.msra.mxu0 %v1675
      %1698 = vmatprep.subr.bf16.mxu0 0
      %1699 = vmatpush1.bf16.msra.mxu0 %v1676
      %1700 = vmatprep.subr.bf16.mxu0 0
      %1701 = vmatpush1.bf16.msra.mxu0 %v1677
      %1702 = vmatprep.subr.bf16.mxu0 0
      %1703 = vmatpush1.bf16.msra.mxu0 0
      %1704 = vmatprep.subr.bf16.mxu0 0
      %1705 = vmatpush1.bf16.msra.mxu0 0
      %1706 = vmatprep.subr.bf16.mxu0 0
      %1707 = vmatpush1.bf16.msra.mxu0 0
      %1708 = vmatprep.subr.bf16.mxu0 0
      %1709 = vmatpush1.bf16.msra.mxu0 0
      %1710 = vmatprep.subr.bf16.mxu0 0
      %1711 = vmatpush1.bf16.msra.mxu0 0
      %1712 = vmatprep.subr.bf16.mxu0 0
      %1713 = vmatpush1.bf16.msra.mxu0 0
      %1714 = vmatprep.subr.bf16.mxu0 0
      %1715 = vmatpush1.bf16.msra.mxu0 0
      %1716 = vmatprep.subr.bf16.mxu0 0
      %1717 = vmatpush1.bf16.msra.mxu0 0
      %1718 = vmatprep.mubr.bf16.mxu0 0
      %1719 = vmatmul.mubr.bf16.gmra.mrb[0].mxu0 %v1609
      %v1720 = vpop.f32.mrb[0].mxu0
      %v1721 = vadd.f32 0.0, %v1720
      %v1722 = vpop.f32.mrb[0].mxu0
      %v1723 = vpop.f32.mrb[0].mxu0
      %v1724 = vadd.f32 0.0, %v1723
      %v1725 = vpop.f32.mrb[0].mxu0
      %1726 = vmatprep.mubr.bf16.mxu0 0
      %1727 = vmatmul.mubr.bf16.gmra.mrb[0].mxu0 %v1617
      %v1728 = vpop.f32.mrb[0].mxu0
      %v1729 = vadd.f32 0.0, %v1728
      %v1730 = vpop.f32.mrb[0].mxu0
      %v1731 = vpop.f32.mrb[0].mxu0
      %v1732 = vadd.f32 0.0, %v1731
      %v1733 = vpop.f32.mrb[0].mxu0
      %1734 = vmatprep.mubr.bf16.mxu0 0
      %1735 = vmatmul.mubr.bf16.gmra.mrb[0].mxu0 %v1625
      %v1736 = vpop.f32.mrb[0].mxu0
      %v1737 = vadd.f32 0.0, %v1736
      %v1738 = vpop.f32.mrb[0].mxu0
      %v1739 = vpop.f32.mrb[0].mxu0
      %v1740 = vadd.f32 0.0, %v1739
      %v1741 = vpop.f32.mrb[0].mxu0
      %1742 = vmatprep.mubr.bf16.mxu0 0
      %1743 = vmatmul.mubr.bf16.gmra.mrb[0].mxu0 %v1633
      %v1744 = vpop.f32.mrb[0].mxu0
      %v1745 = vadd.f32 0.0, %v1744
      %v1746 = vpop.f32.mrb[0].mxu0
      %v1747 = vpop.f32.mrb[0].mxu0
      %v1748 = vadd.f32 0.0, %v1747
      %v1749 = vpop.f32.mrb[0].mxu0
      %1750 = vdwg.mxu0
      %v1751 = vadd.f32 %v1532, %v1721
      %v1752 = vadd.f32 %v1533, %v1724
      %v1753 = vadd.f32 %v1534, %v1729
      %v1754 = vadd.f32 %v1535, %v1732
      %v1755 = vadd.f32 %v1536, %v1737
      %v1756 = vadd.f32 %v1537, %v1740
      %v1757 = vadd.f32 %v1538, %v1745
      %v1758 = vadd.f32 %v1539, %v1748
      %v1759 = vld [vmem:[%s246 + $0x8] sm:$0x8]
      %v1760 = vld [vmem:[%s246 + $0x28] sm:$0xf]
      %v1761 = vsel %vm426, %v1759, 0
      %v1762 = vsel %vm427, %v1541, 0
      %v1763 = vsel %vm428, %v1542, 0
      %v1764 = vsel %vm429, %v1543, 0
      %v1765 = vsel %vm430, %v1544, 0
      %v1766 = vsel %vm431, %v1545, 0
      %v1767 = vsel %vm432, %v1546, 0
      %v1768 = vsel %vm433, %v1547, 0
      %v1769 = vsel %vm434, %v1760, 0
      %s1770 = scalar_lea.vmem %s1, 384
      %v1771 = vld [vmem:[%s1770] sm:$0xf]
      %v1772 = vld [vmem:[%s1770 + $0x4] sm:$0xf]
      %v1773 = vld [vmem:[%s1770 + $0x8] sm:$0xf]
      %v1774 = vld [vmem:[%s1770 + $0xc] sm:$0xf]
      %v1775 = vld [vmem:[%s1770 + $0x10] sm:$0xf]
      %v1776 = vld [vmem:[%s1770 + $0x14] sm:$0xf]
      %v1777 = vld [vmem:[%s1770 + $0x18] sm:$0xf]
      %v1778 = vld [vmem:[%s1770 + $0x1c] sm:$0xf]
      %v1779 = vld [vmem:[%s1770 + $0x20] sm:$0xf]
      %v1780 = vld [vmem:[%s1770 + $0x24] sm:$0xf]
      %v1781 = vld [vmem:[%s1770 + $0x28] sm:$0xf]
      %v1782 = vld [vmem:[%s1770 + $0x2c] sm:$0xf]
      %v1783 = vld [vmem:[%s1770 + $0x30] sm:$0xf]
      %v1784 = vld [vmem:[%s1770 + $0x34] sm:$0xf]
      %v1785 = vld [vmem:[%s1770 + $0x38] sm:$0xf]
      %v1786 = vld [vmem:[%s1770 + $0x3c] sm:$0xf]
      %v1796 = vunpack.c.l.b16 %v1761
      %v1797 = vunpack.c.l.b16 %v1762
      %v1798 = vunpack.c.l.b16 %v1763
      %v1799 = vunpack.c.l.b16 %v1764
      %v1800 = vunpack.c.l.b16 %v1765
      %v1801 = vunpack.c.l.b16 %v1766
      %v1802 = vunpack.c.l.b16 %v1767
      %v1803 = vunpack.c.l.b16 %v1768
      %v1804 = vunpack.c.l.b16 %v1769
      %v1805 = vpack.c.b16 %v1797, %v1796
      %v1806 = vpack.c.b16 %v1799, %v1798
      %v1807 = vpack.c.b16 %v1801, %v1800
      %v1808 = vpack.c.b16 %v1803, %v1802
      %v1809 = vpack.c.b16 %v1804, %v1804
      %v1811 = vshrl.u32 %v1805, 16
      %v1813 = vrot.slane %v1811, 3
      %v1814 = vshll.u32 %v1805, 16
      %v1816 = vrot.slane %v1814, 4
      %v1817 = vor.u32 %v1813, %v1816
      %v1819 = vshrl.u32 %v1806, 16
      %v1821 = vrot.slane %v1819, 3
      %v1822 = vshll.u32 %v1806, 16
      %v1824 = vrot.slane %v1822, 4
      %v1825 = vor.u32 %v1821, %v1824
      %v1826 = vsel %vm637, %v1817, %v1825
      %v1828 = vshrl.u32 %v1807, 16
      %v1830 = vrot.slane %v1828, 3
      %v1831 = vshll.u32 %v1807, 16
      %v1833 = vrot.slane %v1831, 4
      %v1834 = vor.u32 %v1830, %v1833
      %v1835 = vsel %vm637, %v1825, %v1834
      %v1837 = vshrl.u32 %v1808, 16
      %v1839 = vrot.slane %v1837, 3
      %v1840 = vshll.u32 %v1808, 16
      %v1842 = vrot.slane %v1840, 4
      %v1843 = vor.u32 %v1839, %v1842
      %v1844 = vsel %vm637, %v1834, %v1843
      %v1846 = vshrl.u32 %v1809, 16
      %v1848 = vrot.slane %v1846, 3
      %v1849 = vshll.u32 %v1809, 16
      %v1851 = vrot.slane %v1849, 4
      %v1852 = vor.u32 %v1848, %v1851
      %v1853 = vsel %vm637, %v1843, %v1852
      %v1874 = vunpack.c.l.b16 %v1771
      %v1875 = vunpack.c.l.b16 %v1772
      %v1876 = vunpack.c.l.b16 %v1773
      %v1877 = vunpack.c.l.b16 %v1774
      %v1878 = vunpack.c.l.b16 %v1775
      %v1879 = vunpack.c.l.b16 %v1776
      %v1880 = vunpack.c.l.b16 %v1777
      %v1881 = vunpack.c.l.b16 %v1778
      %v1882 = vunpack.c.l.b16 %v1779
      %v1883 = vunpack.c.l.b16 %v1780
      %v1884 = vunpack.c.l.b16 %v1781
      %v1885 = vunpack.c.l.b16 %v1782
      %v1886 = vunpack.c.l.b16 %v1783
      %v1887 = vunpack.c.l.b16 %v1784
      %v1888 = vunpack.c.l.b16 %v1785
      %v1889 = vunpack.c.l.b16 %v1786
      %v1890 = vpack.c.b16 %v1875, %v1874
      %v1891 = vpack.c.b16 %v1877, %v1876
      %v1892 = vpack.c.b16 %v1879, %v1878
      %v1893 = vpack.c.b16 %v1881, %v1880
      %v1894 = vpack.c.b16 %v1883, %v1882
      %v1895 = vpack.c.b16 %v1885, %v1884
      %v1896 = vpack.c.b16 %v1887, %v1886
      %v1897 = vpack.c.b16 %v1889, %v1888
      %1906 = vmatprep.subr.bf16.mxu0 0
      %1907 = vmatpush1.bf16.msra.mxu0 %v1890
      %1908 = vmatprep.subr.bf16.mxu0 0
      %1909 = vmatpush1.bf16.msra.mxu0 %v1891
      %1910 = vmatprep.subr.bf16.mxu0 0
      %1911 = vmatpush1.bf16.msra.mxu0 %v1892
      %1912 = vmatprep.subr.bf16.mxu0 0
      %1913 = vmatpush1.bf16.msra.mxu0 %v1893
      %1914 = vmatprep.subr.bf16.mxu0 0
      %1915 = vmatpush1.bf16.msra.mxu0 %v1894
      %1916 = vmatprep.subr.bf16.mxu0 0
      %1917 = vmatpush1.bf16.msra.mxu0 %v1895
      %1918 = vmatprep.subr.bf16.mxu0 0
      %1919 = vmatpush1.bf16.msra.mxu0 %v1896
      %1920 = vmatprep.subr.bf16.mxu0 0
      %1921 = vmatpush1.bf16.msra.mxu0 %v1897
      %1922 = vmatprep.subr.bf16.mxu0 0
      %1923 = vmatpush1.bf16.msra.mxu0 0
      %1924 = vmatprep.subr.bf16.mxu0 0
      %1925 = vmatpush1.bf16.msra.mxu0 0
      %1926 = vmatprep.subr.bf16.mxu0 0
      %1927 = vmatpush1.bf16.msra.mxu0 0
      %1928 = vmatprep.subr.bf16.mxu0 0
      %1929 = vmatpush1.bf16.msra.mxu0 0
      %1930 = vmatprep.subr.bf16.mxu0 0
      %1931 = vmatpush1.bf16.msra.mxu0 0
      %1932 = vmatprep.subr.bf16.mxu0 0
      %1933 = vmatpush1.bf16.msra.mxu0 0
      %1934 = vmatprep.subr.bf16.mxu0 0
      %1935 = vmatpush1.bf16.msra.mxu0 0
      %1936 = vmatprep.subr.bf16.mxu0 0
      %1937 = vmatpush1.bf16.msra.mxu0 0
      %1938 = vmatprep.mubr.bf16.mxu0 0
      %1939 = vmatmul.mubr.bf16.gmra.mrb[0].mxu0 %v1826
      %v1940 = vpop.f32.mrb[0].mxu0
      %v1941 = vadd.f32 0.0, %v1940
      %v1942 = vpop.f32.mrb[0].mxu0
      %v1943 = vpop.f32.mrb[0].mxu0
      %v1944 = vadd.f32 0.0, %v1943
      %v1945 = vpop.f32.mrb[0].mxu0
      %1946 = vmatprep.mubr.bf16.mxu0 0
      %1947 = vmatmul.mubr.bf16.gmra.mrb[0].mxu0 %v1835
      %v1948 = vpop.f32.mrb[0].mxu0
      %v1949 = vadd.f32 0.0, %v1948
      %v1950 = vpop.f32.mrb[0].mxu0
      %v1951 = vpop.f32.mrb[0].mxu0
      %v1952 = vadd.f32 0.0, %v1951
      %v1953 = vpop.f32.mrb[0].mxu0
      %1954 = vmatprep.mubr.bf16.mxu0 0
      %1955 = vmatmul.mubr.bf16.gmra.mrb[0].mxu0 %v1844
      %v1956 = vpop.f32.mrb[0].mxu0
      %v1957 = vadd.f32 0.0, %v1956
      %v1958 = vpop.f32.mrb[0].mxu0
      %v1959 = vpop.f32.mrb[0].mxu0
      %v1960 = vadd.f32 0.0, %v1959
      %v1961 = vpop.f32.mrb[0].mxu0
      %1962 = vmatprep.mubr.bf16.mxu0 0
      %1963 = vmatmul.mubr.bf16.gmra.mrb[0].mxu0 %v1853
      %v1964 = vpop.f32.mrb[0].mxu0
      %v1965 = vadd.f32 0.0, %v1964
      %v1966 = vpop.f32.mrb[0].mxu0
      %v1967 = vpop.f32.mrb[0].mxu0
      %v1968 = vadd.f32 0.0, %v1967
      %v1969 = vpop.f32.mrb[0].mxu0
      %1970 = vdwg.mxu0
      %v1971 = vadd.f32 %v1751, %v1941
      %v1972 = vadd.f32 %v1752, %v1944
      %v1973 = vadd.f32 %v1753, %v1949
      %v1974 = vadd.f32 %v1754, %v1952
      %v1975 = vadd.f32 %v1755, %v1957
      %v1976 = vadd.f32 %v1756, %v1960
      %v1977 = vadd.f32 %v1757, %v1965
      %v1978 = vadd.f32 %v1758, %v1968
      %s1979 = scalar_lea.vmem %s1, 448
      %v1980 = vld [vmem:[%s1979] sm:$0xf]
      %v1981 = vld [vmem:[%s1979 + $0x4] sm:$0xf]
      %v1982 = vld [vmem:[%s1979 + $0x8] sm:$0xf]
      %v1983 = vld [vmem:[%s1979 + $0xc] sm:$0xf]
      %v1984 = vld [vmem:[%s1979 + $0x10] sm:$0xf]
      %v1985 = vld [vmem:[%s1979 + $0x14] sm:$0xf]
      %v1986 = vld [vmem:[%s1979 + $0x18] sm:$0xf]
      %v1987 = vld [vmem:[%s1979 + $0x1c] sm:$0xf]
      %v1988 = vld [vmem:[%s1979 + $0x20] sm:$0xf]
      %v1989 = vld [vmem:[%s1979 + $0x24] sm:$0xf]
      %v1990 = vld [vmem:[%s1979 + $0x28] sm:$0xf]
      %v1991 = vld [vmem:[%s1979 + $0x2c] sm:$0xf]
      %v1992 = vld [vmem:[%s1979 + $0x30] sm:$0xf]
      %v1993 = vld [vmem:[%s1979 + $0x34] sm:$0xf]
      %v1994 = vld [vmem:[%s1979 + $0x38] sm:$0xf]
      %v1995 = vld [vmem:[%s1979 + $0x3c] sm:$0xf]
      %v2004 = vunpack.c.l.b16 %v1541
      %v2005 = vunpack.c.l.b16 %v1542
      %v2006 = vunpack.c.l.b16 %v1543
      %v2007 = vunpack.c.l.b16 %v1544
      %v2008 = vunpack.c.l.b16 %v1545
      %v2009 = vunpack.c.l.b16 %v1546
      %v2010 = vunpack.c.l.b16 %v1547
      %v2011 = vunpack.c.l.b16 %v1760
      %v2012 = vpack.c.b16 %v2005, %v2004
      %v2013 = vpack.c.b16 %v2007, %v2006
      %v2014 = vpack.c.b16 %v2009, %v2008
      %v2015 = vpack.c.b16 %v2011, %v2010
      %v2036 = vunpack.c.l.b16 %v1980
      %v2037 = vunpack.c.l.b16 %v1981
      %v2038 = vunpack.c.l.b16 %v1982
      %v2039 = vunpack.c.l.b16 %v1983
      %v2040 = vunpack.c.l.b16 %v1984
      %v2041 = vunpack.c.l.b16 %v1985
      %v2042 = vunpack.c.l.b16 %v1986
      %v2043 = vunpack.c.l.b16 %v1987
      %v2044 = vunpack.c.l.b16 %v1988
      %v2045 = vunpack.c.l.b16 %v1989
      %v2046 = vunpack.c.l.b16 %v1990
      %v2047 = vunpack.c.l.b16 %v1991
      %v2048 = vunpack.c.l.b16 %v1992
      %v2049 = vunpack.c.l.b16 %v1993
      %v2050 = vunpack.c.l.b16 %v1994
      %v2051 = vunpack.c.l.b16 %v1995
      %v2052 = vpack.c.b16 %v2037, %v2036
      %v2053 = vpack.c.b16 %v2039, %v2038
      %v2054 = vpack.c.b16 %v2041, %v2040
      %v2055 = vpack.c.b16 %v2043, %v2042
      %v2056 = vpack.c.b16 %v2045, %v2044
      %v2057 = vpack.c.b16 %v2047, %v2046
      %v2058 = vpack.c.b16 %v2049, %v2048
      %v2059 = vpack.c.b16 %v2051, %v2050
      %2068 = vmatprep.subr.bf16.mxu0 0
      %2069 = vmatpush1.bf16.msra.mxu0 %v2052
      %2070 = vmatprep.subr.bf16.mxu0 0
      %2071 = vmatpush1.bf16.msra.mxu0 %v2053
      %2072 = vmatprep.subr.bf16.mxu0 0
      %2073 = vmatpush1.bf16.msra.mxu0 %v2054
      %2074 = vmatprep.subr.bf16.mxu0 0
      %2075 = vmatpush1.bf16.msra.mxu0 %v2055
      %2076 = vmatprep.subr.bf16.mxu0 0
      %2077 = vmatpush1.bf16.msra.mxu0 %v2056
      %2078 = vmatprep.subr.bf16.mxu0 0
      %2079 = vmatpush1.bf16.msra.mxu0 %v2057
      %2080 = vmatprep.subr.bf16.mxu0 0
      %2081 = vmatpush1.bf16.msra.mxu0 %v2058
      %2082 = vmatprep.subr.bf16.mxu0 0
      %2083 = vmatpush1.bf16.msra.mxu0 %v2059
      %2084 = vmatprep.subr.bf16.mxu0 0
      %2085 = vmatpush1.bf16.msra.mxu0 0
      %2086 = vmatprep.subr.bf16.mxu0 0
      %2087 = vmatpush1.bf16.msra.mxu0 0
      %2088 = vmatprep.subr.bf16.mxu0 0
      %2089 = vmatpush1.bf16.msra.mxu0 0
      %2090 = vmatprep.subr.bf16.mxu0 0
      %2091 = vmatpush1.bf16.msra.mxu0 0
      %2092 = vmatprep.subr.bf16.mxu0 0
      %2093 = vmatpush1.bf16.msra.mxu0 0
      %2094 = vmatprep.subr.bf16.mxu0 0
      %2095 = vmatpush1.bf16.msra.mxu0 0
      %2096 = vmatprep.subr.bf16.mxu0 0
      %2097 = vmatpush1.bf16.msra.mxu0 0
      %2098 = vmatprep.subr.bf16.mxu0 0
      %2099 = vmatpush1.bf16.msra.mxu0 0
      %2100 = vmatprep.mubr.bf16.mxu0 0
      %2101 = vmatmul.mubr.bf16.gmra.mrb[0].mxu0 %v2012
      %v2102 = vpop.f32.mrb[0].mxu0
      %v2103 = vadd.f32 0.0, %v2102
      %v2104 = vpop.f32.mrb[0].mxu0
      %v2105 = vpop.f32.mrb[0].mxu0
      %v2106 = vadd.f32 0.0, %v2105
      %v2107 = vpop.f32.mrb[0].mxu0
      %2108 = vmatprep.mubr.bf16.mxu0 0
      %2109 = vmatmul.mubr.bf16.gmra.mrb[0].mxu0 %v2013
      %v2110 = vpop.f32.mrb[0].mxu0
      %v2111 = vadd.f32 0.0, %v2110
      %v2112 = vpop.f32.mrb[0].mxu0
      %v2113 = vpop.f32.mrb[0].mxu0
      %v2114 = vadd.f32 0.0, %v2113
      %v2115 = vpop.f32.mrb[0].mxu0
      %2116 = vmatprep.mubr.bf16.mxu0 0
      %2117 = vmatmul.mubr.bf16.gmra.mrb[0].mxu0 %v2014
      %v2118 = vpop.f32.mrb[0].mxu0
      %v2119 = vadd.f32 0.0, %v2118
      %v2120 = vpop.f32.mrb[0].mxu0
      %v2121 = vpop.f32.mrb[0].mxu0
      %v2122 = vadd.f32 0.0, %v2121
      %v2123 = vpop.f32.mrb[0].mxu0
      %2124 = vmatprep.mubr.bf16.mxu0 0
      %2125 = vmatmul.mubr.bf16.gmra.mrb[0].mxu0 %v2015
      %v2126 = vpop.f32.mrb[0].mxu0
      %v2127 = vadd.f32 0.0, %v2126
      %v2128 = vpop.f32.mrb[0].mxu0
      %v2129 = vpop.f32.mrb[0].mxu0
      %v2130 = vadd.f32 0.0, %v2129
      %v2131 = vpop.f32.mrb[0].mxu0
      %2132 = vdwg.mxu0
      %v2133 = vadd.f32 %v1971, %v2103
      %v2134 = vadd.f32 %v1972, %v2106
      %v2135 = vadd.f32 %v1973, %v2111
      %v2136 = vadd.f32 %v1974, %v2114
      %v2137 = vadd.f32 %v1975, %v2119
      %v2138 = vadd.f32 %v1976, %v2122
      %v2139 = vadd.f32 %v1977, %v2127
      %v2140 = vadd.f32 %v1978, %v2130
      %v2141 = vld [vmem:[%s246 + $0xc] sm:$0xf]
      %v2142 = vld [vmem:[%s246 + $0x10] sm:$0xf]
      %v2143 = vld [vmem:[%s246 + $0x14] sm:$0xf]
      %v2144 = vld [vmem:[%s246 + $0x18] sm:$0xf]
      %v2145 = vld [vmem:[%s246 + $0x1c] sm:$0xf]
      %v2146 = vld [vmem:[%s246 + $0x20] sm:$0xf]
      %v2147 = vld [vmem:[%s246 + $0x24] sm:$0xf]
      %v2148 = vld [vmem:[%s246 + $0x28] sm:$0xf]
      %v2149 = vld [vmem:[%s246 + $0x2c] sm:$0x1]
      %v2150 = vsel %vm938, %v2141, 0
      %v2151 = vsel %vm939, %v2142, 0
      %v2152 = vsel %vm940, %v2143, 0
      %v2153 = vsel %vm941, %v2144, 0
      %v2154 = vsel %vm942, %v2145, 0
      %v2155 = vsel %vm943, %v2146, 0
      %v2156 = vsel %vm944, %v2147, 0
      %v2157 = vsel %vm945, %v2148, 0
      %v2158 = vsel %vm946, %v2149, 0
      %s2159 = scalar_lea.vmem %s1, 512
      %v2160 = vld [vmem:[%s2159] sm:$0xf]
      %v2161 = vld [vmem:[%s2159 + $0x4] sm:$0xf]
      %v2162 = vld [vmem:[%s2159 + $0x8] sm:$0xf]
      %v2163 = vld [vmem:[%s2159 + $0xc] sm:$0xf]
      %v2164 = vld [vmem:[%s2159 + $0x10] sm:$0xf]
      %v2165 = vld [vmem:[%s2159 + $0x14] sm:$0xf]
      %v2166 = vld [vmem:[%s2159 + $0x18] sm:$0xf]
      %v2167 = vld [vmem:[%s2159 + $0x1c] sm:$0xf]
      %v2168 = vld [vmem:[%s2159 + $0x20] sm:$0xf]
      %v2169 = vld [vmem:[%s2159 + $0x24] sm:$0xf]
      %v2170 = vld [vmem:[%s2159 + $0x28] sm:$0xf]
      %v2171 = vld [vmem:[%s2159 + $0x2c] sm:$0xf]
      %v2172 = vld [vmem:[%s2159 + $0x30] sm:$0xf]
      %v2173 = vld [vmem:[%s2159 + $0x34] sm:$0xf]
      %v2174 = vld [vmem:[%s2159 + $0x38] sm:$0xf]
      %v2175 = vld [vmem:[%s2159 + $0x3c] sm:$0xf]
      %v2185 = vunpack.c.l.b16 %v2150
      %v2186 = vunpack.c.l.b16 %v2151
      %v2187 = vunpack.c.l.b16 %v2152
      %v2188 = vunpack.c.l.b16 %v2153
      %v2189 = vunpack.c.l.b16 %v2154
      %v2190 = vunpack.c.l.b16 %v2155
      %v2191 = vunpack.c.l.b16 %v2156
      %v2192 = vunpack.c.l.b16 %v2157
      %v2193 = vunpack.c.l.b16 %v2158
      %v2194 = vpack.c.b16 %v2186, %v2185
      %v2195 = vpack.c.b16 %v2188, %v2187
      %v2196 = vpack.c.b16 %v2190, %v2189
      %v2197 = vpack.c.b16 %v2192, %v2191
      %v2198 = vpack.c.b16 %v2193, %v2193
      %v2200 = vshrl.u32 %v2194, 16
      %v2202 = vshll.u32 %v2194, 16
      %v2204 = vrot.slane %v2202, 1
      %v2205 = vor.u32 %v2200, %v2204
      %v2207 = vshll.u32 %v2195, 16
      %v2209 = vrot.slane %v2207, 1
      %v2210 = vsel %vm996, %v2205, %v2209
      %v2211 = vshrl.u32 %v2195, 16
      %v2213 = vor.u32 %v2211, %v2209
      %v2215 = vshll.u32 %v2196, 16
      %v2217 = vrot.slane %v2215, 1
      %v2218 = vsel %vm996, %v2213, %v2217
      %v2219 = vshrl.u32 %v2196, 16
      %v2221 = vor.u32 %v2219, %v2217
      %v2223 = vshll.u32 %v2197, 16
      %v2225 = vrot.slane %v2223, 1
      %v2226 = vsel %vm996, %v2221, %v2225
      %v2227 = vshrl.u32 %v2197, 16
      %v2229 = vor.u32 %v2227, %v2225
      %v2231 = vshll.u32 %v2198, 16
      %v2233 = vrot.slane %v2231, 1
      %v2234 = vsel %vm996, %v2229, %v2233
      %v2255 = vunpack.c.l.b16 %v2160
      %v2256 = vunpack.c.l.b16 %v2161
      %v2257 = vunpack.c.l.b16 %v2162
      %v2258 = vunpack.c.l.b16 %v2163
      %v2259 = vunpack.c.l.b16 %v2164
      %v2260 = vunpack.c.l.b16 %v2165
      %v2261 = vunpack.c.l.b16 %v2166
      %v2262 = vunpack.c.l.b16 %v2167
      %v2263 = vunpack.c.l.b16 %v2168
      %v2264 = vunpack.c.l.b16 %v2169
      %v2265 = vunpack.c.l.b16 %v2170
      %v2266 = vunpack.c.l.b16 %v2171
      %v2267 = vunpack.c.l.b16 %v2172
      %v2268 = vunpack.c.l.b16 %v2173
      %v2269 = vunpack.c.l.b16 %v2174
      %v2270 = vunpack.c.l.b16 %v2175
      %v2271 = vpack.c.b16 %v2256, %v2255
      %v2272 = vpack.c.b16 %v2258, %v2257
      %v2273 = vpack.c.b16 %v2260, %v2259
      %v2274 = vpack.c.b16 %v2262, %v2261
      %v2275 = vpack.c.b16 %v2264, %v2263
      %v2276 = vpack.c.b16 %v2266, %v2265
      %v2277 = vpack.c.b16 %v2268, %v2267
      %v2278 = vpack.c.b16 %v2270, %v2269
      %2287 = vmatprep.subr.bf16.mxu0 0
      %2288 = vmatpush1.bf16.msra.mxu0 %v2271
      %2289 = vmatprep.subr.bf16.mxu0 0
      %2290 = vmatpush1.bf16.msra.mxu0 %v2272
      %2291 = vmatprep.subr.bf16.mxu0 0
      %2292 = vmatpush1.bf16.msra.mxu0 %v2273
      %2293 = vmatprep.subr.bf16.mxu0 0
      %2294 = vmatpush1.bf16.msra.mxu0 %v2274
      %2295 = vmatprep.subr.bf16.mxu0 0
      %2296 = vmatpush1.bf16.msra.mxu0 %v2275
      %2297 = vmatprep.subr.bf16.mxu0 0
      %2298 = vmatpush1.bf16.msra.mxu0 %v2276
      %2299 = vmatprep.subr.bf16.mxu0 0
      %2300 = vmatpush1.bf16.msra.mxu0 %v2277
      %2301 = vmatprep.subr.bf16.mxu0 0
      %2302 = vmatpush1.bf16.msra.mxu0 %v2278
      %2303 = vmatprep.subr.bf16.mxu0 0
      %2304 = vmatpush1.bf16.msra.mxu0 0
      %2305 = vmatprep.subr.bf16.mxu0 0
      %2306 = vmatpush1.bf16.msra.mxu0 0
      %2307 = vmatprep.subr.bf16.mxu0 0
      %2308 = vmatpush1.bf16.msra.mxu0 0
      %2309 = vmatprep.subr.bf16.mxu0 0
      %2310 = vmatpush1.bf16.msra.mxu0 0
      %2311 = vmatprep.subr.bf16.mxu0 0
      %2312 = vmatpush1.bf16.msra.mxu0 0
      %2313 = vmatprep.subr.bf16.mxu0 0
      %2314 = vmatpush1.bf16.msra.mxu0 0
      %2315 = vmatprep.subr.bf16.mxu0 0
      %2316 = vmatpush1.bf16.msra.mxu0 0
      %2317 = vmatprep.subr.bf16.mxu0 0
      %2318 = vmatpush1.bf16.msra.mxu0 0
      %2319 = vmatprep.mubr.bf16.mxu0 0
      %2320 = vmatmul.mubr.bf16.gmra.mrb[0].mxu0 %v2210
      %v2321 = vpop.f32.mrb[0].mxu0
      %v2322 = vadd.f32 0.0, %v2321
      %v2323 = vpop.f32.mrb[0].mxu0
      %v2324 = vpop.f32.mrb[0].mxu0
      %v2325 = vadd.f32 0.0, %v2324
      %v2326 = vpop.f32.mrb[0].mxu0
      %2327 = vmatprep.mubr.bf16.mxu0 0
      %2328 = vmatmul.mubr.bf16.gmra.mrb[0].mxu0 %v2218
      %v2329 = vpop.f32.mrb[0].mxu0
      %v2330 = vadd.f32 0.0, %v2329
      %v2331 = vpop.f32.mrb[0].mxu0
      %v2332 = vpop.f32.mrb[0].mxu0
      %v2333 = vadd.f32 0.0, %v2332
      %v2334 = vpop.f32.mrb[0].mxu0
      %2335 = vmatprep.mubr.bf16.mxu0 0
      %2336 = vmatmul.mubr.bf16.gmra.mrb[0].mxu0 %v2226
      %v2337 = vpop.f32.mrb[0].mxu0
      %v2338 = vadd.f32 0.0, %v2337
      %v2339 = vpop.f32.mrb[0].mxu0
      %v2340 = vpop.f32.mrb[0].mxu0
      %v2341 = vadd.f32 0.0, %v2340
      %v2342 = vpop.f32.mrb[0].mxu0
      %2343 = vmatprep.mubr.bf16.mxu0 0
      %2344 = vmatmul.mubr.bf16.gmra.mrb[0].mxu0 %v2234
      %v2345 = vpop.f32.mrb[0].mxu0
      %v2346 = vadd.f32 0.0, %v2345
      %v2347 = vpop.f32.mrb[0].mxu0
      %v2348 = vpop.f32.mrb[0].mxu0
      %v2349 = vadd.f32 0.0, %v2348
      %v2350 = vpop.f32.mrb[0].mxu0
      %2351 = vdwg.mxu0
      %v2352 = vadd.f32 %v2133, %v2322
      %v2353 = vadd.f32 %v2134, %v2325
      %v2354 = vadd.f32 %v2135, %v2330
      %v2355 = vadd.f32 %v2136, %v2333
      %v2356 = vadd.f32 %v2137, %v2338
      %v2357 = vadd.f32 %v2138, %v2341
      %v2358 = vadd.f32 %v2139, %v2346
      %v2359 = vadd.f32 %v2140, %v2349
      %v2360 = vld [vmem:[%s2] sm:$0x1]
      %v2362 = vlaneseq
      %v2363 = vshrl.u32 %v2362, 7
      %v2364 = vsub.s32 0, %v2363
      %v2365 = vrot.slane %v2360, %v2364
      %v2367 = vadd.f32 %v2352, %v2365
      %v2368 = vadd.f32 %v2353, %v2365
      %v2369 = vadd.f32 %v2354, %v2365
      %v2370 = vadd.f32 %v2355, %v2365
      %v2371 = vadd.f32 %v2356, %v2365
      %v2372 = vadd.f32 %v2357, %v2365
      %v2373 = vadd.f32 %v2358, %v2365
      %v2374 = vadd.f32 %v2359, %v2365
      %v2375 = vmax.f32 %v2367, 0.0
      %v2376 = vmax.f32 %v2368, 0.0
      %v2377 = vmax.f32 %v2369, 0.0
      %v2378 = vmax.f32 %v2370, 0.0
      %v2379 = vmax.f32 %v2371, 0.0
      %v2380 = vmax.f32 %v2372, 0.0
      %v2381 = vmax.f32 %v2373, 0.0
      %v2382 = vmax.f32 %v2374, 0.0
      %v2383 = vpack.c.bf16 %v2376, %v2375
      %v2384 = vpack.c.bf16 %v2378, %v2377
      %v2385 = vpack.c.bf16 %v2380, %v2379
      %v2386 = vpack.c.bf16 %v2382, %v2381
      %2387 = vst [vmem:[#allocation2] sm:$0xff] 0
      %2388 = vst [vmem:[#allocation2 + $0x8] sm:$0xff] 0
      %2389 = vst [vmem:[#allocation2 + $0x10] sm:$0xff] 0
      %2390 = vst [vmem:[#allocation2 + $0x18] sm:$0xff] 0
      %2391 = vst [vmem:[#allocation2 + $0x20] sm:$0xff] 0
      %2392 = vst [vmem:[#allocation2 + $0x28] sm:$0xff] 0
      %2393 = vst [vmem:[#allocation2 + $0x8] sm:$0xff] %v2383
      %2394 = vst [vmem:[#allocation2 + $0x10] sm:$0xff] %v2384
      %2395 = vst [vmem:[#allocation2 + $0x18] sm:$0xff] %v2385
      %2396 = vst [vmem:[#allocation2 + $0x20] sm:$0xff] %v2386
      %v2397 = vld [vmem:[#allocation2] sm:$0xf8]
      %v2398 = vld [vmem:[#allocation2 + $0x8] sm:$0xff]
      %v2399 = vld [vmem:[#allocation2 + $0x10] sm:$0xff]
      %v2400 = vld [vmem:[#allocation2 + $0x18] sm:$0xff]
      %v2401 = vld [vmem:[#allocation2 + $0x20] sm:$0xf]
      %v2402 = vunpack.c.l.b16 %v336
      %v2403 = vunpack.c.l.b16 %v337
      %v2404 = vunpack.c.l.b16 %v338
      %v2405 = vunpack.c.l.b16 %v339
      %v2406 = vunpack.c.l.b16 %v340
      %v2407 = vunpack.c.l.b16 %v341
      %v2408 = vunpack.c.l.b16 %v342
      %v2409 = vunpack.c.l.b16 %v343
      %v2410 = vpack.c.b16 %v2403, %v2402
      %v2411 = vpack.c.b16 %v2405, %v2404
      %v2412 = vpack.c.b16 %v2407, %v2406
      %v2413 = vpack.c.b16 %v2409, %v2408
      %v2415 = vshrl.u32 %v2410, 16
      %v2417 = vrot.slane %v2415, 4
      %v2418 = vshll.u32 %v2410, 16
      %v2420 = vrot.slane %v2418, 5
      %v2421 = vor.u32 %v2417, %v2420
      %v2423 = vshrl.u32 %v2411, 16
      %v2425 = vrot.slane %v2423, 4
      %v2426 = vshll.u32 %v2411, 16
      %v2428 = vrot.slane %v2426, 5
      %v2429 = vor.u32 %v2425, %v2428
      %v2430 = vsel %vm344, %v2421, %v2429
      %v2432 = vshrl.u32 %v2412, 16
      %v2434 = vrot.slane %v2432, 4
      %v2435 = vshll.u32 %v2412, 16
      %v2437 = vrot.slane %v2435, 5
      %v2438 = vor.u32 %v2434, %v2437
      %v2439 = vsel %vm344, %v2429, %v2438
      %v2441 = vshrl.u32 %v2413, 16
      %v2443 = vrot.slane %v2441, 4
      %v2444 = vshll.u32 %v2413, 16
      %v2446 = vrot.slane %v2444, 5
      %v2447 = vor.u32 %v2443, %v2446
      %v2448 = vsel %vm344, %v2438, %v2447
      %vm2449 = vcmp.ne.s16.totalorder %v2421, 0
      %vm2450 = vcmp.ne.s16.totalorder %v2430, 0
      %vm2451 = vcmp.ne.s16.totalorder %v2439, 0
      %vm2452 = vcmp.ne.s16.totalorder %v2448, 0
      %vm2453 = vcmp.ne.s16.totalorder %v2447, 0
      %v2454 = vsel %vm2449, %v2397, 0
      %v2455 = vsel %vm2450, %v2398, 0
      %v2456 = vsel %vm2451, %v2399, 0
      %v2457 = vsel %vm2452, %v2400, 0
      %v2458 = vsel %vm2453, %v2401, 0
      %v2459 = vld [vmem:[%s3] sm:$0xf]
      %v2460 = vld [vmem:[%s3 + $0x4] sm:$0xf]
      %v2461 = vld [vmem:[%s3 + $0x8] sm:$0xf]
      %v2462 = vld [vmem:[%s3 + $0xc] sm:$0xf]
      %v2463 = vld [vmem:[%s3 + $0x10] sm:$0xf]
      %v2464 = vld [vmem:[%s3 + $0x14] sm:$0xf]
      %v2465 = vld [vmem:[%s3 + $0x18] sm:$0xf]
      %v2466 = vld [vmem:[%s3 + $0x1c] sm:$0xf]
      %v2467 = vld [vmem:[%s3 + $0x20] sm:$0xf]
      %v2468 = vld [vmem:[%s3 + $0x24] sm:$0xf]
      %v2469 = vld [vmem:[%s3 + $0x28] sm:$0xf]
      %v2470 = vld [vmem:[%s3 + $0x2c] sm:$0xf]
      %v2471 = vld [vmem:[%s3 + $0x30] sm:$0xf]
      %v2472 = vld [vmem:[%s3 + $0x34] sm:$0xf]
      %v2473 = vld [vmem:[%s3 + $0x38] sm:$0xf]
      %v2474 = vld [vmem:[%s3 + $0x3c] sm:$0xf]
      %v2475 = vld [vmem:[#allocation2] sm:$0xf0]
      %s2476 = scalar_lea.vmem %s3, 64
      %v2477 = vld [vmem:[%s2476] sm:$0xf]
      %v2478 = vld [vmem:[%s2476 + $0x4] sm:$0xf]
      %v2479 = vld [vmem:[%s2476 + $0x8] sm:$0xf]
      %v2480 = vld [vmem:[%s2476 + $0xc] sm:$0xf]
      %v2481 = vld [vmem:[%s2476 + $0x10] sm:$0xf]
      %v2482 = vld [vmem:[%s2476 + $0x14] sm:$0xf]
      %v2483 = vld [vmem:[%s2476 + $0x18] sm:$0xf]
      %v2484 = vld [vmem:[%s2476 + $0x1c] sm:$0xf]
      %v2485 = vld [vmem:[%s2476 + $0x20] sm:$0xf]
      %v2486 = vld [vmem:[%s2476 + $0x24] sm:$0xf]
      %v2487 = vld [vmem:[%s2476 + $0x28] sm:$0xf]
      %v2488 = vld [vmem:[%s2476 + $0x2c] sm:$0xf]
      %v2489 = vld [vmem:[%s2476 + $0x30] sm:$0xf]
      %v2490 = vld [vmem:[%s2476 + $0x34] sm:$0xf]
      %v2491 = vld [vmem:[%s2476 + $0x38] sm:$0xf]
      %v2492 = vld [vmem:[%s2476 + $0x3c] sm:$0xf]
      %vm2498 = vcmask 1043456
      %v2499 = vrot.slane %v2475, 4
      %v2500 = vrot.slane %v2398, 4
      %v2501 = vsel %vm2498, %v2499, %v2500
      %v2502 = vrot.slane %v2399, 4
      %v2503 = vsel %vm2498, %v2500, %v2502
      %v2504 = vrot.slane %v2400, 4
      %v2505 = vsel %vm2498, %v2502, %v2504
      %v2506 = vrot.slane %v2401, 4
      %v2507 = vsel %vm2498, %v2504, %v2506
      %v2528 = vunpack.c.l.b16 %v2477
      %v2529 = vunpack.c.l.b16 %v2478
      %v2530 = vunpack.c.l.b16 %v2479
      %v2531 = vunpack.c.l.b16 %v2480
      %v2532 = vunpack.c.l.b16 %v2481
      %v2533 = vunpack.c.l.b16 %v2482
      %v2534 = vunpack.c.l.b16 %v2483
      %v2535 = vunpack.c.l.b16 %v2484
      %v2536 = vunpack.c.l.b16 %v2485
      %v2537 = vunpack.c.l.b16 %v2486
      %v2538 = vunpack.c.l.b16 %v2487
      %v2539 = vunpack.c.l.b16 %v2488
      %v2540 = vunpack.c.l.b16 %v2489
      %v2541 = vunpack.c.l.b16 %v2490
      %v2542 = vunpack.c.l.b16 %v2491
      %v2543 = vunpack.c.l.b16 %v2492
      %v2544 = vpack.c.b16 %v2529, %v2528
      %v2545 = vpack.c.b16 %v2531, %v2530
      %v2546 = vpack.c.b16 %v2533, %v2532
      %v2547 = vpack.c.b16 %v2535, %v2534
      %v2548 = vpack.c.b16 %v2537, %v2536
      %v2549 = vpack.c.b16 %v2539, %v2538
      %v2550 = vpack.c.b16 %v2541, %v2540
      %v2551 = vpack.c.b16 %v2543, %v2542
      %2560 = vmatprep.subr.bf16.mxu0 0
      %2561 = vmatpush1.bf16.msra.mxu0 %v2544
      %2562 = vmatprep.subr.bf16.mxu0 0
      %2563 = vmatpush1.bf16.msra.mxu0 %v2545
      %2564 = vmatprep.subr.bf16.mxu0 0
      %2565 = vmatpush1.bf16.msra.mxu0 %v2546
      %2566 = vmatprep.subr.bf16.mxu0 0
      %2567 = vmatpush1.bf16.msra.mxu0 %v2547
      %2568 = vmatprep.subr.bf16.mxu0 0
      %2569 = vmatpush1.bf16.msra.mxu0 %v2548
      %2570 = vmatprep.subr.bf16.mxu0 0
      %2571 = vmatpush1.bf16.msra.mxu0 %v2549
      %2572 = vmatprep.subr.bf16.mxu0 0
      %2573 = vmatpush1.bf16.msra.mxu0 %v2550
      %2574 = vmatprep.subr.bf16.mxu0 0
      %2575 = vmatpush1.bf16.msra.mxu0 %v2551
      %2576 = vmatprep.subr.bf16.mxu0 0
      %2577 = vmatpush1.bf16.msra.mxu0 0
      %2578 = vmatprep.subr.bf16.mxu0 0
      %2579 = vmatpush1.bf16.msra.mxu0 0
      %2580 = vmatprep.subr.bf16.mxu0 0
      %2581 = vmatpush1.bf16.msra.mxu0 0
      %2582 = vmatprep.subr.bf16.mxu0 0
      %2583 = vmatpush1.bf16.msra.mxu0 0
      %2584 = vmatprep.subr.bf16.mxu0 0
      %2585 = vmatpush1.bf16.msra.mxu0 0
      %2586 = vmatprep.subr.bf16.mxu0 0
      %2587 = vmatpush1.bf16.msra.mxu0 0
      %2588 = vmatprep.subr.bf16.mxu0 0
      %2589 = vmatpush1.bf16.msra.mxu0 0
      %2590 = vmatprep.subr.bf16.mxu0 0
      %2591 = vmatpush1.bf16.msra.mxu0 0
      %2592 = vmatprep.mubr.bf16.mxu0 0
      %2593 = vmatmul.mubr.bf16.gmra.mrb[0].mxu0 %v2501
      %v2594 = vpop.f32.mrb[0].mxu0
      %v2595 = vadd.f32 0.0, %v2594
      %v2596 = vpop.f32.mrb[0].mxu0
      %v2597 = vpop.f32.mrb[0].mxu0
      %v2598 = vadd.f32 0.0, %v2597
      %v2599 = vpop.f32.mrb[0].mxu0
      %2600 = vmatprep.mubr.bf16.mxu0 0
      %2601 = vmatmul.mubr.bf16.gmra.mrb[0].mxu0 %v2503
      %v2602 = vpop.f32.mrb[0].mxu0
      %v2603 = vadd.f32 0.0, %v2602
      %v2604 = vpop.f32.mrb[0].mxu0
      %v2605 = vpop.f32.mrb[0].mxu0
      %v2606 = vadd.f32 0.0, %v2605
      %v2607 = vpop.f32.mrb[0].mxu0
      %2608 = vmatprep.mubr.bf16.mxu0 0
      %2609 = vmatmul.mubr.bf16.gmra.mrb[0].mxu0 %v2505
      %v2610 = vpop.f32.mrb[0].mxu0
      %v2611 = vadd.f32 0.0, %v2610
      %v2612 = vpop.f32.mrb[0].mxu0
      %v2613 = vpop.f32.mrb[0].mxu0
      %v2614 = vadd.f32 0.0, %v2613
      %v2615 = vpop.f32.mrb[0].mxu0
      %2616 = vmatprep.mubr.bf16.mxu0 0
      %2617 = vmatmul.mubr.bf16.gmra.mrb[0].mxu0 %v2507
      %v2618 = vpop.f32.mrb[0].mxu0
      %v2619 = vadd.f32 0.0, %v2618
      %v2620 = vpop.f32.mrb[0].mxu0
      %v2621 = vpop.f32.mrb[0].mxu0
      %v2622 = vadd.f32 0.0, %v2621
      %v2623 = vpop.f32.mrb[0].mxu0
      %2624 = vdwg.mxu0
      %v2626 = vshrl.u32 %v2454, 16
      %v2628 = vrot.slane %v2626, 3
      %v2629 = vshll.u32 %v2454, 16
      %v2631 = vrot.slane %v2629, 4
      %v2632 = vor.u32 %v2628, %v2631
      %v2634 = vshrl.u32 %v2455, 16
      %v2636 = vrot.slane %v2634, 3
      %v2637 = vshll.u32 %v2455, 16
      %v2639 = vrot.slane %v2637, 4
      %v2640 = vor.u32 %v2636, %v2639
      %v2641 = vsel %vm637, %v2632, %v2640
      %v2643 = vshrl.u32 %v2456, 16
      %v2645 = vrot.slane %v2643, 3
      %v2646 = vshll.u32 %v2456, 16
      %v2648 = vrot.slane %v2646, 4
      %v2649 = vor.u32 %v2645, %v2648
      %v2650 = vsel %vm637, %v2640, %v2649
      %v2652 = vshrl.u32 %v2457, 16
      %v2654 = vrot.slane %v2652, 3
      %v2655 = vshll.u32 %v2457, 16
      %v2657 = vrot.slane %v2655, 4
      %v2658 = vor.u32 %v2654, %v2657
      %v2659 = vsel %vm637, %v2649, %v2658
      %v2661 = vshrl.u32 %v2458, 16
      %v2663 = vrot.slane %v2661, 3
      %v2664 = vshll.u32 %v2458, 16
      %v2666 = vrot.slane %v2664, 4
      %v2667 = vor.u32 %v2663, %v2666
      %v2668 = vsel %vm637, %v2658, %v2667
      %v2689 = vunpack.c.l.b16 %v2459
      %v2690 = vunpack.c.l.b16 %v2460
      %v2691 = vunpack.c.l.b16 %v2461
      %v2692 = vunpack.c.l.b16 %v2462
      %v2693 = vunpack.c.l.b16 %v2463
      %v2694 = vunpack.c.l.b16 %v2464
      %v2695 = vunpack.c.l.b16 %v2465
      %v2696 = vunpack.c.l.b16 %v2466
      %v2697 = vunpack.c.l.b16 %v2467
      %v2698 = vunpack.c.l.b16 %v2468
      %v2699 = vunpack.c.l.b16 %v2469
      %v2700 = vunpack.c.l.b16 %v2470
      %v2701 = vunpack.c.l.b16 %v2471
      %v2702 = vunpack.c.l.b16 %v2472
      %v2703 = vunpack.c.l.b16 %v2473
      %v2704 = vunpack.c.l.b16 %v2474
      %v2705 = vpack.c.b16 %v2690, %v2689
      %v2706 = vpack.c.b16 %v2692, %v2691
      %v2707 = vpack.c.b16 %v2694, %v2693
      %v2708 = vpack.c.b16 %v2696, %v2695
      %v2709 = vpack.c.b16 %v2698, %v2697
      %v2710 = vpack.c.b16 %v2700, %v2699
      %v2711 = vpack.c.b16 %v2702, %v2701
      %v2712 = vpack.c.b16 %v2704, %v2703
      %2721 = vmatprep.subr.bf16.mxu0 0
      %2722 = vmatpush1.bf16.msra.mxu0 %v2705
      %2723 = vmatprep.subr.bf16.mxu0 0
      %2724 = vmatpush1.bf16.msra.mxu0 %v2706
      %2725 = vmatprep.subr.bf16.mxu0 0
      %2726 = vmatpush1.bf16.msra.mxu0 %v2707
      %2727 = vmatprep.subr.bf16.mxu0 0
      %2728 = vmatpush1.bf16.msra.mxu0 %v2708
      %2729 = vmatprep.subr.bf16.mxu0 0
      %2730 = vmatpush1.bf16.msra.mxu0 %v2709
      %2731 = vmatprep.subr.bf16.mxu0 0
      %2732 = vmatpush1.bf16.msra.mxu0 %v2710
      %2733 = vmatprep.subr.bf16.mxu0 0
      %2734 = vmatpush1.bf16.msra.mxu0 %v2711
      %2735 = vmatprep.subr.bf16.mxu0 0
      %2736 = vmatpush1.bf16.msra.mxu0 %v2712
      %2737 = vmatprep.subr.bf16.mxu0 0
      %2738 = vmatpush1.bf16.msra.mxu0 0
      %2739 = vmatprep.subr.bf16.mxu0 0
      %2740 = vmatpush1.bf16.msra.mxu0 0
      %2741 = vmatprep.subr.bf16.mxu0 0
      %2742 = vmatpush1.bf16.msra.mxu0 0
      %2743 = vmatprep.subr.bf16.mxu0 0
      %2744 = vmatpush1.bf16.msra.mxu0 0
      %2745 = vmatprep.subr.bf16.mxu0 0
      %2746 = vmatpush1.bf16.msra.mxu0 0
      %2747 = vmatprep.subr.bf16.mxu0 0
      %2748 = vmatpush1.bf16.msra.mxu0 0
      %2749 = vmatprep.subr.bf16.mxu0 0
      %2750 = vmatpush1.bf16.msra.mxu0 0
      %2751 = vmatprep.subr.bf16.mxu0 0
      %2752 = vmatpush1.bf16.msra.mxu0 0
      %2753 = vmatprep.mubr.bf16.mxu0 0
      %2754 = vmatmul.mubr.bf16.gmra.mrb[0].mxu0 %v2641
      %v2755 = vpop.f32.mrb[0].mxu0
      %v2756 = vadd.f32 %v2595, %v2755
      %v2757 = vpop.f32.mrb[0].mxu0
      %v2758 = vpop.f32.mrb[0].mxu0
      %v2759 = vadd.f32 %v2598, %v2758
      %v2760 = vpop.f32.mrb[0].mxu0
      %2761 = vmatprep.mubr.bf16.mxu0 0
      %2762 = vmatmul.mubr.bf16.gmra.mrb[0].mxu0 %v2650
      %v2763 = vpop.f32.mrb[0].mxu0
      %v2764 = vadd.f32 %v2603, %v2763
      %v2765 = vpop.f32.mrb[0].mxu0
      %v2766 = vpop.f32.mrb[0].mxu0
      %v2767 = vadd.f32 %v2606, %v2766
      %v2768 = vpop.f32.mrb[0].mxu0
      %2769 = vmatprep.mubr.bf16.mxu0 0
      %2770 = vmatmul.mubr.bf16.gmra.mrb[0].mxu0 %v2659
      %v2771 = vpop.f32.mrb[0].mxu0
      %v2772 = vadd.f32 %v2611, %v2771
      %v2773 = vpop.f32.mrb[0].mxu0
      %v2774 = vpop.f32.mrb[0].mxu0
      %v2775 = vadd.f32 %v2614, %v2774
      %v2776 = vpop.f32.mrb[0].mxu0
      %2777 = vmatprep.mubr.bf16.mxu0 0
      %2778 = vmatmul.mubr.bf16.gmra.mrb[0].mxu0 %v2668
      %v2779 = vpop.f32.mrb[0].mxu0
      %v2780 = vadd.f32 %v2619, %v2779
      %v2781 = vpop.f32.mrb[0].mxu0
      %v2782 = vpop.f32.mrb[0].mxu0
      %v2783 = vadd.f32 %v2622, %v2782
      %v2784 = vpop.f32.mrb[0].mxu0
      %2785 = vdwg.mxu0
      %v2786 = vld [vmem:[#allocation2 + $0x20] sm:$0x1f]
      %v2787 = vunpack.c.l.b16 %v856
      %v2788 = vunpack.c.l.b16 %v857
      %v2789 = vunpack.c.l.b16 %v858
      %v2790 = vunpack.c.l.b16 %v859
      %v2791 = vunpack.c.l.b16 %v860
      %v2792 = vunpack.c.l.b16 %v861
      %v2793 = vunpack.c.l.b16 %v862
      %v2794 = vunpack.c.l.b16 %v863
      %v2795 = vpack.c.b16 %v2788, %v2787
      %v2796 = vpack.c.b16 %v2790, %v2789
      %v2797 = vpack.c.b16 %v2792, %v2791
      %v2798 = vpack.c.b16 %v2794, %v2793
      %v2800 = vshrl.u32 %v2795, 16
      %v2802 = vrot.slane %v2800, 3
      %v2803 = vshll.u32 %v2795, 16
      %v2805 = vrot.slane %v2803, 4
      %v2806 = vor.u32 %v2802, %v2805
      %v2808 = vshrl.u32 %v2796, 16
      %v2810 = vrot.slane %v2808, 3
      %v2811 = vshll.u32 %v2796, 16
      %v2813 = vrot.slane %v2811, 4
      %v2814 = vor.u32 %v2810, %v2813
      %v2815 = vsel %vm637, %v2806, %v2814
      %v2817 = vshrl.u32 %v2797, 16
      %v2819 = vrot.slane %v2817, 3
      %v2820 = vshll.u32 %v2797, 16
      %v2822 = vrot.slane %v2820, 4
      %v2823 = vor.u32 %v2819, %v2822
      %v2824 = vsel %vm637, %v2814, %v2823
      %v2826 = vshrl.u32 %v2798, 16
      %v2828 = vrot.slane %v2826, 3
      %v2829 = vshll.u32 %v2798, 16
      %v2831 = vrot.slane %v2829, 4
      %v2832 = vor.u32 %v2828, %v2831
      %v2833 = vsel %vm637, %v2823, %v2832
      %vm2834 = vcmp.ne.s16.totalorder %v2806, 0
      %vm2835 = vcmp.ne.s16.totalorder %v2815, 0
      %vm2836 = vcmp.ne.s16.totalorder %v2824, 0
      %vm2837 = vcmp.ne.s16.totalorder %v2833, 0
      %vm2838 = vcmp.ne.s16.totalorder %v2832, 0
      %v2839 = vsel %vm2834, %v2475, 0
      %v2840 = vsel %vm2835, %v2398, 0
      %v2841 = vsel %vm2836, %v2399, 0
      %v2842 = vsel %vm2837, %v2400, 0
      %v2843 = vsel %vm2838, %v2786, 0
      %s2844 = scalar_lea.vmem %s3, 128
      %v2845 = vld [vmem:[%s2844] sm:$0xf]
      %v2846 = vld [vmem:[%s2844 + $0x4] sm:$0xf]
      %v2847 = vld [vmem:[%s2844 + $0x8] sm:$0xf]
      %v2848 = vld [vmem:[%s2844 + $0xc] sm:$0xf]
      %v2849 = vld [vmem:[%s2844 + $0x10] sm:$0xf]
      %v2850 = vld [vmem:[%s2844 + $0x14] sm:$0xf]
      %v2851 = vld [vmem:[%s2844 + $0x18] sm:$0xf]
      %v2852 = vld [vmem:[%s2844 + $0x1c] sm:$0xf]
      %v2853 = vld [vmem:[%s2844 + $0x20] sm:$0xf]
      %v2854 = vld [vmem:[%s2844 + $0x24] sm:$0xf]
      %v2855 = vld [vmem:[%s2844 + $0x28] sm:$0xf]
      %v2856 = vld [vmem:[%s2844 + $0x2c] sm:$0xf]
      %v2857 = vld [vmem:[%s2844 + $0x30] sm:$0xf]
      %v2858 = vld [vmem:[%s2844 + $0x34] sm:$0xf]
      %v2859 = vld [vmem:[%s2844 + $0x38] sm:$0xf]
      %v2860 = vld [vmem:[%s2844 + $0x3c] sm:$0xf]
      %v2862 = vshrl.u32 %v2839, 16
      %v2864 = vrot.slane %v2862, 4
      %v2865 = vshll.u32 %v2839, 16
      %v2867 = vrot.slane %v2865, 5
      %v2868 = vor.u32 %v2864, %v2867
      %v2870 = vshrl.u32 %v2840, 16
      %v2872 = vrot.slane %v2870, 4
      %v2873 = vshll.u32 %v2840, 16
      %v2875 = vrot.slane %v2873, 5
      %v2876 = vor.u32 %v2872, %v2875
      %v2877 = vsel %vm344, %v2868, %v2876
      %v2879 = vshrl.u32 %v2841, 16
      %v2881 = vrot.slane %v2879, 4
      %v2882 = vshll.u32 %v2841, 16
      %v2884 = vrot.slane %v2882, 5
      %v2885 = vor.u32 %v2881, %v2884
      %v2886 = vsel %vm344, %v2876, %v2885
      %v2888 = vshrl.u32 %v2842, 16
      %v2890 = vrot.slane %v2888, 4
      %v2891 = vshll.u32 %v2842, 16
      %v2893 = vrot.slane %v2891, 5
      %v2894 = vor.u32 %v2890, %v2893
      %v2895 = vsel %vm344, %v2885, %v2894
      %v2897 = vshrl.u32 %v2843, 16
      %v2899 = vrot.slane %v2897, 4
      %v2900 = vshll.u32 %v2843, 16
      %v2902 = vrot.slane %v2900, 5
      %v2903 = vor.u32 %v2899, %v2902
      %v2904 = vsel %vm344, %v2894, %v2903
      %v2925 = vunpack.c.l.b16 %v2845
      %v2926 = vunpack.c.l.b16 %v2846
      %v2927 = vunpack.c.l.b16 %v2847
      %v2928 = vunpack.c.l.b16 %v2848
      %v2929 = vunpack.c.l.b16 %v2849
      %v2930 = vunpack.c.l.b16 %v2850
      %v2931 = vunpack.c.l.b16 %v2851
      %v2932 = vunpack.c.l.b16 %v2852
      %v2933 = vunpack.c.l.b16 %v2853
      %v2934 = vunpack.c.l.b16 %v2854
      %v2935 = vunpack.c.l.b16 %v2855
      %v2936 = vunpack.c.l.b16 %v2856
      %v2937 = vunpack.c.l.b16 %v2857
      %v2938 = vunpack.c.l.b16 %v2858
      %v2939 = vunpack.c.l.b16 %v2859
      %v2940 = vunpack.c.l.b16 %v2860
      %v2941 = vpack.c.b16 %v2926, %v2925
      %v2942 = vpack.c.b16 %v2928, %v2927
      %v2943 = vpack.c.b16 %v2930, %v2929
      %v2944 = vpack.c.b16 %v2932, %v2931
      %v2945 = vpack.c.b16 %v2934, %v2933
      %v2946 = vpack.c.b16 %v2936, %v2935
      %v2947 = vpack.c.b16 %v2938, %v2937
      %v2948 = vpack.c.b16 %v2940, %v2939
      %2957 = vmatprep.subr.bf16.mxu0 0
      %2958 = vmatpush1.bf16.msra.mxu0 %v2941
      %2959 = vmatprep.subr.bf16.mxu0 0
      %2960 = vmatpush1.bf16.msra.mxu0 %v2942
      %2961 = vmatprep.subr.bf16.mxu0 0
      %2962 = vmatpush1.bf16.msra.mxu0 %v2943
      %2963 = vmatprep.subr.bf16.mxu0 0
      %2964 = vmatpush1.bf16.msra.mxu0 %v2944
      %2965 = vmatprep.subr.bf16.mxu0 0
      %2966 = vmatpush1.bf16.msra.mxu0 %v2945
      %2967 = vmatprep.subr.bf16.mxu0 0
      %2968 = vmatpush1.bf16.msra.mxu0 %v2946
      %2969 = vmatprep.subr.bf16.mxu0 0
      %2970 = vmatpush1.bf16.msra.mxu0 %v2947
      %2971 = vmatprep.subr.bf16.mxu0 0
      %2972 = vmatpush1.bf16.msra.mxu0 %v2948
      %2973 = vmatprep.subr.bf16.mxu0 0
      %2974 = vmatpush1.bf16.msra.mxu0 0
      %2975 = vmatprep.subr.bf16.mxu0 0
      %2976 = vmatpush1.bf16.msra.mxu0 0
      %2977 = vmatprep.subr.bf16.mxu0 0
      %2978 = vmatpush1.bf16.msra.mxu0 0
      %2979 = vmatprep.subr.bf16.mxu0 0
      %2980 = vmatpush1.bf16.msra.mxu0 0
      %2981 = vmatprep.subr.bf16.mxu0 0
      %2982 = vmatpush1.bf16.msra.mxu0 0
      %2983 = vmatprep.subr.bf16.mxu0 0
      %2984 = vmatpush1.bf16.msra.mxu0 0
      %2985 = vmatprep.subr.bf16.mxu0 0
      %2986 = vmatpush1.bf16.msra.mxu0 0
      %2987 = vmatprep.subr.bf16.mxu0 0
      %2988 = vmatpush1.bf16.msra.mxu0 0
      %2989 = vmatprep.mubr.bf16.mxu0 0
      %2990 = vmatmul.mubr.bf16.gmra.mrb[0].mxu0 %v2877
      %v2991 = vpop.f32.mrb[0].mxu0
      %v2992 = vadd.f32 0.0, %v2991
      %v2993 = vpop.f32.mrb[0].mxu0
      %v2994 = vpop.f32.mrb[0].mxu0
      %v2995 = vadd.f32 0.0, %v2994
      %v2996 = vpop.f32.mrb[0].mxu0
      %2997 = vmatprep.mubr.bf16.mxu0 0
      %2998 = vmatmul.mubr.bf16.gmra.mrb[0].mxu0 %v2886
      %v2999 = vpop.f32.mrb[0].mxu0
      %v3000 = vadd.f32 0.0, %v2999
      %v3001 = vpop.f32.mrb[0].mxu0
      %v3002 = vpop.f32.mrb[0].mxu0
      %v3003 = vadd.f32 0.0, %v3002
      %v3004 = vpop.f32.mrb[0].mxu0
      %3005 = vmatprep.mubr.bf16.mxu0 0
      %3006 = vmatmul.mubr.bf16.gmra.mrb[0].mxu0 %v2895
      %v3007 = vpop.f32.mrb[0].mxu0
      %v3008 = vadd.f32 0.0, %v3007
      %v3009 = vpop.f32.mrb[0].mxu0
      %v3010 = vpop.f32.mrb[0].mxu0
      %v3011 = vadd.f32 0.0, %v3010
      %v3012 = vpop.f32.mrb[0].mxu0
      %3013 = vmatprep.mubr.bf16.mxu0 0
      %3014 = vmatmul.mubr.bf16.gmra.mrb[0].mxu0 %v2904
      %v3015 = vpop.f32.mrb[0].mxu0
      %v3016 = vadd.f32 0.0, %v3015
      %v3017 = vpop.f32.mrb[0].mxu0
      %v3018 = vpop.f32.mrb[0].mxu0
      %v3019 = vadd.f32 0.0, %v3018
      %v3020 = vpop.f32.mrb[0].mxu0
      %3021 = vdwg.mxu0
      %v3022 = vadd.f32 %v2756, %v2992
      %v3023 = vadd.f32 %v2759, %v2995
      %v3024 = vadd.f32 %v2764, %v3000
      %v3025 = vadd.f32 %v2767, %v3003
      %v3026 = vadd.f32 %v2772, %v3008
      %v3027 = vadd.f32 %v2775, %v3011
      %v3028 = vadd.f32 %v2780, %v3016
      %v3029 = vadd.f32 %v2783, %v3019
      %v3030 = vld [vmem:[#allocation2] sm:$0x80]
      %v3031 = vld [vmem:[#allocation2 + $0x20] sm:$0xff]
      %v3032 = vrot.slane %v2418, 1
      %v3033 = vor.u32 %v2415, %v3032
      %v3034 = vrot.slane %v2426, 1
      %v3035 = vsel %vm996, %v3033, %v3034
      %v3036 = vor.u32 %v2423, %v3034
      %v3037 = vrot.slane %v2435, 1
      %v3038 = vsel %vm996, %v3036, %v3037
      %v3039 = vor.u32 %v2432, %v3037
      %v3040 = vrot.slane %v2444, 1
      %v3041 = vsel %vm996, %v3039, %v3040
      %v3042 = vor.u32 %v2441, %v3040
      %vm3043 = vcmp.ne.s16.totalorder %v3032, 0
      %vm3044 = vcmp.ne.s16.totalorder %v3035, 0
      %vm3045 = vcmp.ne.s16.totalorder %v3038, 0
      %vm3046 = vcmp.ne.s16.totalorder %v3041, 0
      %vm3047 = vcmp.ne.s16.totalorder %v3042, 0
      %v3048 = vsel %vm3043, %v3030, 0
      %v3049 = vsel %vm3044, %v2398, 0
      %v3050 = vsel %vm3045, %v2399, 0
      %v3051 = vsel %vm3046, %v2400, 0
      %v3052 = vsel %vm3047, %v3031, 0
      %s3053 = scalar_lea.vmem %s3, 192
      %v3054 = vld [vmem:[%s3053] sm:$0xf]
      %v3055 = vld [vmem:[%s3053 + $0x4] sm:$0xf]
      %v3056 = vld [vmem:[%s3053 + $0x8] sm:$0xf]
      %v3057 = vld [vmem:[%s3053 + $0xc] sm:$0xf]
      %v3058 = vld [vmem:[%s3053 + $0x10] sm:$0xf]
      %v3059 = vld [vmem:[%s3053 + $0x14] sm:$0xf]
      %v3060 = vld [vmem:[%s3053 + $0x18] sm:$0xf]
      %v3061 = vld [vmem:[%s3053 + $0x1c] sm:$0xf]
      %v3062 = vld [vmem:[%s3053 + $0x20] sm:$0xf]
      %v3063 = vld [vmem:[%s3053 + $0x24] sm:$0xf]
      %v3064 = vld [vmem:[%s3053 + $0x28] sm:$0xf]
      %v3065 = vld [vmem:[%s3053 + $0x2c] sm:$0xf]
      %v3066 = vld [vmem:[%s3053 + $0x30] sm:$0xf]
      %v3067 = vld [vmem:[%s3053 + $0x34] sm:$0xf]
      %v3068 = vld [vmem:[%s3053 + $0x38] sm:$0xf]
      %v3069 = vld [vmem:[%s3053 + $0x3c] sm:$0xf]
      %v3071 = vshrl.u32 %v3048, 16
      %v3073 = vrot.slane %v3071, 7
      %v3075 = vshrl.u32 %v3049, 16
      %v3077 = vrot.slane %v3075, 7
      %v3078 = vshll.u32 %v3049, 16
      %v3080 = vor.u32 %v3077, %v3078
      %v3081 = vsel %vm864, %v3073, %v3080
      %v3083 = vshrl.u32 %v3050, 16
      %v3085 = vrot.slane %v3083, 7
      %v3086 = vshll.u32 %v3050, 16
      %v3088 = vor.u32 %v3085, %v3086
      %v3089 = vsel %vm864, %v3077, %v3088
      %v3091 = vshrl.u32 %v3051, 16
      %v3093 = vrot.slane %v3091, 7
      %v3094 = vshll.u32 %v3051, 16
      %v3096 = vor.u32 %v3093, %v3094
      %v3097 = vsel %vm864, %v3085, %v3096
      %v3099 = vshrl.u32 %v3052, 16
      %v3101 = vrot.slane %v3099, 7
      %v3102 = vshll.u32 %v3052, 16
      %v3104 = vor.u32 %v3101, %v3102
      %v3105 = vsel %vm864, %v3093, %v3104
      %v3126 = vunpack.c.l.b16 %v3054
      %v3127 = vunpack.c.l.b16 %v3055
      %v3128 = vunpack.c.l.b16 %v3056
      %v3129 = vunpack.c.l.b16 %v3057
      %v3130 = vunpack.c.l.b16 %v3058
      %v3131 = vunpack.c.l.b16 %v3059
      %v3132 = vunpack.c.l.b16 %v3060
      %v3133 = vunpack.c.l.b16 %v3061
      %v3134 = vunpack.c.l.b16 %v3062
      %v3135 = vunpack.c.l.b16 %v3063
      %v3136 = vunpack.c.l.b16 %v3064
      %v3137 = vunpack.c.l.b16 %v3065
      %v3138 = vunpack.c.l.b16 %v3066
      %v3139 = vunpack.c.l.b16 %v3067
      %v3140 = vunpack.c.l.b16 %v3068
      %v3141 = vunpack.c.l.b16 %v3069
      %v3142 = vpack.c.b16 %v3127, %v3126
      %v3143 = vpack.c.b16 %v3129, %v3128
      %v3144 = vpack.c.b16 %v3131, %v3130
      %v3145 = vpack.c.b16 %v3133, %v3132
      %v3146 = vpack.c.b16 %v3135, %v3134
      %v3147 = vpack.c.b16 %v3137, %v3136
      %v3148 = vpack.c.b16 %v3139, %v3138
      %v3149 = vpack.c.b16 %v3141, %v3140
      %3158 = vmatprep.subr.bf16.mxu0 0
      %3159 = vmatpush1.bf16.msra.mxu0 %v3142
      %3160 = vmatprep.subr.bf16.mxu0 0
      %3161 = vmatpush1.bf16.msra.mxu0 %v3143
      %3162 = vmatprep.subr.bf16.mxu0 0
      %3163 = vmatpush1.bf16.msra.mxu0 %v3144
      %3164 = vmatprep.subr.bf16.mxu0 0
      %3165 = vmatpush1.bf16.msra.mxu0 %v3145
      %3166 = vmatprep.subr.bf16.mxu0 0
      %3167 = vmatpush1.bf16.msra.mxu0 %v3146
      %3168 = vmatprep.subr.bf16.mxu0 0
      %3169 = vmatpush1.bf16.msra.mxu0 %v3147
      %3170 = vmatprep.subr.bf16.mxu0 0
      %3171 = vmatpush1.bf16.msra.mxu0 %v3148
      %3172 = vmatprep.subr.bf16.mxu0 0
      %3173 = vmatpush1.bf16.msra.mxu0 %v3149
      %3174 = vmatprep.subr.bf16.mxu0 0
      %3175 = vmatpush1.bf16.msra.mxu0 0
      %3176 = vmatprep.subr.bf16.mxu0 0
      %3177 = vmatpush1.bf16.msra.mxu0 0
      %3178 = vmatprep.subr.bf16.mxu0 0
      %3179 = vmatpush1.bf16.msra.mxu0 0
      %3180 = vmatprep.subr.bf16.mxu0 0
      %3181 = vmatpush1.bf16.msra.mxu0 0
      %3182 = vmatprep.subr.bf16.mxu0 0
      %3183 = vmatpush1.bf16.msra.mxu0 0
      %3184 = vmatprep.subr.bf16.mxu0 0
      %3185 = vmatpush1.bf16.msra.mxu0 0
      %3186 = vmatprep.subr.bf16.mxu0 0
      %3187 = vmatpush1.bf16.msra.mxu0 0
      %3188 = vmatprep.subr.bf16.mxu0 0
      %3189 = vmatpush1.bf16.msra.mxu0 0
      %3190 = vmatprep.mubr.bf16.mxu0 0
      %3191 = vmatmul.mubr.bf16.gmra.mrb[0].mxu0 %v3081
      %v3192 = vpop.f32.mrb[0].mxu0
      %v3193 = vadd.f32 0.0, %v3192
      %v3194 = vpop.f32.mrb[0].mxu0
      %v3195 = vpop.f32.mrb[0].mxu0
      %v3196 = vadd.f32 0.0, %v3195
      %v3197 = vpop.f32.mrb[0].mxu0
      %3198 = vmatprep.mubr.bf16.mxu0 0
      %3199 = vmatmul.mubr.bf16.gmra.mrb[0].mxu0 %v3089
      %v3200 = vpop.f32.mrb[0].mxu0
      %v3201 = vadd.f32 0.0, %v3200
      %v3202 = vpop.f32.mrb[0].mxu0
      %v3203 = vpop.f32.mrb[0].mxu0
      %v3204 = vadd.f32 0.0, %v3203
      %v3205 = vpop.f32.mrb[0].mxu0
      %3206 = vmatprep.mubr.bf16.mxu0 0
      %3207 = vmatmul.mubr.bf16.gmra.mrb[0].mxu0 %v3097
      %v3208 = vpop.f32.mrb[0].mxu0
      %v3209 = vadd.f32 0.0, %v3208
      %v3210 = vpop.f32.mrb[0].mxu0
      %v3211 = vpop.f32.mrb[0].mxu0
      %v3212 = vadd.f32 0.0, %v3211
      %v3213 = vpop.f32.mrb[0].mxu0
      %3214 = vmatprep.mubr.bf16.mxu0 0
      %3215 = vmatmul.mubr.bf16.gmra.mrb[0].mxu0 %v3105
      %v3216 = vpop.f32.mrb[0].mxu0
      %v3217 = vadd.f32 0.0, %v3216
      %v3218 = vpop.f32.mrb[0].mxu0
      %v3219 = vpop.f32.mrb[0].mxu0
      %v3220 = vadd.f32 0.0, %v3219
      %v3221 = vpop.f32.mrb[0].mxu0
      %3222 = vdwg.mxu0
      %v3223 = vadd.f32 %v3022, %v3193
      %v3224 = vadd.f32 %v3023, %v3196
      %v3225 = vadd.f32 %v3024, %v3201
      %v3226 = vadd.f32 %v3025, %v3204
      %v3227 = vadd.f32 %v3026, %v3209
      %v3228 = vadd.f32 %v3027, %v3212
      %v3229 = vadd.f32 %v3028, %v3217
      %v3230 = vadd.f32 %v3029, %v3220
      %s3231 = scalar_lea.vmem %s3, 256
      %v3232 = vld [vmem:[%s3231] sm:$0xf]
      %v3233 = vld [vmem:[%s3231 + $0x4] sm:$0xf]
      %v3234 = vld [vmem:[%s3231 + $0x8] sm:$0xf]
      %v3235 = vld [vmem:[%s3231 + $0xc] sm:$0xf]
      %v3236 = vld [vmem:[%s3231 + $0x10] sm:$0xf]
      %v3237 = vld [vmem:[%s3231 + $0x14] sm:$0xf]
      %v3238 = vld [vmem:[%s3231 + $0x18] sm:$0xf]
      %v3239 = vld [vmem:[%s3231 + $0x1c] sm:$0xf]
      %v3240 = vld [vmem:[%s3231 + $0x20] sm:$0xf]
      %v3241 = vld [vmem:[%s3231 + $0x24] sm:$0xf]
      %v3242 = vld [vmem:[%s3231 + $0x28] sm:$0xf]
      %v3243 = vld [vmem:[%s3231 + $0x2c] sm:$0xf]
      %v3244 = vld [vmem:[%s3231 + $0x30] sm:$0xf]
      %v3245 = vld [vmem:[%s3231 + $0x34] sm:$0xf]
      %v3246 = vld [vmem:[%s3231 + $0x38] sm:$0xf]
      %v3247 = vld [vmem:[%s3231 + $0x3c] sm:$0xf]
      %v3264 = vunpack.c.l.b16 %v3232
      %v3265 = vunpack.c.l.b16 %v3233
      %v3266 = vunpack.c.l.b16 %v3234
      %v3267 = vunpack.c.l.b16 %v3235
      %v3268 = vunpack.c.l.b16 %v3236
      %v3269 = vunpack.c.l.b16 %v3237
      %v3270 = vunpack.c.l.b16 %v3238
      %v3271 = vunpack.c.l.b16 %v3239
      %v3272 = vunpack.c.l.b16 %v3240
      %v3273 = vunpack.c.l.b16 %v3241
      %v3274 = vunpack.c.l.b16 %v3242
      %v3275 = vunpack.c.l.b16 %v3243
      %v3276 = vunpack.c.l.b16 %v3244
      %v3277 = vunpack.c.l.b16 %v3245
      %v3278 = vunpack.c.l.b16 %v3246
      %v3279 = vunpack.c.l.b16 %v3247
      %v3280 = vpack.c.b16 %v3265, %v3264
      %v3281 = vpack.c.b16 %v3267, %v3266
      %v3282 = vpack.c.b16 %v3269, %v3268
      %v3283 = vpack.c.b16 %v3271, %v3270
      %v3284 = vpack.c.b16 %v3273, %v3272
      %v3285 = vpack.c.b16 %v3275, %v3274
      %v3286 = vpack.c.b16 %v3277, %v3276
      %v3287 = vpack.c.b16 %v3279, %v3278
      %3296 = vmatprep.subr.bf16.mxu0 0
      %3297 = vmatpush1.bf16.msra.mxu0 %v3280
      %3298 = vmatprep.subr.bf16.mxu0 0
      %3299 = vmatpush1.bf16.msra.mxu0 %v3281
      %3300 = vmatprep.subr.bf16.mxu0 0
      %3301 = vmatpush1.bf16.msra.mxu0 %v3282
      %3302 = vmatprep.subr.bf16.mxu0 0
      %3303 = vmatpush1.bf16.msra.mxu0 %v3283
      %3304 = vmatprep.subr.bf16.mxu0 0
      %3305 = vmatpush1.bf16.msra.mxu0 %v3284
      %3306 = vmatprep.subr.bf16.mxu0 0
      %3307 = vmatpush1.bf16.msra.mxu0 %v3285
      %3308 = vmatprep.subr.bf16.mxu0 0
      %3309 = vmatpush1.bf16.msra.mxu0 %v3286
      %3310 = vmatprep.subr.bf16.mxu0 0
      %3311 = vmatpush1.bf16.msra.mxu0 %v3287
      %3312 = vmatprep.subr.bf16.mxu0 0
      %3313 = vmatpush1.bf16.msra.mxu0 0
      %3314 = vmatprep.subr.bf16.mxu0 0
      %3315 = vmatpush1.bf16.msra.mxu0 0
      %3316 = vmatprep.subr.bf16.mxu0 0
      %3317 = vmatpush1.bf16.msra.mxu0 0
      %3318 = vmatprep.subr.bf16.mxu0 0
      %3319 = vmatpush1.bf16.msra.mxu0 0
      %3320 = vmatprep.subr.bf16.mxu0 0
      %3321 = vmatpush1.bf16.msra.mxu0 0
      %3322 = vmatprep.subr.bf16.mxu0 0
      %3323 = vmatpush1.bf16.msra.mxu0 0
      %3324 = vmatprep.subr.bf16.mxu0 0
      %3325 = vmatpush1.bf16.msra.mxu0 0
      %3326 = vmatprep.subr.bf16.mxu0 0
      %3327 = vmatpush1.bf16.msra.mxu0 0
      %3328 = vmatprep.mubr.bf16.mxu0 0
      %3329 = vmatmul.mubr.bf16.gmra.mrb[0].mxu0 %v2398
      %v3330 = vpop.f32.mrb[0].mxu0
      %v3331 = vadd.f32 0.0, %v3330
      %v3332 = vpop.f32.mrb[0].mxu0
      %v3333 = vpop.f32.mrb[0].mxu0
      %v3334 = vadd.f32 0.0, %v3333
      %v3335 = vpop.f32.mrb[0].mxu0
      %3336 = vmatprep.mubr.bf16.mxu0 0
      %3337 = vmatmul.mubr.bf16.gmra.mrb[0].mxu0 %v2399
      %v3338 = vpop.f32.mrb[0].mxu0
      %v3339 = vadd.f32 0.0, %v3338
      %v3340 = vpop.f32.mrb[0].mxu0
      %v3341 = vpop.f32.mrb[0].mxu0
      %v3342 = vadd.f32 0.0, %v3341
      %v3343 = vpop.f32.mrb[0].mxu0
      %3344 = vmatprep.mubr.bf16.mxu0 0
      %3345 = vmatmul.mubr.bf16.gmra.mrb[0].mxu0 %v2400
      %v3346 = vpop.f32.mrb[0].mxu0
      %v3347 = vadd.f32 0.0, %v3346
      %v3348 = vpop.f32.mrb[0].mxu0
      %v3349 = vpop.f32.mrb[0].mxu0
      %v3350 = vadd.f32 0.0, %v3349
      %v3351 = vpop.f32.mrb[0].mxu0
      %3352 = vmatprep.mubr.bf16.mxu0 0
      %3353 = vmatmul.mubr.bf16.gmra.mrb[0].mxu0 %v3031
      %v3354 = vpop.f32.mrb[0].mxu0
      %v3355 = vadd.f32 0.0, %v3354
      %v3356 = vpop.f32.mrb[0].mxu0
      %v3357 = vpop.f32.mrb[0].mxu0
      %v3358 = vadd.f32 0.0, %v3357
      %v3359 = vpop.f32.mrb[0].mxu0
      %3360 = vdwg.mxu0
      %v3361 = vadd.f32 %v3223, %v3331
      %v3362 = vadd.f32 %v3224, %v3334
      %v3363 = vadd.f32 %v3225, %v3339
      %v3364 = vadd.f32 %v3226, %v3342
      %v3365 = vadd.f32 %v3227, %v3347
      %v3366 = vadd.f32 %v3228, %v3350
      %v3367 = vadd.f32 %v3229, %v3355
      %v3368 = vadd.f32 %v3230, %v3358
      %v3369 = vld [vmem:[#allocation2 + $0x8] sm:$0xff]
      %v3370 = vld [vmem:[#allocation2 + $0x10] sm:$0xff]
      %v3371 = vld [vmem:[#allocation2 + $0x18] sm:$0xff]
      %v3372 = vld [vmem:[#allocation2 + $0x20] sm:$0xff]
      %v3373 = vld [vmem:[#allocation2 + $0x28] sm:$0x1]
      %v3374 = vrot.slane %v2800, 7
      %v3375 = vor.u32 %v3374, %v2803
      %v3376 = vrot.slane %v2808, 7
      %v3377 = vor.u32 %v3376, %v2811
      %v3378 = vsel %vm864, %v3374, %v3377
      %v3379 = vrot.slane %v2817, 7
      %v3380 = vor.u32 %v3379, %v2820
      %v3381 = vsel %vm864, %v3376, %v3380
      %v3382 = vrot.slane %v2826, 7
      %v3383 = vor.u32 %v3382, %v2829
      %v3384 = vsel %vm864, %v3379, %v3383
      %vm3385 = vcmp.ne.s16.totalorder %v3375, 0
      %vm3386 = vcmp.ne.s16.totalorder %v3378, 0
      %vm3387 = vcmp.ne.s16.totalorder %v3381, 0
      %vm3388 = vcmp.ne.s16.totalorder %v3384, 0
      %vm3389 = vcmp.ne.s16.totalorder %v3382, 0
      %v3390 = vsel %vm3385, %v3369, 0
      %v3391 = vsel %vm3386, %v3370, 0
      %v3392 = vsel %vm3387, %v3371, 0
      %v3393 = vsel %vm3388, %v3372, 0
      %v3394 = vsel %vm3389, %v3373, 0
      %s3395 = scalar_lea.vmem %s3, 320
      %v3396 = vld [vmem:[%s3395] sm:$0xf]
      %v3397 = vld [vmem:[%s3395 + $0x4] sm:$0xf]
      %v3398 = vld [vmem:[%s3395 + $0x8] sm:$0xf]
      %v3399 = vld [vmem:[%s3395 + $0xc] sm:$0xf]
      %v3400 = vld [vmem:[%s3395 + $0x10] sm:$0xf]
      %v3401 = vld [vmem:[%s3395 + $0x14] sm:$0xf]
      %v3402 = vld [vmem:[%s3395 + $0x18] sm:$0xf]
      %v3403 = vld [vmem:[%s3395 + $0x1c] sm:$0xf]
      %v3404 = vld [vmem:[%s3395 + $0x20] sm:$0xf]
      %v3405 = vld [vmem:[%s3395 + $0x24] sm:$0xf]
      %v3406 = vld [vmem:[%s3395 + $0x28] sm:$0xf]
      %v3407 = vld [vmem:[%s3395 + $0x2c] sm:$0xf]
      %v3408 = vld [vmem:[%s3395 + $0x30] sm:$0xf]
      %v3409 = vld [vmem:[%s3395 + $0x34] sm:$0xf]
      %v3410 = vld [vmem:[%s3395 + $0x38] sm:$0xf]
      %v3411 = vld [vmem:[%s3395 + $0x3c] sm:$0xf]
      %v3413 = vshrl.u32 %v3390, 16
      %v3415 = vshll.u32 %v3390, 16
      %v3417 = vrot.slane %v3415, 1
      %v3418 = vor.u32 %v3413, %v3417
      %v3420 = vshll.u32 %v3391, 16
      %v3422 = vrot.slane %v3420, 1
      %v3423 = vsel %vm996, %v3418, %v3422
      %v3424 = vshrl.u32 %v3391, 16
      %v3426 = vor.u32 %v3424, %v3422
      %v3428 = vshll.u32 %v3392, 16
      %v3430 = vrot.slane %v3428, 1
      %v3431 = vsel %vm996, %v3426, %v3430
      %v3432 = vshrl.u32 %v3392, 16
      %v3434 = vor.u32 %v3432, %v3430
      %v3436 = vshll.u32 %v3393, 16
      %v3438 = vrot.slane %v3436, 1
      %v3439 = vsel %vm996, %v3434, %v3438
      %v3440 = vshrl.u32 %v3393, 16
      %v3442 = vor.u32 %v3440, %v3438
      %v3444 = vshll.u32 %v3394, 16
      %v3446 = vrot.slane %v3444, 1
      %v3447 = vsel %vm996, %v3442, %v3446
      %v3468 = vunpack.c.l.b16 %v3396
      %v3469 = vunpack.c.l.b16 %v3397
      %v3470 = vunpack.c.l.b16 %v3398
      %v3471 = vunpack.c.l.b16 %v3399
      %v3472 = vunpack.c.l.b16 %v3400
      %v3473 = vunpack.c.l.b16 %v3401
      %v3474 = vunpack.c.l.b16 %v3402
      %v3475 = vunpack.c.l.b16 %v3403
      %v3476 = vunpack.c.l.b16 %v3404
      %v3477 = vunpack.c.l.b16 %v3405
      %v3478 = vunpack.c.l.b16 %v3406
      %v3479 = vunpack.c.l.b16 %v3407
      %v3480 = vunpack.c.l.b16 %v3408
      %v3481 = vunpack.c.l.b16 %v3409
      %v3482 = vunpack.c.l.b16 %v3410
      %v3483 = vunpack.c.l.b16 %v3411
      %v3484 = vpack.c.b16 %v3469, %v3468
      %v3485 = vpack.c.b16 %v3471, %v3470
      %v3486 = vpack.c.b16 %v3473, %v3472
      %v3487 = vpack.c.b16 %v3475, %v3474
      %v3488 = vpack.c.b16 %v3477, %v3476
      %v3489 = vpack.c.b16 %v3479, %v3478
      %v3490 = vpack.c.b16 %v3481, %v3480
      %v3491 = vpack.c.b16 %v3483, %v3482
      %3500 = vmatprep.subr.bf16.mxu0 0
      %3501 = vmatpush1.bf16.msra.mxu0 %v3484
      %3502 = vmatprep.subr.bf16.mxu0 0
      %3503 = vmatpush1.bf16.msra.mxu0 %v3485
      %3504 = vmatprep.subr.bf16.mxu0 0
      %3505 = vmatpush1.bf16.msra.mxu0 %v3486
      %3506 = vmatprep.subr.bf16.mxu0 0
      %3507 = vmatpush1.bf16.msra.mxu0 %v3487
      %3508 = vmatprep.subr.bf16.mxu0 0
      %3509 = vmatpush1.bf16.msra.mxu0 %v3488
      %3510 = vmatprep.subr.bf16.mxu0 0
      %3511 = vmatpush1.bf16.msra.mxu0 %v3489
      %3512 = vmatprep.subr.bf16.mxu0 0
      %3513 = vmatpush1.bf16.msra.mxu0 %v3490
      %3514 = vmatprep.subr.bf16.mxu0 0
      %3515 = vmatpush1.bf16.msra.mxu0 %v3491
      %3516 = vmatprep.subr.bf16.mxu0 0
      %3517 = vmatpush1.bf16.msra.mxu0 0
      %3518 = vmatprep.subr.bf16.mxu0 0
      %3519 = vmatpush1.bf16.msra.mxu0 0
      %3520 = vmatprep.subr.bf16.mxu0 0
      %3521 = vmatpush1.bf16.msra.mxu0 0
      %3522 = vmatprep.subr.bf16.mxu0 0
      %3523 = vmatpush1.bf16.msra.mxu0 0
      %3524 = vmatprep.subr.bf16.mxu0 0
      %3525 = vmatpush1.bf16.msra.mxu0 0
      %3526 = vmatprep.subr.bf16.mxu0 0
      %3527 = vmatpush1.bf16.msra.mxu0 0
      %3528 = vmatprep.subr.bf16.mxu0 0
      %3529 = vmatpush1.bf16.msra.mxu0 0
      %3530 = vmatprep.subr.bf16.mxu0 0
      %3531 = vmatpush1.bf16.msra.mxu0 0
      %3532 = vmatprep.mubr.bf16.mxu0 0
      %3533 = vmatmul.mubr.bf16.gmra.mrb[0].mxu0 %v3423
      %v3534 = vpop.f32.mrb[0].mxu0
      %v3535 = vadd.f32 0.0, %v3534
      %v3536 = vpop.f32.mrb[0].mxu0
      %v3537 = vpop.f32.mrb[0].mxu0
      %v3538 = vadd.f32 0.0, %v3537
      %v3539 = vpop.f32.mrb[0].mxu0
      %3540 = vmatprep.mubr.bf16.mxu0 0
      %3541 = vmatmul.mubr.bf16.gmra.mrb[0].mxu0 %v3431
      %v3542 = vpop.f32.mrb[0].mxu0
      %v3543 = vadd.f32 0.0, %v3542
      %v3544 = vpop.f32.mrb[0].mxu0
      %v3545 = vpop.f32.mrb[0].mxu0
      %v3546 = vadd.f32 0.0, %v3545
      %v3547 = vpop.f32.mrb[0].mxu0
      %3548 = vmatprep.mubr.bf16.mxu0 0
      %3549 = vmatmul.mubr.bf16.gmra.mrb[0].mxu0 %v3439
      %v3550 = vpop.f32.mrb[0].mxu0
      %v3551 = vadd.f32 0.0, %v3550
      %v3552 = vpop.f32.mrb[0].mxu0
      %v3553 = vpop.f32.mrb[0].mxu0
      %v3554 = vadd.f32 0.0, %v3553
      %v3555 = vpop.f32.mrb[0].mxu0
      %3556 = vmatprep.mubr.bf16.mxu0 0
      %3557 = vmatmul.mubr.bf16.gmra.mrb[0].mxu0 %v3447
      %v3558 = vpop.f32.mrb[0].mxu0
      %v3559 = vadd.f32 0.0, %v3558
      %v3560 = vpop.f32.mrb[0].mxu0
      %v3561 = vpop.f32.mrb[0].mxu0
      %v3562 = vadd.f32 0.0, %v3561
      %v3563 = vpop.f32.mrb[0].mxu0
      %3564 = vdwg.mxu0
      %v3565 = vadd.f32 %v3361, %v3535
      %v3566 = vadd.f32 %v3362, %v3538
      %v3567 = vadd.f32 %v3363, %v3543
      %v3568 = vadd.f32 %v3364, %v3546
      %v3569 = vadd.f32 %v3365, %v3551
      %v3570 = vadd.f32 %v3366, %v3554
      %v3571 = vadd.f32 %v3367, %v3559
      %v3572 = vadd.f32 %v3368, %v3562
      %v3573 = vld [vmem:[#allocation2 + $0x8] sm:$0xf8]
      %v3574 = vld [vmem:[#allocation2 + $0x28] sm:$0xf]
      %v3575 = vsel %vm2449, %v3573, 0
      %v3576 = vsel %vm2450, %v3370, 0
      %v3577 = vsel %vm2451, %v3371, 0
      %v3578 = vsel %vm2452, %v3372, 0
      %v3579 = vsel %vm2453, %v3574, 0
      %s3580 = scalar_lea.vmem %s3, 384
      %v3581 = vld [vmem:[%s3580] sm:$0xf]
      %v3582 = vld [vmem:[%s3580 + $0x4] sm:$0xf]
      %v3583 = vld [vmem:[%s3580 + $0x8] sm:$0xf]
      %v3584 = vld [vmem:[%s3580 + $0xc] sm:$0xf]
      %v3585 = vld [vmem:[%s3580 + $0x10] sm:$0xf]
      %v3586 = vld [vmem:[%s3580 + $0x14] sm:$0xf]
      %v3587 = vld [vmem:[%s3580 + $0x18] sm:$0xf]
      %v3588 = vld [vmem:[%s3580 + $0x1c] sm:$0xf]
      %v3589 = vld [vmem:[%s3580 + $0x20] sm:$0xf]
      %v3590 = vld [vmem:[%s3580 + $0x24] sm:$0xf]
      %v3591 = vld [vmem:[%s3580 + $0x28] sm:$0xf]
      %v3592 = vld [vmem:[%s3580 + $0x2c] sm:$0xf]
      %v3593 = vld [vmem:[%s3580 + $0x30] sm:$0xf]
      %v3594 = vld [vmem:[%s3580 + $0x34] sm:$0xf]
      %v3595 = vld [vmem:[%s3580 + $0x38] sm:$0xf]
      %v3596 = vld [vmem:[%s3580 + $0x3c] sm:$0xf]
      %v3598 = vshrl.u32 %v3575, 16
      %v3600 = vrot.slane %v3598, 3
      %v3601 = vshll.u32 %v3575, 16
      %v3603 = vrot.slane %v3601, 4
      %v3604 = vor.u32 %v3600, %v3603
      %v3606 = vshrl.u32 %v3576, 16
      %v3608 = vrot.slane %v3606, 3
      %v3609 = vshll.u32 %v3576, 16
      %v3611 = vrot.slane %v3609, 4
      %v3612 = vor.u32 %v3608, %v3611
      %v3613 = vsel %vm637, %v3604, %v3612
      %v3615 = vshrl.u32 %v3577, 16
      %v3617 = vrot.slane %v3615, 3
      %v3618 = vshll.u32 %v3577, 16
      %v3620 = vrot.slane %v3618, 4
      %v3621 = vor.u32 %v3617, %v3620
      %v3622 = vsel %vm637, %v3612, %v3621
      %v3624 = vshrl.u32 %v3578, 16
      %v3626 = vrot.slane %v3624, 3
      %v3627 = vshll.u32 %v3578, 16
      %v3629 = vrot.slane %v3627, 4
      %v3630 = vor.u32 %v3626, %v3629
      %v3631 = vsel %vm637, %v3621, %v3630
      %v3633 = vshrl.u32 %v3579, 16
      %v3635 = vrot.slane %v3633, 3
      %v3636 = vshll.u32 %v3579, 16
      %v3638 = vrot.slane %v3636, 4
      %v3639 = vor.u32 %v3635, %v3638
      %v3640 = vsel %vm637, %v3630, %v3639
      %v3661 = vunpack.c.l.b16 %v3581
      %v3662 = vunpack.c.l.b16 %v3582
      %v3663 = vunpack.c.l.b16 %v3583
      %v3664 = vunpack.c.l.b16 %v3584
      %v3665 = vunpack.c.l.b16 %v3585
      %v3666 = vunpack.c.l.b16 %v3586
      %v3667 = vunpack.c.l.b16 %v3587
      %v3668 = vunpack.c.l.b16 %v3588
      %v3669 = vunpack.c.l.b16 %v3589
      %v3670 = vunpack.c.l.b16 %v3590
      %v3671 = vunpack.c.l.b16 %v3591
      %v3672 = vunpack.c.l.b16 %v3592
      %v3673 = vunpack.c.l.b16 %v3593
      %v3674 = vunpack.c.l.b16 %v3594
      %v3675 = vunpack.c.l.b16 %v3595
      %v3676 = vunpack.c.l.b16 %v3596
      %v3677 = vpack.c.b16 %v3662, %v3661
      %v3678 = vpack.c.b16 %v3664, %v3663
      %v3679 = vpack.c.b16 %v3666, %v3665
      %v3680 = vpack.c.b16 %v3668, %v3667
      %v3681 = vpack.c.b16 %v3670, %v3669
      %v3682 = vpack.c.b16 %v3672, %v3671
      %v3683 = vpack.c.b16 %v3674, %v3673
      %v3684 = vpack.c.b16 %v3676, %v3675
      %3693 = vmatprep.subr.bf16.mxu0 0
      %3694 = vmatpush1.bf16.msra.mxu0 %v3677
      %3695 = vmatprep.subr.bf16.mxu0 0
      %3696 = vmatpush1.bf16.msra.mxu0 %v3678
      %3697 = vmatprep.subr.bf16.mxu0 0
      %3698 = vmatpush1.bf16.msra.mxu0 %v3679
      %3699 = vmatprep.subr.bf16.mxu0 0
      %3700 = vmatpush1.bf16.msra.mxu0 %v3680
      %3701 = vmatprep.subr.bf16.mxu0 0
      %3702 = vmatpush1.bf16.msra.mxu0 %v3681
      %3703 = vmatprep.subr.bf16.mxu0 0
      %3704 = vmatpush1.bf16.msra.mxu0 %v3682
      %3705 = vmatprep.subr.bf16.mxu0 0
      %3706 = vmatpush1.bf16.msra.mxu0 %v3683
      %3707 = vmatprep.subr.bf16.mxu0 0
      %3708 = vmatpush1.bf16.msra.mxu0 %v3684
      %3709 = vmatprep.subr.bf16.mxu0 0
      %3710 = vmatpush1.bf16.msra.mxu0 0
      %3711 = vmatprep.subr.bf16.mxu0 0
      %3712 = vmatpush1.bf16.msra.mxu0 0
      %3713 = vmatprep.subr.bf16.mxu0 0
      %3714 = vmatpush1.bf16.msra.mxu0 0
      %3715 = vmatprep.subr.bf16.mxu0 0
      %3716 = vmatpush1.bf16.msra.mxu0 0
      %3717 = vmatprep.subr.bf16.mxu0 0
      %3718 = vmatpush1.bf16.msra.mxu0 0
      %3719 = vmatprep.subr.bf16.mxu0 0
      %3720 = vmatpush1.bf16.msra.mxu0 0
      %3721 = vmatprep.subr.bf16.mxu0 0
      %3722 = vmatpush1.bf16.msra.mxu0 0
      %3723 = vmatprep.subr.bf16.mxu0 0
      %3724 = vmatpush1.bf16.msra.mxu0 0
      %3725 = vmatprep.mubr.bf16.mxu0 0
      %3726 = vmatmul.mubr.bf16.gmra.mrb[0].mxu0 %v3613
      %v3727 = vpop.f32.mrb[0].mxu0
      %v3728 = vadd.f32 0.0, %v3727
      %v3729 = vpop.f32.mrb[0].mxu0
      %v3730 = vpop.f32.mrb[0].mxu0
      %v3731 = vadd.f32 0.0, %v3730
      %v3732 = vpop.f32.mrb[0].mxu0
      %3733 = vmatprep.mubr.bf16.mxu0 0
      %3734 = vmatmul.mubr.bf16.gmra.mrb[0].mxu0 %v3622
      %v3735 = vpop.f32.mrb[0].mxu0
      %v3736 = vadd.f32 0.0, %v3735
      %v3737 = vpop.f32.mrb[0].mxu0
      %v3738 = vpop.f32.mrb[0].mxu0
      %v3739 = vadd.f32 0.0, %v3738
      %v3740 = vpop.f32.mrb[0].mxu0
      %3741 = vmatprep.mubr.bf16.mxu0 0
      %3742 = vmatmul.mubr.bf16.gmra.mrb[0].mxu0 %v3631
      %v3743 = vpop.f32.mrb[0].mxu0
      %v3744 = vadd.f32 0.0, %v3743
      %v3745 = vpop.f32.mrb[0].mxu0
      %v3746 = vpop.f32.mrb[0].mxu0
      %v3747 = vadd.f32 0.0, %v3746
      %v3748 = vpop.f32.mrb[0].mxu0
      %3749 = vmatprep.mubr.bf16.mxu0 0
      %3750 = vmatmul.mubr.bf16.gmra.mrb[0].mxu0 %v3640
      %v3751 = vpop.f32.mrb[0].mxu0
      %v3752 = vadd.f32 0.0, %v3751
      %v3753 = vpop.f32.mrb[0].mxu0
      %v3754 = vpop.f32.mrb[0].mxu0
      %v3755 = vadd.f32 0.0, %v3754
      %v3756 = vpop.f32.mrb[0].mxu0
      %3757 = vdwg.mxu0
      %v3758 = vadd.f32 %v3565, %v3728
      %v3759 = vadd.f32 %v3566, %v3731
      %v3760 = vadd.f32 %v3567, %v3736
      %v3761 = vadd.f32 %v3568, %v3739
      %v3762 = vadd.f32 %v3569, %v3744
      %v3763 = vadd.f32 %v3570, %v3747
      %v3764 = vadd.f32 %v3571, %v3752
      %v3765 = vadd.f32 %v3572, %v3755
      %v3766 = vld [vmem:[#allocation2 + $0x8] sm:$0xf0]
      %s3767 = scalar_lea.vmem %s3, 448
      %v3768 = vld [vmem:[%s3767] sm:$0xf]
      %v3769 = vld [vmem:[%s3767 + $0x4] sm:$0xf]
      %v3770 = vld [vmem:[%s3767 + $0x8] sm:$0xf]
      %v3771 = vld [vmem:[%s3767 + $0xc] sm:$0xf]
      %v3772 = vld [vmem:[%s3767 + $0x10] sm:$0xf]
      %v3773 = vld [vmem:[%s3767 + $0x14] sm:$0xf]
      %v3774 = vld [vmem:[%s3767 + $0x18] sm:$0xf]
      %v3775 = vld [vmem:[%s3767 + $0x1c] sm:$0xf]
      %v3776 = vld [vmem:[%s3767 + $0x20] sm:$0xf]
      %v3777 = vld [vmem:[%s3767 + $0x24] sm:$0xf]
      %v3778 = vld [vmem:[%s3767 + $0x28] sm:$0xf]
      %v3779 = vld [vmem:[%s3767 + $0x2c] sm:$0xf]
      %v3780 = vld [vmem:[%s3767 + $0x30] sm:$0xf]
      %v3781 = vld [vmem:[%s3767 + $0x34] sm:$0xf]
      %v3782 = vld [vmem:[%s3767 + $0x38] sm:$0xf]
      %v3783 = vld [vmem:[%s3767 + $0x3c] sm:$0xf]
      %v3789 = vrot.slane %v3766, 4
      %v3790 = vrot.slane %v3370, 4
      %v3791 = vsel %vm2498, %v3789, %v3790
      %v3792 = vrot.slane %v3371, 4
      %v3793 = vsel %vm2498, %v3790, %v3792
      %v3794 = vrot.slane %v3372, 4
      %v3795 = vsel %vm2498, %v3792, %v3794
      %v3796 = vrot.slane %v3574, 4
      %v3797 = vsel %vm2498, %v3794, %v3796
      %v3818 = vunpack.c.l.b16 %v3768
      %v3819 = vunpack.c.l.b16 %v3769
      %v3820 = vunpack.c.l.b16 %v3770
      %v3821 = vunpack.c.l.b16 %v3771
      %v3822 = vunpack.c.l.b16 %v3772
      %v3823 = vunpack.c.l.b16 %v3773
      %v3824 = vunpack.c.l.b16 %v3774
      %v3825 = vunpack.c.l.b16 %v3775
      %v3826 = vunpack.c.l.b16 %v3776
      %v3827 = vunpack.c.l.b16 %v3777
      %v3828 = vunpack.c.l.b16 %v3778
      %v3829 = vunpack.c.l.b16 %v3779
      %v3830 = vunpack.c.l.b16 %v3780
      %v3831 = vunpack.c.l.b16 %v3781
      %v3832 = vunpack.c.l.b16 %v3782
      %v3833 = vunpack.c.l.b16 %v3783
      %v3834 = vpack.c.b16 %v3819, %v3818
      %v3835 = vpack.c.b16 %v3821, %v3820
      %v3836 = vpack.c.b16 %v3823, %v3822
      %v3837 = vpack.c.b16 %v3825, %v3824
      %v3838 = vpack.c.b16 %v3827, %v3826
      %v3839 = vpack.c.b16 %v3829, %v3828
      %v3840 = vpack.c.b16 %v3831, %v3830
      %v3841 = vpack.c.b16 %v3833, %v3832
      %3850 = vmatprep.subr.bf16.mxu0 0
      %3851 = vmatpush1.bf16.msra.mxu0 %v3834
      %3852 = vmatprep.subr.bf16.mxu0 0
      %3853 = vmatpush1.bf16.msra.mxu0 %v3835
      %3854 = vmatprep.subr.bf16.mxu0 0
      %3855 = vmatpush1.bf16.msra.mxu0 %v3836
      %3856 = vmatprep.subr.bf16.mxu0 0
      %3857 = vmatpush1.bf16.msra.mxu0 %v3837
      %3858 = vmatprep.subr.bf16.mxu0 0
      %3859 = vmatpush1.bf16.msra.mxu0 %v3838
      %3860 = vmatprep.subr.bf16.mxu0 0
      %3861 = vmatpush1.bf16.msra.mxu0 %v3839
      %3862 = vmatprep.subr.bf16.mxu0 0
      %3863 = vmatpush1.bf16.msra.mxu0 %v3840
      %3864 = vmatprep.subr.bf16.mxu0 0
      %3865 = vmatpush1.bf16.msra.mxu0 %v3841
      %3866 = vmatprep.subr.bf16.mxu0 0
      %3867 = vmatpush1.bf16.msra.mxu0 0
      %3868 = vmatprep.subr.bf16.mxu0 0
      %3869 = vmatpush1.bf16.msra.mxu0 0
      %3870 = vmatprep.subr.bf16.mxu0 0
      %3871 = vmatpush1.bf16.msra.mxu0 0
      %3872 = vmatprep.subr.bf16.mxu0 0
      %3873 = vmatpush1.bf16.msra.mxu0 0
      %3874 = vmatprep.subr.bf16.mxu0 0
      %3875 = vmatpush1.bf16.msra.mxu0 0
      %3876 = vmatprep.subr.bf16.mxu0 0
      %3877 = vmatpush1.bf16.msra.mxu0 0
      %3878 = vmatprep.subr.bf16.mxu0 0
      %3879 = vmatpush1.bf16.msra.mxu0 0
      %3880 = vmatprep.subr.bf16.mxu0 0
      %3881 = vmatpush1.bf16.msra.mxu0 0
      %3882 = vmatprep.mubr.bf16.mxu0 0
      %3883 = vmatmul.mubr.bf16.gmra.mrb[0].mxu0 %v3791
      %v3884 = vpop.f32.mrb[0].mxu0
      %v3885 = vadd.f32 0.0, %v3884
      %v3886 = vpop.f32.mrb[0].mxu0
      %v3887 = vpop.f32.mrb[0].mxu0
      %v3888 = vadd.f32 0.0, %v3887
      %v3889 = vpop.f32.mrb[0].mxu0
      %3890 = vmatprep.mubr.bf16.mxu0 0
      %3891 = vmatmul.mubr.bf16.gmra.mrb[0].mxu0 %v3793
      %v3892 = vpop.f32.mrb[0].mxu0
      %v3893 = vadd.f32 0.0, %v3892
      %v3894 = vpop.f32.mrb[0].mxu0
      %v3895 = vpop.f32.mrb[0].mxu0
      %v3896 = vadd.f32 0.0, %v3895
      %v3897 = vpop.f32.mrb[0].mxu0
      %3898 = vmatprep.mubr.bf16.mxu0 0
      %3899 = vmatmul.mubr.bf16.gmra.mrb[0].mxu0 %v3795
      %v3900 = vpop.f32.mrb[0].mxu0
      %v3901 = vadd.f32 0.0, %v3900
      %v3902 = vpop.f32.mrb[0].mxu0
      %v3903 = vpop.f32.mrb[0].mxu0
      %v3904 = vadd.f32 0.0, %v3903
      %v3905 = vpop.f32.mrb[0].mxu0
      %3906 = vmatprep.mubr.bf16.mxu0 0
      %3907 = vmatmul.mubr.bf16.gmra.mrb[0].mxu0 %v3797
      %v3908 = vpop.f32.mrb[0].mxu0
      %v3909 = vadd.f32 0.0, %v3908
      %v3910 = vpop.f32.mrb[0].mxu0
      %v3911 = vpop.f32.mrb[0].mxu0
      %v3912 = vadd.f32 0.0, %v3911
      %v3913 = vpop.f32.mrb[0].mxu0
      %3914 = vdwg.mxu0
      %v3915 = vadd.f32 %v3758, %v3885
      %v3916 = vadd.f32 %v3759, %v3888
      %v3917 = vadd.f32 %v3760, %v3893
      %v3918 = vadd.f32 %v3761, %v3896
      %v3919 = vadd.f32 %v3762, %v3901
      %v3920 = vadd.f32 %v3763, %v3904
      %v3921 = vadd.f32 %v3764, %v3909
      %v3922 = vadd.f32 %v3765, %v3912
      %v3923 = vld [vmem:[#allocation2 + $0x28] sm:$0x1f]
      %v3924 = vsel %vm2834, %v3766, 0
      %v3925 = vsel %vm2835, %v3370, 0
      %v3926 = vsel %vm2836, %v3371, 0
      %v3927 = vsel %vm2837, %v3372, 0
      %v3928 = vsel %vm2838, %v3923, 0
      %s3929 = scalar_lea.vmem %s3, 512
      %v3930 = vld [vmem:[%s3929] sm:$0xf]
      %v3931 = vld [vmem:[%s3929 + $0x4] sm:$0xf]
      %v3932 = vld [vmem:[%s3929 + $0x8] sm:$0xf]
      %v3933 = vld [vmem:[%s3929 + $0xc] sm:$0xf]
      %v3934 = vld [vmem:[%s3929 + $0x10] sm:$0xf]
      %v3935 = vld [vmem:[%s3929 + $0x14] sm:$0xf]
      %v3936 = vld [vmem:[%s3929 + $0x18] sm:$0xf]
      %v3937 = vld [vmem:[%s3929 + $0x1c] sm:$0xf]
      %v3938 = vld [vmem:[%s3929 + $0x20] sm:$0xf]
      %v3939 = vld [vmem:[%s3929 + $0x24] sm:$0xf]
      %v3940 = vld [vmem:[%s3929 + $0x28] sm:$0xf]
      %v3941 = vld [vmem:[%s3929 + $0x2c] sm:$0xf]
      %v3942 = vld [vmem:[%s3929 + $0x30] sm:$0xf]
      %v3943 = vld [vmem:[%s3929 + $0x34] sm:$0xf]
      %v3944 = vld [vmem:[%s3929 + $0x38] sm:$0xf]
      %v3945 = vld [vmem:[%s3929 + $0x3c] sm:$0xf]
      %v3947 = vshrl.u32 %v3924, 16
      %v3949 = vrot.slane %v3947, 4
      %v3950 = vshll.u32 %v3924, 16
      %v3952 = vrot.slane %v3950, 5
      %v3953 = vor.u32 %v3949, %v3952
      %v3955 = vshrl.u32 %v3925, 16
      %v3957 = vrot.slane %v3955, 4
      %v3958 = vshll.u32 %v3925, 16
      %v3960 = vrot.slane %v3958, 5
      %v3961 = vor.u32 %v3957, %v3960
      %v3962 = vsel %vm344, %v3953, %v3961
      %v3964 = vshrl.u32 %v3926, 16
      %v3966 = vrot.slane %v3964, 4
      %v3967 = vshll.u32 %v3926, 16
      %v3969 = vrot.slane %v3967, 5
      %v3970 = vor.u32 %v3966, %v3969
      %v3971 = vsel %vm344, %v3961, %v3970
      %v3973 = vshrl.u32 %v3927, 16
      %v3975 = vrot.slane %v3973, 4
      %v3976 = vshll.u32 %v3927, 16
      %v3978 = vrot.slane %v3976, 5
      %v3979 = vor.u32 %v3975, %v3978
      %v3980 = vsel %vm344, %v3970, %v3979
      %v3982 = vshrl.u32 %v3928, 16
      %v3984 = vrot.slane %v3982, 4
      %v3985 = vshll.u32 %v3928, 16
      %v3987 = vrot.slane %v3985, 5
      %v3988 = vor.u32 %v3984, %v3987
      %v3989 = vsel %vm344, %v3979, %v3988
      %v4010 = vunpack.c.l.b16 %v3930
      %v4011 = vunpack.c.l.b16 %v3931
      %v4012 = vunpack.c.l.b16 %v3932
      %v4013 = vunpack.c.l.b16 %v3933
      %v4014 = vunpack.c.l.b16 %v3934
      %v4015 = vunpack.c.l.b16 %v3935
      %v4016 = vunpack.c.l.b16 %v3936
      %v4017 = vunpack.c.l.b16 %v3937
      %v4018 = vunpack.c.l.b16 %v3938
      %v4019 = vunpack.c.l.b16 %v3939
      %v4020 = vunpack.c.l.b16 %v3940
      %v4021 = vunpack.c.l.b16 %v3941
      %v4022 = vunpack.c.l.b16 %v3942
      %v4023 = vunpack.c.l.b16 %v3943
      %v4024 = vunpack.c.l.b16 %v3944
      %v4025 = vunpack.c.l.b16 %v3945
      %v4026 = vpack.c.b16 %v4011, %v4010
      %v4027 = vpack.c.b16 %v4013, %v4012
      %v4028 = vpack.c.b16 %v4015, %v4014
      %v4029 = vpack.c.b16 %v4017, %v4016
      %v4030 = vpack.c.b16 %v4019, %v4018
      %v4031 = vpack.c.b16 %v4021, %v4020
      %v4032 = vpack.c.b16 %v4023, %v4022
      %v4033 = vpack.c.b16 %v4025, %v4024
      %4042 = vmatprep.subr.bf16.mxu0 0
      %4043 = vmatpush1.bf16.msra.mxu0 %v4026
      %4044 = vmatprep.subr.bf16.mxu0 0
      %4045 = vmatpush1.bf16.msra.mxu0 %v4027
      %4046 = vmatprep.subr.bf16.mxu0 0
      %4047 = vmatpush1.bf16.msra.mxu0 %v4028
      %4048 = vmatprep.subr.bf16.mxu0 0
      %4049 = vmatpush1.bf16.msra.mxu0 %v4029
      %4050 = vmatprep.subr.bf16.mxu0 0
      %4051 = vmatpush1.bf16.msra.mxu0 %v4030
      %4052 = vmatprep.subr.bf16.mxu0 0
      %4053 = vmatpush1.bf16.msra.mxu0 %v4031
      %4054 = vmatprep.subr.bf16.mxu0 0
      %4055 = vmatpush1.bf16.msra.mxu0 %v4032
      %4056 = vmatprep.subr.bf16.mxu0 0
      %4057 = vmatpush1.bf16.msra.mxu0 %v4033
      %4058 = vmatprep.subr.bf16.mxu0 0
      %4059 = vmatpush1.bf16.msra.mxu0 0
      %4060 = vmatprep.subr.bf16.mxu0 0
      %4061 = vmatpush1.bf16.msra.mxu0 0
      %4062 = vmatprep.subr.bf16.mxu0 0
      %4063 = vmatpush1.bf16.msra.mxu0 0
      %4064 = vmatprep.subr.bf16.mxu0 0
      %4065 = vmatpush1.bf16.msra.mxu0 0
      %4066 = vmatprep.subr.bf16.mxu0 0
      %4067 = vmatpush1.bf16.msra.mxu0 0
      %4068 = vmatprep.subr.bf16.mxu0 0
      %4069 = vmatpush1.bf16.msra.mxu0 0
      %4070 = vmatprep.subr.bf16.mxu0 0
      %4071 = vmatpush1.bf16.msra.mxu0 0
      %4072 = vmatprep.subr.bf16.mxu0 0
      %4073 = vmatpush1.bf16.msra.mxu0 0
      %4074 = vmatprep.mubr.bf16.mxu0 0
      %4075 = vmatmul.mubr.bf16.gmra.mrb[0].mxu0 %v3962
      %v4076 = vpop.f32.mrb[0].mxu0
      %v4077 = vadd.f32 0.0, %v4076
      %v4078 = vpop.f32.mrb[0].mxu0
      %v4079 = vpop.f32.mrb[0].mxu0
      %v4080 = vadd.f32 0.0, %v4079
      %v4081 = vpop.f32.mrb[0].mxu0
      %4082 = vmatprep.mubr.bf16.mxu0 0
      %4083 = vmatmul.mubr.bf16.gmra.mrb[0].mxu0 %v3971
      %v4084 = vpop.f32.mrb[0].mxu0
      %v4085 = vadd.f32 0.0, %v4084
      %v4086 = vpop.f32.mrb[0].mxu0
      %v4087 = vpop.f32.mrb[0].mxu0
      %v4088 = vadd.f32 0.0, %v4087
      %v4089 = vpop.f32.mrb[0].mxu0
      %4090 = vmatprep.mubr.bf16.mxu0 0
      %4091 = vmatmul.mubr.bf16.gmra.mrb[0].mxu0 %v3980
      %v4092 = vpop.f32.mrb[0].mxu0
      %v4093 = vadd.f32 0.0, %v4092
      %v4094 = vpop.f32.mrb[0].mxu0
      %v4095 = vpop.f32.mrb[0].mxu0
      %v4096 = vadd.f32 0.0, %v4095
      %v4097 = vpop.f32.mrb[0].mxu0
      %4098 = vmatprep.mubr.bf16.mxu0 0
      %4099 = vmatmul.mubr.bf16.gmra.mrb[0].mxu0 %v3989
      %v4100 = vpop.f32.mrb[0].mxu0
      %v4101 = vadd.f32 0.0, %v4100
      %v4102 = vpop.f32.mrb[0].mxu0
      %v4103 = vpop.f32.mrb[0].mxu0
      %v4104 = vadd.f32 0.0, %v4103
      %v4105 = vpop.f32.mrb[0].mxu0
      %4106 = vdwg.mxu0
      %v4107 = vadd.f32 %v3915, %v4077
      %v4108 = vadd.f32 %v3916, %v4080
      %v4109 = vadd.f32 %v3917, %v4085
      %v4110 = vadd.f32 %v3918, %v4088
      %v4111 = vadd.f32 %v3919, %v4093
      %v4112 = vadd.f32 %v3920, %v4096
      %v4113 = vadd.f32 %v3921, %v4101
      %v4114 = vadd.f32 %v3922, %v4104
      %v4115 = vld [vmem:[%s246 + $0x8] sm:$0xf]
      %v4116 = vld [vmem:[%s246 + $0xc] sm:$0xf]
      %v4117 = vld [vmem:[%s246 + $0x10] sm:$0xf]
      %v4118 = vld [vmem:[%s246 + $0x14] sm:$0xf]
      %v4119 = vld [vmem:[%s246 + $0x18] sm:$0xf]
      %v4120 = vld [vmem:[%s246 + $0x1c] sm:$0xf]
      %v4121 = vld [vmem:[%s246 + $0x20] sm:$0xf]
      %v4122 = vld [vmem:[%s246 + $0x24] sm:$0xf]
      %v4123 = vunpack.c.l.bf16 %v4115
      %v4124 = vunpack.c.l.bf16 %v4116
      %v4125 = vunpack.c.l.bf16 %v4117
      %v4126 = vunpack.c.l.bf16 %v4118
      %v4127 = vunpack.c.l.bf16 %v4119
      %v4128 = vunpack.c.l.bf16 %v4120
      %v4129 = vunpack.c.l.bf16 %v4121
      %v4130 = vunpack.c.l.bf16 %v4122
      %v4131 = vld [vmem:[%s4] sm:$0x1]
      %v4133 = vlaneseq
      %v4134 = vshrl.u32 %v4133, 7
      %v4135 = vsub.s32 0, %v4134
      %v4136 = vrot.slane %v4131, %v4135
      %v4138 = vadd.f32 %v4107, %v4136
      %v4139 = vadd.f32 %v4108, %v4136
      %v4140 = vadd.f32 %v4109, %v4136
      %v4141 = vadd.f32 %v4110, %v4136
      %v4142 = vadd.f32 %v4111, %v4136
      %v4143 = vadd.f32 %v4112, %v4136
      %v4144 = vadd.f32 %v4113, %v4136
      %v4145 = vadd.f32 %v4114, %v4136
      %v4146 = vadd.f32 %v4138, %v4123
      %v4147 = vadd.f32 %v4139, %v4124
      %v4148 = vadd.f32 %v4140, %v4125
      %v4149 = vadd.f32 %v4141, %v4126
      %v4150 = vadd.f32 %v4142, %v4127
      %v4151 = vadd.f32 %v4143, %v4128
      %v4152 = vadd.f32 %v4144, %v4129
      %v4153 = vadd.f32 %v4145, %v4130
      %v4154 = vmax.f32 %v4146, 0.0
      %v4155 = vmax.f32 %v4147, 0.0
      %v4156 = vmax.f32 %v4148, 0.0
      %v4157 = vmax.f32 %v4149, 0.0
      %v4158 = vmax.f32 %v4150, 0.0
      %v4159 = vmax.f32 %v4151, 0.0
      %v4160 = vmax.f32 %v4152, 0.0
      %v4161 = vmax.f32 %v4153, 0.0
      %4162 = vst [vmem:[%s251] sm:$0xf] 0
      %4163 = vst [vmem:[%s251 + $0x4] sm:$0xf] 0
      %4164 = vst [vmem:[%s251 + $0x8] sm:$0xf] 0
      %4165 = vst [vmem:[%s251 + $0xc] sm:$0xf] 0
      %4166 = vst [vmem:[%s251 + $0x10] sm:$0xf] 0
      %4167 = vst [vmem:[%s251 + $0x14] sm:$0xf] 0
      %4168 = vst [vmem:[%s251 + $0x18] sm:$0xf] 0
      %4169 = vst [vmem:[%s251 + $0x1c] sm:$0xf] 0
      %4170 = vst [vmem:[%s251 + $0x20] sm:$0xf] 0
      %4171 = vst [vmem:[%s251 + $0x24] sm:$0xf] 0
      %4172 = vst [vmem:[%s251 + $0x28] sm:$0xf] 0
      %4173 = vst [vmem:[%s251 + $0x2c] sm:$0xf] 0
      %v4174 = vpack.c.bf16 %v4155, %v4154
      %v4175 = vpack.c.bf16 %v4157, %v4156
      %v4176 = vpack.c.bf16 %v4159, %v4158
      %v4177 = vpack.c.bf16 %v4161, %v4160
      %v4182 = vunpack.c.l.b16 %v4174
      %v4183 = vunpack.c.h.b16 %v4174
      %v4184 = vunpack.c.l.b16 %v4175
      %v4185 = vunpack.c.h.b16 %v4175
      %v4186 = vunpack.c.l.b16 %v4176
      %v4187 = vunpack.c.h.b16 %v4176
      %v4188 = vunpack.c.l.b16 %v4177
      %v4189 = vunpack.c.h.b16 %v4177
      %v4190 = vpack.c.b16 %v4182, %v4182
      %v4191 = vpack.c.b16 %v4183, %v4183
      %v4192 = vpack.c.b16 %v4184, %v4184
      %v4193 = vpack.c.b16 %v4185, %v4185
      %v4194 = vpack.c.b16 %v4186, %v4186
      %v4195 = vpack.c.b16 %v4187, %v4187
      %v4196 = vpack.c.b16 %v4188, %v4188
      %v4197 = vpack.c.b16 %v4189, %v4189
      %4206 = vst [vmem:[%s251 + $0x8] sm:$0xf] %v4190
      %4207 = vst [vmem:[%s251 + $0xc] sm:$0xf] %v4191
      %4208 = vst [vmem:[%s251 + $0x10] sm:$0xf] %v4192
      %4209 = vst [vmem:[%s251 + $0x14] sm:$0xf] %v4193
      %4210 = vst [vmem:[%s251 + $0x18] sm:$0xf] %v4194
      %4211 = vst [vmem:[%s251 + $0x1c] sm:$0xf] %v4195
      %4212 = vst [vmem:[%s251 + $0x20] sm:$0xf] %v4196
      %4213 = vst [vmem:[%s251 + $0x24] sm:$0xf] %v4197
      %p4214 = scmp.lt.s32.totalorder %s17, 1
      %s4215 = scalar_select %p4214, %s17, 1
      %s4216 = smul.addr %s4215, 12
      %s4217 = smul.addr %s4216, 4
      %s4218 = scalar_lea.vmem %s6, %s4217
      // Predicated region
      $region45: #{block_group_forward.3} parent=43 // pred_check
        %p4219 = pneg %p166
      $region46: #{block_group_forward.3} parent=43 // pred_check_branch
        %4221 = sbr.rel (%p4219) target = $region48
      $region47: #{block_group_forward.3} parent=43 // pred_region
        _
      $region48: #{block_group_forward.3} parent=43 // pred_fallthru
        _
    $region44: #{block_group_forward.3} parent=5 // pred_fallthru
      _
    %p4222 = scmp.le.s32.totalorder 2, %s12
    // Predicated region
    $region49: #{block_group_forward.3} parent=5 // pred_check
      %p4223 = pneg %p4222
    $region50: #{block_group_forward.3} parent=5 // pred_check_branch
      %4225 = sbr.rel (%p4223) target = $region52
    $region51: #{block_group_forward.3} parent=5 // pred_region
      %s4226 = ssub.s32 %s12, 2
      // Predicated region
      $region53: #{block_group_forward.3} parent=51 // pred_check
        %p4227 = pneg %p172
      $region54: #{block_group_forward.3} parent=51 // pred_check_branch
        %4229 = sbr.rel (%p4227) target = $region56
      $region55: #{block_group_forward.3} parent=51 // pred_region
        %p4230 = scmp.lt.s32.totalorder %s18, 1
        %s4231 = scalar_select %p4230, %s18, 1
        %s4232 = smul.addr %s4231, 12
        %s4233 = smul.addr %s4232, 4
        %s4234 = scalar_lea.vmem %s6, %s4233
      $region56: #{block_group_forward.3} parent=51 // pred_fallthru
        _
    $region52: #{block_group_forward.3} parent=5 // pred_fallthru
      _
  $region6: #{block_group_forward.3} parent=0 // loop_footer
    %s16 = sadd.s32 1, %s12
  $region7: #{block_group_forward.3} parent=0 // loop_footer_branch
    %11 = sbr.rel target = $region3
  $region8: #{block_group_forward.3} parent=0 // loop_exit
    _

</llo_original>
